<compile_context>
chip_gen: v7x
topology: tpu7x:2x2x1
jax: 0.10.0
libtpu: 0.0.40
codegen_flags: <defaults>
</compile_context>

<pallas_src>
import functools

import jax
import jax.numpy as jnp
from jax.experimental import pallas as pl
from jax.experimental.pallas import tpu as pltpu


LANES = 128                       # lane-dense output width (pad Cout to this)
VMEM_LIMIT = 32 * 1024 * 1024     # explicit scoped-VMEM budget (v7x-safe)
FUSED_BN_MAX_ROWS = 1024          # single-tile fused BN path below this M


# ----------------------------------------------------------------------------
# Synthetic Darknet cfg (equivalent to parse_cfg output), exercising
# convolutional / shortcut / route / upsample / yolo blocks.
# ----------------------------------------------------------------------------
CFG_BLOCKS = [
    {'type': 'net', 'height': '32', 'width': '32', 'channels': '3'},
    {'type': 'convolutional', 'batch_normalize': '1', 'filters': '8',
     'size': '3', 'stride': '1', 'pad': '1', 'activation': 'leaky'},           # 0: 32x32x8
    {'type': 'convolutional', 'batch_normalize': '1', 'filters': '16',
     'size': '3', 'stride': '2', 'pad': '1', 'activation': 'leaky'},           # 1: 16x16x16
    {'type': 'convolutional', 'batch_normalize': '1', 'filters': '16',
     'size': '3', 'stride': '1', 'pad': '1', 'activation': 'leaky'},           # 2: 16x16x16
    {'type': 'shortcut', 'from': '-2', 'activation': 'linear'},                # 3: 16x16x16
    {'type': 'convolutional', 'batch_normalize': '1', 'filters': '32',
     'size': '3', 'stride': '2', 'pad': '1', 'activation': 'leaky'},           # 4: 8x8x32
    {'type': 'convolutional', 'filters': '27', 'size': '1', 'stride': '1',
     'pad': '1', 'activation': 'linear'},                                      # 5: 8x8x27
    {'type': 'yolo', 'mask': '0,1,2',
     'anchors': '10,13, 16,30, 33,23, 30,61, 62,45, 59,119',
     'classes': '4', 'num': '6'},                                              # 6: (B,192,9)
    {'type': 'route', 'layers': '-3'},                                         # 7: 8x8x32
    {'type': 'convolutional', 'batch_normalize': '1', 'filters': '16',
     'size': '1', 'stride': '1', 'pad': '1', 'activation': 'leaky'},           # 8: 8x8x16
    {'type': 'upsample', 'stride': '2'},                                       # 9: 16x16x16
    {'type': 'route', 'layers': '-1, -7'},                                     # 10: 16x16x32
    {'type': 'convolutional', 'filters': '27', 'size': '1', 'stride': '1',
     'pad': '1', 'activation': 'linear'},                                      # 11: 16x16x27
    {'type': 'yolo', 'mask': '3,4,5',
     'anchors': '10,13, 16,30, 33,23, 30,61, 62,45, 59,119',
     'classes': '4', 'num': '6'},                                              # 12: (B,768,9)
]


# ----------------------------------------------------------------------------
# Helpers
# ----------------------------------------------------------------------------
def _round_up(x, m):
    return (x + m - 1) // m * m


def _tile_rows(m):
    if m >= 1024:
        return 512
    if m >= 256:
        return 256
    return _round_up(m, 8)


def _pad_rows(a, mp):
    if a.shape[0] == mp:
        return a
    return jnp.pad(a, ((0, mp - a.shape[0]), (0, 0)))


# ----------------------------------------------------------------------------
# Pallas kernels
# ----------------------------------------------------------------------------
def _gemm_stats_kernel(p_ref, w_ref, y_ref, stat_ref):
    """Pass 1 of a tiled BN conv: GEMM one M-tile (bf16 operands, f32 acc) and
    accumulate per-channel sum / sum-of-squares into a VMEM-resident (8,128)
    accumulator output (grid axis is "arbitrary")."""
    @pl.when(pl.program_id(0) == 0)
    def _init():
        stat_ref[...] = jnp.zeros_like(stat_ref)

    y = jnp.dot(p_ref[...], w_ref[...], preferred_element_type=jnp.float32)
    y_ref[...] = y
    stat_ref[0:1, :] = stat_ref[0:1, :] + jnp.sum(y, axis=0, keepdims=True)
    stat_ref[1:2, :] = stat_ref[1:2, :] + jnp.sum(y * y, axis=0, keepdims=True)


def _affine_kernel(leaky, y_ref, s_ref, b_ref, o_ref):
    """Pass 2 of a tiled BN conv: y*scale + shift (+ LeakyReLU(0.1))."""
    y = y_ref[...] * s_ref[...] + b_ref[...]
    if leaky:
        y = jnp.where(y > 0, y, 0.1 * y)
    o_ref[...] = y


def _gemm_bias_kernel(leaky, p_ref, w_ref, b_ref, o_ref):
    """GEMM + bias (+ LeakyReLU) for convs without BatchNorm."""
    y = jnp.dot(p_ref[...], w_ref[...], preferred_element_type=jnp.float32)
    y = y + b_ref[...]
    if leaky:
        y = jnp.where(y > 0, y, 0.1 * y)
    o_ref[...] = y


def _gemm_bn_fused_kernel(leaky, m_real, p_ref, w_ref, g_ref, b_ref, o_ref):
    """Single-tile fused GEMM + training-mode BatchNorm + LeakyReLU.  Sums are
    divided by the *real* row count so zero-padded rows do not bias stats."""
    y = jnp.dot(p_ref[...], w_ref[...], preferred_element_type=jnp.float32)
    inv_m = 1.0 / m_real
    mean = jnp.sum(y, axis=0, keepdims=True) * inv_m
    var = jnp.maximum(jnp.sum(y * y, axis=0, keepdims=True) * inv_m
                      - mean * mean, 0.0)
    y = (y - mean) * jax.lax.rsqrt(var + 1e-5)
    y = y * g_ref[...] + b_ref[...]
    if leaky:
        y = jnp.where(y > 0, y, 0.1 * y)
    o_ref[...] = y


def _yolo_kernel(gg, g, p_ref, tab_ref, o_ref):
    """predict_transform on a (tm, 128) tile.  Lane layout: lane = a*bbox + c.
    tab rows: 0 sigmoid-mask, 1 wh-mask, 2 scaled anchor, 3 x-offset mask,
    4 y-offset mask, 5 final multiplier (stride for c<4, else 1)."""
    tm = p_ref.shape[0]
    p = p_ref[...]
    sig_m = tab_ref[0:1, :] > 0.5
    wh_m = tab_ref[1:2, :] > 0.5
    anc = tab_ref[2:3, :]
    gx_m = tab_ref[3:4, :]
    gy_m = tab_ref[4:5, :]
    mult = tab_ref[5:6, :]

    # global row index -> (gx, gy) grid offsets, computed in f32 (exact here).
    r0 = (pl.program_id(0) * tm).astype(jnp.float32)
    rows = jax.lax.broadcasted_iota(jnp.int32, (tm, 1), 0).astype(jnp.float32) + r0
    cell = rows - jnp.floor((rows + 0.5) / gg) * gg
    gy = jnp.floor((cell + 0.5) / g)
    gx = cell - gy * g

    y = jnp.where(sig_m, jax.nn.sigmoid(p), p)          # x, y, obj, classes
    y = jnp.where(wh_m, jnp.exp(p) * anc, y)            # w, h  (select, inf-safe)
    y = y + gx * gx_m + gy * gy_m                       # grid offsets on x, y
    o_ref[...] = y * mult                               # back to input-pixel scale


# ----------------------------------------------------------------------------
# Layer wrappers (JAX glue around the Pallas kernels)
# ----------------------------------------------------------------------------
def conv2d_block(x, c_real, p, k, stride, pad, batch_norm, leaky):
    """x: (N, H, W, Cs) NHWC activation; real channels occupy the first c_real
    lanes, any extra lanes are exactly zero.  Returns ((N,Ho,Wo,128), Cout)."""
    N, H, W, Cs = x.shape
    Cout = p['w'].shape[0]
    assert Cout <= LANES

    if k == 1 and stride == 1 and pad == 0:
        # 1x1 conv: direct GEMM on the (possibly lane-padded) activation; no
        # im2col duplication.  Zero activation pad lanes meet zero weight rows.
        Ho, Wo = H, W
        patches = x.reshape(N * H * W, Cs).astype(jnp.bfloat16)
        wm = p['w'][:, :, 0, 0].T                                   # (Cin, Cout)
        wm = jnp.pad(wm, ((0, Cs - wm.shape[0]), (0, LANES - Cout)))
    else:
        # TODO(synk): at large resolutions fuse im2col into the kernel with a
        # halo-tiled manual DMA over (N, Ho) row blocks instead of
        # materializing bf16 patches in HBM.
        xr = x[..., :c_real].astype(jnp.bfloat16)
        xp = jnp.pad(xr, ((0, 0), (pad, pad), (pad, pad), (0, 0)))
        Hp, Wp = H + 2 * pad, W + 2 * pad
        Ho = (Hp - k) // stride + 1
        Wo = (Wp - k) // stride + 1
        cols = []
        for di in range(k):
            for dj in range(k):
                cols.append(xp[:, di:di + stride * Ho:stride,
                               dj:dj + stride * Wo:stride, :])
        patches = jnp.stack(cols, axis=3).reshape(N * Ho * Wo, k * k * c_real)
        wm = jnp.transpose(p['w'], (2, 3, 1, 0)).reshape(k * k * c_real, Cout)
        wm = jnp.pad(wm, ((0, 0), (0, LANES - Cout)))
    wm = wm.astype(jnp.bfloat16)

    M = N * Ho * Wo
    Kf = patches.shape[1]

    if batch_norm and M <= FUSED_BN_MAX_ROWS:
        tm = _round_up(M, 8)                  # single fused tile
    else:
        tm = _tile_rows(M)
    Mp = _round_up(M, tm)
    nt = Mp // tm
    patches = _pad_rows(patches, Mp)

    in_tile = pl.BlockSpec((tm, Kf), lambda i: (i, 0))
    w_full = pl.BlockSpec((Kf, LANES), lambda i: (0, 0))
    out_tile = pl.BlockSpec((tm, LANES), lambda i: (i, 0))
    row_full = pl.BlockSpec((1, LANES), lambda i: (0, 0))

    if batch_norm:
        gamma = jnp.pad(p['gamma'], (0, LANES - Cout))
        beta = jnp.pad(p['beta'], (0, LANES - Cout))
        if nt == 1:
            out = pl.pallas_call(
                functools.partial(_gemm_bn_fused_kernel, leaky, float(M)),
                grid=(1,),
                in_specs=[in_tile, w_full, row_full, row_full],
                out_specs=out_tile,
                out_shape=jax.ShapeDtypeStruct((Mp, LANES), jnp.float32),
                compiler_params=pltpu.CompilerParams(
                    dimension_semantics=("arbitrary",),
                    vmem_limit_bytes=VMEM_LIMIT),
            )(patches, wm, gamma.reshape(1, LANES), beta.reshape(1, LANES))
        else:
            # Pass 1: tiled GEMM + cross-tile sum / sumsq accumulation.
            y, stats = pl.pallas_call(
                _gemm_stats_kernel,
                grid=(nt,),
                in_specs=[in_tile, w_full],
                out_specs=(out_tile,
                           pl.BlockSpec((8, LANES), lambda i: (0, 0))),
                out_shape=(jax.ShapeDtypeStruct((Mp, LANES), jnp.float32),
                           jax.ShapeDtypeStruct((8, LANES), jnp.float32)),
                compiler_params=pltpu.CompilerParams(
                    dimension_semantics=("arbitrary",),
                    vmem_limit_bytes=VMEM_LIMIT),
            )(patches, wm)
            # per-channel batch statistics (zero-padded rows contribute 0)
            mean = stats[0] / M
            var = jnp.maximum(stats[1] / M - mean * mean, 0.0)
            scale = gamma * jax.lax.rsqrt(var + 1e-5)
            shift = beta - mean * scale
            # Pass 2: tiled scale/shift + LeakyReLU ("parallel" -> megacore).
            out = pl.pallas_call(
                functools.partial(_affine_kernel, leaky),
                grid=(nt,),
                in_specs=[out_tile, row_full, row_full],
                out_specs=out_tile,
                out_shape=jax.ShapeDtypeStruct((Mp, LANES), jnp.float32),
                compiler_params=pltpu.CompilerParams(
                    dimension_semantics=("parallel",),
                    vmem_limit_bytes=VMEM_LIMIT),
            )(y, scale.reshape(1, LANES), shift.reshape(1, LANES))
    else:
        bias = jnp.pad(p['bias'], (0, LANES - Cout)).reshape(1, LANES)
        out = pl.pallas_call(
            functools.partial(_gemm_bias_kernel, leaky),
            grid=(nt,),
            in_specs=[in_tile, w_full, row_full],
            out_specs=out_tile,
            out_shape=jax.ShapeDtypeStruct((Mp, LANES), jnp.float32),
            compiler_params=pltpu.CompilerParams(
                dimension_semantics=("parallel",),
                vmem_limit_bytes=VMEM_LIMIT),
        )(patches, wm, bias)

    return out[:M].reshape(N, Ho, Wo, LANES), Cout


def yolo_layer(x, c_real, anchors, num_classes, inp_dim):
    """predict_transform.  Input x is the (N, G, G, 128) lane-padded head conv
    output with c_real = A*bbox real channels in lanes [a*bbox + c]."""
    N, G, _, Cs = x.shape
    A = len(anchors)
    bbox = 5 + num_classes
    assert c_real == A * bbox and c_real <= LANES
    stride = inp_dim // G
    M = N * G * G
    tm = _tile_rows(M)
    Mp = _round_up(M, tm)
    nt = Mp // tm

    pred = x.reshape(M, Cs)
    if Cs < LANES:
        pred = jnp.pad(pred, ((0, 0), (0, LANES - Cs)))
    pred = _pad_rows(pred, Mp)

    # Per-lane constant table (resident (8,128) block) replaces the old
    # (N*R, 9) offset / anchor HBM tensors.
    sig = [0.0] * LANES
    wh = [0.0] * LANES
    anc = [0.0] * LANES
    gxm = [0.0] * LANES
    gym = [0.0] * LANES
    mult = [1.0] * LANES
    for lane in range(A * bbox):
        a, c = divmod(lane, bbox)
        if c in (2, 3):
            wh[lane] = 1.0
            anc[lane] = float(anchors[a][0 if c == 2 else 1]) / stride
        else:
            sig[lane] = 1.0
        if c == 0:
            gxm[lane] = 1.0
        if c == 1:
            gym[lane] = 1.0
        if c < 4:
            mult[lane] = float(stride)
    table = jnp.array([sig, wh, anc, gxm, gym, mult,
                       [0.0] * LANES, [0.0] * LANES], jnp.float32)

    out = pl.pallas_call(
        functools.partial(_yolo_kernel, float(G * G), float(G)),
        grid=(nt,),
        in_specs=[pl.BlockSpec((tm, LANES), lambda i: (i, 0)),
                  pl.BlockSpec((8, LANES), lambda i: (0, 0))],
        out_specs=pl.BlockSpec((tm, LANES), lambda i: (i, 0)),
        out_shape=jax.ShapeDtypeStruct((Mp, LANES), jnp.float32),
        compiler_params=pltpu.CompilerParams(
            dimension_semantics=("parallel",),
            vmem_limit_bytes=VMEM_LIMIT),
    )(pred, table)

    out = out[:M, :A * bbox].reshape(N, G * G, A, bbox)
    return out.reshape(N, G * G * A, bbox)


# ----------------------------------------------------------------------------
# Parameter construction (mirrors create_modules filter bookkeeping)
# ----------------------------------------------------------------------------
def build_params(blocks, key):
    prev_filters = 3
    output_filters = []
    params = {}
    for index, blk in enumerate(blocks[1:]):
        filters = prev_filters
        if blk['type'] == 'convolutional':
            bn = int(blk.get('batch_normalize', 0))
            filters = int(blk['filters'])
            k = int(blk['size'])
            key, k1, k2 = jax.random.split(key, 3)
            p = {'w': 0.1 * jax.random.normal(
                k1, (filters, prev_filters, k, k), jnp.float32)}
            if bn:
                p['gamma'] = jnp.ones((filters,), jnp.float32)   # torch BN defaults
                p['beta'] = jnp.zeros((filters,), jnp.float32)
            else:
                p['bias'] = 0.1 * jax.random.normal(k2, (filters,), jnp.float32)
            params[index] = p
        elif blk['type'] == 'route':
            layers = [int(a) for a in blk['layers'].split(',')]
            layers = [(l - index) if l > 0 else l for l in layers]
            if len(layers) > 1:
                filters = (output_filters[index + layers[0]]
                           + output_filters[index + layers[1]])
            else:
                filters = output_filters[index + layers[0]]
        prev_filters = filters
        output_filters.append(filters)
    return params


# ----------------------------------------------------------------------------
# Darknet.forward equivalent
# ----------------------------------------------------------------------------
def darknet_forward(x_nchw, blocks, params):
    inp_dim = int(blocks[0]['height'])
    x = jnp.transpose(x_nchw.astype(jnp.float32), (0, 2, 3, 1))  # NCHW -> NHWC
    c_real = x.shape[-1]
    outputs = {}
    detections = None
    for i, module in enumerate(blocks[1:]):
        t = module['type']
        if t == 'convolutional':
            bn = int(module.get('batch_normalize', 0))
            k = int(module['size'])
            s = int(module['stride'])
            pad = (k - 1) // 2 if int(module['pad']) else 0
            leaky = module['activation'] == 'leaky'
            x, c_real = conv2d_block(x, c_real, params[i], k, s, pad,
                                     bool(bn), leaky)
        elif t == 'upsample':
            # TODO(synk): fold nearest upsample into the consumer conv's
            # indexing instead of materializing the repeated activation.
            x = jnp.repeat(jnp.repeat(x, 2, axis=1), 2, axis=2)
        elif t == 'route':
            layers = [int(a) for a in module['layers'].split(',')]
            layers = [(l - i) if l > 0 else l for l in layers]
            if len(layers) == 1:
                x, c_real = outputs[i + layers[0]]
            else:
                # TODO(synk): fold the 2-input concat into the consumer conv
                # as a sum of two dots (split weight by channel group).
                a1, c1 = outputs[i + layers[0]]
                a2, c2 = outputs[i + layers[1]]
                x = jnp.concatenate([a1[..., :c1], a2[..., :c2]], axis=-1)
                c_real = c1 + c2
        elif t == 'shortcut':
            frm = int(module['from'])
            a1, c1 = outputs[i - 1]
            a2, _ = outputs[i + frm]
            x = a1 + a2
            c_real = c1
        elif t == 'yolo':
            mask = [int(m) for m in module['mask'].split(',')]
            a_flat = [int(a) for a in module['anchors'].split(',')]
            anchors = [(a_flat[2 * j], a_flat[2 * j + 1])
                       for j in range(len(a_flat) // 2)]
            anchors = [anchors[m] for m in mask]
            num_classes = int(module['classes'])
            x = yolo_layer(x, c_real, anchors, num_classes, inp_dim)
            detections = x if detections is None else jnp.concatenate(
                [detections, x], axis=1)
        outputs[i] = (x, c_real)
    return detections


# ----------------------------------------------------------------------------
if __name__ == "__main__":
    key = jax.random.PRNGKey(0)
    key, kx, kp = jax.random.split(key, 3)

    params = build_params(CFG_BLOCKS, kp)
    x = jax.random.normal(kx, (2, 3, 32, 32), jnp.float32)   # NCHW input

    fwd = jax.jit(lambda inp: darknet_forward(inp, CFG_BLOCKS, params))
    detections = fwd(x)
    jax.block_until_ready(detections)

    assert detections.shape == (2, 8 * 8 * 3 + 16 * 16 * 3, 9), detections.shape
    assert bool(jnp.all(jnp.isfinite(detections)))
    print("KERNEL_OK")
</pallas_src>

<mosaic_0001>
module attributes {stable_mosaic.version = 11 : i64} {
  func.func @_gemm_stats_kernel(%arg0: i32, %arg1: memref<512x27xbf16, #tpu.memory_space<vmem>>, %arg2: memref<27x128xbf16, #tpu.memory_space<vmem>>, %arg3: memref<512x128xf32, #tpu.memory_space<vmem>>, %arg4: memref<8x128xf32, #tpu.memory_space<vmem>>) attributes {dimension_semantics = [#tpu.dimension_semantics<arbitrary>], iteration_bounds = array<i64: 4>, scalar_prefetch = 0 : i64, scratch_operands = 0 : i64, tpu.core_type = #tpu.core_type<tc>, window_params = [{transform_indices = @transform_0, window_bounds = array<i64: 512, 27>}, {pipeline_mode = #tpu.pipeline_mode<synchronous>, transform_indices = @transform_1, window_bounds = array<i64: 27, 128>}, {transform_indices = @transform_2, window_bounds = array<i64: 512, 128>}, {pipeline_mode = #tpu.pipeline_mode<synchronous>, transform_indices = @transform_3, window_bounds = array<i64: 8, 128>}]} {
    %c0_i32 = arith.constant 0 : i32
    %0 = arith.cmpi eq, %arg0, %c0_i32 : i32
    %1 = arith.extui %0 : i1 to i32
    %c0_i32_0 = arith.constant 0 : i32
    %2 = arith.cmpi ne, %1, %c0_i32_0 : i32
    scf.if %2 {
      %cst_15 = arith.constant 0.000000e+00 : f32
      %18 = vector.broadcast %cst_15 : f32 to vector<8x128xf32>
      %c0_16 = arith.constant 0 : index
      %c0_17 = arith.constant 0 : index
      %19 = vector.load %arg4[%c0_16, %c0_17] : memref<8x128xf32, #tpu.memory_space<vmem>>, vector<8x128xf32>
      tpu.vector_store %arg4[%c0_16, %c0_17], %18 {strides = array<i32>} : memref<8x128xf32, #tpu.memory_space<vmem>>, vector<8x128xf32>,
    } else {
    }
    %c0 = arith.constant 0 : index
    %c0_1 = arith.constant 0 : index
    %3 = vector.load %arg1[%c0, %c0_1] : memref<512x27xbf16, #tpu.memory_space<vmem>>, vector<512x27xbf16>
    %c0_2 = arith.constant 0 : index
    %c0_3 = arith.constant 0 : index
    %4 = vector.load %arg2[%c0_2, %c0_3] : memref<27x128xbf16, #tpu.memory_space<vmem>>, vector<27x128xbf16>
    %cst = arith.constant dense<0.000000e+00> : vector<512x128xf32>
    %5 = tpu.matmul %3, %4, %cst {dimension_numbers = #tpu.dot_dimension_numbers<[1], [0], [0], [1], [0, 0, 1, 1], [], []>} : vector<512x27xbf16>, vector<27x128xbf16>, vector<512x128xf32> -> vector<512x128xf32>
    %c0_4 = arith.constant 0 : index
    %c0_5 = arith.constant 0 : index
    %6 = vector.load %arg3[%c0_4, %c0_5] : memref<512x128xf32, #tpu.memory_space<vmem>>, vector<512x128xf32>
    tpu.vector_store %arg3[%c0_4, %c0_5], %5 {strides = array<i32>} : memref<512x128xf32, #tpu.memory_space<vmem>>, vector<512x128xf32>,
    %c0_6 = arith.constant 0 : index
    %c0_7 = arith.constant 0 : index
    %7 = vector.load %arg4[%c0_6, %c0_7] : memref<8x128xf32, #tpu.memory_space<vmem>>, vector<1x128xf32>
    %cst_8 = arith.constant dense<0.000000e+00> : vector<128xf32>
    %8 = vector.multi_reduction <add>, %5, %cst_8 [0] : vector<512x128xf32> to vector<128xf32>
    %9 = vector.shape_cast %8 : vector<128xf32> to vector<1x128xf32>
    %10 = arith.addf %7, %9 : vector<1x128xf32>
    %c0_9 = arith.constant 0 : index
    %c0_10 = arith.constant 0 : index
    %11 = vector.load %arg4[%c0_9, %c0_10] : memref<8x128xf32, #tpu.memory_space<vmem>>, vector<1x128xf32>
    tpu.vector_store %arg4[%c0_9, %c0_10], %10 {strides = array<i32>} : memref<8x128xf32, #tpu.memory_space<vmem>>, vector<1x128xf32>,
    %c1 = arith.constant 1 : index
    %c0_11 = arith.constant 0 : index
    %12 = vector.load %arg4[%c1, %c0_11] : memref<8x128xf32, #tpu.memory_space<vmem>>, vector<1x128xf32>
    %13 = arith.mulf %5, %5 : vector<512x128xf32>
    %cst_12 = arith.constant dense<0.000000e+00> : vector<128xf32>
    %14 = vector.multi_reduction <add>, %13, %cst_12 [0] : vector<512x128xf32> to vector<128xf32>
    %15 = vector.shape_cast %14 : vector<128xf32> to vector<1x128xf32>
    %16 = arith.addf %12, %15 : vector<1x128xf32>
    %c1_13 = arith.constant 1 : index
    %c0_14 = arith.constant 0 : index
    %17 = vector.load %arg4[%c1_13, %c0_14] : memref<8x128xf32, #tpu.memory_space<vmem>>, vector<1x128xf32>
    tpu.vector_store %arg4[%c1_13, %c0_14], %16 {strides = array<i32>} : memref<8x128xf32, #tpu.memory_space<vmem>>, vector<1x128xf32>,
    return
  }
  func.func @transform_0(%arg0: i32) -> (i32, i32) {
    %c0_i32 = arith.constant 0 : i32
    %c0_i32_0 = arith.constant 0 : i32
    return %arg0, %c0_i32 : i32, i32
  }
  func.func @transform_1(%arg0: i32) -> (i32, i32) {
    %c0_i32 = arith.constant 0 : i32
    %c0_i32_0 = arith.constant 0 : i32
    %c0_i32_1 = arith.constant 0 : i32
    return %c0_i32, %c0_i32_0 : i32, i32
  }
  func.func @transform_2(%arg0: i32) -> (i32, i32) {
    %c0_i32 = arith.constant 0 : i32
    %c0_i32_0 = arith.constant 0 : i32
    return %arg0, %c0_i32 : i32, i32
  }
  func.func @transform_3(%arg0: i32) -> (i32, i32) {
    %c0_i32 = arith.constant 0 : i32
    %c0_i32_0 = arith.constant 0 : i32
    %c0_i32_1 = arith.constant 0 : i32
    return %c0_i32, %c0_i32_0 : i32, i32
  }
}

module attributes {stable_mosaic.version = 11 : i64} {
  func.func @_affine_kernel(%arg0: i32, %arg1: memref<512x128xf32, #tpu.memory_space<vmem>>, %arg2: memref<1x128xf32, #tpu.memory_space<vmem>>, %arg3: memref<1x128xf32, #tpu.memory_space<vmem>>, %arg4: memref<512x128xf32, #tpu.memory_space<vmem>>) attributes {dimension_semantics = [#tpu.dimension_semantics<parallel>], iteration_bounds = array<i64: 4>, scalar_prefetch = 0 : i64, scratch_operands = 0 : i64, tpu.core_type = #tpu.core_type<tc>, window_params = [{transform_indices = @transform_0, window_bounds = array<i64: 512, 128>}, {pipeline_mode = #tpu.pipeline_mode<synchronous>, transform_indices = @transform_1, window_bounds = array<i64: 1, 128>}, {pipeline_mode = #tpu.pipeline_mode<synchronous>, transform_indices = @transform_2, window_bounds = array<i64: 1, 128>}, {transform_indices = @transform_3, window_bounds = array<i64: 512, 128>}]} {
    %c0 = arith.constant 0 : index
    %c0_0 = arith.constant 0 : index
    %0 = vector.load %arg1[%c0, %c0_0] : memref<512x128xf32, #tpu.memory_space<vmem>>, vector<512x128xf32>
    %c0_1 = arith.constant 0 : index
    %c0_2 = arith.constant 0 : index
    %1 = vector.load %arg2[%c0_1, %c0_2] : memref<1x128xf32, #tpu.memory_space<vmem>>, vector<1x128xf32>
    %2 = vector.broadcast %1 : vector<1x128xf32> to vector<512x128xf32>
    %3 = arith.mulf %0, %2 : vector<512x128xf32>
    %c0_3 = arith.constant 0 : index
    %c0_4 = arith.constant 0 : index
    %4 = vector.load %arg3[%c0_3, %c0_4] : memref<1x128xf32, #tpu.memory_space<vmem>>, vector<1x128xf32>
    %5 = vector.broadcast %4 : vector<1x128xf32> to vector<512x128xf32>
    %6 = arith.addf %3, %5 : vector<512x128xf32>
    %cst = arith.constant 0.000000e+00 : f32
    %7 = vector.broadcast %cst : f32 to vector<512x128xf32>
    %8 = arith.cmpf ogt, %6, %7 : vector<512x128xf32>
    %cst_5 = arith.constant 1.000000e-01 : f32
    %9 = vector.broadcast %cst_5 : f32 to vector<512x128xf32>
    %10 = arith.mulf %9, %6 : vector<512x128xf32>
    %11 = arith.select %8, %6, %10 : vector<512x128xi1>, vector<512x128xf32>
    %c0_6 = arith.constant 0 : index
    %c0_7 = arith.constant 0 : index
    %12 = vector.load %arg4[%c0_6, %c0_7] : memref<512x128xf32, #tpu.memory_space<vmem>>, vector<512x128xf32>
    tpu.vector_store %arg4[%c0_6, %c0_7], %11 {strides = array<i32>} : memref<512x128xf32, #tpu.memory_space<vmem>>, vector<512x128xf32>,
    return
  }
  func.func @transform_0(%arg0: i32) -> (i32, i32) {
    %c0_i32 = arith.constant 0 : i32
    %c0_i32_0 = arith.constant 0 : i32
    return %arg0, %c0_i32 : i32, i32
  }
  func.func @transform_1(%arg0: i32) -> (i32, i32) {
    %c0_i32 = arith.constant 0 : i32
    %c0_i32_0 = arith.constant 0 : i32
    %c0_i32_1 = arith.constant 0 : i32
    return %c0_i32, %c0_i32_0 : i32, i32
  }
  func.func @transform_2(%arg0: i32) -> (i32, i32) {
    %c0_i32 = arith.constant 0 : i32
    %c0_i32_0 = arith.constant 0 : i32
    %c0_i32_1 = arith.constant 0 : i32
    return %c0_i32, %c0_i32_0 : i32, i32
  }
  func.func @transform_3(%arg0: i32) -> (i32, i32) {
    %c0_i32 = arith.constant 0 : i32
    %c0_i32_0 = arith.constant 0 : i32
    return %arg0, %c0_i32 : i32, i32
  }
}

module attributes {stable_mosaic.version = 11 : i64} {
  func.func @_gemm_bn_fused_kernel(%arg0: i32, %arg1: memref<512x72xbf16, #tpu.memory_space<vmem>>, %arg2: memref<72x128xbf16, #tpu.memory_space<vmem>>, %arg3: memref<1x128xf32, #tpu.memory_space<vmem>>, %arg4: memref<1x128xf32, #tpu.memory_space<vmem>>, %arg5: memref<512x128xf32, #tpu.memory_space<vmem>>) attributes {dimension_semantics = [#tpu.dimension_semantics<arbitrary>], iteration_bounds = array<i64: 1>, scalar_prefetch = 0 : i64, scratch_operands = 0 : i64, tpu.core_type = #tpu.core_type<tc>, window_params = [{transform_indices = @transform_0, window_bounds = array<i64: 512, 72>}, {pipeline_mode = #tpu.pipeline_mode<synchronous>, transform_indices = @transform_1, window_bounds = array<i64: 72, 128>}, {pipeline_mode = #tpu.pipeline_mode<synchronous>, transform_indices = @transform_2, window_bounds = array<i64: 1, 128>}, {pipeline_mode = #tpu.pipeline_mode<synchronous>, transform_indices = @transform_3, window_bounds = array<i64: 1, 128>}, {transform_indices = @transform_4, window_bounds = array<i64: 512, 128>}]} {
    %c0 = arith.constant 0 : index
    %c0_0 = arith.constant 0 : index
    %0 = vector.load %arg1[%c0, %c0_0] : memref<512x72xbf16, #tpu.memory_space<vmem>>, vector<512x72xbf16>
    %c0_1 = arith.constant 0 : index
    %c0_2 = arith.constant 0 : index
    %1 = vector.load %arg2[%c0_1, %c0_2] : memref<72x128xbf16, #tpu.memory_space<vmem>>, vector<72x128xbf16>
    %cst = arith.constant dense<0.000000e+00> : vector<512x128xf32>
    %2 = tpu.matmul %0, %1, %cst {dimension_numbers = #tpu.dot_dimension_numbers<[1], [0], [0], [1], [0, 0, 1, 1], [], []>} : vector<512x72xbf16>, vector<72x128xbf16>, vector<512x128xf32> -> vector<512x128xf32>
    %cst_3 = arith.constant dense<0.000000e+00> : vector<128xf32>
    %3 = vector.multi_reduction <add>, %2, %cst_3 [0] : vector<512x128xf32> to vector<128xf32>
    %4 = vector.shape_cast %3 : vector<128xf32> to vector<1x128xf32>
    %cst_4 = arith.constant 0.001953125 : f32
    %5 = vector.broadcast %cst_4 : f32 to vector<1x128xf32>
    %6 = arith.mulf %4, %5 : vector<1x128xf32>
    %7 = arith.mulf %2, %2 : vector<512x128xf32>
    %cst_5 = arith.constant dense<0.000000e+00> : vector<128xf32>
    %8 = vector.multi_reduction <add>, %7, %cst_5 [0] : vector<512x128xf32> to vector<128xf32>
    %9 = vector.shape_cast %8 : vector<128xf32> to vector<1x128xf32>
    %cst_6 = arith.constant 0.001953125 : f32
    %10 = vector.broadcast %cst_6 : f32 to vector<1x128xf32>
    %11 = arith.mulf %9, %10 : vector<1x128xf32>
    %12 = arith.mulf %6, %6 : vector<1x128xf32>
    %13 = arith.subf %11, %12 : vector<1x128xf32>
    %cst_7 = arith.constant 0.000000e+00 : f32
    %14 = vector.broadcast %cst_7 : f32 to vector<1x128xf32>
    %15 = arith.maximumf %13, %14 : vector<1x128xf32>
    %16 = vector.broadcast %6 : vector<1x128xf32> to vector<512x128xf32>
    %17 = arith.subf %2, %16 : vector<512x128xf32>
    %cst_8 = arith.constant 9.99999974E-6 : f32
    %18 = vector.broadcast %cst_8 : f32 to vector<1x128xf32>
    %19 = arith.addf %15, %18 : vector<1x128xf32>
    %20 = math.rsqrt %19 : vector<1x128xf32>
    %21 = vector.broadcast %20 : vector<1x128xf32> to vector<512x128xf32>
    %22 = arith.mulf %17, %21 : vector<512x128xf32>
    %c0_9 = arith.constant 0 : index
    %c0_10 = arith.constant 0 : index
    %23 = vector.load %arg3[%c0_9, %c0_10] : memref<1x128xf32, #tpu.memory_space<vmem>>, vector<1x128xf32>
    %24 = vector.broadcast %23 : vector<1x128xf32> to vector<512x128xf32>
    %25 = arith.mulf %22, %24 : vector<512x128xf32>
    %c0_11 = arith.constant 0 : index
    %c0_12 = arith.constant 0 : index
    %26 = vector.load %arg4[%c0_11, %c0_12] : memref<1x128xf32, #tpu.memory_space<vmem>>, vector<1x128xf32>
    %27 = vector.broadcast %26 : vector<1x128xf32> to vector<512x128xf32>
    %28 = arith.addf %25, %27 : vector<512x128xf32>
    %cst_13 = arith.constant 0.000000e+00 : f32
    %29 = vector.broadcast %cst_13 : f32 to vector<512x128xf32>
    %30 = arith.cmpf ogt, %28, %29 : vector<512x128xf32>
    %cst_14 = arith.constant 1.000000e-01 : f32
    %31 = vector.broadcast %cst_14 : f32 to vector<512x128xf32>
    %32 = arith.mulf %31, %28 : vector<512x128xf32>
    %33 = arith.select %30, %28, %32 : vector<512x128xi1>, vector<512x128xf32>
    %c0_15 = arith.constant 0 : index
    %c0_16 = arith.constant 0 : index
    %34 = vector.load %arg5[%c0_15, %c0_16] : memref<512x128xf32, #tpu.memory_space<vmem>>, vector<512x128xf32>
    tpu.vector_store %arg5[%c0_15, %c0_16], %33 {strides = array<i32>} : memref<512x128xf32, #tpu.memory_space<vmem>>, vector<512x128xf32>,
    return
  }
  func.func @transform_0(%arg0: i32) -> (i32, i32) {
    %c0_i32 = arith.constant 0 : i32
    %c0_i32_0 = arith.constant 0 : i32
    return %arg0, %c0_i32 : i32, i32
  }
  func.func @transform_1(%arg0: i32) -> (i32, i32) {
    %c0_i32 = arith.constant 0 : i32
    %c0_i32_0 = arith.constant 0 : i32
    %c0_i32_1 = arith.constant 0 : i32
    return %c0_i32, %c0_i32_0 : i32, i32
  }
  func.func @transform_2(%arg0: i32) -> (i32, i32) {
    %c0_i32 = arith.constant 0 : i32
    %c0_i32_0 = arith.constant 0 : i32
    %c0_i32_1 = arith.constant 0 : i32
    return %c0_i32, %c0_i32_0 : i32, i32
  }
  func.func @transform_3(%arg0: i32) -> (i32, i32) {
    %c0_i32 = arith.constant 0 : i32
    %c0_i32_0 = arith.constant 0 : i32
    %c0_i32_1 = arith.constant 0 : i32
    return %c0_i32, %c0_i32_0 : i32, i32
  }
  func.func @transform_4(%arg0: i32) -> (i32, i32) {
    %c0_i32 = arith.constant 0 : i32
    %c0_i32_0 = arith.constant 0 : i32
    return %arg0, %c0_i32 : i32, i32
  }
}

module attributes {stable_mosaic.version = 11 : i64} {
  func.func @_gemm_bn_fused_kernel(%arg0: i32, %arg1: memref<512x144xbf16, #tpu.memory_space<vmem>>, %arg2: memref<144x128xbf16, #tpu.memory_space<vmem>>, %arg3: memref<1x128xf32, #tpu.memory_space<vmem>>, %arg4: memref<1x128xf32, #tpu.memory_space<vmem>>, %arg5: memref<512x128xf32, #tpu.memory_space<vmem>>) attributes {dimension_semantics = [#tpu.dimension_semantics<arbitrary>], iteration_bounds = array<i64: 1>, scalar_prefetch = 0 : i64, scratch_operands = 0 : i64, tpu.core_type = #tpu.core_type<tc>, window_params = [{transform_indices = @transform_0, window_bounds = array<i64: 512, 144>}, {pipeline_mode = #tpu.pipeline_mode<synchronous>, transform_indices = @transform_1, window_bounds = array<i64: 144, 128>}, {pipeline_mode = #tpu.pipeline_mode<synchronous>, transform_indices = @transform_2, window_bounds = array<i64: 1, 128>}, {pipeline_mode = #tpu.pipeline_mode<synchronous>, transform_indices = @transform_3, window_bounds = array<i64: 1, 128>}, {transform_indices = @transform_4, window_bounds = array<i64: 512, 128>}]} {
    %c0 = arith.constant 0 : index
    %c0_0 = arith.constant 0 : index
    %0 = vector.load %arg1[%c0, %c0_0] : memref<512x144xbf16, #tpu.memory_space<vmem>>, vector<512x144xbf16>
    %c0_1 = arith.constant 0 : index
    %c0_2 = arith.constant 0 : index
    %1 = vector.load %arg2[%c0_1, %c0_2] : memref<144x128xbf16, #tpu.memory_space<vmem>>, vector<144x128xbf16>
    %cst = arith.constant dense<0.000000e+00> : vector<512x128xf32>
    %2 = tpu.matmul %0, %1, %cst {dimension_numbers = #tpu.dot_dimension_numbers<[1], [0], [0], [1], [0, 0, 1, 1], [], []>} : vector<512x144xbf16>, vector<144x128xbf16>, vector<512x128xf32> -> vector<512x128xf32>
    %cst_3 = arith.constant dense<0.000000e+00> : vector<128xf32>
    %3 = vector.multi_reduction <add>, %2, %cst_3 [0] : vector<512x128xf32> to vector<128xf32>
    %4 = vector.shape_cast %3 : vector<128xf32> to vector<1x128xf32>
    %cst_4 = arith.constant 0.001953125 : f32
    %5 = vector.broadcast %cst_4 : f32 to vector<1x128xf32>
    %6 = arith.mulf %4, %5 : vector<1x128xf32>
    %7 = arith.mulf %2, %2 : vector<512x128xf32>
    %cst_5 = arith.constant dense<0.000000e+00> : vector<128xf32>
    %8 = vector.multi_reduction <add>, %7, %cst_5 [0] : vector<512x128xf32> to vector<128xf32>
    %9 = vector.shape_cast %8 : vector<128xf32> to vector<1x128xf32>
    %cst_6 = arith.constant 0.001953125 : f32
    %10 = vector.broadcast %cst_6 : f32 to vector<1x128xf32>
    %11 = arith.mulf %9, %10 : vector<1x128xf32>
    %12 = arith.mulf %6, %6 : vector<1x128xf32>
    %13 = arith.subf %11, %12 : vector<1x128xf32>
    %cst_7 = arith.constant 0.000000e+00 : f32
    %14 = vector.broadcast %cst_7 : f32 to vector<1x128xf32>
    %15 = arith.maximumf %13, %14 : vector<1x128xf32>
    %16 = vector.broadcast %6 : vector<1x128xf32> to vector<512x128xf32>
    %17 = arith.subf %2, %16 : vector<512x128xf32>
    %cst_8 = arith.constant 9.99999974E-6 : f32
    %18 = vector.broadcast %cst_8 : f32 to vector<1x128xf32>
    %19 = arith.addf %15, %18 : vector<1x128xf32>
    %20 = math.rsqrt %19 : vector<1x128xf32>
    %21 = vector.broadcast %20 : vector<1x128xf32> to vector<512x128xf32>
    %22 = arith.mulf %17, %21 : vector<512x128xf32>
    %c0_9 = arith.constant 0 : index
    %c0_10 = arith.constant 0 : index
    %23 = vector.load %arg3[%c0_9, %c0_10] : memref<1x128xf32, #tpu.memory_space<vmem>>, vector<1x128xf32>
    %24 = vector.broadcast %23 : vector<1x128xf32> to vector<512x128xf32>
    %25 = arith.mulf %22, %24 : vector<512x128xf32>
    %c0_11 = arith.constant 0 : index
    %c0_12 = arith.constant 0 : index
    %26 = vector.load %arg4[%c0_11, %c0_12] : memref<1x128xf32, #tpu.memory_space<vmem>>, vector<1x128xf32>
    %27 = vector.broadcast %26 : vector<1x128xf32> to vector<512x128xf32>
    %28 = arith.addf %25, %27 : vector<512x128xf32>
    %cst_13 = arith.constant 0.000000e+00 : f32
    %29 = vector.broadcast %cst_13 : f32 to vector<512x128xf32>
    %30 = arith.cmpf ogt, %28, %29 : vector<512x128xf32>
    %cst_14 = arith.constant 1.000000e-01 : f32
    %31 = vector.broadcast %cst_14 : f32 to vector<512x128xf32>
    %32 = arith.mulf %31, %28 : vector<512x128xf32>
    %33 = arith.select %30, %28, %32 : vector<512x128xi1>, vector<512x128xf32>
    %c0_15 = arith.constant 0 : index
    %c0_16 = arith.constant 0 : index
    %34 = vector.load %arg5[%c0_15, %c0_16] : memref<512x128xf32, #tpu.memory_space<vmem>>, vector<512x128xf32>
    tpu.vector_store %arg5[%c0_15, %c0_16], %33 {strides = array<i32>} : memref<512x128xf32, #tpu.memory_space<vmem>>, vector<512x128xf32>,
    return
  }
  func.func @transform_0(%arg0: i32) -> (i32, i32) {
    %c0_i32 = arith.constant 0 : i32
    %c0_i32_0 = arith.constant 0 : i32
    return %arg0, %c0_i32 : i32, i32
  }
  func.func @transform_1(%arg0: i32) -> (i32, i32) {
    %c0_i32 = arith.constant 0 : i32
    %c0_i32_0 = arith.constant 0 : i32
    %c0_i32_1 = arith.constant 0 : i32
    return %c0_i32, %c0_i32_0 : i32, i32
  }
  func.func @transform_2(%arg0: i32) -> (i32, i32) {
    %c0_i32 = arith.constant 0 : i32
    %c0_i32_0 = arith.constant 0 : i32
    %c0_i32_1 = arith.constant 0 : i32
    return %c0_i32, %c0_i32_0 : i32, i32
  }
  func.func @transform_3(%arg0: i32) -> (i32, i32) {
    %c0_i32 = arith.constant 0 : i32
    %c0_i32_0 = arith.constant 0 : i32
    %c0_i32_1 = arith.constant 0 : i32
    return %c0_i32, %c0_i32_0 : i32, i32
  }
  func.func @transform_4(%arg0: i32) -> (i32, i32) {
    %c0_i32 = arith.constant 0 : i32
    %c0_i32_0 = arith.constant 0 : i32
    return %arg0, %c0_i32 : i32, i32
  }
}

module attributes {stable_mosaic.version = 11 : i64} {
  func.func @_gemm_bn_fused_kernel(%arg0: i32, %arg1: memref<128x144xbf16, #tpu.memory_space<vmem>>, %arg2: memref<144x128xbf16, #tpu.memory_space<vmem>>, %arg3: memref<1x128xf32, #tpu.memory_space<vmem>>, %arg4: memref<1x128xf32, #tpu.memory_space<vmem>>, %arg5: memref<128x128xf32, #tpu.memory_space<vmem>>) attributes {dimension_semantics = [#tpu.dimension_semantics<arbitrary>], iteration_bounds = array<i64: 1>, scalar_prefetch = 0 : i64, scratch_operands = 0 : i64, tpu.core_type = #tpu.core_type<tc>, window_params = [{transform_indices = @transform_0, window_bounds = array<i64: 128, 144>}, {pipeline_mode = #tpu.pipeline_mode<synchronous>, transform_indices = @transform_1, window_bounds = array<i64: 144, 128>}, {pipeline_mode = #tpu.pipeline_mode<synchronous>, transform_indices = @transform_2, window_bounds = array<i64: 1, 128>}, {pipeline_mode = #tpu.pipeline_mode<synchronous>, transform_indices = @transform_3, window_bounds = array<i64: 1, 128>}, {transform_indices = @transform_4, window_bounds = array<i64: 128, 128>}]} {
    %c0 = arith.constant 0 : index
    %c0_0 = arith.constant 0 : index
    %0 = vector.load %arg1[%c0, %c0_0] : memref<128x144xbf16, #tpu.memory_space<vmem>>, vector<128x144xbf16>
    %c0_1 = arith.constant 0 : index
    %c0_2 = arith.constant 0 : index
    %1 = vector.load %arg2[%c0_1, %c0_2] : memref<144x128xbf16, #tpu.memory_space<vmem>>, vector<144x128xbf16>
    %cst = arith.constant dense<0.000000e+00> : vector<128x128xf32>
    %2 = tpu.matmul %0, %1, %cst {dimension_numbers = #tpu.dot_dimension_numbers<[1], [0], [0], [1], [0, 0, 1, 1], [], []>} : vector<128x144xbf16>, vector<144x128xbf16>, vector<128x128xf32> -> vector<128x128xf32>
    %cst_3 = arith.constant dense<0.000000e+00> : vector<128xf32>
    %3 = vector.multi_reduction <add>, %2, %cst_3 [0] : vector<128x128xf32> to vector<128xf32>
    %4 = vector.shape_cast %3 : vector<128xf32> to vector<1x128xf32>
    %cst_4 = arith.constant 7.812500e-03 : f32
    %5 = vector.broadcast %cst_4 : f32 to vector<1x128xf32>
    %6 = arith.mulf %4, %5 : vector<1x128xf32>
    %7 = arith.mulf %2, %2 : vector<128x128xf32>
    %cst_5 = arith.constant dense<0.000000e+00> : vector<128xf32>
    %8 = vector.multi_reduction <add>, %7, %cst_5 [0] : vector<128x128xf32> to vector<128xf32>
    %9 = vector.shape_cast %8 : vector<128xf32> to vector<1x128xf32>
    %cst_6 = arith.constant 7.812500e-03 : f32
    %10 = vector.broadcast %cst_6 : f32 to vector<1x128xf32>
    %11 = arith.mulf %9, %10 : vector<1x128xf32>
    %12 = arith.mulf %6, %6 : vector<1x128xf32>
    %13 = arith.subf %11, %12 : vector<1x128xf32>
    %cst_7 = arith.constant 0.000000e+00 : f32
    %14 = vector.broadcast %cst_7 : f32 to vector<1x128xf32>
    %15 = arith.maximumf %13, %14 : vector<1x128xf32>
    %16 = vector.broadcast %6 : vector<1x128xf32> to vector<128x128xf32>
    %17 = arith.subf %2, %16 : vector<128x128xf32>
    %cst_8 = arith.constant 9.99999974E-6 : f32
    %18 = vector.broadcast %cst_8 : f32 to vector<1x128xf32>
    %19 = arith.addf %15, %18 : vector<1x128xf32>
    %20 = math.rsqrt %19 : vector<1x128xf32>
    %21 = vector.broadcast %20 : vector<1x128xf32> to vector<128x128xf32>
    %22 = arith.mulf %17, %21 : vector<128x128xf32>
    %c0_9 = arith.constant 0 : index
    %c0_10 = arith.constant 0 : index
    %23 = vector.load %arg3[%c0_9, %c0_10] : memref<1x128xf32, #tpu.memory_space<vmem>>, vector<1x128xf32>
    %24 = vector.broadcast %23 : vector<1x128xf32> to vector<128x128xf32>
    %25 = arith.mulf %22, %24 : vector<128x128xf32>
    %c0_11 = arith.constant 0 : index
    %c0_12 = arith.constant 0 : index
    %26 = vector.load %arg4[%c0_11, %c0_12] : memref<1x128xf32, #tpu.memory_space<vmem>>, vector<1x128xf32>
    %27 = vector.broadcast %26 : vector<1x128xf32> to vector<128x128xf32>
    %28 = arith.addf %25, %27 : vector<128x128xf32>
    %cst_13 = arith.constant 0.000000e+00 : f32
    %29 = vector.broadcast %cst_13 : f32 to vector<128x128xf32>
    %30 = arith.cmpf ogt, %28, %29 : vector<128x128xf32>
    %cst_14 = arith.constant 1.000000e-01 : f32
    %31 = vector.broadcast %cst_14 : f32 to vector<128x128xf32>
    %32 = arith.mulf %31, %28 : vector<128x128xf32>
    %33 = arith.select %30, %28, %32 : vector<128x128xi1>, vector<128x128xf32>
    %c0_15 = arith.constant 0 : index
    %c0_16 = arith.constant 0 : index
    %34 = vector.load %arg5[%c0_15, %c0_16] : memref<128x128xf32, #tpu.memory_space<vmem>>, vector<128x128xf32>
    tpu.vector_store %arg5[%c0_15, %c0_16], %33 {strides = array<i32>} : memref<128x128xf32, #tpu.memory_space<vmem>>, vector<128x128xf32>,
    return
  }
  func.func @transform_0(%arg0: i32) -> (i32, i32) {
    %c0_i32 = arith.constant 0 : i32
    %c0_i32_0 = arith.constant 0 : i32
    return %arg0, %c0_i32 : i32, i32
  }
  func.func @transform_1(%arg0: i32) -> (i32, i32) {
    %c0_i32 = arith.constant 0 : i32
    %c0_i32_0 = arith.constant 0 : i32
    %c0_i32_1 = arith.constant 0 : i32
    return %c0_i32, %c0_i32_0 : i32, i32
  }
  func.func @transform_2(%arg0: i32) -> (i32, i32) {
    %c0_i32 = arith.constant 0 : i32
    %c0_i32_0 = arith.constant 0 : i32
    %c0_i32_1 = arith.constant 0 : i32
    return %c0_i32, %c0_i32_0 : i32, i32
  }
  func.func @transform_3(%arg0: i32) -> (i32, i32) {
    %c0_i32 = arith.constant 0 : i32
    %c0_i32_0 = arith.constant 0 : i32
    %c0_i32_1 = arith.constant 0 : i32
    return %c0_i32, %c0_i32_0 : i32, i32
  }
  func.func @transform_4(%arg0: i32) -> (i32, i32) {
    %c0_i32 = arith.constant 0 : i32
    %c0_i32_0 = arith.constant 0 : i32
    return %arg0, %c0_i32 : i32, i32
  }
}

module attributes {stable_mosaic.version = 11 : i64} {
  func.func @_gemm_bn_fused_kernel(%arg0: i32, %arg1: memref<128x128xbf16, #tpu.memory_space<vmem>>, %arg2: memref<128x128xbf16, #tpu.memory_space<vmem>>, %arg3: memref<1x128xf32, #tpu.memory_space<vmem>>, %arg4: memref<1x128xf32, #tpu.memory_space<vmem>>, %arg5: memref<128x128xf32, #tpu.memory_space<vmem>>) attributes {dimension_semantics = [#tpu.dimension_semantics<arbitrary>], iteration_bounds = array<i64: 1>, scalar_prefetch = 0 : i64, scratch_operands = 0 : i64, tpu.core_type = #tpu.core_type<tc>, window_params = [{transform_indices = @transform_0, window_bounds = array<i64: 128, 128>}, {pipeline_mode = #tpu.pipeline_mode<synchronous>, transform_indices = @transform_1, window_bounds = array<i64: 128, 128>}, {pipeline_mode = #tpu.pipeline_mode<synchronous>, transform_indices = @transform_2, window_bounds = array<i64: 1, 128>}, {pipeline_mode = #tpu.pipeline_mode<synchronous>, transform_indices = @transform_3, window_bounds = array<i64: 1, 128>}, {transform_indices = @transform_4, window_bounds = array<i64: 128, 128>}]} {
    %c0 = arith.constant 0 : index
    %c0_0 = arith.constant 0 : index
    %0 = vector.load %arg1[%c0, %c0_0] : memref<128x128xbf16, #tpu.memory_space<vmem>>, vector<128x128xbf16>
    %c0_1 = arith.constant 0 : index
    %c0_2 = arith.constant 0 : index
    %1 = vector.load %arg2[%c0_1, %c0_2] : memref<128x128xbf16, #tpu.memory_space<vmem>>, vector<128x128xbf16>
    %cst = arith.constant dense<0.000000e+00> : vector<128x128xf32>
    %2 = tpu.matmul %0, %1, %cst {dimension_numbers = #tpu.dot_dimension_numbers<[1], [0], [0], [1], [0, 0, 1, 1], [], []>} : vector<128x128xbf16>, vector<128x128xbf16>, vector<128x128xf32> -> vector<128x128xf32>
    %cst_3 = arith.constant dense<0.000000e+00> : vector<128xf32>
    %3 = vector.multi_reduction <add>, %2, %cst_3 [0] : vector<128x128xf32> to vector<128xf32>
    %4 = vector.shape_cast %3 : vector<128xf32> to vector<1x128xf32>
    %cst_4 = arith.constant 7.812500e-03 : f32
    %5 = vector.broadcast %cst_4 : f32 to vector<1x128xf32>
    %6 = arith.mulf %4, %5 : vector<1x128xf32>
    %7 = arith.mulf %2, %2 : vector<128x128xf32>
    %cst_5 = arith.constant dense<0.000000e+00> : vector<128xf32>
    %8 = vector.multi_reduction <add>, %7, %cst_5 [0] : vector<128x128xf32> to vector<128xf32>
    %9 = vector.shape_cast %8 : vector<128xf32> to vector<1x128xf32>
    %cst_6 = arith.constant 7.812500e-03 : f32
    %10 = vector.broadcast %cst_6 : f32 to vector<1x128xf32>
    %11 = arith.mulf %9, %10 : vector<1x128xf32>
    %12 = arith.mulf %6, %6 : vector<1x128xf32>
    %13 = arith.subf %11, %12 : vector<1x128xf32>
    %cst_7 = arith.constant 0.000000e+00 : f32
    %14 = vector.broadcast %cst_7 : f32 to vector<1x128xf32>
    %15 = arith.maximumf %13, %14 : vector<1x128xf32>
    %16 = vector.broadcast %6 : vector<1x128xf32> to vector<128x128xf32>
    %17 = arith.subf %2, %16 : vector<128x128xf32>
    %cst_8 = arith.constant 9.99999974E-6 : f32
    %18 = vector.broadcast %cst_8 : f32 to vector<1x128xf32>
    %19 = arith.addf %15, %18 : vector<1x128xf32>
    %20 = math.rsqrt %19 : vector<1x128xf32>
    %21 = vector.broadcast %20 : vector<1x128xf32> to vector<128x128xf32>
    %22 = arith.mulf %17, %21 : vector<128x128xf32>
    %c0_9 = arith.constant 0 : index
    %c0_10 = arith.constant 0 : index
    %23 = vector.load %arg3[%c0_9, %c0_10] : memref<1x128xf32, #tpu.memory_space<vmem>>, vector<1x128xf32>
    %24 = vector.broadcast %23 : vector<1x128xf32> to vector<128x128xf32>
    %25 = arith.mulf %22, %24 : vector<128x128xf32>
    %c0_11 = arith.constant 0 : index
    %c0_12 = arith.constant 0 : index
    %26 = vector.load %arg4[%c0_11, %c0_12] : memref<1x128xf32, #tpu.memory_space<vmem>>, vector<1x128xf32>
    %27 = vector.broadcast %26 : vector<1x128xf32> to vector<128x128xf32>
    %28 = arith.addf %25, %27 : vector<128x128xf32>
    %cst_13 = arith.constant 0.000000e+00 : f32
    %29 = vector.broadcast %cst_13 : f32 to vector<128x128xf32>
    %30 = arith.cmpf ogt, %28, %29 : vector<128x128xf32>
    %cst_14 = arith.constant 1.000000e-01 : f32
    %31 = vector.broadcast %cst_14 : f32 to vector<128x128xf32>
    %32 = arith.mulf %31, %28 : vector<128x128xf32>
    %33 = arith.select %30, %28, %32 : vector<128x128xi1>, vector<128x128xf32>
    %c0_15 = arith.constant 0 : index
    %c0_16 = arith.constant 0 : index
    %34 = vector.load %arg5[%c0_15, %c0_16] : memref<128x128xf32, #tpu.memory_space<vmem>>, vector<128x128xf32>
    tpu.vector_store %arg5[%c0_15, %c0_16], %33 {strides = array<i32>} : memref<128x128xf32, #tpu.memory_space<vmem>>, vector<128x128xf32>,
    return
  }
  func.func @transform_0(%arg0: i32) -> (i32, i32) {
    %c0_i32 = arith.constant 0 : i32
    %c0_i32_0 = arith.constant 0 : i32
    return %arg0, %c0_i32 : i32, i32
  }
  func.func @transform_1(%arg0: i32) -> (i32, i32) {
    %c0_i32 = arith.constant 0 : i32
    %c0_i32_0 = arith.constant 0 : i32
    %c0_i32_1 = arith.constant 0 : i32
    return %c0_i32, %c0_i32_0 : i32, i32
  }
  func.func @transform_2(%arg0: i32) -> (i32, i32) {
    %c0_i32 = arith.constant 0 : i32
    %c0_i32_0 = arith.constant 0 : i32
    %c0_i32_1 = arith.constant 0 : i32
    return %c0_i32, %c0_i32_0 : i32, i32
  }
  func.func @transform_3(%arg0: i32) -> (i32, i32) {
    %c0_i32 = arith.constant 0 : i32
    %c0_i32_0 = arith.constant 0 : i32
    %c0_i32_1 = arith.constant 0 : i32
    return %c0_i32, %c0_i32_0 : i32, i32
  }
  func.func @transform_4(%arg0: i32) -> (i32, i32) {
    %c0_i32 = arith.constant 0 : i32
    %c0_i32_0 = arith.constant 0 : i32
    return %arg0, %c0_i32 : i32, i32
  }
}

module attributes {stable_mosaic.version = 11 : i64} {
  func.func @_gemm_bias_kernel(%arg0: i32, %arg1: memref<256x32xbf16, #tpu.memory_space<vmem>>, %arg2: memref<32x128xbf16, #tpu.memory_space<vmem>>, %arg3: memref<1x128xf32, #tpu.memory_space<vmem>>, %arg4: memref<256x128xf32, #tpu.memory_space<vmem>>) attributes {dimension_semantics = [#tpu.dimension_semantics<parallel>], iteration_bounds = array<i64: 2>, scalar_prefetch = 0 : i64, scratch_operands = 0 : i64, tpu.core_type = #tpu.core_type<tc>, window_params = [{transform_indices = @transform_0, window_bounds = array<i64: 256, 32>}, {pipeline_mode = #tpu.pipeline_mode<synchronous>, transform_indices = @transform_1, window_bounds = array<i64: 32, 128>}, {pipeline_mode = #tpu.pipeline_mode<synchronous>, transform_indices = @transform_2, window_bounds = array<i64: 1, 128>}, {transform_indices = @transform_3, window_bounds = array<i64: 256, 128>}]} {
    %c0 = arith.constant 0 : index
    %c0_0 = arith.constant 0 : index
    %0 = vector.load %arg1[%c0, %c0_0] : memref<256x32xbf16, #tpu.memory_space<vmem>>, vector<256x32xbf16>
    %c0_1 = arith.constant 0 : index
    %c0_2 = arith.constant 0 : index
    %1 = vector.load %arg2[%c0_1, %c0_2] : memref<32x128xbf16, #tpu.memory_space<vmem>>, vector<32x128xbf16>
    %cst = arith.constant dense<0.000000e+00> : vector<256x128xf32>
    %2 = tpu.matmul %0, %1, %cst {dimension_numbers = #tpu.dot_dimension_numbers<[1], [0], [0], [1], [0, 0, 1, 1], [], []>} : vector<256x32xbf16>, vector<32x128xbf16>, vector<256x128xf32> -> vector<256x128xf32>
    %c0_3 = arith.constant 0 : index
    %c0_4 = arith.constant 0 : index
    %3 = vector.load %arg3[%c0_3, %c0_4] : memref<1x128xf32, #tpu.memory_space<vmem>>, vector<1x128xf32>
    %4 = vector.broadcast %3 : vector<1x128xf32> to vector<256x128xf32>
    %5 = arith.addf %2, %4 : vector<256x128xf32>
    %c0_5 = arith.constant 0 : index
    %c0_6 = arith.constant 0 : index
    %6 = vector.load %arg4[%c0_5, %c0_6] : memref<256x128xf32, #tpu.memory_space<vmem>>, vector<256x128xf32>
    tpu.vector_store %arg4[%c0_5, %c0_6], %5 {strides = array<i32>} : memref<256x128xf32, #tpu.memory_space<vmem>>, vector<256x128xf32>,
    return
  }
  func.func @transform_0(%arg0: i32) -> (i32, i32) {
    %c0_i32 = arith.constant 0 : i32
    %c0_i32_0 = arith.constant 0 : i32
    return %arg0, %c0_i32 : i32, i32
  }
  func.func @transform_1(%arg0: i32) -> (i32, i32) {
    %c0_i32 = arith.constant 0 : i32
    %c0_i32_0 = arith.constant 0 : i32
    %c0_i32_1 = arith.constant 0 : i32
    return %c0_i32, %c0_i32_0 : i32, i32
  }
  func.func @transform_2(%arg0: i32) -> (i32, i32) {
    %c0_i32 = arith.constant 0 : i32
    %c0_i32_0 = arith.constant 0 : i32
    %c0_i32_1 = arith.constant 0 : i32
    return %c0_i32, %c0_i32_0 : i32, i32
  }
  func.func @transform_3(%arg0: i32) -> (i32, i32) {
    %c0_i32 = arith.constant 0 : i32
    %c0_i32_0 = arith.constant 0 : i32
    return %arg0, %c0_i32 : i32, i32
  }
}

module attributes {stable_mosaic.version = 11 : i64} {
  func.func @_gemm_bias_kernel(%arg0: i32, %arg1: memref<128x128xbf16, #tpu.memory_space<vmem>>, %arg2: memref<128x128xbf16, #tpu.memory_space<vmem>>, %arg3: memref<1x128xf32, #tpu.memory_space<vmem>>, %arg4: memref<128x128xf32, #tpu.memory_space<vmem>>) attributes {dimension_semantics = [#tpu.dimension_semantics<parallel>], iteration_bounds = array<i64: 1>, scalar_prefetch = 0 : i64, scratch_operands = 0 : i64, tpu.core_type = #tpu.core_type<tc>, window_params = [{transform_indices = @transform_0, window_bounds = array<i64: 128, 128>}, {pipeline_mode = #tpu.pipeline_mode<synchronous>, transform_indices = @transform_1, window_bounds = array<i64: 128, 128>}, {pipeline_mode = #tpu.pipeline_mode<synchronous>, transform_indices = @transform_2, window_bounds = array<i64: 1, 128>}, {transform_indices = @transform_3, window_bounds = array<i64: 128, 128>}]} {
    %c0 = arith.constant 0 : index
    %c0_0 = arith.constant 0 : index
    %0 = vector.load %arg1[%c0, %c0_0] : memref<128x128xbf16, #tpu.memory_space<vmem>>, vector<128x128xbf16>
    %c0_1 = arith.constant 0 : index
    %c0_2 = arith.constant 0 : index
    %1 = vector.load %arg2[%c0_1, %c0_2] : memref<128x128xbf16, #tpu.memory_space<vmem>>, vector<128x128xbf16>
    %cst = arith.constant dense<0.000000e+00> : vector<128x128xf32>
    %2 = tpu.matmul %0, %1, %cst {dimension_numbers = #tpu.dot_dimension_numbers<[1], [0], [0], [1], [0, 0, 1, 1], [], []>} : vector<128x128xbf16>, vector<128x128xbf16>, vector<128x128xf32> -> vector<128x128xf32>
    %c0_3 = arith.constant 0 : index
    %c0_4 = arith.constant 0 : index
    %3 = vector.load %arg3[%c0_3, %c0_4] : memref<1x128xf32, #tpu.memory_space<vmem>>, vector<1x128xf32>
    %4 = vector.broadcast %3 : vector<1x128xf32> to vector<128x128xf32>
    %5 = arith.addf %2, %4 : vector<128x128xf32>
    %c0_5 = arith.constant 0 : index
    %c0_6 = arith.constant 0 : index
    %6 = vector.load %arg4[%c0_5, %c0_6] : memref<128x128xf32, #tpu.memory_space<vmem>>, vector<128x128xf32>
    tpu.vector_store %arg4[%c0_5, %c0_6], %5 {strides = array<i32>} : memref<128x128xf32, #tpu.memory_space<vmem>>, vector<128x128xf32>,
    return
  }
  func.func @transform_0(%arg0: i32) -> (i32, i32) {
    %c0_i32 = arith.constant 0 : i32
    %c0_i32_0 = arith.constant 0 : i32
    return %arg0, %c0_i32 : i32, i32
  }
  func.func @transform_1(%arg0: i32) -> (i32, i32) {
    %c0_i32 = arith.constant 0 : i32
    %c0_i32_0 = arith.constant 0 : i32
    %c0_i32_1 = arith.constant 0 : i32
    return %c0_i32, %c0_i32_0 : i32, i32
  }
  func.func @transform_2(%arg0: i32) -> (i32, i32) {
    %c0_i32 = arith.constant 0 : i32
    %c0_i32_0 = arith.constant 0 : i32
    %c0_i32_1 = arith.constant 0 : i32
    return %c0_i32, %c0_i32_0 : i32, i32
  }
  func.func @transform_3(%arg0: i32) -> (i32, i32) {
    %c0_i32 = arith.constant 0 : i32
    %c0_i32_0 = arith.constant 0 : i32
    return %arg0, %c0_i32 : i32, i32
  }
}

module attributes {stable_mosaic.version = 11 : i64} {
  func.func @_yolo_kernel(%arg0: i32, %arg1: memref<256x128xf32, #tpu.memory_space<vmem>>, %arg2: memref<8x128xf32, #tpu.memory_space<vmem>>, %arg3: memref<256x128xf32, #tpu.memory_space<vmem>>) attributes {dimension_semantics = [#tpu.dimension_semantics<parallel>], iteration_bounds = array<i64: 2>, scalar_prefetch = 0 : i64, scratch_operands = 0 : i64, tpu.core_type = #tpu.core_type<tc>, window_params = [{transform_indices = @transform_0, window_bounds = array<i64: 256, 128>}, {pipeline_mode = #tpu.pipeline_mode<synchronous>, transform_indices = @transform_1, window_bounds = array<i64: 8, 128>}, {transform_indices = @transform_2, window_bounds = array<i64: 256, 128>}]} {
    %c0 = arith.constant 0 : index
    %c0_0 = arith.constant 0 : index
    %0 = vector.load %arg1[%c0, %c0_0] : memref<256x128xf32, #tpu.memory_space<vmem>>, vector<256x128xf32>
    %c0_1 = arith.constant 0 : index
    %c0_2 = arith.constant 0 : index
    %1 = vector.load %arg2[%c0_1, %c0_2] : memref<8x128xf32, #tpu.memory_space<vmem>>, vector<1x128xf32>
    %cst = arith.constant 5.000000e-01 : f32
    %2 = vector.broadcast %cst : f32 to vector<1x128xf32>
    %3 = arith.cmpf ogt, %1, %2 : vector<1x128xf32>
    %c1 = arith.constant 1 : index
    %c0_3 = arith.constant 0 : index
    %4 = vector.load %arg2[%c1, %c0_3] : memref<8x128xf32, #tpu.memory_space<vmem>>, vector<1x128xf32>
    %cst_4 = arith.constant 5.000000e-01 : f32
    %5 = vector.broadcast %cst_4 : f32 to vector<1x128xf32>
    %6 = arith.cmpf ogt, %4, %5 : vector<1x128xf32>
    %c2 = arith.constant 2 : index
    %c0_5 = arith.constant 0 : index
    %7 = vector.load %arg2[%c2, %c0_5] : memref<8x128xf32, #tpu.memory_space<vmem>>, vector<1x128xf32>
    %c3 = arith.constant 3 : index
    %c0_6 = arith.constant 0 : index
    %8 = vector.load %arg2[%c3, %c0_6] : memref<8x128xf32, #tpu.memory_space<vmem>>, vector<1x128xf32>
    %c4 = arith.constant 4 : index
    %c0_7 = arith.constant 0 : index
    %9 = vector.load %arg2[%c4, %c0_7] : memref<8x128xf32, #tpu.memory_space<vmem>>, vector<1x128xf32>
    %c5 = arith.constant 5 : index
    %c0_8 = arith.constant 0 : index
    %10 = vector.load %arg2[%c5, %c0_8] : memref<8x128xf32, #tpu.memory_space<vmem>>, vector<1x128xf32>
    %c256_i32 = arith.constant 256 : i32
    %11 = arith.muli %arg0, %c256_i32 : i32
    %12 = arith.sitofp %11 : i32 to f32
    %13 = tpu.iota {dimensions = array<i32: 0>} : vector<256x1xi32>
    %14 = arith.sitofp %13 : vector<256x1xi32> to vector<256x1xf32>
    %15 = vector.broadcast %12 : f32 to vector<256x1xf32>
    %16 = arith.addf %14, %15 : vector<256x1xf32>
    %cst_9 = arith.constant 5.000000e-01 : f32
    %17 = vector.broadcast %cst_9 : f32 to vector<256x1xf32>
    %18 = arith.addf %16, %17 : vector<256x1xf32>
    %cst_10 = arith.constant 2.560000e+02 : f32
    %19 = vector.broadcast %cst_10 : f32 to vector<256x1xf32>
    %20 = arith.divf %18, %19 : vector<256x1xf32>
    %21 = math.floor %20 : vector<256x1xf32>
    %cst_11 = arith.constant 2.560000e+02 : f32
    %22 = vector.broadcast %cst_11 : f32 to vector<256x1xf32>
    %23 = arith.mulf %21, %22 : vector<256x1xf32>
    %24 = arith.subf %16, %23 : vector<256x1xf32>
    %cst_12 = arith.constant 5.000000e-01 : f32
    %25 = vector.broadcast %cst_12 : f32 to vector<256x1xf32>
    %26 = arith.addf %24, %25 : vector<256x1xf32>
    %cst_13 = arith.constant 1.600000e+01 : f32
    %27 = vector.broadcast %cst_13 : f32 to vector<256x1xf32>
    %28 = arith.divf %26, %27 : vector<256x1xf32>
    %29 = math.floor %28 : vector<256x1xf32>
    %cst_14 = arith.constant 1.600000e+01 : f32
    %30 = vector.broadcast %cst_14 : f32 to vector<256x1xf32>
    %31 = arith.mulf %29, %30 : vector<256x1xf32>
    %32 = arith.subf %24, %31 : vector<256x1xf32>
    %33 = arith.negf %0 : vector<256x128xf32>
    %34 = math.exp %33 : vector<256x128xf32>
    %cst_15 = arith.constant 1.000000e+00 : f32
    %35 = vector.broadcast %cst_15 : f32 to vector<256x128xf32>
    %36 = arith.addf %35, %34 : vector<256x128xf32>
    %37 = arith.divf %35, %36 : vector<256x128xf32>
    %38 = vector.shape_cast %3 : vector<1x128xi1> to vector<1x128xi1>
    %39 = vector.broadcast %38 : vector<1x128xi1> to vector<256x128xi1>
    %40 = arith.select %39, %37, %0 : vector<256x128xi1>, vector<256x128xf32>
    %41 = math.exp %0 : vector<256x128xf32>
    %42 = vector.broadcast %7 : vector<1x128xf32> to vector<256x128xf32>
    %43 = arith.mulf %41, %42 : vector<256x128xf32>
    %44 = vector.shape_cast %6 : vector<1x128xi1> to vector<1x128xi1>
    %45 = vector.broadcast %44 : vector<1x128xi1> to vector<256x128xi1>
    %46 = arith.select %45, %43, %40 : vector<256x128xi1>, vector<256x128xf32>
    %47 = vector.broadcast %32 : vector<256x1xf32> to vector<256x128xf32>
    %48 = vector.broadcast %8 : vector<1x128xf32> to vector<256x128xf32>
    %49 = arith.mulf %47, %48 : vector<256x128xf32>
    %50 = arith.addf %46, %49 : vector<256x128xf32>
    %51 = vector.broadcast %29 : vector<256x1xf32> to vector<256x128xf32>
    %52 = vector.broadcast %9 : vector<1x128xf32> to vector<256x128xf32>
    %53 = arith.mulf %51, %52 : vector<256x128xf32>
    %54 = arith.addf %50, %53 : vector<256x128xf32>
    %55 = vector.broadcast %10 : vector<1x128xf32> to vector<256x128xf32>
    %56 = arith.mulf %54, %55 : vector<256x128xf32>
    %c0_16 = arith.constant 0 : index
    %c0_17 = arith.constant 0 : index
    %57 = vector.load %arg3[%c0_16, %c0_17] : memref<256x128xf32, #tpu.memory_space<vmem>>, vector<256x128xf32>
    tpu.vector_store %arg3[%c0_16, %c0_17], %56 {strides = array<i32>} : memref<256x128xf32, #tpu.memory_space<vmem>>, vector<256x128xf32>,
    return
  }
  func.func @transform_0(%arg0: i32) -> (i32, i32) {
    %c0_i32 = arith.constant 0 : i32
    %c0_i32_0 = arith.constant 0 : i32
    return %arg0, %c0_i32 : i32, i32
  }
  func.func @transform_1(%arg0: i32) -> (i32, i32) {
    %c0_i32 = arith.constant 0 : i32
    %c0_i32_0 = arith.constant 0 : i32
    %c0_i32_1 = arith.constant 0 : i32
    return %c0_i32, %c0_i32_0 : i32, i32
  }
  func.func @transform_2(%arg0: i32) -> (i32, i32) {
    %c0_i32 = arith.constant 0 : i32
    %c0_i32_0 = arith.constant 0 : i32
    return %arg0, %c0_i32 : i32, i32
  }
}

module attributes {stable_mosaic.version = 11 : i64} {
  func.func @_yolo_kernel(%arg0: i32, %arg1: memref<128x128xf32, #tpu.memory_space<vmem>>, %arg2: memref<8x128xf32, #tpu.memory_space<vmem>>, %arg3: memref<128x128xf32, #tpu.memory_space<vmem>>) attributes {dimension_semantics = [#tpu.dimension_semantics<parallel>], iteration_bounds = array<i64: 1>, scalar_prefetch = 0 : i64, scratch_operands = 0 : i64, tpu.core_type = #tpu.core_type<tc>, window_params = [{transform_indices = @transform_0, window_bounds = array<i64: 128, 128>}, {pipeline_mode = #tpu.pipeline_mode<synchronous>, transform_indices = @transform_1, window_bounds = array<i64: 8, 128>}, {transform_indices = @transform_2, window_bounds = array<i64: 128, 128>}]} {
    %c0 = arith.constant 0 : index
    %c0_0 = arith.constant 0 : index
    %0 = vector.load %arg1[%c0, %c0_0] : memref<128x128xf32, #tpu.memory_space<vmem>>, vector<128x128xf32>
    %c0_1 = arith.constant 0 : index
    %c0_2 = arith.constant 0 : index
    %1 = vector.load %arg2[%c0_1, %c0_2] : memref<8x128xf32, #tpu.memory_space<vmem>>, vector<1x128xf32>
    %cst = arith.constant 5.000000e-01 : f32
    %2 = vector.broadcast %cst : f32 to vector<1x128xf32>
    %3 = arith.cmpf ogt, %1, %2 : vector<1x128xf32>
    %c1 = arith.constant 1 : index
    %c0_3 = arith.constant 0 : index
    %4 = vector.load %arg2[%c1, %c0_3] : memref<8x128xf32, #tpu.memory_space<vmem>>, vector<1x128xf32>
    %cst_4 = arith.constant 5.000000e-01 : f32
    %5 = vector.broadcast %cst_4 : f32 to vector<1x128xf32>
    %6 = arith.cmpf ogt, %4, %5 : vector<1x128xf32>
    %c2 = arith.constant 2 : index
    %c0_5 = arith.constant 0 : index
    %7 = vector.load %arg2[%c2, %c0_5] : memref<8x128xf32, #tpu.memory_space<vmem>>, vector<1x128xf32>
    %c3 = arith.constant 3 : index
    %c0_6 = arith.constant 0 : index
    %8 = vector.load %arg2[%c3, %c0_6] : memref<8x128xf32, #tpu.memory_space<vmem>>, vector<1x128xf32>
    %c4 = arith.constant 4 : index
    %c0_7 = arith.constant 0 : index
    %9 = vector.load %arg2[%c4, %c0_7] : memref<8x128xf32, #tpu.memory_space<vmem>>, vector<1x128xf32>
    %c5 = arith.constant 5 : index
    %c0_8 = arith.constant 0 : index
    %10 = vector.load %arg2[%c5, %c0_8] : memref<8x128xf32, #tpu.memory_space<vmem>>, vector<1x128xf32>
    %c128_i32 = arith.constant 128 : i32
    %11 = arith.muli %arg0, %c128_i32 : i32
    %12 = arith.sitofp %11 : i32 to f32
    %13 = tpu.iota {dimensions = array<i32: 0>} : vector<128x1xi32>
    %14 = arith.sitofp %13 : vector<128x1xi32> to vector<128x1xf32>
    %15 = vector.broadcast %12 : f32 to vector<128x1xf32>
    %16 = arith.addf %14, %15 : vector<128x1xf32>
    %cst_9 = arith.constant 5.000000e-01 : f32
    %17 = vector.broadcast %cst_9 : f32 to vector<128x1xf32>
    %18 = arith.addf %16, %17 : vector<128x1xf32>
    %cst_10 = arith.constant 6.400000e+01 : f32
    %19 = vector.broadcast %cst_10 : f32 to vector<128x1xf32>
    %20 = arith.divf %18, %19 : vector<128x1xf32>
    %21 = math.floor %20 : vector<128x1xf32>
    %cst_11 = arith.constant 6.400000e+01 : f32
    %22 = vector.broadcast %cst_11 : f32 to vector<128x1xf32>
    %23 = arith.mulf %21, %22 : vector<128x1xf32>
    %24 = arith.subf %16, %23 : vector<128x1xf32>
    %cst_12 = arith.constant 5.000000e-01 : f32
    %25 = vector.broadcast %cst_12 : f32 to vector<128x1xf32>
    %26 = arith.addf %24, %25 : vector<128x1xf32>
    %cst_13 = arith.constant 8.000000e+00 : f32
    %27 = vector.broadcast %cst_13 : f32 to vector<128x1xf32>
    %28 = arith.divf %26, %27 : vector<128x1xf32>
    %29 = math.floor %28 : vector<128x1xf32>
    %cst_14 = arith.constant 8.000000e+00 : f32
    %30 = vector.broadcast %cst_14 : f32 to vector<128x1xf32>
    %31 = arith.mulf %29, %30 : vector<128x1xf32>
    %32 = arith.subf %24, %31 : vector<128x1xf32>
    %33 = arith.negf %0 : vector<128x128xf32>
    %34 = math.exp %33 : vector<128x128xf32>
    %cst_15 = arith.constant 1.000000e+00 : f32
    %35 = vector.broadcast %cst_15 : f32 to vector<128x128xf32>
    %36 = arith.addf %35, %34 : vector<128x128xf32>
    %37 = arith.divf %35, %36 : vector<128x128xf32>
    %38 = vector.shape_cast %3 : vector<1x128xi1> to vector<1x128xi1>
    %39 = vector.broadcast %38 : vector<1x128xi1> to vector<128x128xi1>
    %40 = arith.select %39, %37, %0 : vector<128x128xi1>, vector<128x128xf32>
    %41 = math.exp %0 : vector<128x128xf32>
    %42 = vector.broadcast %7 : vector<1x128xf32> to vector<128x128xf32>
    %43 = arith.mulf %41, %42 : vector<128x128xf32>
    %44 = vector.shape_cast %6 : vector<1x128xi1> to vector<1x128xi1>
    %45 = vector.broadcast %44 : vector<1x128xi1> to vector<128x128xi1>
    %46 = arith.select %45, %43, %40 : vector<128x128xi1>, vector<128x128xf32>
    %47 = vector.broadcast %32 : vector<128x1xf32> to vector<128x128xf32>
    %48 = vector.broadcast %8 : vector<1x128xf32> to vector<128x128xf32>
    %49 = arith.mulf %47, %48 : vector<128x128xf32>
    %50 = arith.addf %46, %49 : vector<128x128xf32>
    %51 = vector.broadcast %29 : vector<128x1xf32> to vector<128x128xf32>
    %52 = vector.broadcast %9 : vector<1x128xf32> to vector<128x128xf32>
    %53 = arith.mulf %51, %52 : vector<128x128xf32>
    %54 = arith.addf %50, %53 : vector<128x128xf32>
    %55 = vector.broadcast %10 : vector<1x128xf32> to vector<128x128xf32>
    %56 = arith.mulf %54, %55 : vector<128x128xf32>
    %c0_16 = arith.constant 0 : index
    %c0_17 = arith.constant 0 : index
    %57 = vector.load %arg3[%c0_16, %c0_17] : memref<128x128xf32, #tpu.memory_space<vmem>>, vector<128x128xf32>
    tpu.vector_store %arg3[%c0_16, %c0_17], %56 {strides = array<i32>} : memref<128x128xf32, #tpu.memory_space<vmem>>, vector<128x128xf32>,
    return
  }
  func.func @transform_0(%arg0: i32) -> (i32, i32) {
    %c0_i32 = arith.constant 0 : i32
    %c0_i32_0 = arith.constant 0 : i32
    return %arg0, %c0_i32 : i32, i32
  }
  func.func @transform_1(%arg0: i32) -> (i32, i32) {
    %c0_i32 = arith.constant 0 : i32
    %c0_i32_0 = arith.constant 0 : i32
    %c0_i32_1 = arith.constant 0 : i32
    return %c0_i32, %c0_i32_0 : i32, i32
  }
  func.func @transform_2(%arg0: i32) -> (i32, i32) {
    %c0_i32 = arith.constant 0 : i32
    %c0_i32_0 = arith.constant 0 : i32
    return %arg0, %c0_i32 : i32, i32
  }
}

</mosaic_0001>

<llo_original>
// kernel: _lambda_.11
$region0: #{_lambda_.11}
  #allocation0 [shape = 'u32[]', space=smem, size = 0x4, offset = 0x4, fixed_abs, tag = 'smem constant byte address 0x4 - core index']
  #allocation1 [shape = 'u32[144,128]{1,0:T(1,128)}', space=vmem, size = 0x12000, scoped, tag = 'internal scratch']
  %s0 = inlined_call_operand.vmem [shape: f32[2048,128], index: 0, kind: input, shape index: {}]
  %s1 = inlined_call_operand.vmem [shape: f32[1,128], index: 1, kind: input, shape index: {}]
  %s2 = inlined_call_operand.vmem [shape: f32[1,128], index: 2, kind: input, shape index: {}]
  %s3 = inlined_call_operand.vmem [shape: f32[2048,128], index: 3, kind: output, shape index: {}]
  %s4 = sld [smem:[#allocation0]]
  $region45: #{_lambda_.11} parent=0
    _
  %s6 = ssub.s32 1, %s4
  %s7 = scalar_select 0, %s6, %s4
  loop: start=0, step=1, limit=6
  $region2: #{_lambda_.11} parent=0 // loop_pre_header
    _
  $region3: #{_lambda_.11} parent=0 // loop_header
    %s9 = sphi 0, %s13
    %p10 = scmp.ge.s32.totalorder %s9, 6
    %s19 = sphi 0, %s21
    %s22 = sphi 0, %s19
    %s23 = sphi 0, %s22
    %s39 = sphi 0, %s23
    %s43 = sphi 0, %s43
    %s45 = sphi 0, %s43
    %s46 = sphi 0, %s45
    %s60 = sphi 0, %s46
    %s64 = sphi 0, %s64
    %s66 = sphi 0, %s64
    %s67 = sphi 0, %s66
    %s81 = sphi 0, %s67
    %s87 = sphi 0, %s89
    %s90 = sphi 0, %s87
    %s91 = sphi 0, %s90
    %s107 = sphi 0, %s91
  $region4: #{_lambda_.11} parent=0 // loop_header_branch
    %12 = sbr.rel (%p10) target = $region8
  $region5: #{_lambda_.11} parent=0 // loop_body
    %s14 = ssub.s32 %s9, 1
    %s15 = ssub.s32 %s9, 2
    %s16 = sadd.s32 %s9, 1
    %s17 = ssub.s32 %s9, %s16
    %p18 = scmp.eq.s32.totalorder %s17, 0
    %s20 = sadd.s32 %s19, 1
    %s21 = scalar_select %p18, %s19, %s20
    %p24 = pneg %p18
    %p25 = scmp.eq.s32.totalorder %s9, 3
    %p26 = por %p24, %p25
    %p27 = scmp.ne.s32.totalorder %s19, %s22
    %p28 = scmp.eq.s32.totalorder %s9, 0
    %p29 = por %p27, %p28
    %p30 = scmp.ne.s32.totalorder %s19, %s22
    %p31 = scmp.eq.s32.totalorder %s14, 3
    %p32 = por %p30, %p31
    %p33 = scmp.ne.s32.totalorder %s22, %s23
    %p34 = scmp.eq.s32.totalorder %s14, 0
    %p35 = por %p33, %p34
    %p36 = scmp.ne.s32.totalorder %s22, %s23
    %p37 = scmp.eq.s32.totalorder %s15, 3
    %p38 = por %p36, %p37
    %p40 = scmp.ne.s32.totalorder %s23, %s39
    %p41 = scmp.eq.s32.totalorder %s15, 0
    %p42 = por %p40, %p41
    %s44 = sadd.s32 %s43, 1
    %p47 = scmp.eq.s32.totalorder %s9, 3
    %p48 = scmp.ne.s32.totalorder %s43, %s45
    %p49 = scmp.eq.s32.totalorder %s9, 0
    %p50 = por %p48, %p49
    %p51 = scmp.ne.s32.totalorder %s43, %s45
    %p52 = scmp.eq.s32.totalorder %s14, 3
    %p53 = por %p51, %p52
    %p54 = scmp.ne.s32.totalorder %s45, %s46
    %p55 = scmp.eq.s32.totalorder %s14, 0
    %p56 = por %p54, %p55
    %p57 = scmp.ne.s32.totalorder %s45, %s46
    %p58 = scmp.eq.s32.totalorder %s15, 3
    %p59 = por %p57, %p58
    %p61 = scmp.ne.s32.totalorder %s46, %s60
    %p62 = scmp.eq.s32.totalorder %s15, 0
    %p63 = por %p61, %p62
    %s65 = sadd.s32 %s64, 1
    %p68 = scmp.eq.s32.totalorder %s9, 3
    %p69 = scmp.ne.s32.totalorder %s64, %s66
    %p70 = scmp.eq.s32.totalorder %s9, 0
    %p71 = por %p69, %p70
    %p72 = scmp.ne.s32.totalorder %s64, %s66
    %p73 = scmp.eq.s32.totalorder %s14, 3
    %p74 = por %p72, %p73
    %p75 = scmp.ne.s32.totalorder %s66, %s67
    %p76 = scmp.eq.s32.totalorder %s14, 0
    %p77 = por %p75, %p76
    %p78 = scmp.ne.s32.totalorder %s66, %s67
    %p79 = scmp.eq.s32.totalorder %s15, 3
    %p80 = por %p78, %p79
    %p82 = scmp.ne.s32.totalorder %s67, %s81
    %p83 = scmp.eq.s32.totalorder %s15, 0
    %p84 = por %p82, %p83
    %s85 = ssub.s32 %s9, %s16
    %p86 = scmp.eq.s32.totalorder %s85, 0
    %s88 = sadd.s32 %s87, 1
    %s89 = scalar_select %p86, %s87, %s88
    %p92 = pneg %p86
    %p93 = scmp.eq.s32.totalorder %s9, 3
    %p94 = por %p92, %p93
    %p95 = scmp.ne.s32.totalorder %s87, %s90
    %p96 = scmp.eq.s32.totalorder %s9, 0
    %p97 = por %p95, %p96
    %p98 = scmp.ne.s32.totalorder %s87, %s90
    %p99 = scmp.eq.s32.totalorder %s14, 3
    %p100 = por %p98, %p99
    %p101 = scmp.ne.s32.totalorder %s90, %s91
    %p102 = scmp.eq.s32.totalorder %s14, 0
    %p103 = por %p101, %p102
    %p104 = scmp.ne.s32.totalorder %s90, %s91
    %p105 = scmp.eq.s32.totalorder %s15, 3
    %p106 = por %p104, %p105
    %p108 = scmp.ne.s32.totalorder %s91, %s107
    %p109 = scmp.eq.s32.totalorder %s15, 0
    %p110 = por %p108, %p109
    %p111 = scmp.le.s32.totalorder 1, %s9
    %p112 = scmp.lt.s32.totalorder %s9, 5
    %p113 = pnand %p111, %p112
    %p114 = pneg %p113
    // Predicated region
    $region9: #{_lambda_.11} parent=5 // pred_check
      _
    $region10: #{_lambda_.11} parent=5 // pred_check_branch
      %116 = sbr.rel (%p113) target = $region12
    $region11: #{_lambda_.11} parent=5 // pred_region
      %s117 = ssub.s32 %s9, 1
      // Predicated region
      $region13: #{_lambda_.11} parent=11 // pred_check
        %p118 = pneg %p56
      $region14: #{_lambda_.11} parent=11 // pred_check_branch
        %120 = sbr.rel (%p118) target = $region16
      $region15: #{_lambda_.11} parent=11 // pred_region
        _
      $region16: #{_lambda_.11} parent=11 // pred_fallthru
        _
      // Predicated region
      $region17: #{_lambda_.11} parent=11 // pred_check
        %p121 = pneg %p77
      $region18: #{_lambda_.11} parent=11 // pred_check_branch
        %123 = sbr.rel (%p121) target = $region20
      $region19: #{_lambda_.11} parent=11 // pred_region
        _
      $region20: #{_lambda_.11} parent=11 // pred_fallthru
        _
    $region12: #{_lambda_.11} parent=5 // pred_fallthru
      _
    %p124 = scmp.lt.s32.totalorder %s9, 4
    // Predicated region
    $region21: #{_lambda_.11} parent=5 // pred_check
      %p125 = pneg %p124
    $region22: #{_lambda_.11} parent=5 // pred_check_branch
      %127 = sbr.rel (%p125) target = $region24
    $region23: #{_lambda_.11} parent=5 // pred_region
      // Predicated region
      $region25: #{_lambda_.11} parent=23 // pred_check
        %p128 = pneg %p29
      $region26: #{_lambda_.11} parent=23 // pred_check_branch
        %130 = sbr.rel (%p128) target = $region28
      $region27: #{_lambda_.11} parent=23 // pred_region
        %s131 = smul.u32 64, %s9
        %p132 = scmp.lt.s32.totalorder %s131, 255
        %s133 = scalar_select %p132, %s131, 255
        %s134 = smul.addr %s133, 8
        %s135 = scalar_lea.vmem %s0, %s134
        %s136 = smul.u32 64, %s9
      $region28: #{_lambda_.11} parent=23 // pred_fallthru
        _
    $region24: #{_lambda_.11} parent=5 // pred_fallthru
      _
    %p137 = scmp.le.s32.totalorder 1, %s9
    %p138 = scmp.lt.s32.totalorder %s9, 5
    %p139 = pnand %p137, %p138
    %p140 = pneg %p139
    // Predicated region
    $region29: #{_lambda_.11} parent=5 // pred_check
      _
    $region30: #{_lambda_.11} parent=5 // pred_check_branch
      %142 = sbr.rel (%p139) target = $region32
    $region31: #{_lambda_.11} parent=5 // pred_region
      %s143 = ssub.s32 %s9, 1
      %s144 = smul.u32 64, %s14
      %p145 = scmp.lt.s32.totalorder %s144, 255
      %s146 = scalar_select %p145, %s144, 255
      %s147 = smul.addr %s146, 8
      %s148 = scalar_lea.vmem %s0, %s147
      %p149 = pneg %p35
      %p150 = pneg %p32
      %p151 = pneg %p56
      %p152 = pneg %p53
      %p153 = pneg %p77
      %p154 = pneg %p74
      %p155 = pneg %p103
      %p156 = pneg %p100
      %s157 = smul.u32 64, %s14
      %p158 = scmp.lt.s32.totalorder %s157, 255
      %s159 = scalar_select %p158, %s157, 255
      %s160 = smul.addr %s159, 8
      %s161 = scalar_lea.vmem %s3, %s160
      %s162 = smul.u32 64, %s14
      %p163 = scmp.lt.s32.totalorder %s162, 255
      %s164 = scalar_select %p163, %s162, 255
      %s165 = smul.addr %s164, 8
      %s166 = scalar_lea.vmem %s0, %s165
      %s167 = smul.u32 64, %s14
      %s168 = smul.u32 64, %s14
      %p169 = scmp.lt.s32.totalorder %s168, 255
      %s170 = scalar_select %p169, %s168, 255
      %s171 = smul.addr %s170, 8
      %s172 = scalar_lea.vmem %s3, %s171
      %s173 = smul.u32 64, %s14
      %v174 = vld [vmem:[%s166] sm:$0xff]
      %v175 = vld [vmem:[%s166 + $0x8] sm:$0xff]
      %v176 = vld [vmem:[%s166 + $0x10] sm:$0xff]
      %v177 = vld [vmem:[%s166 + $0x18] sm:$0xff]
      %v178 = vld [vmem:[%s166 + $0x20] sm:$0xff]
      %v179 = vld [vmem:[%s166 + $0x28] sm:$0xff]
      %v180 = vld [vmem:[%s166 + $0x30] sm:$0xff]
      %v181 = vld [vmem:[%s166 + $0x38] sm:$0xff]
      %v182 = vld [vmem:[%s166 + $0x40] sm:$0xff]
      %v183 = vld [vmem:[%s166 + $0x48] sm:$0xff]
      %v184 = vld [vmem:[%s166 + $0x50] sm:$0xff]
      %v185 = vld [vmem:[%s166 + $0x58] sm:$0xff]
      %v186 = vld [vmem:[%s166 + $0x60] sm:$0xff]
      %v187 = vld [vmem:[%s166 + $0x68] sm:$0xff]
      %v188 = vld [vmem:[%s166 + $0x70] sm:$0xff]
      %v189 = vld [vmem:[%s166 + $0x78] sm:$0xff]
      %v190 = vld [vmem:[%s166 + $0x80] sm:$0xff]
      %v191 = vld [vmem:[%s166 + $0x88] sm:$0xff]
      %v192 = vld [vmem:[%s166 + $0x90] sm:$0xff]
      %v193 = vld [vmem:[%s166 + $0x98] sm:$0xff]
      %v194 = vld [vmem:[%s166 + $0xa0] sm:$0xff]
      %v195 = vld [vmem:[%s166 + $0xa8] sm:$0xff]
      %v196 = vld [vmem:[%s166 + $0xb0] sm:$0xff]
      %v197 = vld [vmem:[%s166 + $0xb8] sm:$0xff]
      %v198 = vld [vmem:[%s166 + $0xc0] sm:$0xff]
      %v199 = vld [vmem:[%s166 + $0xc8] sm:$0xff]
      %v200 = vld [vmem:[%s166 + $0xd0] sm:$0xff]
      %v201 = vld [vmem:[%s166 + $0xd8] sm:$0xff]
      %v202 = vld [vmem:[%s166 + $0xe0] sm:$0xff]
      %v203 = vld [vmem:[%s166 + $0xe8] sm:$0xff]
      %v204 = vld [vmem:[%s166 + $0xf0] sm:$0xff]
      %v205 = vld [vmem:[%s166 + $0xf8] sm:$0xff]
      %v206 = vld [vmem:[%s166 + $0x100] sm:$0xff]
      %v207 = vld [vmem:[%s166 + $0x108] sm:$0xff]
      %v208 = vld [vmem:[%s166 + $0x110] sm:$0xff]
      %v209 = vld [vmem:[%s166 + $0x118] sm:$0xff]
      %v210 = vld [vmem:[%s166 + $0x120] sm:$0xff]
      %v211 = vld [vmem:[%s166 + $0x128] sm:$0xff]
      %v212 = vld [vmem:[%s166 + $0x130] sm:$0xff]
      %v213 = vld [vmem:[%s166 + $0x138] sm:$0xff]
      %v214 = vld [vmem:[%s166 + $0x140] sm:$0xff]
      %v215 = vld [vmem:[%s166 + $0x148] sm:$0xff]
      %v216 = vld [vmem:[%s166 + $0x150] sm:$0xff]
      %v217 = vld [vmem:[%s166 + $0x158] sm:$0xff]
      %v218 = vld [vmem:[%s166 + $0x160] sm:$0xff]
      %v219 = vld [vmem:[%s166 + $0x168] sm:$0xff]
      %v220 = vld [vmem:[%s166 + $0x170] sm:$0xff]
      %v221 = vld [vmem:[%s166 + $0x178] sm:$0xff]
      %v222 = vld [vmem:[%s166 + $0x180] sm:$0xff]
      %v223 = vld [vmem:[%s166 + $0x188] sm:$0xff]
      %v224 = vld [vmem:[%s166 + $0x190] sm:$0xff]
      %v225 = vld [vmem:[%s166 + $0x198] sm:$0xff]
      %v226 = vld [vmem:[%s166 + $0x1a0] sm:$0xff]
      %v227 = vld [vmem:[%s166 + $0x1a8] sm:$0xff]
      %v228 = vld [vmem:[%s166 + $0x1b0] sm:$0xff]
      %v229 = vld [vmem:[%s166 + $0x1b8] sm:$0xff]
      %v230 = vld [vmem:[%s166 + $0x1c0] sm:$0xff]
      %v231 = vld [vmem:[%s166 + $0x1c8] sm:$0xff]
      %v232 = vld [vmem:[%s166 + $0x1d0] sm:$0xff]
      %v233 = vld [vmem:[%s166 + $0x1d8] sm:$0xff]
      %v234 = vld [vmem:[%s166 + $0x1e0] sm:$0xff]
      %v235 = vld [vmem:[%s166 + $0x1e8] sm:$0xff]
      %v236 = vld [vmem:[%s166 + $0x1f0] sm:$0xff]
      %v237 = vld [vmem:[%s166 + $0x1f8] sm:$0xff]
      %v238 = vld [vmem:[%s1] sm:$0x1]
      %v240 = vlaneseq
      %v241 = vshrl.u32 %v240, 7
      %v242 = vsub.s32 0, %v241
      %v243 = vrot.slane %v238, %v242
      %v245 = vmul.f32 %v174, %v243
      %v246 = vmul.f32 %v175, %v243
      %v247 = vmul.f32 %v176, %v243
      %v248 = vmul.f32 %v177, %v243
      %v249 = vmul.f32 %v178, %v243
      %v250 = vmul.f32 %v179, %v243
      %v251 = vmul.f32 %v180, %v243
      %v252 = vmul.f32 %v181, %v243
      %v253 = vmul.f32 %v182, %v243
      %v254 = vmul.f32 %v183, %v243
      %v255 = vmul.f32 %v184, %v243
      %v256 = vmul.f32 %v185, %v243
      %v257 = vmul.f32 %v186, %v243
      %v258 = vmul.f32 %v187, %v243
      %v259 = vmul.f32 %v188, %v243
      %v260 = vmul.f32 %v189, %v243
      %v261 = vmul.f32 %v190, %v243
      %v262 = vmul.f32 %v191, %v243
      %v263 = vmul.f32 %v192, %v243
      %v264 = vmul.f32 %v193, %v243
      %v265 = vmul.f32 %v194, %v243
      %v266 = vmul.f32 %v195, %v243
      %v267 = vmul.f32 %v196, %v243
      %v268 = vmul.f32 %v197, %v243
      %v269 = vmul.f32 %v198, %v243
      %v270 = vmul.f32 %v199, %v243
      %v271 = vmul.f32 %v200, %v243
      %v272 = vmul.f32 %v201, %v243
      %v273 = vmul.f32 %v202, %v243
      %v274 = vmul.f32 %v203, %v243
      %v275 = vmul.f32 %v204, %v243
      %v276 = vmul.f32 %v205, %v243
      %v277 = vmul.f32 %v206, %v243
      %v278 = vmul.f32 %v207, %v243
      %v279 = vmul.f32 %v208, %v243
      %v280 = vmul.f32 %v209, %v243
      %v281 = vmul.f32 %v210, %v243
      %v282 = vmul.f32 %v211, %v243
      %v283 = vmul.f32 %v212, %v243
      %v284 = vmul.f32 %v213, %v243
      %v285 = vmul.f32 %v214, %v243
      %v286 = vmul.f32 %v215, %v243
      %v287 = vmul.f32 %v216, %v243
      %v288 = vmul.f32 %v217, %v243
      %v289 = vmul.f32 %v218, %v243
      %v290 = vmul.f32 %v219, %v243
      %v291 = vmul.f32 %v220, %v243
      %v292 = vmul.f32 %v221, %v243
      %v293 = vmul.f32 %v222, %v243
      %v294 = vmul.f32 %v223, %v243
      %v295 = vmul.f32 %v224, %v243
      %v296 = vmul.f32 %v225, %v243
      %v297 = vmul.f32 %v226, %v243
      %v298 = vmul.f32 %v227, %v243
      %v299 = vmul.f32 %v228, %v243
      %v300 = vmul.f32 %v229, %v243
      %v301 = vmul.f32 %v230, %v243
      %v302 = vmul.f32 %v231, %v243
      %v303 = vmul.f32 %v232, %v243
      %v304 = vmul.f32 %v233, %v243
      %v305 = vmul.f32 %v234, %v243
      %v306 = vmul.f32 %v235, %v243
      %v307 = vmul.f32 %v236, %v243
      %v308 = vmul.f32 %v237, %v243
      %v309 = vld [vmem:[%s2] sm:$0x1]
      %v311 = vlaneseq
      %v312 = vshrl.u32 %v311, 7
      %v313 = vsub.s32 0, %v312
      %v314 = vrot.slane %v309, %v313
      %v316 = vadd.f32 %v245, %v314
      %v317 = vadd.f32 %v246, %v314
      %v318 = vadd.f32 %v247, %v314
      %v319 = vadd.f32 %v248, %v314
      %v320 = vadd.f32 %v249, %v314
      %v321 = vadd.f32 %v250, %v314
      %v322 = vadd.f32 %v251, %v314
      %v323 = vadd.f32 %v252, %v314
      %v324 = vadd.f32 %v253, %v314
      %v325 = vadd.f32 %v254, %v314
      %v326 = vadd.f32 %v255, %v314
      %v327 = vadd.f32 %v256, %v314
      %v328 = vadd.f32 %v257, %v314
      %v329 = vadd.f32 %v258, %v314
      %v330 = vadd.f32 %v259, %v314
      %v331 = vadd.f32 %v260, %v314
      %v332 = vadd.f32 %v261, %v314
      %v333 = vadd.f32 %v262, %v314
      %v334 = vadd.f32 %v263, %v314
      %v335 = vadd.f32 %v264, %v314
      %v336 = vadd.f32 %v265, %v314
      %v337 = vadd.f32 %v266, %v314
      %v338 = vadd.f32 %v267, %v314
      %v339 = vadd.f32 %v268, %v314
      %v340 = vadd.f32 %v269, %v314
      %v341 = vadd.f32 %v270, %v314
      %v342 = vadd.f32 %v271, %v314
      %v343 = vadd.f32 %v272, %v314
      %v344 = vadd.f32 %v273, %v314
      %v345 = vadd.f32 %v274, %v314
      %v346 = vadd.f32 %v275, %v314
      %v347 = vadd.f32 %v276, %v314
      %v348 = vadd.f32 %v277, %v314
      %v349 = vadd.f32 %v278, %v314
      %v350 = vadd.f32 %v279, %v314
      %v351 = vadd.f32 %v280, %v314
      %v352 = vadd.f32 %v281, %v314
      %v353 = vadd.f32 %v282, %v314
      %v354 = vadd.f32 %v283, %v314
      %v355 = vadd.f32 %v284, %v314
      %v356 = vadd.f32 %v285, %v314
      %v357 = vadd.f32 %v286, %v314
      %v358 = vadd.f32 %v287, %v314
      %v359 = vadd.f32 %v288, %v314
      %v360 = vadd.f32 %v289, %v314
      %v361 = vadd.f32 %v290, %v314
      %v362 = vadd.f32 %v291, %v314
      %v363 = vadd.f32 %v292, %v314
      %v364 = vadd.f32 %v293, %v314
      %v365 = vadd.f32 %v294, %v314
      %v366 = vadd.f32 %v295, %v314
      %v367 = vadd.f32 %v296, %v314
      %v368 = vadd.f32 %v297, %v314
      %v369 = vadd.f32 %v298, %v314
      %v370 = vadd.f32 %v299, %v314
      %v371 = vadd.f32 %v300, %v314
      %v372 = vadd.f32 %v301, %v314
      %v373 = vadd.f32 %v302, %v314
      %v374 = vadd.f32 %v303, %v314
      %v375 = vadd.f32 %v304, %v314
      %v376 = vadd.f32 %v305, %v314
      %v377 = vadd.f32 %v306, %v314
      %v378 = vadd.f32 %v307, %v314
      %v379 = vadd.f32 %v308, %v314
      %vm380 = vcmp.gt.f32.partialorder %v316, 0.0
      %vm381 = vcmp.gt.f32.partialorder %v317, 0.0
      %vm382 = vcmp.gt.f32.partialorder %v318, 0.0
      %vm383 = vcmp.gt.f32.partialorder %v319, 0.0
      %vm384 = vcmp.gt.f32.partialorder %v320, 0.0
      %vm385 = vcmp.gt.f32.partialorder %v321, 0.0
      %vm386 = vcmp.gt.f32.partialorder %v322, 0.0
      %vm387 = vcmp.gt.f32.partialorder %v323, 0.0
      %vm388 = vcmp.gt.f32.partialorder %v324, 0.0
      %vm389 = vcmp.gt.f32.partialorder %v325, 0.0
      %vm390 = vcmp.gt.f32.partialorder %v326, 0.0
      %vm391 = vcmp.gt.f32.partialorder %v327, 0.0
      %vm392 = vcmp.gt.f32.partialorder %v328, 0.0
      %vm393 = vcmp.gt.f32.partialorder %v329, 0.0
      %vm394 = vcmp.gt.f32.partialorder %v330, 0.0
      %vm395 = vcmp.gt.f32.partialorder %v331, 0.0
      %vm396 = vcmp.gt.f32.partialorder %v332, 0.0
      %vm397 = vcmp.gt.f32.partialorder %v333, 0.0
      %vm398 = vcmp.gt.f32.partialorder %v334, 0.0
      %vm399 = vcmp.gt.f32.partialorder %v335, 0.0
      %vm400 = vcmp.gt.f32.partialorder %v336, 0.0
      %vm401 = vcmp.gt.f32.partialorder %v337, 0.0
      %vm402 = vcmp.gt.f32.partialorder %v338, 0.0
      %vm403 = vcmp.gt.f32.partialorder %v339, 0.0
      %vm404 = vcmp.gt.f32.partialorder %v340, 0.0
      %vm405 = vcmp.gt.f32.partialorder %v341, 0.0
      %vm406 = vcmp.gt.f32.partialorder %v342, 0.0
      %vm407 = vcmp.gt.f32.partialorder %v343, 0.0
      %vm408 = vcmp.gt.f32.partialorder %v344, 0.0
      %vm409 = vcmp.gt.f32.partialorder %v345, 0.0
      %vm410 = vcmp.gt.f32.partialorder %v346, 0.0
      %vm411 = vcmp.gt.f32.partialorder %v347, 0.0
      %vm412 = vcmp.gt.f32.partialorder %v348, 0.0
      %vm413 = vcmp.gt.f32.partialorder %v349, 0.0
      %vm414 = vcmp.gt.f32.partialorder %v350, 0.0
      %vm415 = vcmp.gt.f32.partialorder %v351, 0.0
      %vm416 = vcmp.gt.f32.partialorder %v352, 0.0
      %vm417 = vcmp.gt.f32.partialorder %v353, 0.0
      %vm418 = vcmp.gt.f32.partialorder %v354, 0.0
      %vm419 = vcmp.gt.f32.partialorder %v355, 0.0
      %vm420 = vcmp.gt.f32.partialorder %v356, 0.0
      %vm421 = vcmp.gt.f32.partialorder %v357, 0.0
      %vm422 = vcmp.gt.f32.partialorder %v358, 0.0
      %vm423 = vcmp.gt.f32.partialorder %v359, 0.0
      %vm424 = vcmp.gt.f32.partialorder %v360, 0.0
      %vm425 = vcmp.gt.f32.partialorder %v361, 0.0
      %vm426 = vcmp.gt.f32.partialorder %v362, 0.0
      %vm427 = vcmp.gt.f32.partialorder %v363, 0.0
      %vm428 = vcmp.gt.f32.partialorder %v364, 0.0
      %vm429 = vcmp.gt.f32.partialorder %v365, 0.0
      %vm430 = vcmp.gt.f32.partialorder %v366, 0.0
      %vm431 = vcmp.gt.f32.partialorder %v367, 0.0
      %vm432 = vcmp.gt.f32.partialorder %v368, 0.0
      %vm433 = vcmp.gt.f32.partialorder %v369, 0.0
      %vm434 = vcmp.gt.f32.partialorder %v370, 0.0
      %vm435 = vcmp.gt.f32.partialorder %v371, 0.0
      %vm436 = vcmp.gt.f32.partialorder %v372, 0.0
      %vm437 = vcmp.gt.f32.partialorder %v373, 0.0
      %vm438 = vcmp.gt.f32.partialorder %v374, 0.0
      %vm439 = vcmp.gt.f32.partialorder %v375, 0.0
      %vm440 = vcmp.gt.f32.partialorder %v376, 0.0
      %vm441 = vcmp.gt.f32.partialorder %v377, 0.0
      %vm442 = vcmp.gt.f32.partialorder %v378, 0.0
      %vm443 = vcmp.gt.f32.partialorder %v379, 0.0
      %v444 = vmul.f32 %v316, 0.1
      %v445 = vmul.f32 %v317, 0.1
      %v446 = vmul.f32 %v318, 0.1
      %v447 = vmul.f32 %v319, 0.1
      %v448 = vmul.f32 %v320, 0.1
      %v449 = vmul.f32 %v321, 0.1
      %v450 = vmul.f32 %v322, 0.1
      %v451 = vmul.f32 %v323, 0.1
      %v452 = vmul.f32 %v324, 0.1
      %v453 = vmul.f32 %v325, 0.1
      %v454 = vmul.f32 %v326, 0.1
      %v455 = vmul.f32 %v327, 0.1
      %v456 = vmul.f32 %v328, 0.1
      %v457 = vmul.f32 %v329, 0.1
      %v458 = vmul.f32 %v330, 0.1
      %v459 = vmul.f32 %v331, 0.1
      %v460 = vmul.f32 %v332, 0.1
      %v461 = vmul.f32 %v333, 0.1
      %v462 = vmul.f32 %v334, 0.1
      %v463 = vmul.f32 %v335, 0.1
      %v464 = vmul.f32 %v336, 0.1
      %v465 = vmul.f32 %v337, 0.1
      %v466 = vmul.f32 %v338, 0.1
      %v467 = vmul.f32 %v339, 0.1
      %v468 = vmul.f32 %v340, 0.1
      %v469 = vmul.f32 %v341, 0.1
      %v470 = vmul.f32 %v342, 0.1
      %v471 = vmul.f32 %v343, 0.1
      %v472 = vmul.f32 %v344, 0.1
      %v473 = vmul.f32 %v345, 0.1
      %v474 = vmul.f32 %v346, 0.1
      %v475 = vmul.f32 %v347, 0.1
      %v476 = vmul.f32 %v348, 0.1
      %v477 = vmul.f32 %v349, 0.1
      %v478 = vmul.f32 %v350, 0.1
      %v479 = vmul.f32 %v351, 0.1
      %v480 = vmul.f32 %v352, 0.1
      %v481 = vmul.f32 %v353, 0.1
      %v482 = vmul.f32 %v354, 0.1
      %v483 = vmul.f32 %v355, 0.1
      %v484 = vmul.f32 %v356, 0.1
      %v485 = vmul.f32 %v357, 0.1
      %v486 = vmul.f32 %v358, 0.1
      %v487 = vmul.f32 %v359, 0.1
      %v488 = vmul.f32 %v360, 0.1
      %v489 = vmul.f32 %v361, 0.1
      %v490 = vmul.f32 %v362, 0.1
      %v491 = vmul.f32 %v363, 0.1
      %v492 = vmul.f32 %v364, 0.1
      %v493 = vmul.f32 %v365, 0.1
      %v494 = vmul.f32 %v366, 0.1
      %v495 = vmul.f32 %v367, 0.1
      %v496 = vmul.f32 %v368, 0.1
      %v497 = vmul.f32 %v369, 0.1
      %v498 = vmul.f32 %v370, 0.1
      %v499 = vmul.f32 %v371, 0.1
      %v500 = vmul.f32 %v372, 0.1
      %v501 = vmul.f32 %v373, 0.1
      %v502 = vmul.f32 %v374, 0.1
      %v503 = vmul.f32 %v375, 0.1
      %v504 = vmul.f32 %v376, 0.1
      %v505 = vmul.f32 %v377, 0.1
      %v506 = vmul.f32 %v378, 0.1
      %v507 = vmul.f32 %v379, 0.1
      %v508 = vsel %vm380, %v316, %v444
      %v509 = vsel %vm381, %v317, %v445
      %v510 = vsel %vm382, %v318, %v446
      %v511 = vsel %vm383, %v319, %v447
      %v512 = vsel %vm384, %v320, %v448
      %v513 = vsel %vm385, %v321, %v449
      %v514 = vsel %vm386, %v322, %v450
      %v515 = vsel %vm387, %v323, %v451
      %v516 = vsel %vm388, %v324, %v452
      %v517 = vsel %vm389, %v325, %v453
      %v518 = vsel %vm390, %v326, %v454
      %v519 = vsel %vm391, %v327, %v455
      %v520 = vsel %vm392, %v328, %v456
      %v521 = vsel %vm393, %v329, %v457
      %v522 = vsel %vm394, %v330, %v458
      %v523 = vsel %vm395, %v331, %v459
      %v524 = vsel %vm396, %v332, %v460
      %v525 = vsel %vm397, %v333, %v461
      %v526 = vsel %vm398, %v334, %v462
      %v527 = vsel %vm399, %v335, %v463
      %v528 = vsel %vm400, %v336, %v464
      %v529 = vsel %vm401, %v337, %v465
      %v530 = vsel %vm402, %v338, %v466
      %v531 = vsel %vm403, %v339, %v467
      %v532 = vsel %vm404, %v340, %v468
      %v533 = vsel %vm405, %v341, %v469
      %v534 = vsel %vm406, %v342, %v470
      %v535 = vsel %vm407, %v343, %v471
      %v536 = vsel %vm408, %v344, %v472
      %v537 = vsel %vm409, %v345, %v473
      %v538 = vsel %vm410, %v346, %v474
      %v539 = vsel %vm411, %v347, %v475
      %v540 = vsel %vm412, %v348, %v476
      %v541 = vsel %vm413, %v349, %v477
      %v542 = vsel %vm414, %v350, %v478
      %v543 = vsel %vm415, %v351, %v479
      %v544 = vsel %vm416, %v352, %v480
      %v545 = vsel %vm417, %v353, %v481
      %v546 = vsel %vm418, %v354, %v482
      %v547 = vsel %vm419, %v355, %v483
      %v548 = vsel %vm420, %v356, %v484
      %v549 = vsel %vm421, %v357, %v485
      %v550 = vsel %vm422, %v358, %v486
      %v551 = vsel %vm423, %v359, %v487
      %v552 = vsel %vm424, %v360, %v488
      %v553 = vsel %vm425, %v361, %v489
      %v554 = vsel %vm426, %v362, %v490
      %v555 = vsel %vm427, %v363, %v491
      %v556 = vsel %vm428, %v364, %v492
      %v557 = vsel %vm429, %v365, %v493
      %v558 = vsel %vm430, %v366, %v494
      %v559 = vsel %vm431, %v367, %v495
      %v560 = vsel %vm432, %v368, %v496
      %v561 = vsel %vm433, %v369, %v497
      %v562 = vsel %vm434, %v370, %v498
      %v563 = vsel %vm435, %v371, %v499
      %v564 = vsel %vm436, %v372, %v500
      %v565 = vsel %vm437, %v373, %v501
      %v566 = vsel %vm438, %v374, %v502
      %v567 = vsel %vm439, %v375, %v503
      %v568 = vsel %vm440, %v376, %v504
      %v569 = vsel %vm441, %v377, %v505
      %v570 = vsel %vm442, %v378, %v506
      %v571 = vsel %vm443, %v379, %v507
      %572 = vst [vmem:[%s172] sm:$0xff] %v508
      %573 = vst [vmem:[%s172 + $0x8] sm:$0xff] %v509
      %574 = vst [vmem:[%s172 + $0x10] sm:$0xff] %v510
      %575 = vst [vmem:[%s172 + $0x18] sm:$0xff] %v511
      %576 = vst [vmem:[%s172 + $0x20] sm:$0xff] %v512
      %577 = vst [vmem:[%s172 + $0x28] sm:$0xff] %v513
      %578 = vst [vmem:[%s172 + $0x30] sm:$0xff] %v514
      %579 = vst [vmem:[%s172 + $0x38] sm:$0xff] %v515
      %580 = vst [vmem:[%s172 + $0x40] sm:$0xff] %v516
      %581 = vst [vmem:[%s172 + $0x48] sm:$0xff] %v517
      %582 = vst [vmem:[%s172 + $0x50] sm:$0xff] %v518
      %583 = vst [vmem:[%s172 + $0x58] sm:$0xff] %v519
      %584 = vst [vmem:[%s172 + $0x60] sm:$0xff] %v520
      %585 = vst [vmem:[%s172 + $0x68] sm:$0xff] %v521
      %586 = vst [vmem:[%s172 + $0x70] sm:$0xff] %v522
      %587 = vst [vmem:[%s172 + $0x78] sm:$0xff] %v523
      %588 = vst [vmem:[%s172 + $0x80] sm:$0xff] %v524
      %589 = vst [vmem:[%s172 + $0x88] sm:$0xff] %v525
      %590 = vst [vmem:[%s172 + $0x90] sm:$0xff] %v526
      %591 = vst [vmem:[%s172 + $0x98] sm:$0xff] %v527
      %592 = vst [vmem:[%s172 + $0xa0] sm:$0xff] %v528
      %593 = vst [vmem:[%s172 + $0xa8] sm:$0xff] %v529
      %594 = vst [vmem:[%s172 + $0xb0] sm:$0xff] %v530
      %595 = vst [vmem:[%s172 + $0xb8] sm:$0xff] %v531
      %596 = vst [vmem:[%s172 + $0xc0] sm:$0xff] %v532
      %597 = vst [vmem:[%s172 + $0xc8] sm:$0xff] %v533
      %598 = vst [vmem:[%s172 + $0xd0] sm:$0xff] %v534
      %599 = vst [vmem:[%s172 + $0xd8] sm:$0xff] %v535
      %600 = vst [vmem:[%s172 + $0xe0] sm:$0xff] %v536
      %601 = vst [vmem:[%s172 + $0xe8] sm:$0xff] %v537
      %602 = vst [vmem:[%s172 + $0xf0] sm:$0xff] %v538
      %603 = vst [vmem:[%s172 + $0xf8] sm:$0xff] %v539
      %604 = vst [vmem:[%s172 + $0x100] sm:$0xff] %v540
      %605 = vst [vmem:[%s172 + $0x108] sm:$0xff] %v541
      %606 = vst [vmem:[%s172 + $0x110] sm:$0xff] %v542
      %607 = vst [vmem:[%s172 + $0x118] sm:$0xff] %v543
      %608 = vst [vmem:[%s172 + $0x120] sm:$0xff] %v544
      %609 = vst [vmem:[%s172 + $0x128] sm:$0xff] %v545
      %610 = vst [vmem:[%s172 + $0x130] sm:$0xff] %v546
      %611 = vst [vmem:[%s172 + $0x138] sm:$0xff] %v547
      %612 = vst [vmem:[%s172 + $0x140] sm:$0xff] %v548
      %613 = vst [vmem:[%s172 + $0x148] sm:$0xff] %v549
      %614 = vst [vmem:[%s172 + $0x150] sm:$0xff] %v550
      %615 = vst [vmem:[%s172 + $0x158] sm:$0xff] %v551
      %616 = vst [vmem:[%s172 + $0x160] sm:$0xff] %v552
      %617 = vst [vmem:[%s172 + $0x168] sm:$0xff] %v553
      %618 = vst [vmem:[%s172 + $0x170] sm:$0xff] %v554
      %619 = vst [vmem:[%s172 + $0x178] sm:$0xff] %v555
      %620 = vst [vmem:[%s172 + $0x180] sm:$0xff] %v556
      %621 = vst [vmem:[%s172 + $0x188] sm:$0xff] %v557
      %622 = vst [vmem:[%s172 + $0x190] sm:$0xff] %v558
      %623 = vst [vmem:[%s172 + $0x198] sm:$0xff] %v559
      %624 = vst [vmem:[%s172 + $0x1a0] sm:$0xff] %v560
      %625 = vst [vmem:[%s172 + $0x1a8] sm:$0xff] %v561
      %626 = vst [vmem:[%s172 + $0x1b0] sm:$0xff] %v562
      %627 = vst [vmem:[%s172 + $0x1b8] sm:$0xff] %v563
      %628 = vst [vmem:[%s172 + $0x1c0] sm:$0xff] %v564
      %629 = vst [vmem:[%s172 + $0x1c8] sm:$0xff] %v565
      %630 = vst [vmem:[%s172 + $0x1d0] sm:$0xff] %v566
      %631 = vst [vmem:[%s172 + $0x1d8] sm:$0xff] %v567
      %632 = vst [vmem:[%s172 + $0x1e0] sm:$0xff] %v568
      %633 = vst [vmem:[%s172 + $0x1e8] sm:$0xff] %v569
      %634 = vst [vmem:[%s172 + $0x1f0] sm:$0xff] %v570
      %635 = vst [vmem:[%s172 + $0x1f8] sm:$0xff] %v571
      %s636 = smul.u32 64, %s14
      %p637 = scmp.lt.s32.totalorder %s636, 255
      %s638 = scalar_select %p637, %s636, 255
      %s639 = smul.addr %s638, 8
      %s640 = scalar_lea.vmem %s3, %s639
      // Predicated region
      $region33: #{_lambda_.11} parent=31 // pred_check
        %p641 = pneg %p100
      $region34: #{_lambda_.11} parent=31 // pred_check_branch
        %643 = sbr.rel (%p641) target = $region36
      $region35: #{_lambda_.11} parent=31 // pred_region
        %s644 = smul.u32 64, %s14
      $region36: #{_lambda_.11} parent=31 // pred_fallthru
        _
    $region32: #{_lambda_.11} parent=5 // pred_fallthru
      _
    %p645 = scmp.le.s32.totalorder 2, %s9
    // Predicated region
    $region37: #{_lambda_.11} parent=5 // pred_check
      %p646 = pneg %p645
    $region38: #{_lambda_.11} parent=5 // pred_check_branch
      %648 = sbr.rel (%p646) target = $region40
    $region39: #{_lambda_.11} parent=5 // pred_region
      %s649 = ssub.s32 %s9, 2
      // Predicated region
      $region41: #{_lambda_.11} parent=39 // pred_check
        %p650 = pneg %p106
      $region42: #{_lambda_.11} parent=39 // pred_check_branch
        %652 = sbr.rel (%p650) target = $region44
      $region43: #{_lambda_.11} parent=39 // pred_region
        %s653 = smul.u32 64, %s15
        %p654 = scmp.lt.s32.totalorder %s653, 255
        %s655 = scalar_select %p654, %s653, 255
        %s656 = smul.addr %s655, 8
        %s657 = scalar_lea.vmem %s3, %s656
      $region44: #{_lambda_.11} parent=39 // pred_fallthru
        _
    $region40: #{_lambda_.11} parent=5 // pred_fallthru
      _
  $region6: #{_lambda_.11} parent=0 // loop_footer
    %s13 = sadd.s32 1, %s9
  $region7: #{_lambda_.11} parent=0 // loop_footer_branch
    %8 = sbr.rel target = $region3
  $region8: #{_lambda_.11} parent=0 // loop_exit
    _

// kernel: _lambda_.10
$region0: #{_lambda_.10}
  #allocation0 [shape = 'u32[]', space=smem, size = 0x4, offset = 0x4, fixed_abs, tag = 'smem constant byte address 0x4 - core index']
  #allocation1 [shape = 'u32[144,128]{1,0:T(1,128)}', space=vmem, size = 0x12000, scoped, tag = 'internal scratch']
  %s0 = inlined_call_operand.vmem [shape: bf16[2048,27], index: 0, kind: input, shape index: {}]
  %s1 = inlined_call_operand.vmem [shape: bf16[27,128], index: 1, kind: input, shape index: {}]
  %s2 = inlined_call_operand.vmem [shape: f32[2048,128], index: 2, kind: output, shape index: {0}]
  %s3 = inlined_call_operand.vmem [shape: f32[8,128], index: 3, kind: output, shape index: {1}]
  %4 = xla_tuple %s2, %s3
  %s5 = sld [smem:[#allocation0]]
  $region53: #{_lambda_.10} parent=0
    _
  %s7 = ssub.s32 1, %s5
  %s8 = scalar_select 0, %s7, %s5
  loop: start=0, step=1, limit=6
  $region2: #{_lambda_.10} parent=0 // loop_pre_header
    _
  $region3: #{_lambda_.10} parent=0 // loop_header
    %s10 = sphi 0, %s14
    %p11 = scmp.ge.s32.totalorder %s10, 6
    %s20 = sphi 0, %s22
    %s23 = sphi 0, %s20
    %s24 = sphi 0, %s23
    %s40 = sphi 0, %s24
    %s44 = sphi 0, %s44
    %s46 = sphi 0, %s44
    %s47 = sphi 0, %s46
    %s61 = sphi 0, %s47
    %s67 = sphi 0, %s69
    %s70 = sphi 0, %s67
    %s71 = sphi 0, %s70
    %s87 = sphi 0, %s71
    %s91 = sphi 0, %s91
    %s93 = sphi 0, %s91
    %s94 = sphi 0, %s93
    %s108 = sphi 0, %s94
  $region4: #{_lambda_.10} parent=0 // loop_header_branch
    %13 = sbr.rel (%p11) target = $region8
  $region5: #{_lambda_.10} parent=0 // loop_body
    %s15 = ssub.s32 %s10, 1
    %s16 = ssub.s32 %s10, 2
    %s17 = sadd.s32 %s10, 1
    %s18 = ssub.s32 %s10, %s17
    %p19 = scmp.eq.s32.totalorder %s18, 0
    %s21 = sadd.s32 %s20, 1
    %s22 = scalar_select %p19, %s20, %s21
    %p25 = pneg %p19
    %p26 = scmp.eq.s32.totalorder %s10, 3
    %p27 = por %p25, %p26
    %p28 = scmp.ne.s32.totalorder %s20, %s23
    %p29 = scmp.eq.s32.totalorder %s10, 0
    %p30 = por %p28, %p29
    %p31 = scmp.ne.s32.totalorder %s20, %s23
    %p32 = scmp.eq.s32.totalorder %s15, 3
    %p33 = por %p31, %p32
    %p34 = scmp.ne.s32.totalorder %s23, %s24
    %p35 = scmp.eq.s32.totalorder %s15, 0
    %p36 = por %p34, %p35
    %p37 = scmp.ne.s32.totalorder %s23, %s24
    %p38 = scmp.eq.s32.totalorder %s16, 3
    %p39 = por %p37, %p38
    %p41 = scmp.ne.s32.totalorder %s24, %s40
    %p42 = scmp.eq.s32.totalorder %s16, 0
    %p43 = por %p41, %p42
    %s45 = sadd.s32 %s44, 1
    %p48 = scmp.eq.s32.totalorder %s10, 3
    %p49 = scmp.ne.s32.totalorder %s44, %s46
    %p50 = scmp.eq.s32.totalorder %s10, 0
    %p51 = por %p49, %p50
    %p52 = scmp.ne.s32.totalorder %s44, %s46
    %p53 = scmp.eq.s32.totalorder %s15, 3
    %p54 = por %p52, %p53
    %p55 = scmp.ne.s32.totalorder %s46, %s47
    %p56 = scmp.eq.s32.totalorder %s15, 0
    %p57 = por %p55, %p56
    %p58 = scmp.ne.s32.totalorder %s46, %s47
    %p59 = scmp.eq.s32.totalorder %s16, 3
    %p60 = por %p58, %p59
    %p62 = scmp.ne.s32.totalorder %s47, %s61
    %p63 = scmp.eq.s32.totalorder %s16, 0
    %p64 = por %p62, %p63
    %s65 = ssub.s32 %s10, %s17
    %p66 = scmp.eq.s32.totalorder %s65, 0
    %s68 = sadd.s32 %s67, 1
    %s69 = scalar_select %p66, %s67, %s68
    %p72 = pneg %p66
    %p73 = scmp.eq.s32.totalorder %s10, 3
    %p74 = por %p72, %p73
    %p75 = scmp.ne.s32.totalorder %s67, %s70
    %p76 = scmp.eq.s32.totalorder %s10, 0
    %p77 = por %p75, %p76
    %p78 = scmp.ne.s32.totalorder %s67, %s70
    %p79 = scmp.eq.s32.totalorder %s15, 3
    %p80 = por %p78, %p79
    %p81 = scmp.ne.s32.totalorder %s70, %s71
    %p82 = scmp.eq.s32.totalorder %s15, 0
    %p83 = por %p81, %p82
    %p84 = scmp.ne.s32.totalorder %s70, %s71
    %p85 = scmp.eq.s32.totalorder %s16, 3
    %p86 = por %p84, %p85
    %p88 = scmp.ne.s32.totalorder %s71, %s87
    %p89 = scmp.eq.s32.totalorder %s16, 0
    %p90 = por %p88, %p89
    %s92 = sadd.s32 %s91, 1
    %p95 = scmp.eq.s32.totalorder %s10, 3
    %p96 = scmp.ne.s32.totalorder %s91, %s93
    %p97 = scmp.eq.s32.totalorder %s10, 0
    %p98 = por %p96, %p97
    %p99 = scmp.ne.s32.totalorder %s91, %s93
    %p100 = scmp.eq.s32.totalorder %s15, 3
    %p101 = por %p99, %p100
    %p102 = scmp.ne.s32.totalorder %s93, %s94
    %p103 = scmp.eq.s32.totalorder %s15, 0
    %p104 = por %p102, %p103
    %p105 = scmp.ne.s32.totalorder %s93, %s94
    %p106 = scmp.eq.s32.totalorder %s16, 3
    %p107 = por %p105, %p106
    %p109 = scmp.ne.s32.totalorder %s94, %s108
    %p110 = scmp.eq.s32.totalorder %s16, 0
    %p111 = por %p109, %p110
    %p112 = scmp.le.s32.totalorder 1, %s10
    %p113 = scmp.lt.s32.totalorder %s10, 5
    %p114 = pnand %p112, %p113
    %p115 = pneg %p114
    // Predicated region
    $region9: #{_lambda_.10} parent=5 // pred_check
      _
    $region10: #{_lambda_.10} parent=5 // pred_check_branch
      %117 = sbr.rel (%p114) target = $region12
    $region11: #{_lambda_.10} parent=5 // pred_region
      %s118 = ssub.s32 %s10, 1
      // Predicated region
      $region13: #{_lambda_.10} parent=11 // pred_check
        %p119 = pneg %p57
      $region14: #{_lambda_.10} parent=11 // pred_check_branch
        %121 = sbr.rel (%p119) target = $region16
      $region15: #{_lambda_.10} parent=11 // pred_region
        _
      $region16: #{_lambda_.10} parent=11 // pred_fallthru
        _
    $region12: #{_lambda_.10} parent=5 // pred_fallthru
      _
    %p122 = scmp.lt.s32.totalorder %s10, 4
    // Predicated region
    $region17: #{_lambda_.10} parent=5 // pred_check
      %p123 = pneg %p122
    $region18: #{_lambda_.10} parent=5 // pred_check_branch
      %125 = sbr.rel (%p123) target = $region20
    $region19: #{_lambda_.10} parent=5 // pred_region
      // Predicated region
      $region21: #{_lambda_.10} parent=19 // pred_check
        %p126 = pneg %p30
      $region22: #{_lambda_.10} parent=19 // pred_check_branch
        %128 = sbr.rel (%p126) target = $region24
      $region23: #{_lambda_.10} parent=19 // pred_region
        %s129 = smul.u32 64, %s10
        %p130 = scmp.lt.s32.totalorder %s129, 255
        %s131 = scalar_select %p130, %s129, 255
        %s132 = smul.addr %s131, 4
        %s133 = scalar_lea.vmem %s0, %s132
        %s134 = smul.u32 64, %s10
      $region24: #{_lambda_.10} parent=19 // pred_fallthru
        _
    $region20: #{_lambda_.10} parent=5 // pred_fallthru
      _
    %p135 = scmp.le.s32.totalorder 1, %s10
    %p136 = scmp.lt.s32.totalorder %s10, 5
    %p137 = pnand %p135, %p136
    %p138 = pneg %p137
    // Predicated region
    $region25: #{_lambda_.10} parent=5 // pred_check
      _
    $region26: #{_lambda_.10} parent=5 // pred_check_branch
      %140 = sbr.rel (%p137) target = $region28
    $region27: #{_lambda_.10} parent=5 // pred_region
      %s141 = ssub.s32 %s10, 1
      %s142 = smul.u32 64, %s15
      %p143 = scmp.lt.s32.totalorder %s142, 255
      %s144 = scalar_select %p143, %s142, 255
      %s145 = smul.addr %s144, 4
      %s146 = scalar_lea.vmem %s0, %s145
      %p147 = pneg %p36
      %p148 = pneg %p33
      %p149 = pneg %p57
      %p150 = pneg %p54
      %p151 = pneg %p83
      %p152 = pneg %p80
      %s153 = smul.u32 64, %s15
      %p154 = scmp.lt.s32.totalorder %s153, 255
      %s155 = scalar_select %p154, %s153, 255
      %s156 = smul.addr %s155, 8
      %s157 = scalar_lea.vmem %s2, %s156
      %p158 = pneg %p104
      %p159 = pneg %p101
      %s160 = smul.u32 64, %s15
      %p161 = scmp.lt.s32.totalorder %s160, 255
      %s162 = scalar_select %p161, %s160, 255
      %s163 = smul.addr %s162, 4
      %s164 = scalar_lea.vmem %s0, %s163
      %s165 = smul.u32 64, %s15
      %s166 = smul.u32 64, %s15
      %p167 = scmp.lt.s32.totalorder %s166, 255
      %s168 = scalar_select %p167, %s166, 255
      %s169 = smul.addr %s168, 8
      %s170 = scalar_lea.vmem %s2, %s169
      %s171 = smul.u32 64, %s15
      %p173 = scmp.eq.s32.totalorder %s15, 0
      // Predicated region
      $region29: #{_lambda_.10} parent=27 // pred_check
        %p174 = pneg %p173
      $region30: #{_lambda_.10} parent=27 // pred_check_branch
        %176 = sbr.rel (%p174) target = $region32
      $region31: #{_lambda_.10} parent=27 // pred_region
        %177 = vst [vmem:[%s3] sm:$0xff] 0.0
      $region32: #{_lambda_.10} parent=27 // pred_fallthru
        _
      %v178 = vld [vmem:[%s164] sm:$0xf]
      %v179 = vld [vmem:[%s164 + $0x4] sm:$0xf]
      %v180 = vld [vmem:[%s164 + $0x8] sm:$0xf]
      %v181 = vld [vmem:[%s164 + $0xc] sm:$0xf]
      %v182 = vld [vmem:[%s164 + $0x10] sm:$0xf]
      %v183 = vld [vmem:[%s164 + $0x14] sm:$0xf]
      %v184 = vld [vmem:[%s164 + $0x18] sm:$0xf]
      %v185 = vld [vmem:[%s164 + $0x1c] sm:$0xf]
      %v186 = vld [vmem:[%s164 + $0x20] sm:$0xf]
      %v187 = vld [vmem:[%s164 + $0x24] sm:$0xf]
      %v188 = vld [vmem:[%s164 + $0x28] sm:$0xf]
      %v189 = vld [vmem:[%s164 + $0x2c] sm:$0xf]
      %v190 = vld [vmem:[%s164 + $0x30] sm:$0xf]
      %v191 = vld [vmem:[%s164 + $0x34] sm:$0xf]
      %v192 = vld [vmem:[%s164 + $0x38] sm:$0xf]
      %v193 = vld [vmem:[%s164 + $0x3c] sm:$0xf]
      %v194 = vld [vmem:[%s164 + $0x40] sm:$0xf]
      %v195 = vld [vmem:[%s164 + $0x44] sm:$0xf]
      %v196 = vld [vmem:[%s164 + $0x48] sm:$0xf]
      %v197 = vld [vmem:[%s164 + $0x4c] sm:$0xf]
      %v198 = vld [vmem:[%s164 + $0x50] sm:$0xf]
      %v199 = vld [vmem:[%s164 + $0x54] sm:$0xf]
      %v200 = vld [vmem:[%s164 + $0x58] sm:$0xf]
      %v201 = vld [vmem:[%s164 + $0x5c] sm:$0xf]
      %v202 = vld [vmem:[%s164 + $0x60] sm:$0xf]
      %v203 = vld [vmem:[%s164 + $0x64] sm:$0xf]
      %v204 = vld [vmem:[%s164 + $0x68] sm:$0xf]
      %v205 = vld [vmem:[%s164 + $0x6c] sm:$0xf]
      %v206 = vld [vmem:[%s164 + $0x70] sm:$0xf]
      %v207 = vld [vmem:[%s164 + $0x74] sm:$0xf]
      %v208 = vld [vmem:[%s164 + $0x78] sm:$0xf]
      %v209 = vld [vmem:[%s164 + $0x7c] sm:$0xf]
      %v210 = vld [vmem:[%s164 + $0x80] sm:$0xf]
      %v211 = vld [vmem:[%s164 + $0x84] sm:$0xf]
      %v212 = vld [vmem:[%s164 + $0x88] sm:$0xf]
      %v213 = vld [vmem:[%s164 + $0x8c] sm:$0xf]
      %v214 = vld [vmem:[%s164 + $0x90] sm:$0xf]
      %v215 = vld [vmem:[%s164 + $0x94] sm:$0xf]
      %v216 = vld [vmem:[%s164 + $0x98] sm:$0xf]
      %v217 = vld [vmem:[%s164 + $0x9c] sm:$0xf]
      %v218 = vld [vmem:[%s164 + $0xa0] sm:$0xf]
      %v219 = vld [vmem:[%s164 + $0xa4] sm:$0xf]
      %v220 = vld [vmem:[%s164 + $0xa8] sm:$0xf]
      %v221 = vld [vmem:[%s164 + $0xac] sm:$0xf]
      %v222 = vld [vmem:[%s164 + $0xb0] sm:$0xf]
      %v223 = vld [vmem:[%s164 + $0xb4] sm:$0xf]
      %v224 = vld [vmem:[%s164 + $0xb8] sm:$0xf]
      %v225 = vld [vmem:[%s164 + $0xbc] sm:$0xf]
      %v226 = vld [vmem:[%s164 + $0xc0] sm:$0xf]
      %v227 = vld [vmem:[%s164 + $0xc4] sm:$0xf]
      %v228 = vld [vmem:[%s164 + $0xc8] sm:$0xf]
      %v229 = vld [vmem:[%s164 + $0xcc] sm:$0xf]
      %v230 = vld [vmem:[%s164 + $0xd0] sm:$0xf]
      %v231 = vld [vmem:[%s164 + $0xd4] sm:$0xf]
      %v232 = vld [vmem:[%s164 + $0xd8] sm:$0xf]
      %v233 = vld [vmem:[%s164 + $0xdc] sm:$0xf]
      %v234 = vld [vmem:[%s164 + $0xe0] sm:$0xf]
      %v235 = vld [vmem:[%s164 + $0xe4] sm:$0xf]
      %v236 = vld [vmem:[%s164 + $0xe8] sm:$0xf]
      %v237 = vld [vmem:[%s164 + $0xec] sm:$0xf]
      %v238 = vld [vmem:[%s164 + $0xf0] sm:$0xf]
      %v239 = vld [vmem:[%s164 + $0xf4] sm:$0xf]
      %v240 = vld [vmem:[%s164 + $0xf8] sm:$0xf]
      %v241 = vld [vmem:[%s164 + $0xfc] sm:$0xf]
      %v242 = vld [vmem:[%s1] sm:$0xf]
      %v243 = vld [vmem:[%s1 + $0x4] sm:$0xf]
      %v244 = vld [vmem:[%s1 + $0x8] sm:$0xf]
      %v245 = vld [vmem:[%s1 + $0xc] sm:$0x3]
      %v310 = vunpack.c.l.b16 %v178
      %v311 = vunpack.c.l.b16 %v179
      %v312 = vunpack.c.l.b16 %v180
      %v313 = vunpack.c.l.b16 %v181
      %v314 = vunpack.c.l.b16 %v182
      %v315 = vunpack.c.l.b16 %v183
      %v316 = vunpack.c.l.b16 %v184
      %v317 = vunpack.c.l.b16 %v185
      %v318 = vunpack.c.l.b16 %v186
      %v319 = vunpack.c.l.b16 %v187
      %v320 = vunpack.c.l.b16 %v188
      %v321 = vunpack.c.l.b16 %v189
      %v322 = vunpack.c.l.b16 %v190
      %v323 = vunpack.c.l.b16 %v191
      %v324 = vunpack.c.l.b16 %v192
      %v325 = vunpack.c.l.b16 %v193
      %v326 = vunpack.c.l.b16 %v194
      %v327 = vunpack.c.l.b16 %v195
      %v328 = vunpack.c.l.b16 %v196
      %v329 = vunpack.c.l.b16 %v197
      %v330 = vunpack.c.l.b16 %v198
      %v331 = vunpack.c.l.b16 %v199
      %v332 = vunpack.c.l.b16 %v200
      %v333 = vunpack.c.l.b16 %v201
      %v334 = vunpack.c.l.b16 %v202
      %v335 = vunpack.c.l.b16 %v203
      %v336 = vunpack.c.l.b16 %v204
      %v337 = vunpack.c.l.b16 %v205
      %v338 = vunpack.c.l.b16 %v206
      %v339 = vunpack.c.l.b16 %v207
      %v340 = vunpack.c.l.b16 %v208
      %v341 = vunpack.c.l.b16 %v209
      %v342 = vunpack.c.l.b16 %v210
      %v343 = vunpack.c.l.b16 %v211
      %v344 = vunpack.c.l.b16 %v212
      %v345 = vunpack.c.l.b16 %v213
      %v346 = vunpack.c.l.b16 %v214
      %v347 = vunpack.c.l.b16 %v215
      %v348 = vunpack.c.l.b16 %v216
      %v349 = vunpack.c.l.b16 %v217
      %v350 = vunpack.c.l.b16 %v218
      %v351 = vunpack.c.l.b16 %v219
      %v352 = vunpack.c.l.b16 %v220
      %v353 = vunpack.c.l.b16 %v221
      %v354 = vunpack.c.l.b16 %v222
      %v355 = vunpack.c.l.b16 %v223
      %v356 = vunpack.c.l.b16 %v224
      %v357 = vunpack.c.l.b16 %v225
      %v358 = vunpack.c.l.b16 %v226
      %v359 = vunpack.c.l.b16 %v227
      %v360 = vunpack.c.l.b16 %v228
      %v361 = vunpack.c.l.b16 %v229
      %v362 = vunpack.c.l.b16 %v230
      %v363 = vunpack.c.l.b16 %v231
      %v364 = vunpack.c.l.b16 %v232
      %v365 = vunpack.c.l.b16 %v233
      %v366 = vunpack.c.l.b16 %v234
      %v367 = vunpack.c.l.b16 %v235
      %v368 = vunpack.c.l.b16 %v236
      %v369 = vunpack.c.l.b16 %v237
      %v370 = vunpack.c.l.b16 %v238
      %v371 = vunpack.c.l.b16 %v239
      %v372 = vunpack.c.l.b16 %v240
      %v373 = vunpack.c.l.b16 %v241
      %v374 = vpack.c.b16 %v311, %v310
      %v375 = vpack.c.b16 %v313, %v312
      %v376 = vpack.c.b16 %v315, %v314
      %v377 = vpack.c.b16 %v317, %v316
      %v378 = vpack.c.b16 %v319, %v318
      %v379 = vpack.c.b16 %v321, %v320
      %v380 = vpack.c.b16 %v323, %v322
      %v381 = vpack.c.b16 %v325, %v324
      %v382 = vpack.c.b16 %v327, %v326
      %v383 = vpack.c.b16 %v329, %v328
      %v384 = vpack.c.b16 %v331, %v330
      %v385 = vpack.c.b16 %v333, %v332
      %v386 = vpack.c.b16 %v335, %v334
      %v387 = vpack.c.b16 %v337, %v336
      %v388 = vpack.c.b16 %v339, %v338
      %v389 = vpack.c.b16 %v341, %v340
      %v390 = vpack.c.b16 %v343, %v342
      %v391 = vpack.c.b16 %v345, %v344
      %v392 = vpack.c.b16 %v347, %v346
      %v393 = vpack.c.b16 %v349, %v348
      %v394 = vpack.c.b16 %v351, %v350
      %v395 = vpack.c.b16 %v353, %v352
      %v396 = vpack.c.b16 %v355, %v354
      %v397 = vpack.c.b16 %v357, %v356
      %v398 = vpack.c.b16 %v359, %v358
      %v399 = vpack.c.b16 %v361, %v360
      %v400 = vpack.c.b16 %v363, %v362
      %v401 = vpack.c.b16 %v365, %v364
      %v402 = vpack.c.b16 %v367, %v366
      %v403 = vpack.c.b16 %v369, %v368
      %v404 = vpack.c.b16 %v371, %v370
      %v405 = vpack.c.b16 %v373, %v372
      %v410 = vunpack.c.l.b16 %v242
      %v411 = vunpack.c.l.b16 %v243
      %v412 = vunpack.c.l.b16 %v244
      %v413 = vunpack.c.l.b16 %v245
      %v414 = vpack.c.b16 %v411, %v410
      %v415 = vpack.c.b16 %v413, %v412
      %vm417 = vcmask 220160
      %v419 = vsel %vm417, %v374, 0
      %v422 = vsel %vm417, %v375, 0
      %v425 = vsel %vm417, %v376, 0
      %v428 = vsel %vm417, %v377, 0
      %v431 = vsel %vm417, %v378, 0
      %v434 = vsel %vm417, %v379, 0
      %v437 = vsel %vm417, %v380, 0
      %v440 = vsel %vm417, %v381, 0
      %v443 = vsel %vm417, %v382, 0
      %v446 = vsel %vm417, %v383, 0
      %v449 = vsel %vm417, %v384, 0
      %v452 = vsel %vm417, %v385, 0
      %v455 = vsel %vm417, %v386, 0
      %v458 = vsel %vm417, %v387, 0
      %v461 = vsel %vm417, %v388, 0
      %v464 = vsel %vm417, %v389, 0
      %v467 = vsel %vm417, %v390, 0
      %v470 = vsel %vm417, %v391, 0
      %v473 = vsel %vm417, %v392, 0
      %v476 = vsel %vm417, %v393, 0
      %v479 = vsel %vm417, %v394, 0
      %v482 = vsel %vm417, %v395, 0
      %v485 = vsel %vm417, %v396, 0
      %v488 = vsel %vm417, %v397, 0
      %v491 = vsel %vm417, %v398, 0
      %v494 = vsel %vm417, %v399, 0
      %v497 = vsel %vm417, %v400, 0
      %v500 = vsel %vm417, %v401, 0
      %v503 = vsel %vm417, %v402, 0
      %v506 = vsel %vm417, %v403, 0
      %v509 = vsel %vm417, %v404, 0
      %v512 = vsel %vm417, %v405, 0
      %vm514 = vcmask 1044480
      %vm515 = vcmask 1045504
      %v516 = vsel %vm514, 4294967295, 65535
      %v517 = vsel %vm515, %v516, 0
      %v519 = vand.u32 %v415, %v517
      %521 = vmatprep.subr.bf16.mxu0 0
      %522 = vmatpush1.bf16.msra.mxu0 %v414
      %523 = vmatprep.subr.bf16.mxu0 0
      %524 = vmatpush1.bf16.msra.mxu0 %v519
      %525 = vmatprep.subr.bf16.mxu0 0
      %526 = vmatpush1.bf16.msra.mxu0 0
      %527 = vmatprep.subr.bf16.mxu0 0
      %528 = vmatpush1.bf16.msra.mxu0 0
      %529 = vmatprep.subr.bf16.mxu0 0
      %530 = vmatpush1.bf16.msra.mxu0 0
      %531 = vmatprep.subr.bf16.mxu0 0
      %532 = vmatpush1.bf16.msra.mxu0 0
      %533 = vmatprep.subr.bf16.mxu0 0
      %534 = vmatpush1.bf16.msra.mxu0 0
      %535 = vmatprep.subr.bf16.mxu0 0
      %536 = vmatpush1.bf16.msra.mxu0 0
      %537 = vmatprep.subr.bf16.mxu0 0
      %538 = vmatpush1.bf16.msra.mxu0 0
      %539 = vmatprep.subr.bf16.mxu0 0
      %540 = vmatpush1.bf16.msra.mxu0 0
      %541 = vmatprep.subr.bf16.mxu0 0
      %542 = vmatpush1.bf16.msra.mxu0 0
      %543 = vmatprep.subr.bf16.mxu0 0
      %544 = vmatpush1.bf16.msra.mxu0 0
      %545 = vmatprep.subr.bf16.mxu0 0
      %546 = vmatpush1.bf16.msra.mxu0 0
      %547 = vmatprep.subr.bf16.mxu0 0
      %548 = vmatpush1.bf16.msra.mxu0 0
      %549 = vmatprep.subr.bf16.mxu0 0
      %550 = vmatpush1.bf16.msra.mxu0 0
      %551 = vmatprep.subr.bf16.mxu0 0
      %552 = vmatpush1.bf16.msra.mxu0 0
      %553 = vmatprep.mubr.bf16.mxu0 0
      %554 = vmatmul.mubr.bf16.gmra.mrb[0].mxu0 %v419
      %v555 = vpop.f32.mrb[0].mxu0
      %v556 = vadd.f32 0.0, %v555
      %v557 = vpop.f32.mrb[0].mxu0
      %v558 = vpop.f32.mrb[0].mxu0
      %v559 = vadd.f32 0.0, %v558
      %v560 = vpop.f32.mrb[0].mxu0
      %561 = vmatprep.mubr.bf16.mxu0 0
      %562 = vmatmul.mubr.bf16.gmra.mrb[0].mxu0 %v422
      %v563 = vpop.f32.mrb[0].mxu0
      %v564 = vadd.f32 0.0, %v563
      %v565 = vpop.f32.mrb[0].mxu0
      %v566 = vpop.f32.mrb[0].mxu0
      %v567 = vadd.f32 0.0, %v566
      %v568 = vpop.f32.mrb[0].mxu0
      %569 = vmatprep.mubr.bf16.mxu0 0
      %570 = vmatmul.mubr.bf16.gmra.mrb[0].mxu0 %v425
      %v571 = vpop.f32.mrb[0].mxu0
      %v572 = vadd.f32 0.0, %v571
      %v573 = vpop.f32.mrb[0].mxu0
      %v574 = vpop.f32.mrb[0].mxu0
      %v575 = vadd.f32 0.0, %v574
      %v576 = vpop.f32.mrb[0].mxu0
      %577 = vmatprep.mubr.bf16.mxu0 0
      %578 = vmatmul.mubr.bf16.gmra.mrb[0].mxu0 %v428
      %v579 = vpop.f32.mrb[0].mxu0
      %v580 = vadd.f32 0.0, %v579
      %v581 = vpop.f32.mrb[0].mxu0
      %v582 = vpop.f32.mrb[0].mxu0
      %v583 = vadd.f32 0.0, %v582
      %v584 = vpop.f32.mrb[0].mxu0
      %585 = vmatprep.mubr.bf16.mxu0 0
      %586 = vmatmul.mubr.bf16.gmra.mrb[0].mxu0 %v431
      %v587 = vpop.f32.mrb[0].mxu0
      %v588 = vadd.f32 0.0, %v587
      %v589 = vpop.f32.mrb[0].mxu0
      %v590 = vpop.f32.mrb[0].mxu0
      %v591 = vadd.f32 0.0, %v590
      %v592 = vpop.f32.mrb[0].mxu0
      %593 = vmatprep.mubr.bf16.mxu0 0
      %594 = vmatmul.mubr.bf16.gmra.mrb[0].mxu0 %v434
      %v595 = vpop.f32.mrb[0].mxu0
      %v596 = vadd.f32 0.0, %v595
      %v597 = vpop.f32.mrb[0].mxu0
      %v598 = vpop.f32.mrb[0].mxu0
      %v599 = vadd.f32 0.0, %v598
      %v600 = vpop.f32.mrb[0].mxu0
      %601 = vmatprep.mubr.bf16.mxu0 0
      %602 = vmatmul.mubr.bf16.gmra.mrb[0].mxu0 %v437
      %v603 = vpop.f32.mrb[0].mxu0
      %v604 = vadd.f32 0.0, %v603
      %v605 = vpop.f32.mrb[0].mxu0
      %v606 = vpop.f32.mrb[0].mxu0
      %v607 = vadd.f32 0.0, %v606
      %v608 = vpop.f32.mrb[0].mxu0
      %609 = vmatprep.mubr.bf16.mxu0 0
      %610 = vmatmul.mubr.bf16.gmra.mrb[0].mxu0 %v440
      %v611 = vpop.f32.mrb[0].mxu0
      %v612 = vadd.f32 0.0, %v611
      %v613 = vpop.f32.mrb[0].mxu0
      %v614 = vpop.f32.mrb[0].mxu0
      %v615 = vadd.f32 0.0, %v614
      %v616 = vpop.f32.mrb[0].mxu0
      %617 = vmatprep.mubr.bf16.mxu0 0
      %618 = vmatmul.mubr.bf16.gmra.mrb[0].mxu0 %v443
      %v619 = vpop.f32.mrb[0].mxu0
      %v620 = vadd.f32 0.0, %v619
      %v621 = vpop.f32.mrb[0].mxu0
      %v622 = vpop.f32.mrb[0].mxu0
      %v623 = vadd.f32 0.0, %v622
      %v624 = vpop.f32.mrb[0].mxu0
      %625 = vmatprep.mubr.bf16.mxu0 0
      %626 = vmatmul.mubr.bf16.gmra.mrb[0].mxu0 %v446
      %v627 = vpop.f32.mrb[0].mxu0
      %v628 = vadd.f32 0.0, %v627
      %v629 = vpop.f32.mrb[0].mxu0
      %v630 = vpop.f32.mrb[0].mxu0
      %v631 = vadd.f32 0.0, %v630
      %v632 = vpop.f32.mrb[0].mxu0
      %633 = vmatprep.mubr.bf16.mxu0 0
      %634 = vmatmul.mubr.bf16.gmra.mrb[0].mxu0 %v449
      %v635 = vpop.f32.mrb[0].mxu0
      %v636 = vadd.f32 0.0, %v635
      %v637 = vpop.f32.mrb[0].mxu0
      %v638 = vpop.f32.mrb[0].mxu0
      %v639 = vadd.f32 0.0, %v638
      %v640 = vpop.f32.mrb[0].mxu0
      %641 = vmatprep.mubr.bf16.mxu0 0
      %642 = vmatmul.mubr.bf16.gmra.mrb[0].mxu0 %v452
      %v643 = vpop.f32.mrb[0].mxu0
      %v644 = vadd.f32 0.0, %v643
      %v645 = vpop.f32.mrb[0].mxu0
      %v646 = vpop.f32.mrb[0].mxu0
      %v647 = vadd.f32 0.0, %v646
      %v648 = vpop.f32.mrb[0].mxu0
      %649 = vmatprep.mubr.bf16.mxu0 0
      %650 = vmatmul.mubr.bf16.gmra.mrb[0].mxu0 %v455
      %v651 = vpop.f32.mrb[0].mxu0
      %v652 = vadd.f32 0.0, %v651
      %v653 = vpop.f32.mrb[0].mxu0
      %v654 = vpop.f32.mrb[0].mxu0
      %v655 = vadd.f32 0.0, %v654
      %v656 = vpop.f32.mrb[0].mxu0
      %657 = vmatprep.mubr.bf16.mxu0 0
      %658 = vmatmul.mubr.bf16.gmra.mrb[0].mxu0 %v458
      %v659 = vpop.f32.mrb[0].mxu0
      %v660 = vadd.f32 0.0, %v659
      %v661 = vpop.f32.mrb[0].mxu0
      %v662 = vpop.f32.mrb[0].mxu0
      %v663 = vadd.f32 0.0, %v662
      %v664 = vpop.f32.mrb[0].mxu0
      %665 = vmatprep.mubr.bf16.mxu0 0
      %666 = vmatmul.mubr.bf16.gmra.mrb[0].mxu0 %v461
      %v667 = vpop.f32.mrb[0].mxu0
      %v668 = vadd.f32 0.0, %v667
      %v669 = vpop.f32.mrb[0].mxu0
      %v670 = vpop.f32.mrb[0].mxu0
      %v671 = vadd.f32 0.0, %v670
      %v672 = vpop.f32.mrb[0].mxu0
      %673 = vmatprep.mubr.bf16.mxu0 0
      %674 = vmatmul.mubr.bf16.gmra.mrb[0].mxu0 %v464
      %v675 = vpop.f32.mrb[0].mxu0
      %v676 = vadd.f32 0.0, %v675
      %v677 = vpop.f32.mrb[0].mxu0
      %v678 = vpop.f32.mrb[0].mxu0
      %v679 = vadd.f32 0.0, %v678
      %v680 = vpop.f32.mrb[0].mxu0
      %681 = vmatprep.mubr.bf16.mxu0 0
      %682 = vmatmul.mubr.bf16.gmra.mrb[0].mxu0 %v467
      %v683 = vpop.f32.mrb[0].mxu0
      %v684 = vadd.f32 0.0, %v683
      %v685 = vpop.f32.mrb[0].mxu0
      %v686 = vpop.f32.mrb[0].mxu0
      %v687 = vadd.f32 0.0, %v686
      %v688 = vpop.f32.mrb[0].mxu0
      %689 = vmatprep.mubr.bf16.mxu0 0
      %690 = vmatmul.mubr.bf16.gmra.mrb[0].mxu0 %v470
      %v691 = vpop.f32.mrb[0].mxu0
      %v692 = vadd.f32 0.0, %v691
      %v693 = vpop.f32.mrb[0].mxu0
      %v694 = vpop.f32.mrb[0].mxu0
      %v695 = vadd.f32 0.0, %v694
      %v696 = vpop.f32.mrb[0].mxu0
      %697 = vmatprep.mubr.bf16.mxu0 0
      %698 = vmatmul.mubr.bf16.gmra.mrb[0].mxu0 %v473
      %v699 = vpop.f32.mrb[0].mxu0
      %v700 = vadd.f32 0.0, %v699
      %v701 = vpop.f32.mrb[0].mxu0
      %v702 = vpop.f32.mrb[0].mxu0
      %v703 = vadd.f32 0.0, %v702
      %v704 = vpop.f32.mrb[0].mxu0
      %705 = vmatprep.mubr.bf16.mxu0 0
      %706 = vmatmul.mubr.bf16.gmra.mrb[0].mxu0 %v476
      %v707 = vpop.f32.mrb[0].mxu0
      %v708 = vadd.f32 0.0, %v707
      %v709 = vpop.f32.mrb[0].mxu0
      %v710 = vpop.f32.mrb[0].mxu0
      %v711 = vadd.f32 0.0, %v710
      %v712 = vpop.f32.mrb[0].mxu0
      %713 = vmatprep.mubr.bf16.mxu0 0
      %714 = vmatmul.mubr.bf16.gmra.mrb[0].mxu0 %v479
      %v715 = vpop.f32.mrb[0].mxu0
      %v716 = vadd.f32 0.0, %v715
      %v717 = vpop.f32.mrb[0].mxu0
      %v718 = vpop.f32.mrb[0].mxu0
      %v719 = vadd.f32 0.0, %v718
      %v720 = vpop.f32.mrb[0].mxu0
      %721 = vmatprep.mubr.bf16.mxu0 0
      %722 = vmatmul.mubr.bf16.gmra.mrb[0].mxu0 %v482
      %v723 = vpop.f32.mrb[0].mxu0
      %v724 = vadd.f32 0.0, %v723
      %v725 = vpop.f32.mrb[0].mxu0
      %v726 = vpop.f32.mrb[0].mxu0
      %v727 = vadd.f32 0.0, %v726
      %v728 = vpop.f32.mrb[0].mxu0
      %729 = vmatprep.mubr.bf16.mxu0 0
      %730 = vmatmul.mubr.bf16.gmra.mrb[0].mxu0 %v485
      %v731 = vpop.f32.mrb[0].mxu0
      %v732 = vadd.f32 0.0, %v731
      %v733 = vpop.f32.mrb[0].mxu0
      %v734 = vpop.f32.mrb[0].mxu0
      %v735 = vadd.f32 0.0, %v734
      %v736 = vpop.f32.mrb[0].mxu0
      %737 = vmatprep.mubr.bf16.mxu0 0
      %738 = vmatmul.mubr.bf16.gmra.mrb[0].mxu0 %v488
      %v739 = vpop.f32.mrb[0].mxu0
      %v740 = vadd.f32 0.0, %v739
      %v741 = vpop.f32.mrb[0].mxu0
      %v742 = vpop.f32.mrb[0].mxu0
      %v743 = vadd.f32 0.0, %v742
      %v744 = vpop.f32.mrb[0].mxu0
      %745 = vmatprep.mubr.bf16.mxu0 0
      %746 = vmatmul.mubr.bf16.gmra.mrb[0].mxu0 %v491
      %v747 = vpop.f32.mrb[0].mxu0
      %v748 = vadd.f32 0.0, %v747
      %v749 = vpop.f32.mrb[0].mxu0
      %v750 = vpop.f32.mrb[0].mxu0
      %v751 = vadd.f32 0.0, %v750
      %v752 = vpop.f32.mrb[0].mxu0
      %753 = vmatprep.mubr.bf16.mxu0 0
      %754 = vmatmul.mubr.bf16.gmra.mrb[0].mxu0 %v494
      %v755 = vpop.f32.mrb[0].mxu0
      %v756 = vadd.f32 0.0, %v755
      %v757 = vpop.f32.mrb[0].mxu0
      %v758 = vpop.f32.mrb[0].mxu0
      %v759 = vadd.f32 0.0, %v758
      %v760 = vpop.f32.mrb[0].mxu0
      %761 = vmatprep.mubr.bf16.mxu0 0
      %762 = vmatmul.mubr.bf16.gmra.mrb[0].mxu0 %v497
      %v763 = vpop.f32.mrb[0].mxu0
      %v764 = vadd.f32 0.0, %v763
      %v765 = vpop.f32.mrb[0].mxu0
      %v766 = vpop.f32.mrb[0].mxu0
      %v767 = vadd.f32 0.0, %v766
      %v768 = vpop.f32.mrb[0].mxu0
      %769 = vmatprep.mubr.bf16.mxu0 0
      %770 = vmatmul.mubr.bf16.gmra.mrb[0].mxu0 %v500
      %v771 = vpop.f32.mrb[0].mxu0
      %v772 = vadd.f32 0.0, %v771
      %v773 = vpop.f32.mrb[0].mxu0
      %v774 = vpop.f32.mrb[0].mxu0
      %v775 = vadd.f32 0.0, %v774
      %v776 = vpop.f32.mrb[0].mxu0
      %777 = vmatprep.mubr.bf16.mxu0 0
      %778 = vmatmul.mubr.bf16.gmra.mrb[0].mxu0 %v503
      %v779 = vpop.f32.mrb[0].mxu0
      %v780 = vadd.f32 0.0, %v779
      %v781 = vpop.f32.mrb[0].mxu0
      %v782 = vpop.f32.mrb[0].mxu0
      %v783 = vadd.f32 0.0, %v782
      %v784 = vpop.f32.mrb[0].mxu0
      %785 = vmatprep.mubr.bf16.mxu0 0
      %786 = vmatmul.mubr.bf16.gmra.mrb[0].mxu0 %v506
      %v787 = vpop.f32.mrb[0].mxu0
      %v788 = vadd.f32 0.0, %v787
      %v789 = vpop.f32.mrb[0].mxu0
      %v790 = vpop.f32.mrb[0].mxu0
      %v791 = vadd.f32 0.0, %v790
      %v792 = vpop.f32.mrb[0].mxu0
      %793 = vmatprep.mubr.bf16.mxu0 0
      %794 = vmatmul.mubr.bf16.gmra.mrb[0].mxu0 %v509
      %v795 = vpop.f32.mrb[0].mxu0
      %v796 = vadd.f32 0.0, %v795
      %v797 = vpop.f32.mrb[0].mxu0
      %v798 = vpop.f32.mrb[0].mxu0
      %v799 = vadd.f32 0.0, %v798
      %v800 = vpop.f32.mrb[0].mxu0
      %801 = vmatprep.mubr.bf16.mxu0 0
      %802 = vmatmul.mubr.bf16.gmra.mrb[0].mxu0 %v512
      %v803 = vpop.f32.mrb[0].mxu0
      %v804 = vadd.f32 0.0, %v803
      %v805 = vpop.f32.mrb[0].mxu0
      %v806 = vpop.f32.mrb[0].mxu0
      %v807 = vadd.f32 0.0, %v806
      %v808 = vpop.f32.mrb[0].mxu0
      %809 = vdwg.mxu0
      %810 = vst [vmem:[%s170] sm:$0xff] %v556
      %811 = vst [vmem:[%s170 + $0x8] sm:$0xff] %v559
      %812 = vst [vmem:[%s170 + $0x10] sm:$0xff] %v564
      %813 = vst [vmem:[%s170 + $0x18] sm:$0xff] %v567
      %814 = vst [vmem:[%s170 + $0x20] sm:$0xff] %v572
      %815 = vst [vmem:[%s170 + $0x28] sm:$0xff] %v575
      %816 = vst [vmem:[%s170 + $0x30] sm:$0xff] %v580
      %817 = vst [vmem:[%s170 + $0x38] sm:$0xff] %v583
      %818 = vst [vmem:[%s170 + $0x40] sm:$0xff] %v588
      %819 = vst [vmem:[%s170 + $0x48] sm:$0xff] %v591
      %820 = vst [vmem:[%s170 + $0x50] sm:$0xff] %v596
      %821 = vst [vmem:[%s170 + $0x58] sm:$0xff] %v599
      %822 = vst [vmem:[%s170 + $0x60] sm:$0xff] %v604
      %823 = vst [vmem:[%s170 + $0x68] sm:$0xff] %v607
      %824 = vst [vmem:[%s170 + $0x70] sm:$0xff] %v612
      %825 = vst [vmem:[%s170 + $0x78] sm:$0xff] %v615
      %826 = vst [vmem:[%s170 + $0x80] sm:$0xff] %v620
      %827 = vst [vmem:[%s170 + $0x88] sm:$0xff] %v623
      %828 = vst [vmem:[%s170 + $0x90] sm:$0xff] %v628
      %829 = vst [vmem:[%s170 + $0x98] sm:$0xff] %v631
      %830 = vst [vmem:[%s170 + $0xa0] sm:$0xff] %v636
      %831 = vst [vmem:[%s170 + $0xa8] sm:$0xff] %v639
      %832 = vst [vmem:[%s170 + $0xb0] sm:$0xff] %v644
      %833 = vst [vmem:[%s170 + $0xb8] sm:$0xff] %v647
      %834 = vst [vmem:[%s170 + $0xc0] sm:$0xff] %v652
      %835 = vst [vmem:[%s170 + $0xc8] sm:$0xff] %v655
      %836 = vst [vmem:[%s170 + $0xd0] sm:$0xff] %v660
      %837 = vst [vmem:[%s170 + $0xd8] sm:$0xff] %v663
      %838 = vst [vmem:[%s170 + $0xe0] sm:$0xff] %v668
      %839 = vst [vmem:[%s170 + $0xe8] sm:$0xff] %v671
      %840 = vst [vmem:[%s170 + $0xf0] sm:$0xff] %v676
      %841 = vst [vmem:[%s170 + $0xf8] sm:$0xff] %v679
      %842 = vst [vmem:[%s170 + $0x100] sm:$0xff] %v684
      %843 = vst [vmem:[%s170 + $0x108] sm:$0xff] %v687
      %844 = vst [vmem:[%s170 + $0x110] sm:$0xff] %v692
      %845 = vst [vmem:[%s170 + $0x118] sm:$0xff] %v695
      %846 = vst [vmem:[%s170 + $0x120] sm:$0xff] %v700
      %847 = vst [vmem:[%s170 + $0x128] sm:$0xff] %v703
      %848 = vst [vmem:[%s170 + $0x130] sm:$0xff] %v708
      %849 = vst [vmem:[%s170 + $0x138] sm:$0xff] %v711
      %850 = vst [vmem:[%s170 + $0x140] sm:$0xff] %v716
      %851 = vst [vmem:[%s170 + $0x148] sm:$0xff] %v719
      %852 = vst [vmem:[%s170 + $0x150] sm:$0xff] %v724
      %853 = vst [vmem:[%s170 + $0x158] sm:$0xff] %v727
      %854 = vst [vmem:[%s170 + $0x160] sm:$0xff] %v732
      %855 = vst [vmem:[%s170 + $0x168] sm:$0xff] %v735
      %856 = vst [vmem:[%s170 + $0x170] sm:$0xff] %v740
      %857 = vst [vmem:[%s170 + $0x178] sm:$0xff] %v743
      %858 = vst [vmem:[%s170 + $0x180] sm:$0xff] %v748
      %859 = vst [vmem:[%s170 + $0x188] sm:$0xff] %v751
      %860 = vst [vmem:[%s170 + $0x190] sm:$0xff] %v756
      %861 = vst [vmem:[%s170 + $0x198] sm:$0xff] %v759
      %862 = vst [vmem:[%s170 + $0x1a0] sm:$0xff] %v764
      %863 = vst [vmem:[%s170 + $0x1a8] sm:$0xff] %v767
      %864 = vst [vmem:[%s170 + $0x1b0] sm:$0xff] %v772
      %865 = vst [vmem:[%s170 + $0x1b8] sm:$0xff] %v775
      %866 = vst [vmem:[%s170 + $0x1c0] sm:$0xff] %v780
      %867 = vst [vmem:[%s170 + $0x1c8] sm:$0xff] %v783
      %868 = vst [vmem:[%s170 + $0x1d0] sm:$0xff] %v788
      %869 = vst [vmem:[%s170 + $0x1d8] sm:$0xff] %v791
      %870 = vst [vmem:[%s170 + $0x1e0] sm:$0xff] %v796
      %871 = vst [vmem:[%s170 + $0x1e8] sm:$0xff] %v799
      %872 = vst [vmem:[%s170 + $0x1f0] sm:$0xff] %v804
      %873 = vst [vmem:[%s170 + $0x1f8] sm:$0xff] %v807
      %v874 = vld [vmem:[%s3] sm:$0x1]
      %v875 = vadd.f32 %v556, %v559
      %v876 = vadd.f32 %v875, %v564
      %v877 = vadd.f32 %v876, %v567
      %v878 = vadd.f32 %v877, %v572
      %v879 = vadd.f32 %v878, %v575
      %v880 = vadd.f32 %v879, %v580
      %v881 = vadd.f32 %v880, %v583
      %v882 = vadd.f32 %v881, %v588
      %v883 = vadd.f32 %v882, %v591
      %v884 = vadd.f32 %v883, %v596
      %v885 = vadd.f32 %v884, %v599
      %v886 = vadd.f32 %v885, %v604
      %v887 = vadd.f32 %v886, %v607
      %v888 = vadd.f32 %v887, %v612
      %v889 = vadd.f32 %v888, %v615
      %v890 = vadd.f32 %v889, %v620
      %v891 = vadd.f32 %v890, %v623
      %v892 = vadd.f32 %v891, %v628
      %v893 = vadd.f32 %v892, %v631
      %v894 = vadd.f32 %v893, %v636
      %v895 = vadd.f32 %v894, %v639
      %v896 = vadd.f32 %v895, %v644
      %v897 = vadd.f32 %v896, %v647
      %v898 = vadd.f32 %v897, %v652
      %v899 = vadd.f32 %v898, %v655
      %v900 = vadd.f32 %v899, %v660
      %v901 = vadd.f32 %v900, %v663
      %v902 = vadd.f32 %v901, %v668
      %v903 = vadd.f32 %v902, %v671
      %v904 = vadd.f32 %v903, %v676
      %v905 = vadd.f32 %v904, %v679
      %v906 = vadd.f32 %v905, %v684
      %v907 = vadd.f32 %v906, %v687
      %v908 = vadd.f32 %v907, %v692
      %v909 = vadd.f32 %v908, %v695
      %v910 = vadd.f32 %v909, %v700
      %v911 = vadd.f32 %v910, %v703
      %v912 = vadd.f32 %v911, %v708
      %v913 = vadd.f32 %v912, %v711
      %v914 = vadd.f32 %v913, %v716
      %v915 = vadd.f32 %v914, %v719
      %v916 = vadd.f32 %v915, %v724
      %v917 = vadd.f32 %v916, %v727
      %v918 = vadd.f32 %v917, %v732
      %v919 = vadd.f32 %v918, %v735
      %v920 = vadd.f32 %v919, %v740
      %v921 = vadd.f32 %v920, %v743
      %v922 = vadd.f32 %v921, %v748
      %v923 = vadd.f32 %v922, %v751
      %v924 = vadd.f32 %v923, %v756
      %v925 = vadd.f32 %v924, %v759
      %v926 = vadd.f32 %v925, %v764
      %v927 = vadd.f32 %v926, %v767
      %v928 = vadd.f32 %v927, %v772
      %v929 = vadd.f32 %v928, %v775
      %v930 = vadd.f32 %v929, %v780
      %v931 = vadd.f32 %v930, %v783
      %v932 = vadd.f32 %v931, %v788
      %v933 = vadd.f32 %v932, %v791
      %v934 = vadd.f32 %v933, %v796
      %v935 = vadd.f32 %v934, %v799
      %v936 = vadd.f32 %v935, %v804
      %v937 = vadd.f32 %v936, %v807
      %v938 = vrot.slane %v937, 4
      %v939 = vadd.f32 %v937, %v938
      %v940 = vrot.slane %v939, 2
      %v941 = vadd.f32 %v939, %v940
      %v942 = vrot.slane %v941, 1
      %v943 = vadd.f32 %v941, %v942
      %v944 = vadd.f32 %v874, %v943
      %945 = vst [vmem:[%s3] sm:$0x1] %v944
      %v946 = vld [vmem:[%s3 + $0x1] sm:$0x1]
      %v947 = vmul.f32 %v556, %v556
      %v948 = vmul.f32 %v559, %v559
      %v949 = vmul.f32 %v564, %v564
      %v950 = vmul.f32 %v567, %v567
      %v951 = vmul.f32 %v572, %v572
      %v952 = vmul.f32 %v575, %v575
      %v953 = vmul.f32 %v580, %v580
      %v954 = vmul.f32 %v583, %v583
      %v955 = vmul.f32 %v588, %v588
      %v956 = vmul.f32 %v591, %v591
      %v957 = vmul.f32 %v596, %v596
      %v958 = vmul.f32 %v599, %v599
      %v959 = vmul.f32 %v604, %v604
      %v960 = vmul.f32 %v607, %v607
      %v961 = vmul.f32 %v612, %v612
      %v962 = vmul.f32 %v615, %v615
      %v963 = vmul.f32 %v620, %v620
      %v964 = vmul.f32 %v623, %v623
      %v965 = vmul.f32 %v628, %v628
      %v966 = vmul.f32 %v631, %v631
      %v967 = vmul.f32 %v636, %v636
      %v968 = vmul.f32 %v639, %v639
      %v969 = vmul.f32 %v644, %v644
      %v970 = vmul.f32 %v647, %v647
      %v971 = vmul.f32 %v652, %v652
      %v972 = vmul.f32 %v655, %v655
      %v973 = vmul.f32 %v660, %v660
      %v974 = vmul.f32 %v663, %v663
      %v975 = vmul.f32 %v668, %v668
      %v976 = vmul.f32 %v671, %v671
      %v977 = vmul.f32 %v676, %v676
      %v978 = vmul.f32 %v679, %v679
      %v979 = vmul.f32 %v684, %v684
      %v980 = vmul.f32 %v687, %v687
      %v981 = vmul.f32 %v692, %v692
      %v982 = vmul.f32 %v695, %v695
      %v983 = vmul.f32 %v700, %v700
      %v984 = vmul.f32 %v703, %v703
      %v985 = vmul.f32 %v708, %v708
      %v986 = vmul.f32 %v711, %v711
      %v987 = vmul.f32 %v716, %v716
      %v988 = vmul.f32 %v719, %v719
      %v989 = vmul.f32 %v724, %v724
      %v990 = vmul.f32 %v727, %v727
      %v991 = vmul.f32 %v732, %v732
      %v992 = vmul.f32 %v735, %v735
      %v993 = vmul.f32 %v740, %v740
      %v994 = vmul.f32 %v743, %v743
      %v995 = vmul.f32 %v748, %v748
      %v996 = vmul.f32 %v751, %v751
      %v997 = vmul.f32 %v756, %v756
      %v998 = vmul.f32 %v759, %v759
      %v999 = vmul.f32 %v764, %v764
      %v1000 = vmul.f32 %v767, %v767
      %v1001 = vmul.f32 %v772, %v772
      %v1002 = vmul.f32 %v775, %v775
      %v1003 = vmul.f32 %v780, %v780
      %v1004 = vmul.f32 %v783, %v783
      %v1005 = vmul.f32 %v788, %v788
      %v1006 = vmul.f32 %v791, %v791
      %v1007 = vmul.f32 %v796, %v796
      %v1008 = vmul.f32 %v799, %v799
      %v1009 = vmul.f32 %v804, %v804
      %v1010 = vmul.f32 %v807, %v807
      %v1011 = vadd.f32 %v947, %v948
      %v1012 = vadd.f32 %v1011, %v949
      %v1013 = vadd.f32 %v1012, %v950
      %v1014 = vadd.f32 %v1013, %v951
      %v1015 = vadd.f32 %v1014, %v952
      %v1016 = vadd.f32 %v1015, %v953
      %v1017 = vadd.f32 %v1016, %v954
      %v1018 = vadd.f32 %v1017, %v955
      %v1019 = vadd.f32 %v1018, %v956
      %v1020 = vadd.f32 %v1019, %v957
      %v1021 = vadd.f32 %v1020, %v958
      %v1022 = vadd.f32 %v1021, %v959
      %v1023 = vadd.f32 %v1022, %v960
      %v1024 = vadd.f32 %v1023, %v961
      %v1025 = vadd.f32 %v1024, %v962
      %v1026 = vadd.f32 %v1025, %v963
      %v1027 = vadd.f32 %v1026, %v964
      %v1028 = vadd.f32 %v1027, %v965
      %v1029 = vadd.f32 %v1028, %v966
      %v1030 = vadd.f32 %v1029, %v967
      %v1031 = vadd.f32 %v1030, %v968
      %v1032 = vadd.f32 %v1031, %v969
      %v1033 = vadd.f32 %v1032, %v970
      %v1034 = vadd.f32 %v1033, %v971
      %v1035 = vadd.f32 %v1034, %v972
      %v1036 = vadd.f32 %v1035, %v973
      %v1037 = vadd.f32 %v1036, %v974
      %v1038 = vadd.f32 %v1037, %v975
      %v1039 = vadd.f32 %v1038, %v976
      %v1040 = vadd.f32 %v1039, %v977
      %v1041 = vadd.f32 %v1040, %v978
      %v1042 = vadd.f32 %v1041, %v979
      %v1043 = vadd.f32 %v1042, %v980
      %v1044 = vadd.f32 %v1043, %v981
      %v1045 = vadd.f32 %v1044, %v982
      %v1046 = vadd.f32 %v1045, %v983
      %v1047 = vadd.f32 %v1046, %v984
      %v1048 = vadd.f32 %v1047, %v985
      %v1049 = vadd.f32 %v1048, %v986
      %v1050 = vadd.f32 %v1049, %v987
      %v1051 = vadd.f32 %v1050, %v988
      %v1052 = vadd.f32 %v1051, %v989
      %v1053 = vadd.f32 %v1052, %v990
      %v1054 = vadd.f32 %v1053, %v991
      %v1055 = vadd.f32 %v1054, %v992
      %v1056 = vadd.f32 %v1055, %v993
      %v1057 = vadd.f32 %v1056, %v994
      %v1058 = vadd.f32 %v1057, %v995
      %v1059 = vadd.f32 %v1058, %v996
      %v1060 = vadd.f32 %v1059, %v997
      %v1061 = vadd.f32 %v1060, %v998
      %v1062 = vadd.f32 %v1061, %v999
      %v1063 = vadd.f32 %v1062, %v1000
      %v1064 = vadd.f32 %v1063, %v1001
      %v1065 = vadd.f32 %v1064, %v1002
      %v1066 = vadd.f32 %v1065, %v1003
      %v1067 = vadd.f32 %v1066, %v1004
      %v1068 = vadd.f32 %v1067, %v1005
      %v1069 = vadd.f32 %v1068, %v1006
      %v1070 = vadd.f32 %v1069, %v1007
      %v1071 = vadd.f32 %v1070, %v1008
      %v1072 = vadd.f32 %v1071, %v1009
      %v1073 = vadd.f32 %v1072, %v1010
      %v1074 = vrot.slane %v1073, 4
      %v1075 = vadd.f32 %v1073, %v1074
      %v1076 = vrot.slane %v1075, 2
      %v1077 = vadd.f32 %v1075, %v1076
      %v1078 = vrot.slane %v1077, 1
      %v1079 = vadd.f32 %v1077, %v1078
      %v1080 = vadd.f32 %v946, %v1079
      %1081 = vst [vmem:[%s3 + $0x1] sm:$0x1] %v1080
      %s1082 = smul.u32 64, %s15
      %p1083 = scmp.lt.s32.totalorder %s1082, 255
      %s1084 = scalar_select %p1083, %s1082, 255
      %s1085 = smul.addr %s1084, 8
      %s1086 = scalar_lea.vmem %s2, %s1085
      // Predicated region
      $region33: #{_lambda_.10} parent=27 // pred_check
        %p1087 = pneg %p80
      $region34: #{_lambda_.10} parent=27 // pred_check_branch
        %1089 = sbr.rel (%p1087) target = $region36
      $region35: #{_lambda_.10} parent=27 // pred_region
        %s1090 = smul.u32 64, %s15
      $region36: #{_lambda_.10} parent=27 // pred_fallthru
        _
      // Predicated region
      $region37: #{_lambda_.10} parent=27 // pred_check
        %p1091 = pneg %p101
      $region38: #{_lambda_.10} parent=27 // pred_check_branch
        %1093 = sbr.rel (%p1091) target = $region40
      $region39: #{_lambda_.10} parent=27 // pred_region
        _
      $region40: #{_lambda_.10} parent=27 // pred_fallthru
        _
      // Predicated region
      $region41: #{_lambda_.10} parent=27 // pred_check
        %p1094 = pneg %p101
      $region42: #{_lambda_.10} parent=27 // pred_check_branch
        %1096 = sbr.rel (%p1094) target = $region44
      $region43: #{_lambda_.10} parent=27 // pred_region
        _
      $region44: #{_lambda_.10} parent=27 // pred_fallthru
        _
    $region28: #{_lambda_.10} parent=5 // pred_fallthru
      _
    %p1097 = scmp.le.s32.totalorder 2, %s10
    // Predicated region
    $region45: #{_lambda_.10} parent=5 // pred_check
      %p1098 = pneg %p1097
    $region46: #{_lambda_.10} parent=5 // pred_check_branch
      %1100 = sbr.rel (%p1098) target = $region48
    $region47: #{_lambda_.10} parent=5 // pred_region
      %s1101 = ssub.s32 %s10, 2
      // Predicated region
      $region49: #{_lambda_.10} parent=47 // pred_check
        %p1102 = pneg %p86
      $region50: #{_lambda_.10} parent=47 // pred_check_branch
        %1104 = sbr.rel (%p1102) target = $region52
      $region51: #{_lambda_.10} parent=47 // pred_region
        %s1105 = smul.u32 64, %s16
        %p1106 = scmp.lt.s32.totalorder %s1105, 255
        %s1107 = scalar_select %p1106, %s1105, 255
        %s1108 = smul.addr %s1107, 8
        %s1109 = scalar_lea.vmem %s2, %s1108
      $region52: #{_lambda_.10} parent=47 // pred_fallthru
        _
    $region48: #{_lambda_.10} parent=5 // pred_fallthru
      _
  $region6: #{_lambda_.10} parent=0 // loop_footer
    %s14 = sadd.s32 1, %s10
  $region7: #{_lambda_.10} parent=0 // loop_footer_branch
    %9 = sbr.rel target = $region3
  $region8: #{_lambda_.10} parent=0 // loop_exit
    _

// kernel: _lambda_.12
$region0: #{_lambda_.12}
  #allocation0 [shape = 'u32[]', space=smem, size = 0x4, offset = 0x4, fixed_abs, tag = 'smem constant byte address 0x4 - core index']
  #allocation1 [shape = 'u32[144,128]{1,0:T(1,128)}', space=vmem, size = 0x12000, scoped, tag = 'internal scratch']
  %s0 = inlined_call_operand.vmem [shape: bf16[512,72], index: 0, kind: input, shape index: {}]
  %s1 = inlined_call_operand.vmem [shape: bf16[72,128], index: 1, kind: input, shape index: {}]
  %s2 = inlined_call_operand.vmem [shape: f32[1,128], index: 2, kind: input, shape index: {}]
  %s3 = inlined_call_operand.vmem [shape: f32[1,128], index: 3, kind: input, shape index: {}]
  %s4 = inlined_call_operand.vmem [shape: f32[512,128], index: 4, kind: output, shape index: {}]
  %s5 = sld [smem:[#allocation0]]
  $region26: #{_lambda_.12} parent=0
    _
  %s7 = ssub.s32 1, %s5
  %s8 = scalar_select 0, %s7, %s5
  // Predicated region
  $region2: #{_lambda_.12} parent=0 // pred_check
    _
  $region3: #{_lambda_.12} parent=0 // pred_check_branch
    %10 = sbr.rel (0) target = $region5
  $region4: #{_lambda_.12} parent=0 // pred_region
    _
  $region5: #{_lambda_.12} parent=0 // pred_fallthru
    _
  // Predicated region
  $region6: #{_lambda_.12} parent=0 // pred_check
    _
  $region7: #{_lambda_.12} parent=0 // pred_check_branch
    %12 = sbr.rel (0) target = $region9
  $region8: #{_lambda_.12} parent=0 // pred_region
    _
  $region9: #{_lambda_.12} parent=0 // pred_fallthru
    _
  // Predicated region
  $region10: #{_lambda_.12} parent=0 // pred_check
    _
  $region11: #{_lambda_.12} parent=0 // pred_check_branch
    %14 = sbr.rel (0) target = $region13
  $region12: #{_lambda_.12} parent=0 // pred_region
    _
  $region13: #{_lambda_.12} parent=0 // pred_fallthru
    _
  // Predicated region
  $region14: #{_lambda_.12} parent=0 // pred_check
    _
  $region15: #{_lambda_.12} parent=0 // pred_check_branch
    %16 = sbr.rel (0) target = $region17
  $region16: #{_lambda_.12} parent=0 // pred_region
    _
  $region17: #{_lambda_.12} parent=0 // pred_fallthru
    _
  %v18 = vld [vmem:[%s0] sm:$0xf]
  %v19 = vld [vmem:[%s0 + $0x4] sm:$0xf]
  %v20 = vld [vmem:[%s0 + $0x8] sm:$0xf]
  %v21 = vld [vmem:[%s0 + $0xc] sm:$0xf]
  %v22 = vld [vmem:[%s0 + $0x10] sm:$0xf]
  %v23 = vld [vmem:[%s0 + $0x14] sm:$0xf]
  %v24 = vld [vmem:[%s0 + $0x18] sm:$0xf]
  %v25 = vld [vmem:[%s0 + $0x1c] sm:$0xf]
  %v26 = vld [vmem:[%s0 + $0x20] sm:$0xf]
  %v27 = vld [vmem:[%s0 + $0x24] sm:$0xf]
  %v28 = vld [vmem:[%s0 + $0x28] sm:$0xf]
  %v29 = vld [vmem:[%s0 + $0x2c] sm:$0xf]
  %v30 = vld [vmem:[%s0 + $0x30] sm:$0xf]
  %v31 = vld [vmem:[%s0 + $0x34] sm:$0xf]
  %v32 = vld [vmem:[%s0 + $0x38] sm:$0xf]
  %v33 = vld [vmem:[%s0 + $0x3c] sm:$0xf]
  %v34 = vld [vmem:[%s0 + $0x40] sm:$0xf]
  %v35 = vld [vmem:[%s0 + $0x44] sm:$0xf]
  %v36 = vld [vmem:[%s0 + $0x48] sm:$0xf]
  %v37 = vld [vmem:[%s0 + $0x4c] sm:$0xf]
  %v38 = vld [vmem:[%s0 + $0x50] sm:$0xf]
  %v39 = vld [vmem:[%s0 + $0x54] sm:$0xf]
  %v40 = vld [vmem:[%s0 + $0x58] sm:$0xf]
  %v41 = vld [vmem:[%s0 + $0x5c] sm:$0xf]
  %v42 = vld [vmem:[%s0 + $0x60] sm:$0xf]
  %v43 = vld [vmem:[%s0 + $0x64] sm:$0xf]
  %v44 = vld [vmem:[%s0 + $0x68] sm:$0xf]
  %v45 = vld [vmem:[%s0 + $0x6c] sm:$0xf]
  %v46 = vld [vmem:[%s0 + $0x70] sm:$0xf]
  %v47 = vld [vmem:[%s0 + $0x74] sm:$0xf]
  %v48 = vld [vmem:[%s0 + $0x78] sm:$0xf]
  %v49 = vld [vmem:[%s0 + $0x7c] sm:$0xf]
  %v50 = vld [vmem:[%s0 + $0x80] sm:$0xf]
  %v51 = vld [vmem:[%s0 + $0x84] sm:$0xf]
  %v52 = vld [vmem:[%s0 + $0x88] sm:$0xf]
  %v53 = vld [vmem:[%s0 + $0x8c] sm:$0xf]
  %v54 = vld [vmem:[%s0 + $0x90] sm:$0xf]
  %v55 = vld [vmem:[%s0 + $0x94] sm:$0xf]
  %v56 = vld [vmem:[%s0 + $0x98] sm:$0xf]
  %v57 = vld [vmem:[%s0 + $0x9c] sm:$0xf]
  %v58 = vld [vmem:[%s0 + $0xa0] sm:$0xf]
  %v59 = vld [vmem:[%s0 + $0xa4] sm:$0xf]
  %v60 = vld [vmem:[%s0 + $0xa8] sm:$0xf]
  %v61 = vld [vmem:[%s0 + $0xac] sm:$0xf]
  %v62 = vld [vmem:[%s0 + $0xb0] sm:$0xf]
  %v63 = vld [vmem:[%s0 + $0xb4] sm:$0xf]
  %v64 = vld [vmem:[%s0 + $0xb8] sm:$0xf]
  %v65 = vld [vmem:[%s0 + $0xbc] sm:$0xf]
  %v66 = vld [vmem:[%s0 + $0xc0] sm:$0xf]
  %v67 = vld [vmem:[%s0 + $0xc4] sm:$0xf]
  %v68 = vld [vmem:[%s0 + $0xc8] sm:$0xf]
  %v69 = vld [vmem:[%s0 + $0xcc] sm:$0xf]
  %v70 = vld [vmem:[%s0 + $0xd0] sm:$0xf]
  %v71 = vld [vmem:[%s0 + $0xd4] sm:$0xf]
  %v72 = vld [vmem:[%s0 + $0xd8] sm:$0xf]
  %v73 = vld [vmem:[%s0 + $0xdc] sm:$0xf]
  %v74 = vld [vmem:[%s0 + $0xe0] sm:$0xf]
  %v75 = vld [vmem:[%s0 + $0xe4] sm:$0xf]
  %v76 = vld [vmem:[%s0 + $0xe8] sm:$0xf]
  %v77 = vld [vmem:[%s0 + $0xec] sm:$0xf]
  %v78 = vld [vmem:[%s0 + $0xf0] sm:$0xf]
  %v79 = vld [vmem:[%s0 + $0xf4] sm:$0xf]
  %v80 = vld [vmem:[%s0 + $0xf8] sm:$0xf]
  %v81 = vld [vmem:[%s0 + $0xfc] sm:$0xf]
  %v82 = vld [vmem:[%s1] sm:$0xf]
  %v83 = vld [vmem:[%s1 + $0x4] sm:$0xf]
  %v84 = vld [vmem:[%s1 + $0x8] sm:$0xf]
  %v85 = vld [vmem:[%s1 + $0xc] sm:$0xf]
  %v86 = vld [vmem:[%s1 + $0x10] sm:$0xf]
  %v87 = vld [vmem:[%s1 + $0x14] sm:$0xf]
  %v88 = vld [vmem:[%s1 + $0x18] sm:$0xf]
  %v89 = vld [vmem:[%s1 + $0x1c] sm:$0xf]
  %v90 = vld [vmem:[%s1 + $0x20] sm:$0xf]
  %v155 = vunpack.c.l.b16 %v18
  %v156 = vunpack.c.l.b16 %v19
  %v157 = vunpack.c.l.b16 %v20
  %v158 = vunpack.c.l.b16 %v21
  %v159 = vunpack.c.l.b16 %v22
  %v160 = vunpack.c.l.b16 %v23
  %v161 = vunpack.c.l.b16 %v24
  %v162 = vunpack.c.l.b16 %v25
  %v163 = vunpack.c.l.b16 %v26
  %v164 = vunpack.c.l.b16 %v27
  %v165 = vunpack.c.l.b16 %v28
  %v166 = vunpack.c.l.b16 %v29
  %v167 = vunpack.c.l.b16 %v30
  %v168 = vunpack.c.l.b16 %v31
  %v169 = vunpack.c.l.b16 %v32
  %v170 = vunpack.c.l.b16 %v33
  %v171 = vunpack.c.l.b16 %v34
  %v172 = vunpack.c.l.b16 %v35
  %v173 = vunpack.c.l.b16 %v36
  %v174 = vunpack.c.l.b16 %v37
  %v175 = vunpack.c.l.b16 %v38
  %v176 = vunpack.c.l.b16 %v39
  %v177 = vunpack.c.l.b16 %v40
  %v178 = vunpack.c.l.b16 %v41
  %v179 = vunpack.c.l.b16 %v42
  %v180 = vunpack.c.l.b16 %v43
  %v181 = vunpack.c.l.b16 %v44
  %v182 = vunpack.c.l.b16 %v45
  %v183 = vunpack.c.l.b16 %v46
  %v184 = vunpack.c.l.b16 %v47
  %v185 = vunpack.c.l.b16 %v48
  %v186 = vunpack.c.l.b16 %v49
  %v187 = vunpack.c.l.b16 %v50
  %v188 = vunpack.c.l.b16 %v51
  %v189 = vunpack.c.l.b16 %v52
  %v190 = vunpack.c.l.b16 %v53
  %v191 = vunpack.c.l.b16 %v54
  %v192 = vunpack.c.l.b16 %v55
  %v193 = vunpack.c.l.b16 %v56
  %v194 = vunpack.c.l.b16 %v57
  %v195 = vunpack.c.l.b16 %v58
  %v196 = vunpack.c.l.b16 %v59
  %v197 = vunpack.c.l.b16 %v60
  %v198 = vunpack.c.l.b16 %v61
  %v199 = vunpack.c.l.b16 %v62
  %v200 = vunpack.c.l.b16 %v63
  %v201 = vunpack.c.l.b16 %v64
  %v202 = vunpack.c.l.b16 %v65
  %v203 = vunpack.c.l.b16 %v66
  %v204 = vunpack.c.l.b16 %v67
  %v205 = vunpack.c.l.b16 %v68
  %v206 = vunpack.c.l.b16 %v69
  %v207 = vunpack.c.l.b16 %v70
  %v208 = vunpack.c.l.b16 %v71
  %v209 = vunpack.c.l.b16 %v72
  %v210 = vunpack.c.l.b16 %v73
  %v211 = vunpack.c.l.b16 %v74
  %v212 = vunpack.c.l.b16 %v75
  %v213 = vunpack.c.l.b16 %v76
  %v214 = vunpack.c.l.b16 %v77
  %v215 = vunpack.c.l.b16 %v78
  %v216 = vunpack.c.l.b16 %v79
  %v217 = vunpack.c.l.b16 %v80
  %v218 = vunpack.c.l.b16 %v81
  %v219 = vpack.c.b16 %v156, %v155
  %v220 = vpack.c.b16 %v158, %v157
  %v221 = vpack.c.b16 %v160, %v159
  %v222 = vpack.c.b16 %v162, %v161
  %v223 = vpack.c.b16 %v164, %v163
  %v224 = vpack.c.b16 %v166, %v165
  %v225 = vpack.c.b16 %v168, %v167
  %v226 = vpack.c.b16 %v170, %v169
  %v227 = vpack.c.b16 %v172, %v171
  %v228 = vpack.c.b16 %v174, %v173
  %v229 = vpack.c.b16 %v176, %v175
  %v230 = vpack.c.b16 %v178, %v177
  %v231 = vpack.c.b16 %v180, %v179
  %v232 = vpack.c.b16 %v182, %v181
  %v233 = vpack.c.b16 %v184, %v183
  %v234 = vpack.c.b16 %v186, %v185
  %v235 = vpack.c.b16 %v188, %v187
  %v236 = vpack.c.b16 %v190, %v189
  %v237 = vpack.c.b16 %v192, %v191
  %v238 = vpack.c.b16 %v194, %v193
  %v239 = vpack.c.b16 %v196, %v195
  %v240 = vpack.c.b16 %v198, %v197
  %v241 = vpack.c.b16 %v200, %v199
  %v242 = vpack.c.b16 %v202, %v201
  %v243 = vpack.c.b16 %v204, %v203
  %v244 = vpack.c.b16 %v206, %v205
  %v245 = vpack.c.b16 %v208, %v207
  %v246 = vpack.c.b16 %v210, %v209
  %v247 = vpack.c.b16 %v212, %v211
  %v248 = vpack.c.b16 %v214, %v213
  %v249 = vpack.c.b16 %v216, %v215
  %v250 = vpack.c.b16 %v218, %v217
  %v260 = vunpack.c.l.b16 %v82
  %v261 = vunpack.c.l.b16 %v83
  %v262 = vunpack.c.l.b16 %v84
  %v263 = vunpack.c.l.b16 %v85
  %v264 = vunpack.c.l.b16 %v86
  %v265 = vunpack.c.l.b16 %v87
  %v266 = vunpack.c.l.b16 %v88
  %v267 = vunpack.c.l.b16 %v89
  %v268 = vunpack.c.l.b16 %v90
  %v269 = vpack.c.b16 %v261, %v260
  %v270 = vpack.c.b16 %v263, %v262
  %v271 = vpack.c.b16 %v265, %v264
  %v272 = vpack.c.b16 %v267, %v266
  %v273 = vpack.c.b16 %v268, %v268
  %vm278 = vcmask 588800
  %v280 = vsel %vm278, %v219, 0
  %v283 = vsel %vm278, %v220, 0
  %v286 = vsel %vm278, %v221, 0
  %v289 = vsel %vm278, %v222, 0
  %v292 = vsel %vm278, %v223, 0
  %v295 = vsel %vm278, %v224, 0
  %v298 = vsel %vm278, %v225, 0
  %v301 = vsel %vm278, %v226, 0
  %v304 = vsel %vm278, %v227, 0
  %v307 = vsel %vm278, %v228, 0
  %v310 = vsel %vm278, %v229, 0
  %v313 = vsel %vm278, %v230, 0
  %v316 = vsel %vm278, %v231, 0
  %v319 = vsel %vm278, %v232, 0
  %v322 = vsel %vm278, %v233, 0
  %v325 = vsel %vm278, %v234, 0
  %v328 = vsel %vm278, %v235, 0
  %v331 = vsel %vm278, %v236, 0
  %v334 = vsel %vm278, %v237, 0
  %v337 = vsel %vm278, %v238, 0
  %v340 = vsel %vm278, %v239, 0
  %v343 = vsel %vm278, %v240, 0
  %v346 = vsel %vm278, %v241, 0
  %v349 = vsel %vm278, %v242, 0
  %v352 = vsel %vm278, %v243, 0
  %v355 = vsel %vm278, %v244, 0
  %v358 = vsel %vm278, %v245, 0
  %v361 = vsel %vm278, %v246, 0
  %v364 = vsel %vm278, %v247, 0
  %v367 = vsel %vm278, %v248, 0
  %v370 = vsel %vm278, %v249, 0
  %v373 = vsel %vm278, %v250, 0
  %vm375 = vcmask 1043456
  %v377 = vsel %vm375, %v273, 0
  %379 = vmatprep.subr.bf16.mxu0 0
  %380 = vmatpush1.bf16.msra.mxu0 %v269
  %381 = vmatprep.subr.bf16.mxu0 0
  %382 = vmatpush1.bf16.msra.mxu0 %v270
  %383 = vmatprep.subr.bf16.mxu0 0
  %384 = vmatpush1.bf16.msra.mxu0 %v271
  %385 = vmatprep.subr.bf16.mxu0 0
  %386 = vmatpush1.bf16.msra.mxu0 %v272
  %387 = vmatprep.subr.bf16.mxu0 0
  %388 = vmatpush1.bf16.msra.mxu0 %v377
  %389 = vmatprep.subr.bf16.mxu0 0
  %390 = vmatpush1.bf16.msra.mxu0 0
  %391 = vmatprep.subr.bf16.mxu0 0
  %392 = vmatpush1.bf16.msra.mxu0 0
  %393 = vmatprep.subr.bf16.mxu0 0
  %394 = vmatpush1.bf16.msra.mxu0 0
  %395 = vmatprep.subr.bf16.mxu0 0
  %396 = vmatpush1.bf16.msra.mxu0 0
  %397 = vmatprep.subr.bf16.mxu0 0
  %398 = vmatpush1.bf16.msra.mxu0 0
  %399 = vmatprep.subr.bf16.mxu0 0
  %400 = vmatpush1.bf16.msra.mxu0 0
  %401 = vmatprep.subr.bf16.mxu0 0
  %402 = vmatpush1.bf16.msra.mxu0 0
  %403 = vmatprep.subr.bf16.mxu0 0
  %404 = vmatpush1.bf16.msra.mxu0 0
  %405 = vmatprep.subr.bf16.mxu0 0
  %406 = vmatpush1.bf16.msra.mxu0 0
  %407 = vmatprep.subr.bf16.mxu0 0
  %408 = vmatpush1.bf16.msra.mxu0 0
  %409 = vmatprep.subr.bf16.mxu0 0
  %410 = vmatpush1.bf16.msra.mxu0 0
  %411 = vmatprep.mubr.bf16.mxu0 0
  %412 = vmatmul.mubr.bf16.gmra.mrb[0].mxu0 %v280
  %v413 = vpop.f32.mrb[0].mxu0
  %v414 = vadd.f32 0.0, %v413
  %v415 = vpop.f32.mrb[0].mxu0
  %v416 = vpop.f32.mrb[0].mxu0
  %v417 = vadd.f32 0.0, %v416
  %v418 = vpop.f32.mrb[0].mxu0
  %419 = vmatprep.mubr.bf16.mxu0 0
  %420 = vmatmul.mubr.bf16.gmra.mrb[0].mxu0 %v283
  %v421 = vpop.f32.mrb[0].mxu0
  %v422 = vadd.f32 0.0, %v421
  %v423 = vpop.f32.mrb[0].mxu0
  %v424 = vpop.f32.mrb[0].mxu0
  %v425 = vadd.f32 0.0, %v424
  %v426 = vpop.f32.mrb[0].mxu0
  %427 = vmatprep.mubr.bf16.mxu0 0
  %428 = vmatmul.mubr.bf16.gmra.mrb[0].mxu0 %v286
  %v429 = vpop.f32.mrb[0].mxu0
  %v430 = vadd.f32 0.0, %v429
  %v431 = vpop.f32.mrb[0].mxu0
  %v432 = vpop.f32.mrb[0].mxu0
  %v433 = vadd.f32 0.0, %v432
  %v434 = vpop.f32.mrb[0].mxu0
  %435 = vmatprep.mubr.bf16.mxu0 0
  %436 = vmatmul.mubr.bf16.gmra.mrb[0].mxu0 %v289
  %v437 = vpop.f32.mrb[0].mxu0
  %v438 = vadd.f32 0.0, %v437
  %v439 = vpop.f32.mrb[0].mxu0
  %v440 = vpop.f32.mrb[0].mxu0
  %v441 = vadd.f32 0.0, %v440
  %v442 = vpop.f32.mrb[0].mxu0
  %443 = vmatprep.mubr.bf16.mxu0 0
  %444 = vmatmul.mubr.bf16.gmra.mrb[0].mxu0 %v292
  %v445 = vpop.f32.mrb[0].mxu0
  %v446 = vadd.f32 0.0, %v445
  %v447 = vpop.f32.mrb[0].mxu0
  %v448 = vpop.f32.mrb[0].mxu0
  %v449 = vadd.f32 0.0, %v448
  %v450 = vpop.f32.mrb[0].mxu0
  %451 = vmatprep.mubr.bf16.mxu0 0
  %452 = vmatmul.mubr.bf16.gmra.mrb[0].mxu0 %v295
  %v453 = vpop.f32.mrb[0].mxu0
  %v454 = vadd.f32 0.0, %v453
  %v455 = vpop.f32.mrb[0].mxu0
  %v456 = vpop.f32.mrb[0].mxu0
  %v457 = vadd.f32 0.0, %v456
  %v458 = vpop.f32.mrb[0].mxu0
  %459 = vmatprep.mubr.bf16.mxu0 0
  %460 = vmatmul.mubr.bf16.gmra.mrb[0].mxu0 %v298
  %v461 = vpop.f32.mrb[0].mxu0
  %v462 = vadd.f32 0.0, %v461
  %v463 = vpop.f32.mrb[0].mxu0
  %v464 = vpop.f32.mrb[0].mxu0
  %v465 = vadd.f32 0.0, %v464
  %v466 = vpop.f32.mrb[0].mxu0
  %467 = vmatprep.mubr.bf16.mxu0 0
  %468 = vmatmul.mubr.bf16.gmra.mrb[0].mxu0 %v301
  %v469 = vpop.f32.mrb[0].mxu0
  %v470 = vadd.f32 0.0, %v469
  %v471 = vpop.f32.mrb[0].mxu0
  %v472 = vpop.f32.mrb[0].mxu0
  %v473 = vadd.f32 0.0, %v472
  %v474 = vpop.f32.mrb[0].mxu0
  %475 = vmatprep.mubr.bf16.mxu0 0
  %476 = vmatmul.mubr.bf16.gmra.mrb[0].mxu0 %v304
  %v477 = vpop.f32.mrb[0].mxu0
  %v478 = vadd.f32 0.0, %v477
  %v479 = vpop.f32.mrb[0].mxu0
  %v480 = vpop.f32.mrb[0].mxu0
  %v481 = vadd.f32 0.0, %v480
  %v482 = vpop.f32.mrb[0].mxu0
  %483 = vmatprep.mubr.bf16.mxu0 0
  %484 = vmatmul.mubr.bf16.gmra.mrb[0].mxu0 %v307
  %v485 = vpop.f32.mrb[0].mxu0
  %v486 = vadd.f32 0.0, %v485
  %v487 = vpop.f32.mrb[0].mxu0
  %v488 = vpop.f32.mrb[0].mxu0
  %v489 = vadd.f32 0.0, %v488
  %v490 = vpop.f32.mrb[0].mxu0
  %491 = vmatprep.mubr.bf16.mxu0 0
  %492 = vmatmul.mubr.bf16.gmra.mrb[0].mxu0 %v310
  %v493 = vpop.f32.mrb[0].mxu0
  %v494 = vadd.f32 0.0, %v493
  %v495 = vpop.f32.mrb[0].mxu0
  %v496 = vpop.f32.mrb[0].mxu0
  %v497 = vadd.f32 0.0, %v496
  %v498 = vpop.f32.mrb[0].mxu0
  %499 = vmatprep.mubr.bf16.mxu0 0
  %500 = vmatmul.mubr.bf16.gmra.mrb[0].mxu0 %v313
  %v501 = vpop.f32.mrb[0].mxu0
  %v502 = vadd.f32 0.0, %v501
  %v503 = vpop.f32.mrb[0].mxu0
  %v504 = vpop.f32.mrb[0].mxu0
  %v505 = vadd.f32 0.0, %v504
  %v506 = vpop.f32.mrb[0].mxu0
  %507 = vmatprep.mubr.bf16.mxu0 0
  %508 = vmatmul.mubr.bf16.gmra.mrb[0].mxu0 %v316
  %v509 = vpop.f32.mrb[0].mxu0
  %v510 = vadd.f32 0.0, %v509
  %v511 = vpop.f32.mrb[0].mxu0
  %v512 = vpop.f32.mrb[0].mxu0
  %v513 = vadd.f32 0.0, %v512
  %v514 = vpop.f32.mrb[0].mxu0
  %515 = vmatprep.mubr.bf16.mxu0 0
  %516 = vmatmul.mubr.bf16.gmra.mrb[0].mxu0 %v319
  %v517 = vpop.f32.mrb[0].mxu0
  %v518 = vadd.f32 0.0, %v517
  %v519 = vpop.f32.mrb[0].mxu0
  %v520 = vpop.f32.mrb[0].mxu0
  %v521 = vadd.f32 0.0, %v520
  %v522 = vpop.f32.mrb[0].mxu0
  %523 = vmatprep.mubr.bf16.mxu0 0
  %524 = vmatmul.mubr.bf16.gmra.mrb[0].mxu0 %v322
  %v525 = vpop.f32.mrb[0].mxu0
  %v526 = vadd.f32 0.0, %v525
  %v527 = vpop.f32.mrb[0].mxu0
  %v528 = vpop.f32.mrb[0].mxu0
  %v529 = vadd.f32 0.0, %v528
  %v530 = vpop.f32.mrb[0].mxu0
  %531 = vmatprep.mubr.bf16.mxu0 0
  %532 = vmatmul.mubr.bf16.gmra.mrb[0].mxu0 %v325
  %v533 = vpop.f32.mrb[0].mxu0
  %v534 = vadd.f32 0.0, %v533
  %v535 = vpop.f32.mrb[0].mxu0
  %v536 = vpop.f32.mrb[0].mxu0
  %v537 = vadd.f32 0.0, %v536
  %v538 = vpop.f32.mrb[0].mxu0
  %539 = vmatprep.mubr.bf16.mxu0 0
  %540 = vmatmul.mubr.bf16.gmra.mrb[0].mxu0 %v328
  %v541 = vpop.f32.mrb[0].mxu0
  %v542 = vadd.f32 0.0, %v541
  %v543 = vpop.f32.mrb[0].mxu0
  %v544 = vpop.f32.mrb[0].mxu0
  %v545 = vadd.f32 0.0, %v544
  %v546 = vpop.f32.mrb[0].mxu0
  %547 = vmatprep.mubr.bf16.mxu0 0
  %548 = vmatmul.mubr.bf16.gmra.mrb[0].mxu0 %v331
  %v549 = vpop.f32.mrb[0].mxu0
  %v550 = vadd.f32 0.0, %v549
  %v551 = vpop.f32.mrb[0].mxu0
  %v552 = vpop.f32.mrb[0].mxu0
  %v553 = vadd.f32 0.0, %v552
  %v554 = vpop.f32.mrb[0].mxu0
  %555 = vmatprep.mubr.bf16.mxu0 0
  %556 = vmatmul.mubr.bf16.gmra.mrb[0].mxu0 %v334
  %v557 = vpop.f32.mrb[0].mxu0
  %v558 = vadd.f32 0.0, %v557
  %v559 = vpop.f32.mrb[0].mxu0
  %v560 = vpop.f32.mrb[0].mxu0
  %v561 = vadd.f32 0.0, %v560
  %v562 = vpop.f32.mrb[0].mxu0
  %563 = vmatprep.mubr.bf16.mxu0 0
  %564 = vmatmul.mubr.bf16.gmra.mrb[0].mxu0 %v337
  %v565 = vpop.f32.mrb[0].mxu0
  %v566 = vadd.f32 0.0, %v565
  %v567 = vpop.f32.mrb[0].mxu0
  %v568 = vpop.f32.mrb[0].mxu0
  %v569 = vadd.f32 0.0, %v568
  %v570 = vpop.f32.mrb[0].mxu0
  %571 = vmatprep.mubr.bf16.mxu0 0
  %572 = vmatmul.mubr.bf16.gmra.mrb[0].mxu0 %v340
  %v573 = vpop.f32.mrb[0].mxu0
  %v574 = vadd.f32 0.0, %v573
  %v575 = vpop.f32.mrb[0].mxu0
  %v576 = vpop.f32.mrb[0].mxu0
  %v577 = vadd.f32 0.0, %v576
  %v578 = vpop.f32.mrb[0].mxu0
  %579 = vmatprep.mubr.bf16.mxu0 0
  %580 = vmatmul.mubr.bf16.gmra.mrb[0].mxu0 %v343
  %v581 = vpop.f32.mrb[0].mxu0
  %v582 = vadd.f32 0.0, %v581
  %v583 = vpop.f32.mrb[0].mxu0
  %v584 = vpop.f32.mrb[0].mxu0
  %v585 = vadd.f32 0.0, %v584
  %v586 = vpop.f32.mrb[0].mxu0
  %587 = vmatprep.mubr.bf16.mxu0 0
  %588 = vmatmul.mubr.bf16.gmra.mrb[0].mxu0 %v346
  %v589 = vpop.f32.mrb[0].mxu0
  %v590 = vadd.f32 0.0, %v589
  %v591 = vpop.f32.mrb[0].mxu0
  %v592 = vpop.f32.mrb[0].mxu0
  %v593 = vadd.f32 0.0, %v592
  %v594 = vpop.f32.mrb[0].mxu0
  %595 = vmatprep.mubr.bf16.mxu0 0
  %596 = vmatmul.mubr.bf16.gmra.mrb[0].mxu0 %v349
  %v597 = vpop.f32.mrb[0].mxu0
  %v598 = vadd.f32 0.0, %v597
  %v599 = vpop.f32.mrb[0].mxu0
  %v600 = vpop.f32.mrb[0].mxu0
  %v601 = vadd.f32 0.0, %v600
  %v602 = vpop.f32.mrb[0].mxu0
  %603 = vmatprep.mubr.bf16.mxu0 0
  %604 = vmatmul.mubr.bf16.gmra.mrb[0].mxu0 %v352
  %v605 = vpop.f32.mrb[0].mxu0
  %v606 = vadd.f32 0.0, %v605
  %v607 = vpop.f32.mrb[0].mxu0
  %v608 = vpop.f32.mrb[0].mxu0
  %v609 = vadd.f32 0.0, %v608
  %v610 = vpop.f32.mrb[0].mxu0
  %611 = vmatprep.mubr.bf16.mxu0 0
  %612 = vmatmul.mubr.bf16.gmra.mrb[0].mxu0 %v355
  %v613 = vpop.f32.mrb[0].mxu0
  %v614 = vadd.f32 0.0, %v613
  %v615 = vpop.f32.mrb[0].mxu0
  %v616 = vpop.f32.mrb[0].mxu0
  %v617 = vadd.f32 0.0, %v616
  %v618 = vpop.f32.mrb[0].mxu0
  %619 = vmatprep.mubr.bf16.mxu0 0
  %620 = vmatmul.mubr.bf16.gmra.mrb[0].mxu0 %v358
  %v621 = vpop.f32.mrb[0].mxu0
  %v622 = vadd.f32 0.0, %v621
  %v623 = vpop.f32.mrb[0].mxu0
  %v624 = vpop.f32.mrb[0].mxu0
  %v625 = vadd.f32 0.0, %v624
  %v626 = vpop.f32.mrb[0].mxu0
  %627 = vmatprep.mubr.bf16.mxu0 0
  %628 = vmatmul.mubr.bf16.gmra.mrb[0].mxu0 %v361
  %v629 = vpop.f32.mrb[0].mxu0
  %v630 = vadd.f32 0.0, %v629
  %v631 = vpop.f32.mrb[0].mxu0
  %v632 = vpop.f32.mrb[0].mxu0
  %v633 = vadd.f32 0.0, %v632
  %v634 = vpop.f32.mrb[0].mxu0
  %635 = vmatprep.mubr.bf16.mxu0 0
  %636 = vmatmul.mubr.bf16.gmra.mrb[0].mxu0 %v364
  %v637 = vpop.f32.mrb[0].mxu0
  %v638 = vadd.f32 0.0, %v637
  %v639 = vpop.f32.mrb[0].mxu0
  %v640 = vpop.f32.mrb[0].mxu0
  %v641 = vadd.f32 0.0, %v640
  %v642 = vpop.f32.mrb[0].mxu0
  %643 = vmatprep.mubr.bf16.mxu0 0
  %644 = vmatmul.mubr.bf16.gmra.mrb[0].mxu0 %v367
  %v645 = vpop.f32.mrb[0].mxu0
  %v646 = vadd.f32 0.0, %v645
  %v647 = vpop.f32.mrb[0].mxu0
  %v648 = vpop.f32.mrb[0].mxu0
  %v649 = vadd.f32 0.0, %v648
  %v650 = vpop.f32.mrb[0].mxu0
  %651 = vmatprep.mubr.bf16.mxu0 0
  %652 = vmatmul.mubr.bf16.gmra.mrb[0].mxu0 %v370
  %v653 = vpop.f32.mrb[0].mxu0
  %v654 = vadd.f32 0.0, %v653
  %v655 = vpop.f32.mrb[0].mxu0
  %v656 = vpop.f32.mrb[0].mxu0
  %v657 = vadd.f32 0.0, %v656
  %v658 = vpop.f32.mrb[0].mxu0
  %659 = vmatprep.mubr.bf16.mxu0 0
  %660 = vmatmul.mubr.bf16.gmra.mrb[0].mxu0 %v373
  %v661 = vpop.f32.mrb[0].mxu0
  %v662 = vadd.f32 0.0, %v661
  %v663 = vpop.f32.mrb[0].mxu0
  %v664 = vpop.f32.mrb[0].mxu0
  %v665 = vadd.f32 0.0, %v664
  %v666 = vpop.f32.mrb[0].mxu0
  %667 = vdwg.mxu0
  %v668 = vadd.f32 %v414, %v417
  %v669 = vadd.f32 %v668, %v422
  %v670 = vadd.f32 %v669, %v425
  %v671 = vadd.f32 %v670, %v430
  %v672 = vadd.f32 %v671, %v433
  %v673 = vadd.f32 %v672, %v438
  %v674 = vadd.f32 %v673, %v441
  %v675 = vadd.f32 %v674, %v446
  %v676 = vadd.f32 %v675, %v449
  %v677 = vadd.f32 %v676, %v454
  %v678 = vadd.f32 %v677, %v457
  %v679 = vadd.f32 %v678, %v462
  %v680 = vadd.f32 %v679, %v465
  %v681 = vadd.f32 %v680, %v470
  %v682 = vadd.f32 %v681, %v473
  %v683 = vadd.f32 %v682, %v478
  %v684 = vadd.f32 %v683, %v481
  %v685 = vadd.f32 %v684, %v486
  %v686 = vadd.f32 %v685, %v489
  %v687 = vadd.f32 %v686, %v494
  %v688 = vadd.f32 %v687, %v497
  %v689 = vadd.f32 %v688, %v502
  %v690 = vadd.f32 %v689, %v505
  %v691 = vadd.f32 %v690, %v510
  %v692 = vadd.f32 %v691, %v513
  %v693 = vadd.f32 %v692, %v518
  %v694 = vadd.f32 %v693, %v521
  %v695 = vadd.f32 %v694, %v526
  %v696 = vadd.f32 %v695, %v529
  %v697 = vadd.f32 %v696, %v534
  %v698 = vadd.f32 %v697, %v537
  %v699 = vadd.f32 %v698, %v542
  %v700 = vadd.f32 %v699, %v545
  %v701 = vadd.f32 %v700, %v550
  %v702 = vadd.f32 %v701, %v553
  %v703 = vadd.f32 %v702, %v558
  %v704 = vadd.f32 %v703, %v561
  %v705 = vadd.f32 %v704, %v566
  %v706 = vadd.f32 %v705, %v569
  %v707 = vadd.f32 %v706, %v574
  %v708 = vadd.f32 %v707, %v577
  %v709 = vadd.f32 %v708, %v582
  %v710 = vadd.f32 %v709, %v585
  %v711 = vadd.f32 %v710, %v590
  %v712 = vadd.f32 %v711, %v593
  %v713 = vadd.f32 %v712, %v598
  %v714 = vadd.f32 %v713, %v601
  %v715 = vadd.f32 %v714, %v606
  %v716 = vadd.f32 %v715, %v609
  %v717 = vadd.f32 %v716, %v614
  %v718 = vadd.f32 %v717, %v617
  %v719 = vadd.f32 %v718, %v622
  %v720 = vadd.f32 %v719, %v625
  %v721 = vadd.f32 %v720, %v630
  %v722 = vadd.f32 %v721, %v633
  %v723 = vadd.f32 %v722, %v638
  %v724 = vadd.f32 %v723, %v641
  %v725 = vadd.f32 %v724, %v646
  %v726 = vadd.f32 %v725, %v649
  %v727 = vadd.f32 %v726, %v654
  %v728 = vadd.f32 %v727, %v657
  %v729 = vadd.f32 %v728, %v662
  %v730 = vadd.f32 %v729, %v665
  %v731 = vrot.slane %v730, 4
  %v732 = vadd.f32 %v730, %v731
  %v733 = vrot.slane %v732, 2
  %v734 = vadd.f32 %v732, %v733
  %v735 = vrot.slane %v734, 1
  %v736 = vadd.f32 %v734, %v735
  %v737 = vmul.f32 %v736, 0.001953125
  %v738 = vmul.f32 %v414, %v414
  %v739 = vmul.f32 %v417, %v417
  %v740 = vmul.f32 %v422, %v422
  %v741 = vmul.f32 %v425, %v425
  %v742 = vmul.f32 %v430, %v430
  %v743 = vmul.f32 %v433, %v433
  %v744 = vmul.f32 %v438, %v438
  %v745 = vmul.f32 %v441, %v441
  %v746 = vmul.f32 %v446, %v446
  %v747 = vmul.f32 %v449, %v449
  %v748 = vmul.f32 %v454, %v454
  %v749 = vmul.f32 %v457, %v457
  %v750 = vmul.f32 %v462, %v462
  %v751 = vmul.f32 %v465, %v465
  %v752 = vmul.f32 %v470, %v470
  %v753 = vmul.f32 %v473, %v473
  %v754 = vmul.f32 %v478, %v478
  %v755 = vmul.f32 %v481, %v481
  %v756 = vmul.f32 %v486, %v486
  %v757 = vmul.f32 %v489, %v489
  %v758 = vmul.f32 %v494, %v494
  %v759 = vmul.f32 %v497, %v497
  %v760 = vmul.f32 %v502, %v502
  %v761 = vmul.f32 %v505, %v505
  %v762 = vmul.f32 %v510, %v510
  %v763 = vmul.f32 %v513, %v513
  %v764 = vmul.f32 %v518, %v518
  %v765 = vmul.f32 %v521, %v521
  %v766 = vmul.f32 %v526, %v526
  %v767 = vmul.f32 %v529, %v529
  %v768 = vmul.f32 %v534, %v534
  %v769 = vmul.f32 %v537, %v537
  %v770 = vmul.f32 %v542, %v542
  %v771 = vmul.f32 %v545, %v545
  %v772 = vmul.f32 %v550, %v550
  %v773 = vmul.f32 %v553, %v553
  %v774 = vmul.f32 %v558, %v558
  %v775 = vmul.f32 %v561, %v561
  %v776 = vmul.f32 %v566, %v566
  %v777 = vmul.f32 %v569, %v569
  %v778 = vmul.f32 %v574, %v574
  %v779 = vmul.f32 %v577, %v577
  %v780 = vmul.f32 %v582, %v582
  %v781 = vmul.f32 %v585, %v585
  %v782 = vmul.f32 %v590, %v590
  %v783 = vmul.f32 %v593, %v593
  %v784 = vmul.f32 %v598, %v598
  %v785 = vmul.f32 %v601, %v601
  %v786 = vmul.f32 %v606, %v606
  %v787 = vmul.f32 %v609, %v609
  %v788 = vmul.f32 %v614, %v614
  %v789 = vmul.f32 %v617, %v617
  %v790 = vmul.f32 %v622, %v622
  %v791 = vmul.f32 %v625, %v625
  %v792 = vmul.f32 %v630, %v630
  %v793 = vmul.f32 %v633, %v633
  %v794 = vmul.f32 %v638, %v638
  %v795 = vmul.f32 %v641, %v641
  %v796 = vmul.f32 %v646, %v646
  %v797 = vmul.f32 %v649, %v649
  %v798 = vmul.f32 %v654, %v654
  %v799 = vmul.f32 %v657, %v657
  %v800 = vmul.f32 %v662, %v662
  %v801 = vmul.f32 %v665, %v665
  %v802 = vadd.f32 %v738, %v739
  %v803 = vadd.f32 %v802, %v740
  %v804 = vadd.f32 %v803, %v741
  %v805 = vadd.f32 %v804, %v742
  %v806 = vadd.f32 %v805, %v743
  %v807 = vadd.f32 %v806, %v744
  %v808 = vadd.f32 %v807, %v745
  %v809 = vadd.f32 %v808, %v746
  %v810 = vadd.f32 %v809, %v747
  %v811 = vadd.f32 %v810, %v748
  %v812 = vadd.f32 %v811, %v749
  %v813 = vadd.f32 %v812, %v750
  %v814 = vadd.f32 %v813, %v751
  %v815 = vadd.f32 %v814, %v752
  %v816 = vadd.f32 %v815, %v753
  %v817 = vadd.f32 %v816, %v754
  %v818 = vadd.f32 %v817, %v755
  %v819 = vadd.f32 %v818, %v756
  %v820 = vadd.f32 %v819, %v757
  %v821 = vadd.f32 %v820, %v758
  %v822 = vadd.f32 %v821, %v759
  %v823 = vadd.f32 %v822, %v760
  %v824 = vadd.f32 %v823, %v761
  %v825 = vadd.f32 %v824, %v762
  %v826 = vadd.f32 %v825, %v763
  %v827 = vadd.f32 %v826, %v764
  %v828 = vadd.f32 %v827, %v765
  %v829 = vadd.f32 %v828, %v766
  %v830 = vadd.f32 %v829, %v767
  %v831 = vadd.f32 %v830, %v768
  %v832 = vadd.f32 %v831, %v769
  %v833 = vadd.f32 %v832, %v770
  %v834 = vadd.f32 %v833, %v771
  %v835 = vadd.f32 %v834, %v772
  %v836 = vadd.f32 %v835, %v773
  %v837 = vadd.f32 %v836, %v774
  %v838 = vadd.f32 %v837, %v775
  %v839 = vadd.f32 %v838, %v776
  %v840 = vadd.f32 %v839, %v777
  %v841 = vadd.f32 %v840, %v778
  %v842 = vadd.f32 %v841, %v779
  %v843 = vadd.f32 %v842, %v780
  %v844 = vadd.f32 %v843, %v781
  %v845 = vadd.f32 %v844, %v782
  %v846 = vadd.f32 %v845, %v783
  %v847 = vadd.f32 %v846, %v784
  %v848 = vadd.f32 %v847, %v785
  %v849 = vadd.f32 %v848, %v786
  %v850 = vadd.f32 %v849, %v787
  %v851 = vadd.f32 %v850, %v788
  %v852 = vadd.f32 %v851, %v789
  %v853 = vadd.f32 %v852, %v790
  %v854 = vadd.f32 %v853, %v791
  %v855 = vadd.f32 %v854, %v792
  %v856 = vadd.f32 %v855, %v793
  %v857 = vadd.f32 %v856, %v794
  %v858 = vadd.f32 %v857, %v795
  %v859 = vadd.f32 %v858, %v796
  %v860 = vadd.f32 %v859, %v797
  %v861 = vadd.f32 %v860, %v798
  %v862 = vadd.f32 %v861, %v799
  %v863 = vadd.f32 %v862, %v800
  %v864 = vadd.f32 %v863, %v801
  %v865 = vrot.slane %v864, 4
  %v866 = vadd.f32 %v864, %v865
  %v867 = vrot.slane %v866, 2
  %v868 = vadd.f32 %v866, %v867
  %v869 = vrot.slane %v868, 1
  %v870 = vadd.f32 %v868, %v869
  %v871 = vmul.f32 %v870, 0.001953125
  %v872 = vmul.f32 %v737, %v737
  %v873 = vsub.f32 %v871, %v872
  %v874 = vmax.f32 %v873, 0.0
  %v875 = vsub.f32 %v414, %v737
  %v876 = vsub.f32 %v417, %v737
  %v877 = vsub.f32 %v422, %v737
  %v878 = vsub.f32 %v425, %v737
  %v879 = vsub.f32 %v430, %v737
  %v880 = vsub.f32 %v433, %v737
  %v881 = vsub.f32 %v438, %v737
  %v882 = vsub.f32 %v441, %v737
  %v883 = vsub.f32 %v446, %v737
  %v884 = vsub.f32 %v449, %v737
  %v885 = vsub.f32 %v454, %v737
  %v886 = vsub.f32 %v457, %v737
  %v887 = vsub.f32 %v462, %v737
  %v888 = vsub.f32 %v465, %v737
  %v889 = vsub.f32 %v470, %v737
  %v890 = vsub.f32 %v473, %v737
  %v891 = vsub.f32 %v478, %v737
  %v892 = vsub.f32 %v481, %v737
  %v893 = vsub.f32 %v486, %v737
  %v894 = vsub.f32 %v489, %v737
  %v895 = vsub.f32 %v494, %v737
  %v896 = vsub.f32 %v497, %v737
  %v897 = vsub.f32 %v502, %v737
  %v898 = vsub.f32 %v505, %v737
  %v899 = vsub.f32 %v510, %v737
  %v900 = vsub.f32 %v513, %v737
  %v901 = vsub.f32 %v518, %v737
  %v902 = vsub.f32 %v521, %v737
  %v903 = vsub.f32 %v526, %v737
  %v904 = vsub.f32 %v529, %v737
  %v905 = vsub.f32 %v534, %v737
  %v906 = vsub.f32 %v537, %v737
  %v907 = vsub.f32 %v542, %v737
  %v908 = vsub.f32 %v545, %v737
  %v909 = vsub.f32 %v550, %v737
  %v910 = vsub.f32 %v553, %v737
  %v911 = vsub.f32 %v558, %v737
  %v912 = vsub.f32 %v561, %v737
  %v913 = vsub.f32 %v566, %v737
  %v914 = vsub.f32 %v569, %v737
  %v915 = vsub.f32 %v574, %v737
  %v916 = vsub.f32 %v577, %v737
  %v917 = vsub.f32 %v582, %v737
  %v918 = vsub.f32 %v585, %v737
  %v919 = vsub.f32 %v590, %v737
  %v920 = vsub.f32 %v593, %v737
  %v921 = vsub.f32 %v598, %v737
  %v922 = vsub.f32 %v601, %v737
  %v923 = vsub.f32 %v606, %v737
  %v924 = vsub.f32 %v609, %v737
  %v925 = vsub.f32 %v614, %v737
  %v926 = vsub.f32 %v617, %v737
  %v927 = vsub.f32 %v622, %v737
  %v928 = vsub.f32 %v625, %v737
  %v929 = vsub.f32 %v630, %v737
  %v930 = vsub.f32 %v633, %v737
  %v931 = vsub.f32 %v638, %v737
  %v932 = vsub.f32 %v641, %v737
  %v933 = vsub.f32 %v646, %v737
  %v934 = vsub.f32 %v649, %v737
  %v935 = vsub.f32 %v654, %v737
  %v936 = vsub.f32 %v657, %v737
  %v937 = vsub.f32 %v662, %v737
  %v938 = vsub.f32 %v665, %v737
  %v939 = vadd.f32 %v874, 1e-05
  %v940 = vrsqrt.pop %v939
  %v941 = vmul.f32 %v875, %v940
  %v942 = vmul.f32 %v876, %v940
  %v943 = vmul.f32 %v877, %v940
  %v944 = vmul.f32 %v878, %v940
  %v945 = vmul.f32 %v879, %v940
  %v946 = vmul.f32 %v880, %v940
  %v947 = vmul.f32 %v881, %v940
  %v948 = vmul.f32 %v882, %v940
  %v949 = vmul.f32 %v883, %v940
  %v950 = vmul.f32 %v884, %v940
  %v951 = vmul.f32 %v885, %v940
  %v952 = vmul.f32 %v886, %v940
  %v953 = vmul.f32 %v887, %v940
  %v954 = vmul.f32 %v888, %v940
  %v955 = vmul.f32 %v889, %v940
  %v956 = vmul.f32 %v890, %v940
  %v957 = vmul.f32 %v891, %v940
  %v958 = vmul.f32 %v892, %v940
  %v959 = vmul.f32 %v893, %v940
  %v960 = vmul.f32 %v894, %v940
  %v961 = vmul.f32 %v895, %v940
  %v962 = vmul.f32 %v896, %v940
  %v963 = vmul.f32 %v897, %v940
  %v964 = vmul.f32 %v898, %v940
  %v965 = vmul.f32 %v899, %v940
  %v966 = vmul.f32 %v900, %v940
  %v967 = vmul.f32 %v901, %v940
  %v968 = vmul.f32 %v902, %v940
  %v969 = vmul.f32 %v903, %v940
  %v970 = vmul.f32 %v904, %v940
  %v971 = vmul.f32 %v905, %v940
  %v972 = vmul.f32 %v906, %v940
  %v973 = vmul.f32 %v907, %v940
  %v974 = vmul.f32 %v908, %v940
  %v975 = vmul.f32 %v909, %v940
  %v976 = vmul.f32 %v910, %v940
  %v977 = vmul.f32 %v911, %v940
  %v978 = vmul.f32 %v912, %v940
  %v979 = vmul.f32 %v913, %v940
  %v980 = vmul.f32 %v914, %v940
  %v981 = vmul.f32 %v915, %v940
  %v982 = vmul.f32 %v916, %v940
  %v983 = vmul.f32 %v917, %v940
  %v984 = vmul.f32 %v918, %v940
  %v985 = vmul.f32 %v919, %v940
  %v986 = vmul.f32 %v920, %v940
  %v987 = vmul.f32 %v921, %v940
  %v988 = vmul.f32 %v922, %v940
  %v989 = vmul.f32 %v923, %v940
  %v990 = vmul.f32 %v924, %v940
  %v991 = vmul.f32 %v925, %v940
  %v992 = vmul.f32 %v926, %v940
  %v993 = vmul.f32 %v927, %v940
  %v994 = vmul.f32 %v928, %v940
  %v995 = vmul.f32 %v929, %v940
  %v996 = vmul.f32 %v930, %v940
  %v997 = vmul.f32 %v931, %v940
  %v998 = vmul.f32 %v932, %v940
  %v999 = vmul.f32 %v933, %v940
  %v1000 = vmul.f32 %v934, %v940
  %v1001 = vmul.f32 %v935, %v940
  %v1002 = vmul.f32 %v936, %v940
  %v1003 = vmul.f32 %v937, %v940
  %v1004 = vmul.f32 %v938, %v940
  %v1005 = vld [vmem:[%s2] sm:$0x1]
  %v1007 = vlaneseq
  %v1008 = vshrl.u32 %v1007, 7
  %v1009 = vsub.s32 0, %v1008
  %v1010 = vrot.slane %v1005, %v1009
  %v1012 = vmul.f32 %v941, %v1010
  %v1013 = vmul.f32 %v942, %v1010
  %v1014 = vmul.f32 %v943, %v1010
  %v1015 = vmul.f32 %v944, %v1010
  %v1016 = vmul.f32 %v945, %v1010
  %v1017 = vmul.f32 %v946, %v1010
  %v1018 = vmul.f32 %v947, %v1010
  %v1019 = vmul.f32 %v948, %v1010
  %v1020 = vmul.f32 %v949, %v1010
  %v1021 = vmul.f32 %v950, %v1010
  %v1022 = vmul.f32 %v951, %v1010
  %v1023 = vmul.f32 %v952, %v1010
  %v1024 = vmul.f32 %v953, %v1010
  %v1025 = vmul.f32 %v954, %v1010
  %v1026 = vmul.f32 %v955, %v1010
  %v1027 = vmul.f32 %v956, %v1010
  %v1028 = vmul.f32 %v957, %v1010
  %v1029 = vmul.f32 %v958, %v1010
  %v1030 = vmul.f32 %v959, %v1010
  %v1031 = vmul.f32 %v960, %v1010
  %v1032 = vmul.f32 %v961, %v1010
  %v1033 = vmul.f32 %v962, %v1010
  %v1034 = vmul.f32 %v963, %v1010
  %v1035 = vmul.f32 %v964, %v1010
  %v1036 = vmul.f32 %v965, %v1010
  %v1037 = vmul.f32 %v966, %v1010
  %v1038 = vmul.f32 %v967, %v1010
  %v1039 = vmul.f32 %v968, %v1010
  %v1040 = vmul.f32 %v969, %v1010
  %v1041 = vmul.f32 %v970, %v1010
  %v1042 = vmul.f32 %v971, %v1010
  %v1043 = vmul.f32 %v972, %v1010
  %v1044 = vmul.f32 %v973, %v1010
  %v1045 = vmul.f32 %v974, %v1010
  %v1046 = vmul.f32 %v975, %v1010
  %v1047 = vmul.f32 %v976, %v1010
  %v1048 = vmul.f32 %v977, %v1010
  %v1049 = vmul.f32 %v978, %v1010
  %v1050 = vmul.f32 %v979, %v1010
  %v1051 = vmul.f32 %v980, %v1010
  %v1052 = vmul.f32 %v981, %v1010
  %v1053 = vmul.f32 %v982, %v1010
  %v1054 = vmul.f32 %v983, %v1010
  %v1055 = vmul.f32 %v984, %v1010
  %v1056 = vmul.f32 %v985, %v1010
  %v1057 = vmul.f32 %v986, %v1010
  %v1058 = vmul.f32 %v987, %v1010
  %v1059 = vmul.f32 %v988, %v1010
  %v1060 = vmul.f32 %v989, %v1010
  %v1061 = vmul.f32 %v990, %v1010
  %v1062 = vmul.f32 %v991, %v1010
  %v1063 = vmul.f32 %v992, %v1010
  %v1064 = vmul.f32 %v993, %v1010
  %v1065 = vmul.f32 %v994, %v1010
  %v1066 = vmul.f32 %v995, %v1010
  %v1067 = vmul.f32 %v996, %v1010
  %v1068 = vmul.f32 %v997, %v1010
  %v1069 = vmul.f32 %v998, %v1010
  %v1070 = vmul.f32 %v999, %v1010
  %v1071 = vmul.f32 %v1000, %v1010
  %v1072 = vmul.f32 %v1001, %v1010
  %v1073 = vmul.f32 %v1002, %v1010
  %v1074 = vmul.f32 %v1003, %v1010
  %v1075 = vmul.f32 %v1004, %v1010
  %v1076 = vld [vmem:[%s3] sm:$0x1]
  %v1078 = vlaneseq
  %v1079 = vshrl.u32 %v1078, 7
  %v1080 = vsub.s32 0, %v1079
  %v1081 = vrot.slane %v1076, %v1080
  %v1083 = vadd.f32 %v1012, %v1081
  %v1084 = vadd.f32 %v1013, %v1081
  %v1085 = vadd.f32 %v1014, %v1081
  %v1086 = vadd.f32 %v1015, %v1081
  %v1087 = vadd.f32 %v1016, %v1081
  %v1088 = vadd.f32 %v1017, %v1081
  %v1089 = vadd.f32 %v1018, %v1081
  %v1090 = vadd.f32 %v1019, %v1081
  %v1091 = vadd.f32 %v1020, %v1081
  %v1092 = vadd.f32 %v1021, %v1081
  %v1093 = vadd.f32 %v1022, %v1081
  %v1094 = vadd.f32 %v1023, %v1081
  %v1095 = vadd.f32 %v1024, %v1081
  %v1096 = vadd.f32 %v1025, %v1081
  %v1097 = vadd.f32 %v1026, %v1081
  %v1098 = vadd.f32 %v1027, %v1081
  %v1099 = vadd.f32 %v1028, %v1081
  %v1100 = vadd.f32 %v1029, %v1081
  %v1101 = vadd.f32 %v1030, %v1081
  %v1102 = vadd.f32 %v1031, %v1081
  %v1103 = vadd.f32 %v1032, %v1081
  %v1104 = vadd.f32 %v1033, %v1081
  %v1105 = vadd.f32 %v1034, %v1081
  %v1106 = vadd.f32 %v1035, %v1081
  %v1107 = vadd.f32 %v1036, %v1081
  %v1108 = vadd.f32 %v1037, %v1081
  %v1109 = vadd.f32 %v1038, %v1081
  %v1110 = vadd.f32 %v1039, %v1081
  %v1111 = vadd.f32 %v1040, %v1081
  %v1112 = vadd.f32 %v1041, %v1081
  %v1113 = vadd.f32 %v1042, %v1081
  %v1114 = vadd.f32 %v1043, %v1081
  %v1115 = vadd.f32 %v1044, %v1081
  %v1116 = vadd.f32 %v1045, %v1081
  %v1117 = vadd.f32 %v1046, %v1081
  %v1118 = vadd.f32 %v1047, %v1081
  %v1119 = vadd.f32 %v1048, %v1081
  %v1120 = vadd.f32 %v1049, %v1081
  %v1121 = vadd.f32 %v1050, %v1081
  %v1122 = vadd.f32 %v1051, %v1081
  %v1123 = vadd.f32 %v1052, %v1081
  %v1124 = vadd.f32 %v1053, %v1081
  %v1125 = vadd.f32 %v1054, %v1081
  %v1126 = vadd.f32 %v1055, %v1081
  %v1127 = vadd.f32 %v1056, %v1081
  %v1128 = vadd.f32 %v1057, %v1081
  %v1129 = vadd.f32 %v1058, %v1081
  %v1130 = vadd.f32 %v1059, %v1081
  %v1131 = vadd.f32 %v1060, %v1081
  %v1132 = vadd.f32 %v1061, %v1081
  %v1133 = vadd.f32 %v1062, %v1081
  %v1134 = vadd.f32 %v1063, %v1081
  %v1135 = vadd.f32 %v1064, %v1081
  %v1136 = vadd.f32 %v1065, %v1081
  %v1137 = vadd.f32 %v1066, %v1081
  %v1138 = vadd.f32 %v1067, %v1081
  %v1139 = vadd.f32 %v1068, %v1081
  %v1140 = vadd.f32 %v1069, %v1081
  %v1141 = vadd.f32 %v1070, %v1081
  %v1142 = vadd.f32 %v1071, %v1081
  %v1143 = vadd.f32 %v1072, %v1081
  %v1144 = vadd.f32 %v1073, %v1081
  %v1145 = vadd.f32 %v1074, %v1081
  %v1146 = vadd.f32 %v1075, %v1081
  %vm1147 = vcmp.gt.f32.partialorder %v1083, 0.0
  %vm1148 = vcmp.gt.f32.partialorder %v1084, 0.0
  %vm1149 = vcmp.gt.f32.partialorder %v1085, 0.0
  %vm1150 = vcmp.gt.f32.partialorder %v1086, 0.0
  %vm1151 = vcmp.gt.f32.partialorder %v1087, 0.0
  %vm1152 = vcmp.gt.f32.partialorder %v1088, 0.0
  %vm1153 = vcmp.gt.f32.partialorder %v1089, 0.0
  %vm1154 = vcmp.gt.f32.partialorder %v1090, 0.0
  %vm1155 = vcmp.gt.f32.partialorder %v1091, 0.0
  %vm1156 = vcmp.gt.f32.partialorder %v1092, 0.0
  %vm1157 = vcmp.gt.f32.partialorder %v1093, 0.0
  %vm1158 = vcmp.gt.f32.partialorder %v1094, 0.0
  %vm1159 = vcmp.gt.f32.partialorder %v1095, 0.0
  %vm1160 = vcmp.gt.f32.partialorder %v1096, 0.0
  %vm1161 = vcmp.gt.f32.partialorder %v1097, 0.0
  %vm1162 = vcmp.gt.f32.partialorder %v1098, 0.0
  %vm1163 = vcmp.gt.f32.partialorder %v1099, 0.0
  %vm1164 = vcmp.gt.f32.partialorder %v1100, 0.0
  %vm1165 = vcmp.gt.f32.partialorder %v1101, 0.0
  %vm1166 = vcmp.gt.f32.partialorder %v1102, 0.0
  %vm1167 = vcmp.gt.f32.partialorder %v1103, 0.0
  %vm1168 = vcmp.gt.f32.partialorder %v1104, 0.0
  %vm1169 = vcmp.gt.f32.partialorder %v1105, 0.0
  %vm1170 = vcmp.gt.f32.partialorder %v1106, 0.0
  %vm1171 = vcmp.gt.f32.partialorder %v1107, 0.0
  %vm1172 = vcmp.gt.f32.partialorder %v1108, 0.0
  %vm1173 = vcmp.gt.f32.partialorder %v1109, 0.0
  %vm1174 = vcmp.gt.f32.partialorder %v1110, 0.0
  %vm1175 = vcmp.gt.f32.partialorder %v1111, 0.0
  %vm1176 = vcmp.gt.f32.partialorder %v1112, 0.0
  %vm1177 = vcmp.gt.f32.partialorder %v1113, 0.0
  %vm1178 = vcmp.gt.f32.partialorder %v1114, 0.0
  %vm1179 = vcmp.gt.f32.partialorder %v1115, 0.0
  %vm1180 = vcmp.gt.f32.partialorder %v1116, 0.0
  %vm1181 = vcmp.gt.f32.partialorder %v1117, 0.0
  %vm1182 = vcmp.gt.f32.partialorder %v1118, 0.0
  %vm1183 = vcmp.gt.f32.partialorder %v1119, 0.0
  %vm1184 = vcmp.gt.f32.partialorder %v1120, 0.0
  %vm1185 = vcmp.gt.f32.partialorder %v1121, 0.0
  %vm1186 = vcmp.gt.f32.partialorder %v1122, 0.0
  %vm1187 = vcmp.gt.f32.partialorder %v1123, 0.0
  %vm1188 = vcmp.gt.f32.partialorder %v1124, 0.0
  %vm1189 = vcmp.gt.f32.partialorder %v1125, 0.0
  %vm1190 = vcmp.gt.f32.partialorder %v1126, 0.0
  %vm1191 = vcmp.gt.f32.partialorder %v1127, 0.0
  %vm1192 = vcmp.gt.f32.partialorder %v1128, 0.0
  %vm1193 = vcmp.gt.f32.partialorder %v1129, 0.0
  %vm1194 = vcmp.gt.f32.partialorder %v1130, 0.0
  %vm1195 = vcmp.gt.f32.partialorder %v1131, 0.0
  %vm1196 = vcmp.gt.f32.partialorder %v1132, 0.0
  %vm1197 = vcmp.gt.f32.partialorder %v1133, 0.0
  %vm1198 = vcmp.gt.f32.partialorder %v1134, 0.0
  %vm1199 = vcmp.gt.f32.partialorder %v1135, 0.0
  %vm1200 = vcmp.gt.f32.partialorder %v1136, 0.0
  %vm1201 = vcmp.gt.f32.partialorder %v1137, 0.0
  %vm1202 = vcmp.gt.f32.partialorder %v1138, 0.0
  %vm1203 = vcmp.gt.f32.partialorder %v1139, 0.0
  %vm1204 = vcmp.gt.f32.partialorder %v1140, 0.0
  %vm1205 = vcmp.gt.f32.partialorder %v1141, 0.0
  %vm1206 = vcmp.gt.f32.partialorder %v1142, 0.0
  %vm1207 = vcmp.gt.f32.partialorder %v1143, 0.0
  %vm1208 = vcmp.gt.f32.partialorder %v1144, 0.0
  %vm1209 = vcmp.gt.f32.partialorder %v1145, 0.0
  %vm1210 = vcmp.gt.f32.partialorder %v1146, 0.0
  %v1211 = vmul.f32 %v1083, 0.1
  %v1212 = vmul.f32 %v1084, 0.1
  %v1213 = vmul.f32 %v1085, 0.1
  %v1214 = vmul.f32 %v1086, 0.1
  %v1215 = vmul.f32 %v1087, 0.1
  %v1216 = vmul.f32 %v1088, 0.1
  %v1217 = vmul.f32 %v1089, 0.1
  %v1218 = vmul.f32 %v1090, 0.1
  %v1219 = vmul.f32 %v1091, 0.1
  %v1220 = vmul.f32 %v1092, 0.1
  %v1221 = vmul.f32 %v1093, 0.1
  %v1222 = vmul.f32 %v1094, 0.1
  %v1223 = vmul.f32 %v1095, 0.1
  %v1224 = vmul.f32 %v1096, 0.1
  %v1225 = vmul.f32 %v1097, 0.1
  %v1226 = vmul.f32 %v1098, 0.1
  %v1227 = vmul.f32 %v1099, 0.1
  %v1228 = vmul.f32 %v1100, 0.1
  %v1229 = vmul.f32 %v1101, 0.1
  %v1230 = vmul.f32 %v1102, 0.1
  %v1231 = vmul.f32 %v1103, 0.1
  %v1232 = vmul.f32 %v1104, 0.1
  %v1233 = vmul.f32 %v1105, 0.1
  %v1234 = vmul.f32 %v1106, 0.1
  %v1235 = vmul.f32 %v1107, 0.1
  %v1236 = vmul.f32 %v1108, 0.1
  %v1237 = vmul.f32 %v1109, 0.1
  %v1238 = vmul.f32 %v1110, 0.1
  %v1239 = vmul.f32 %v1111, 0.1
  %v1240 = vmul.f32 %v1112, 0.1
  %v1241 = vmul.f32 %v1113, 0.1
  %v1242 = vmul.f32 %v1114, 0.1
  %v1243 = vmul.f32 %v1115, 0.1
  %v1244 = vmul.f32 %v1116, 0.1
  %v1245 = vmul.f32 %v1117, 0.1
  %v1246 = vmul.f32 %v1118, 0.1
  %v1247 = vmul.f32 %v1119, 0.1
  %v1248 = vmul.f32 %v1120, 0.1
  %v1249 = vmul.f32 %v1121, 0.1
  %v1250 = vmul.f32 %v1122, 0.1
  %v1251 = vmul.f32 %v1123, 0.1
  %v1252 = vmul.f32 %v1124, 0.1
  %v1253 = vmul.f32 %v1125, 0.1
  %v1254 = vmul.f32 %v1126, 0.1
  %v1255 = vmul.f32 %v1127, 0.1
  %v1256 = vmul.f32 %v1128, 0.1
  %v1257 = vmul.f32 %v1129, 0.1
  %v1258 = vmul.f32 %v1130, 0.1
  %v1259 = vmul.f32 %v1131, 0.1
  %v1260 = vmul.f32 %v1132, 0.1
  %v1261 = vmul.f32 %v1133, 0.1
  %v1262 = vmul.f32 %v1134, 0.1
  %v1263 = vmul.f32 %v1135, 0.1
  %v1264 = vmul.f32 %v1136, 0.1
  %v1265 = vmul.f32 %v1137, 0.1
  %v1266 = vmul.f32 %v1138, 0.1
  %v1267 = vmul.f32 %v1139, 0.1
  %v1268 = vmul.f32 %v1140, 0.1
  %v1269 = vmul.f32 %v1141, 0.1
  %v1270 = vmul.f32 %v1142, 0.1
  %v1271 = vmul.f32 %v1143, 0.1
  %v1272 = vmul.f32 %v1144, 0.1
  %v1273 = vmul.f32 %v1145, 0.1
  %v1274 = vmul.f32 %v1146, 0.1
  %v1275 = vsel %vm1147, %v1083, %v1211
  %v1276 = vsel %vm1148, %v1084, %v1212
  %v1277 = vsel %vm1149, %v1085, %v1213
  %v1278 = vsel %vm1150, %v1086, %v1214
  %v1279 = vsel %vm1151, %v1087, %v1215
  %v1280 = vsel %vm1152, %v1088, %v1216
  %v1281 = vsel %vm1153, %v1089, %v1217
  %v1282 = vsel %vm1154, %v1090, %v1218
  %v1283 = vsel %vm1155, %v1091, %v1219
  %v1284 = vsel %vm1156, %v1092, %v1220
  %v1285 = vsel %vm1157, %v1093, %v1221
  %v1286 = vsel %vm1158, %v1094, %v1222
  %v1287 = vsel %vm1159, %v1095, %v1223
  %v1288 = vsel %vm1160, %v1096, %v1224
  %v1289 = vsel %vm1161, %v1097, %v1225
  %v1290 = vsel %vm1162, %v1098, %v1226
  %v1291 = vsel %vm1163, %v1099, %v1227
  %v1292 = vsel %vm1164, %v1100, %v1228
  %v1293 = vsel %vm1165, %v1101, %v1229
  %v1294 = vsel %vm1166, %v1102, %v1230
  %v1295 = vsel %vm1167, %v1103, %v1231
  %v1296 = vsel %vm1168, %v1104, %v1232
  %v1297 = vsel %vm1169, %v1105, %v1233
  %v1298 = vsel %vm1170, %v1106, %v1234
  %v1299 = vsel %vm1171, %v1107, %v1235
  %v1300 = vsel %vm1172, %v1108, %v1236
  %v1301 = vsel %vm1173, %v1109, %v1237
  %v1302 = vsel %vm1174, %v1110, %v1238
  %v1303 = vsel %vm1175, %v1111, %v1239
  %v1304 = vsel %vm1176, %v1112, %v1240
  %v1305 = vsel %vm1177, %v1113, %v1241
  %v1306 = vsel %vm1178, %v1114, %v1242
  %v1307 = vsel %vm1179, %v1115, %v1243
  %v1308 = vsel %vm1180, %v1116, %v1244
  %v1309 = vsel %vm1181, %v1117, %v1245
  %v1310 = vsel %vm1182, %v1118, %v1246
  %v1311 = vsel %vm1183, %v1119, %v1247
  %v1312 = vsel %vm1184, %v1120, %v1248
  %v1313 = vsel %vm1185, %v1121, %v1249
  %v1314 = vsel %vm1186, %v1122, %v1250
  %v1315 = vsel %vm1187, %v1123, %v1251
  %v1316 = vsel %vm1188, %v1124, %v1252
  %v1317 = vsel %vm1189, %v1125, %v1253
  %v1318 = vsel %vm1190, %v1126, %v1254
  %v1319 = vsel %vm1191, %v1127, %v1255
  %v1320 = vsel %vm1192, %v1128, %v1256
  %v1321 = vsel %vm1193, %v1129, %v1257
  %v1322 = vsel %vm1194, %v1130, %v1258
  %v1323 = vsel %vm1195, %v1131, %v1259
  %v1324 = vsel %vm1196, %v1132, %v1260
  %v1325 = vsel %vm1197, %v1133, %v1261
  %v1326 = vsel %vm1198, %v1134, %v1262
  %v1327 = vsel %vm1199, %v1135, %v1263
  %v1328 = vsel %vm1200, %v1136, %v1264
  %v1329 = vsel %vm1201, %v1137, %v1265
  %v1330 = vsel %vm1202, %v1138, %v1266
  %v1331 = vsel %vm1203, %v1139, %v1267
  %v1332 = vsel %vm1204, %v1140, %v1268
  %v1333 = vsel %vm1205, %v1141, %v1269
  %v1334 = vsel %vm1206, %v1142, %v1270
  %v1335 = vsel %vm1207, %v1143, %v1271
  %v1336 = vsel %vm1208, %v1144, %v1272
  %v1337 = vsel %vm1209, %v1145, %v1273
  %v1338 = vsel %vm1210, %v1146, %v1274
  %1339 = vst [vmem:[%s4] sm:$0xff] %v1275
  %1340 = vst [vmem:[%s4 + $0x8] sm:$0xff] %v1276
  %1341 = vst [vmem:[%s4 + $0x10] sm:$0xff] %v1277
  %1342 = vst [vmem:[%s4 + $0x18] sm:$0xff] %v1278
  %1343 = vst [vmem:[%s4 + $0x20] sm:$0xff] %v1279
  %1344 = vst [vmem:[%s4 + $0x28] sm:$0xff] %v1280
  %1345 = vst [vmem:[%s4 + $0x30] sm:$0xff] %v1281
  %1346 = vst [vmem:[%s4 + $0x38] sm:$0xff] %v1282
  %1347 = vst [vmem:[%s4 + $0x40] sm:$0xff] %v1283
  %1348 = vst [vmem:[%s4 + $0x48] sm:$0xff] %v1284
  %1349 = vst [vmem:[%s4 + $0x50] sm:$0xff] %v1285
  %1350 = vst [vmem:[%s4 + $0x58] sm:$0xff] %v1286
  %1351 = vst [vmem:[%s4 + $0x60] sm:$0xff] %v1287
  %1352 = vst [vmem:[%s4 + $0x68] sm:$0xff] %v1288
  %1353 = vst [vmem:[%s4 + $0x70] sm:$0xff] %v1289
  %1354 = vst [vmem:[%s4 + $0x78] sm:$0xff] %v1290
  %1355 = vst [vmem:[%s4 + $0x80] sm:$0xff] %v1291
  %1356 = vst [vmem:[%s4 + $0x88] sm:$0xff] %v1292
  %1357 = vst [vmem:[%s4 + $0x90] sm:$0xff] %v1293
  %1358 = vst [vmem:[%s4 + $0x98] sm:$0xff] %v1294
  %1359 = vst [vmem:[%s4 + $0xa0] sm:$0xff] %v1295
  %1360 = vst [vmem:[%s4 + $0xa8] sm:$0xff] %v1296
  %1361 = vst [vmem:[%s4 + $0xb0] sm:$0xff] %v1297
  %1362 = vst [vmem:[%s4 + $0xb8] sm:$0xff] %v1298
  %1363 = vst [vmem:[%s4 + $0xc0] sm:$0xff] %v1299
  %1364 = vst [vmem:[%s4 + $0xc8] sm:$0xff] %v1300
  %1365 = vst [vmem:[%s4 + $0xd0] sm:$0xff] %v1301
  %1366 = vst [vmem:[%s4 + $0xd8] sm:$0xff] %v1302
  %1367 = vst [vmem:[%s4 + $0xe0] sm:$0xff] %v1303
  %1368 = vst [vmem:[%s4 + $0xe8] sm:$0xff] %v1304
  %1369 = vst [vmem:[%s4 + $0xf0] sm:$0xff] %v1305
  %1370 = vst [vmem:[%s4 + $0xf8] sm:$0xff] %v1306
  %1371 = vst [vmem:[%s4 + $0x100] sm:$0xff] %v1307
  %1372 = vst [vmem:[%s4 + $0x108] sm:$0xff] %v1308
  %1373 = vst [vmem:[%s4 + $0x110] sm:$0xff] %v1309
  %1374 = vst [vmem:[%s4 + $0x118] sm:$0xff] %v1310
  %1375 = vst [vmem:[%s4 + $0x120] sm:$0xff] %v1311
  %1376 = vst [vmem:[%s4 + $0x128] sm:$0xff] %v1312
  %1377 = vst [vmem:[%s4 + $0x130] sm:$0xff] %v1313
  %1378 = vst [vmem:[%s4 + $0x138] sm:$0xff] %v1314
  %1379 = vst [vmem:[%s4 + $0x140] sm:$0xff] %v1315
  %1380 = vst [vmem:[%s4 + $0x148] sm:$0xff] %v1316
  %1381 = vst [vmem:[%s4 + $0x150] sm:$0xff] %v1317
  %1382 = vst [vmem:[%s4 + $0x158] sm:$0xff] %v1318
  %1383 = vst [vmem:[%s4 + $0x160] sm:$0xff] %v1319
  %1384 = vst [vmem:[%s4 + $0x168] sm:$0xff] %v1320
  %1385 = vst [vmem:[%s4 + $0x170] sm:$0xff] %v1321
  %1386 = vst [vmem:[%s4 + $0x178] sm:$0xff] %v1322
  %1387 = vst [vmem:[%s4 + $0x180] sm:$0xff] %v1323
  %1388 = vst [vmem:[%s4 + $0x188] sm:$0xff] %v1324
  %1389 = vst [vmem:[%s4 + $0x190] sm:$0xff] %v1325
  %1390 = vst [vmem:[%s4 + $0x198] sm:$0xff] %v1326
  %1391 = vst [vmem:[%s4 + $0x1a0] sm:$0xff] %v1327
  %1392 = vst [vmem:[%s4 + $0x1a8] sm:$0xff] %v1328
  %1393 = vst [vmem:[%s4 + $0x1b0] sm:$0xff] %v1329
  %1394 = vst [vmem:[%s4 + $0x1b8] sm:$0xff] %v1330
  %1395 = vst [vmem:[%s4 + $0x1c0] sm:$0xff] %v1331
  %1396 = vst [vmem:[%s4 + $0x1c8] sm:$0xff] %v1332
  %1397 = vst [vmem:[%s4 + $0x1d0] sm:$0xff] %v1333
  %1398 = vst [vmem:[%s4 + $0x1d8] sm:$0xff] %v1334
  %1399 = vst [vmem:[%s4 + $0x1e0] sm:$0xff] %v1335
  %1400 = vst [vmem:[%s4 + $0x1e8] sm:$0xff] %v1336
  %1401 = vst [vmem:[%s4 + $0x1f0] sm:$0xff] %v1337
  %1402 = vst [vmem:[%s4 + $0x1f8] sm:$0xff] %v1338
  // Predicated region
  $region18: #{_lambda_.12} parent=0 // pred_check
    _
  $region19: #{_lambda_.12} parent=0 // pred_check_branch
    %1404 = sbr.rel (0) target = $region21
  $region20: #{_lambda_.12} parent=0 // pred_region
    _
  $region21: #{_lambda_.12} parent=0 // pred_fallthru
    _
  // Predicated region
  $region22: #{_lambda_.12} parent=0 // pred_check
    _
  $region23: #{_lambda_.12} parent=0 // pred_check_branch
    %1406 = sbr.rel (0) target = $region25
  $region24: #{_lambda_.12} parent=0 // pred_region
    _
  $region25: #{_lambda_.12} parent=0 // pred_fallthru
    _

// kernel: _lambda_.13
$region0: #{_lambda_.13}
  #allocation0 [shape = 'u32[]', space=smem, size = 0x4, offset = 0x4, fixed_abs, tag = 'smem constant byte address 0x4 - core index']
  #allocation1 [shape = 'u32[144,128]{1,0:T(1,128)}', space=vmem, size = 0x12000, scoped, tag = 'internal scratch']
  %s0 = inlined_call_operand.vmem [shape: bf16[512,144], index: 0, kind: input, shape index: {}]
  %s1 = inlined_call_operand.vmem [shape: bf16[144,128], index: 1, kind: input, shape index: {}]
  %s2 = inlined_call_operand.vmem [shape: f32[1,128], index: 2, kind: input, shape index: {}]
  %s3 = inlined_call_operand.vmem [shape: f32[1,128], index: 3, kind: input, shape index: {}]
  %s4 = inlined_call_operand.vmem [shape: f32[512,128], index: 4, kind: output, shape index: {}]
  %s5 = sld [smem:[#allocation0]]
  $region26: #{_lambda_.13} parent=0
    _
  %s7 = ssub.s32 1, %s5
  %s8 = scalar_select 0, %s7, %s5
  // Predicated region
  $region2: #{_lambda_.13} parent=0 // pred_check
    _
  $region3: #{_lambda_.13} parent=0 // pred_check_branch
    %10 = sbr.rel (0) target = $region5
  $region4: #{_lambda_.13} parent=0 // pred_region
    _
  $region5: #{_lambda_.13} parent=0 // pred_fallthru
    _
  // Predicated region
  $region6: #{_lambda_.13} parent=0 // pred_check
    _
  $region7: #{_lambda_.13} parent=0 // pred_check_branch
    %12 = sbr.rel (0) target = $region9
  $region8: #{_lambda_.13} parent=0 // pred_region
    _
  $region9: #{_lambda_.13} parent=0 // pred_fallthru
    _
  // Predicated region
  $region10: #{_lambda_.13} parent=0 // pred_check
    _
  $region11: #{_lambda_.13} parent=0 // pred_check_branch
    %14 = sbr.rel (0) target = $region13
  $region12: #{_lambda_.13} parent=0 // pred_region
    _
  $region13: #{_lambda_.13} parent=0 // pred_fallthru
    _
  // Predicated region
  $region14: #{_lambda_.13} parent=0 // pred_check
    _
  $region15: #{_lambda_.13} parent=0 // pred_check_branch
    %16 = sbr.rel (0) target = $region17
  $region16: #{_lambda_.13} parent=0 // pred_region
    _
  $region17: #{_lambda_.13} parent=0 // pred_fallthru
    _
  %v18 = vld [vmem:[%s0] sm:$0xff]
  %v19 = vld [vmem:[%s0 + $0x8] sm:$0xff]
  %v20 = vld [vmem:[%s0 + $0x10] sm:$0xff]
  %v21 = vld [vmem:[%s0 + $0x18] sm:$0xff]
  %v22 = vld [vmem:[%s0 + $0x20] sm:$0xff]
  %v23 = vld [vmem:[%s0 + $0x28] sm:$0xff]
  %v24 = vld [vmem:[%s0 + $0x30] sm:$0xff]
  %v25 = vld [vmem:[%s0 + $0x38] sm:$0xff]
  %v26 = vld [vmem:[%s0 + $0x40] sm:$0xff]
  %v27 = vld [vmem:[%s0 + $0x48] sm:$0xff]
  %v28 = vld [vmem:[%s0 + $0x50] sm:$0xff]
  %v29 = vld [vmem:[%s0 + $0x58] sm:$0xff]
  %v30 = vld [vmem:[%s0 + $0x60] sm:$0xff]
  %v31 = vld [vmem:[%s0 + $0x68] sm:$0xff]
  %v32 = vld [vmem:[%s0 + $0x70] sm:$0xff]
  %v33 = vld [vmem:[%s0 + $0x78] sm:$0xff]
  %v34 = vld [vmem:[%s0 + $0x80] sm:$0xff]
  %v35 = vld [vmem:[%s0 + $0x88] sm:$0xff]
  %v36 = vld [vmem:[%s0 + $0x90] sm:$0xff]
  %v37 = vld [vmem:[%s0 + $0x98] sm:$0xff]
  %v38 = vld [vmem:[%s0 + $0xa0] sm:$0xff]
  %v39 = vld [vmem:[%s0 + $0xa8] sm:$0xff]
  %v40 = vld [vmem:[%s0 + $0xb0] sm:$0xff]
  %v41 = vld [vmem:[%s0 + $0xb8] sm:$0xff]
  %v42 = vld [vmem:[%s0 + $0xc0] sm:$0xff]
  %v43 = vld [vmem:[%s0 + $0xc8] sm:$0xff]
  %v44 = vld [vmem:[%s0 + $0xd0] sm:$0xff]
  %v45 = vld [vmem:[%s0 + $0xd8] sm:$0xff]
  %v46 = vld [vmem:[%s0 + $0xe0] sm:$0xff]
  %v47 = vld [vmem:[%s0 + $0xe8] sm:$0xff]
  %v48 = vld [vmem:[%s0 + $0xf0] sm:$0xff]
  %v49 = vld [vmem:[%s0 + $0xf8] sm:$0xff]
  %v50 = vld [vmem:[%s0 + $0x100] sm:$0xff]
  %v51 = vld [vmem:[%s0 + $0x108] sm:$0xff]
  %v52 = vld [vmem:[%s0 + $0x110] sm:$0xff]
  %v53 = vld [vmem:[%s0 + $0x118] sm:$0xff]
  %v54 = vld [vmem:[%s0 + $0x120] sm:$0xff]
  %v55 = vld [vmem:[%s0 + $0x128] sm:$0xff]
  %v56 = vld [vmem:[%s0 + $0x130] sm:$0xff]
  %v57 = vld [vmem:[%s0 + $0x138] sm:$0xff]
  %v58 = vld [vmem:[%s0 + $0x140] sm:$0xff]
  %v59 = vld [vmem:[%s0 + $0x148] sm:$0xff]
  %v60 = vld [vmem:[%s0 + $0x150] sm:$0xff]
  %v61 = vld [vmem:[%s0 + $0x158] sm:$0xff]
  %v62 = vld [vmem:[%s0 + $0x160] sm:$0xff]
  %v63 = vld [vmem:[%s0 + $0x168] sm:$0xff]
  %v64 = vld [vmem:[%s0 + $0x170] sm:$0xff]
  %v65 = vld [vmem:[%s0 + $0x178] sm:$0xff]
  %v66 = vld [vmem:[%s0 + $0x180] sm:$0xff]
  %v67 = vld [vmem:[%s0 + $0x188] sm:$0xff]
  %v68 = vld [vmem:[%s0 + $0x190] sm:$0xff]
  %v69 = vld [vmem:[%s0 + $0x198] sm:$0xff]
  %v70 = vld [vmem:[%s0 + $0x1a0] sm:$0xff]
  %v71 = vld [vmem:[%s0 + $0x1a8] sm:$0xff]
  %v72 = vld [vmem:[%s0 + $0x1b0] sm:$0xff]
  %v73 = vld [vmem:[%s0 + $0x1b8] sm:$0xff]
  %v74 = vld [vmem:[%s0 + $0x1c0] sm:$0xff]
  %v75 = vld [vmem:[%s0 + $0x1c8] sm:$0xff]
  %v76 = vld [vmem:[%s0 + $0x1d0] sm:$0xff]
  %v77 = vld [vmem:[%s0 + $0x1d8] sm:$0xff]
  %v78 = vld [vmem:[%s0 + $0x1e0] sm:$0xff]
  %v79 = vld [vmem:[%s0 + $0x1e8] sm:$0xff]
  %v80 = vld [vmem:[%s0 + $0x1f0] sm:$0xff]
  %v81 = vld [vmem:[%s0 + $0x1f8] sm:$0xff]
  %v82 = vld [vmem:[%s1] sm:$0xf]
  %v83 = vld [vmem:[%s1 + $0x4] sm:$0xf]
  %v84 = vld [vmem:[%s1 + $0x8] sm:$0xf]
  %v85 = vld [vmem:[%s1 + $0xc] sm:$0xf]
  %v86 = vld [vmem:[%s1 + $0x10] sm:$0xf]
  %v87 = vld [vmem:[%s1 + $0x14] sm:$0xf]
  %v88 = vld [vmem:[%s1 + $0x18] sm:$0xf]
  %v89 = vld [vmem:[%s1 + $0x1c] sm:$0xf]
  %v90 = vld [vmem:[%s1 + $0x20] sm:$0xf]
  %v91 = vld [vmem:[%s1 + $0x24] sm:$0xf]
  %v92 = vld [vmem:[%s1 + $0x28] sm:$0xf]
  %v93 = vld [vmem:[%s1 + $0x2c] sm:$0xf]
  %v94 = vld [vmem:[%s1 + $0x30] sm:$0xf]
  %v95 = vld [vmem:[%s1 + $0x34] sm:$0xf]
  %v96 = vld [vmem:[%s1 + $0x38] sm:$0xf]
  %v97 = vld [vmem:[%s1 + $0x3c] sm:$0xf]
  %v98 = vld [vmem:[%s1 + $0x40] sm:$0xf]
  %v99 = vld [vmem:[%s1 + $0x44] sm:$0xf]
  %v164 = vunpack.c.l.b16 %v18
  %v165 = vunpack.c.h.b16 %v18
  %v166 = vunpack.c.l.b16 %v19
  %v167 = vunpack.c.h.b16 %v19
  %v168 = vunpack.c.l.b16 %v20
  %v169 = vunpack.c.h.b16 %v20
  %v170 = vunpack.c.l.b16 %v21
  %v171 = vunpack.c.h.b16 %v21
  %v172 = vunpack.c.l.b16 %v22
  %v173 = vunpack.c.h.b16 %v22
  %v174 = vunpack.c.l.b16 %v23
  %v175 = vunpack.c.h.b16 %v23
  %v176 = vunpack.c.l.b16 %v24
  %v177 = vunpack.c.h.b16 %v24
  %v178 = vunpack.c.l.b16 %v25
  %v179 = vunpack.c.h.b16 %v25
  %v180 = vunpack.c.l.b16 %v26
  %v181 = vunpack.c.h.b16 %v26
  %v182 = vunpack.c.l.b16 %v27
  %v183 = vunpack.c.h.b16 %v27
  %v184 = vunpack.c.l.b16 %v28
  %v185 = vunpack.c.h.b16 %v28
  %v186 = vunpack.c.l.b16 %v29
  %v187 = vunpack.c.h.b16 %v29
  %v188 = vunpack.c.l.b16 %v30
  %v189 = vunpack.c.h.b16 %v30
  %v190 = vunpack.c.l.b16 %v31
  %v191 = vunpack.c.h.b16 %v31
  %v192 = vunpack.c.l.b16 %v32
  %v193 = vunpack.c.h.b16 %v32
  %v194 = vunpack.c.l.b16 %v33
  %v195 = vunpack.c.h.b16 %v33
  %v196 = vunpack.c.l.b16 %v34
  %v197 = vunpack.c.h.b16 %v34
  %v198 = vunpack.c.l.b16 %v35
  %v199 = vunpack.c.h.b16 %v35
  %v200 = vunpack.c.l.b16 %v36
  %v201 = vunpack.c.h.b16 %v36
  %v202 = vunpack.c.l.b16 %v37
  %v203 = vunpack.c.h.b16 %v37
  %v204 = vunpack.c.l.b16 %v38
  %v205 = vunpack.c.h.b16 %v38
  %v206 = vunpack.c.l.b16 %v39
  %v207 = vunpack.c.h.b16 %v39
  %v208 = vunpack.c.l.b16 %v40
  %v209 = vunpack.c.h.b16 %v40
  %v210 = vunpack.c.l.b16 %v41
  %v211 = vunpack.c.h.b16 %v41
  %v212 = vunpack.c.l.b16 %v42
  %v213 = vunpack.c.h.b16 %v42
  %v214 = vunpack.c.l.b16 %v43
  %v215 = vunpack.c.h.b16 %v43
  %v216 = vunpack.c.l.b16 %v44
  %v217 = vunpack.c.h.b16 %v44
  %v218 = vunpack.c.l.b16 %v45
  %v219 = vunpack.c.h.b16 %v45
  %v220 = vunpack.c.l.b16 %v46
  %v221 = vunpack.c.h.b16 %v46
  %v222 = vunpack.c.l.b16 %v47
  %v223 = vunpack.c.h.b16 %v47
  %v224 = vunpack.c.l.b16 %v48
  %v225 = vunpack.c.h.b16 %v48
  %v226 = vunpack.c.l.b16 %v49
  %v227 = vunpack.c.h.b16 %v49
  %v228 = vunpack.c.l.b16 %v50
  %v229 = vunpack.c.h.b16 %v50
  %v230 = vunpack.c.l.b16 %v51
  %v231 = vunpack.c.h.b16 %v51
  %v232 = vunpack.c.l.b16 %v52
  %v233 = vunpack.c.h.b16 %v52
  %v234 = vunpack.c.l.b16 %v53
  %v235 = vunpack.c.h.b16 %v53
  %v236 = vunpack.c.l.b16 %v54
  %v237 = vunpack.c.h.b16 %v54
  %v238 = vunpack.c.l.b16 %v55
  %v239 = vunpack.c.h.b16 %v55
  %v240 = vunpack.c.l.b16 %v56
  %v241 = vunpack.c.h.b16 %v56
  %v242 = vunpack.c.l.b16 %v57
  %v243 = vunpack.c.h.b16 %v57
  %v244 = vunpack.c.l.b16 %v58
  %v245 = vunpack.c.h.b16 %v58
  %v246 = vunpack.c.l.b16 %v59
  %v247 = vunpack.c.h.b16 %v59
  %v248 = vunpack.c.l.b16 %v60
  %v249 = vunpack.c.h.b16 %v60
  %v250 = vunpack.c.l.b16 %v61
  %v251 = vunpack.c.h.b16 %v61
  %v252 = vunpack.c.l.b16 %v62
  %v253 = vunpack.c.h.b16 %v62
  %v254 = vunpack.c.l.b16 %v63
  %v255 = vunpack.c.h.b16 %v63
  %v256 = vunpack.c.l.b16 %v64
  %v257 = vunpack.c.h.b16 %v64
  %v258 = vunpack.c.l.b16 %v65
  %v259 = vunpack.c.h.b16 %v65
  %v260 = vunpack.c.l.b16 %v66
  %v261 = vunpack.c.h.b16 %v66
  %v262 = vunpack.c.l.b16 %v67
  %v263 = vunpack.c.h.b16 %v67
  %v264 = vunpack.c.l.b16 %v68
  %v265 = vunpack.c.h.b16 %v68
  %v266 = vunpack.c.l.b16 %v69
  %v267 = vunpack.c.h.b16 %v69
  %v268 = vunpack.c.l.b16 %v70
  %v269 = vunpack.c.h.b16 %v70
  %v270 = vunpack.c.l.b16 %v71
  %v271 = vunpack.c.h.b16 %v71
  %v272 = vunpack.c.l.b16 %v72
  %v273 = vunpack.c.h.b16 %v72
  %v274 = vunpack.c.l.b16 %v73
  %v275 = vunpack.c.h.b16 %v73
  %v276 = vunpack.c.l.b16 %v74
  %v277 = vunpack.c.h.b16 %v74
  %v278 = vunpack.c.l.b16 %v75
  %v279 = vunpack.c.h.b16 %v75
  %v280 = vunpack.c.l.b16 %v76
  %v281 = vunpack.c.h.b16 %v76
  %v282 = vunpack.c.l.b16 %v77
  %v283 = vunpack.c.h.b16 %v77
  %v284 = vunpack.c.l.b16 %v78
  %v285 = vunpack.c.h.b16 %v78
  %v286 = vunpack.c.l.b16 %v79
  %v287 = vunpack.c.h.b16 %v79
  %v288 = vunpack.c.l.b16 %v80
  %v289 = vunpack.c.h.b16 %v80
  %v290 = vunpack.c.l.b16 %v81
  %v291 = vunpack.c.h.b16 %v81
  %v292 = vpack.c.b16 %v166, %v164
  %v293 = vpack.c.b16 %v167, %v165
  %v294 = vpack.c.b16 %v170, %v168
  %v295 = vpack.c.b16 %v171, %v169
  %v296 = vpack.c.b16 %v174, %v172
  %v297 = vpack.c.b16 %v175, %v173
  %v298 = vpack.c.b16 %v178, %v176
  %v299 = vpack.c.b16 %v179, %v177
  %v300 = vpack.c.b16 %v182, %v180
  %v301 = vpack.c.b16 %v183, %v181
  %v302 = vpack.c.b16 %v186, %v184
  %v303 = vpack.c.b16 %v187, %v185
  %v304 = vpack.c.b16 %v190, %v188
  %v305 = vpack.c.b16 %v191, %v189
  %v306 = vpack.c.b16 %v194, %v192
  %v307 = vpack.c.b16 %v195, %v193
  %v308 = vpack.c.b16 %v198, %v196
  %v309 = vpack.c.b16 %v199, %v197
  %v310 = vpack.c.b16 %v202, %v200
  %v311 = vpack.c.b16 %v203, %v201
  %v312 = vpack.c.b16 %v206, %v204
  %v313 = vpack.c.b16 %v207, %v205
  %v314 = vpack.c.b16 %v210, %v208
  %v315 = vpack.c.b16 %v211, %v209
  %v316 = vpack.c.b16 %v214, %v212
  %v317 = vpack.c.b16 %v215, %v213
  %v318 = vpack.c.b16 %v218, %v216
  %v319 = vpack.c.b16 %v219, %v217
  %v320 = vpack.c.b16 %v222, %v220
  %v321 = vpack.c.b16 %v223, %v221
  %v322 = vpack.c.b16 %v226, %v224
  %v323 = vpack.c.b16 %v227, %v225
  %v324 = vpack.c.b16 %v230, %v228
  %v325 = vpack.c.b16 %v231, %v229
  %v326 = vpack.c.b16 %v234, %v232
  %v327 = vpack.c.b16 %v235, %v233
  %v328 = vpack.c.b16 %v238, %v236
  %v329 = vpack.c.b16 %v239, %v237
  %v330 = vpack.c.b16 %v242, %v240
  %v331 = vpack.c.b16 %v243, %v241
  %v332 = vpack.c.b16 %v246, %v244
  %v333 = vpack.c.b16 %v247, %v245
  %v334 = vpack.c.b16 %v250, %v248
  %v335 = vpack.c.b16 %v251, %v249
  %v336 = vpack.c.b16 %v254, %v252
  %v337 = vpack.c.b16 %v255, %v253
  %v338 = vpack.c.b16 %v258, %v256
  %v339 = vpack.c.b16 %v259, %v257
  %v340 = vpack.c.b16 %v262, %v260
  %v341 = vpack.c.b16 %v263, %v261
  %v342 = vpack.c.b16 %v266, %v264
  %v343 = vpack.c.b16 %v267, %v265
  %v344 = vpack.c.b16 %v270, %v268
  %v345 = vpack.c.b16 %v271, %v269
  %v346 = vpack.c.b16 %v274, %v272
  %v347 = vpack.c.b16 %v275, %v273
  %v348 = vpack.c.b16 %v278, %v276
  %v349 = vpack.c.b16 %v279, %v277
  %v350 = vpack.c.b16 %v282, %v280
  %v351 = vpack.c.b16 %v283, %v281
  %v352 = vpack.c.b16 %v286, %v284
  %v353 = vpack.c.b16 %v287, %v285
  %v354 = vpack.c.b16 %v290, %v288
  %v355 = vpack.c.b16 %v291, %v289
  %v406 = vunpack.c.l.b16 %v82
  %v407 = vunpack.c.l.b16 %v83
  %v408 = vunpack.c.l.b16 %v84
  %v409 = vunpack.c.l.b16 %v85
  %v410 = vunpack.c.l.b16 %v86
  %v411 = vunpack.c.l.b16 %v87
  %v412 = vunpack.c.l.b16 %v88
  %v413 = vunpack.c.l.b16 %v89
  %v414 = vunpack.c.l.b16 %v90
  %v415 = vunpack.c.l.b16 %v91
  %v416 = vunpack.c.l.b16 %v92
  %v417 = vunpack.c.l.b16 %v93
  %v418 = vunpack.c.l.b16 %v94
  %v419 = vunpack.c.l.b16 %v95
  %v420 = vunpack.c.l.b16 %v96
  %v421 = vunpack.c.l.b16 %v97
  %v422 = vunpack.c.l.b16 %v98
  %v423 = vunpack.c.l.b16 %v99
  %v424 = vpack.c.b16 %v407, %v406
  %v425 = vpack.c.b16 %v409, %v408
  %v426 = vpack.c.b16 %v411, %v410
  %v427 = vpack.c.b16 %v413, %v412
  %v428 = vpack.c.b16 %v415, %v414
  %v429 = vpack.c.b16 %v417, %v416
  %v430 = vpack.c.b16 %v419, %v418
  %v431 = vpack.c.b16 %v421, %v420
  %v432 = vpack.c.b16 %v423, %v422
  %vm442 = vcmask 130048
  %v444 = vsel %vm442, %v293, 0
  %v447 = vsel %vm442, %v295, 0
  %v450 = vsel %vm442, %v297, 0
  %v453 = vsel %vm442, %v299, 0
  %v456 = vsel %vm442, %v301, 0
  %v459 = vsel %vm442, %v303, 0
  %v462 = vsel %vm442, %v305, 0
  %v465 = vsel %vm442, %v307, 0
  %v468 = vsel %vm442, %v309, 0
  %v471 = vsel %vm442, %v311, 0
  %v474 = vsel %vm442, %v313, 0
  %v477 = vsel %vm442, %v315, 0
  %v480 = vsel %vm442, %v317, 0
  %v483 = vsel %vm442, %v319, 0
  %v486 = vsel %vm442, %v321, 0
  %v489 = vsel %vm442, %v323, 0
  %v492 = vsel %vm442, %v325, 0
  %v495 = vsel %vm442, %v327, 0
  %v498 = vsel %vm442, %v329, 0
  %v501 = vsel %vm442, %v331, 0
  %v504 = vsel %vm442, %v333, 0
  %v507 = vsel %vm442, %v335, 0
  %v510 = vsel %vm442, %v337, 0
  %v513 = vsel %vm442, %v339, 0
  %v516 = vsel %vm442, %v341, 0
  %v519 = vsel %vm442, %v343, 0
  %v522 = vsel %vm442, %v345, 0
  %v525 = vsel %vm442, %v347, 0
  %v528 = vsel %vm442, %v349, 0
  %v531 = vsel %vm442, %v351, 0
  %v534 = vsel %vm442, %v353, 0
  %v537 = vsel %vm442, %v355, 0
  %539 = vmatprep.subr.bf16.mxu0 0
  %540 = vmatpush1.bf16.msra.mxu0 %v424
  %541 = vmatprep.subr.bf16.mxu0 0
  %542 = vmatpush1.bf16.msra.mxu0 %v425
  %543 = vmatprep.subr.bf16.mxu0 0
  %544 = vmatpush1.bf16.msra.mxu0 %v426
  %545 = vmatprep.subr.bf16.mxu0 0
  %546 = vmatpush1.bf16.msra.mxu0 %v427
  %547 = vmatprep.subr.bf16.mxu0 0
  %548 = vmatpush1.bf16.msra.mxu0 %v428
  %549 = vmatprep.subr.bf16.mxu0 0
  %550 = vmatpush1.bf16.msra.mxu0 %v429
  %551 = vmatprep.subr.bf16.mxu0 0
  %552 = vmatpush1.bf16.msra.mxu0 %v430
  %553 = vmatprep.subr.bf16.mxu0 0
  %554 = vmatpush1.bf16.msra.mxu0 %v431
  %555 = vmatprep.subr.bf16.mxu0 0
  %556 = vmatpush1.bf16.msra.mxu0 %v432
  %557 = vmatprep.subr.bf16.mxu0 0
  %558 = vmatpush1.bf16.msra.mxu0 0
  %559 = vmatprep.subr.bf16.mxu0 0
  %560 = vmatpush1.bf16.msra.mxu0 0
  %561 = vmatprep.subr.bf16.mxu0 0
  %562 = vmatpush1.bf16.msra.mxu0 0
  %563 = vmatprep.subr.bf16.mxu0 0
  %564 = vmatpush1.bf16.msra.mxu0 0
  %565 = vmatprep.subr.bf16.mxu0 0
  %566 = vmatpush1.bf16.msra.mxu0 0
  %567 = vmatprep.subr.bf16.mxu0 0
  %568 = vmatpush1.bf16.msra.mxu0 0
  %569 = vmatprep.subr.bf16.mxu0 0
  %570 = vmatpush1.bf16.msra.mxu0 0
  %571 = vmatprep.mubr.bf16.mxu0 %v444
  %572 = vmatmul.mubr.bf16.gmra.mrb[0].mxu0 %v292
  %v573 = vpop.f32.mrb[0].mxu0
  %v574 = vadd.f32 0.0, %v573
  %v575 = vpop.f32.mrb[0].mxu0
  %v576 = vpop.f32.mrb[0].mxu0
  %v577 = vadd.f32 0.0, %v576
  %v578 = vpop.f32.mrb[0].mxu0
  %579 = vmatprep.mubr.bf16.mxu0 %v447
  %580 = vmatmul.mubr.bf16.gmra.mrb[0].mxu0 %v294
  %v581 = vpop.f32.mrb[0].mxu0
  %v582 = vadd.f32 0.0, %v581
  %v583 = vpop.f32.mrb[0].mxu0
  %v584 = vpop.f32.mrb[0].mxu0
  %v585 = vadd.f32 0.0, %v584
  %v586 = vpop.f32.mrb[0].mxu0
  %587 = vmatprep.mubr.bf16.mxu0 %v450
  %588 = vmatmul.mubr.bf16.gmra.mrb[0].mxu0 %v296
  %v589 = vpop.f32.mrb[0].mxu0
  %v590 = vadd.f32 0.0, %v589
  %v591 = vpop.f32.mrb[0].mxu0
  %v592 = vpop.f32.mrb[0].mxu0
  %v593 = vadd.f32 0.0, %v592
  %v594 = vpop.f32.mrb[0].mxu0
  %595 = vmatprep.mubr.bf16.mxu0 %v453
  %596 = vmatmul.mubr.bf16.gmra.mrb[0].mxu0 %v298
  %v597 = vpop.f32.mrb[0].mxu0
  %v598 = vadd.f32 0.0, %v597
  %v599 = vpop.f32.mrb[0].mxu0
  %v600 = vpop.f32.mrb[0].mxu0
  %v601 = vadd.f32 0.0, %v600
  %v602 = vpop.f32.mrb[0].mxu0
  %603 = vmatprep.mubr.bf16.mxu0 %v456
  %604 = vmatmul.mubr.bf16.gmra.mrb[0].mxu0 %v300
  %v605 = vpop.f32.mrb[0].mxu0
  %v606 = vadd.f32 0.0, %v605
  %v607 = vpop.f32.mrb[0].mxu0
  %v608 = vpop.f32.mrb[0].mxu0
  %v609 = vadd.f32 0.0, %v608
  %v610 = vpop.f32.mrb[0].mxu0
  %611 = vmatprep.mubr.bf16.mxu0 %v459
  %612 = vmatmul.mubr.bf16.gmra.mrb[0].mxu0 %v302
  %v613 = vpop.f32.mrb[0].mxu0
  %v614 = vadd.f32 0.0, %v613
  %v615 = vpop.f32.mrb[0].mxu0
  %v616 = vpop.f32.mrb[0].mxu0
  %v617 = vadd.f32 0.0, %v616
  %v618 = vpop.f32.mrb[0].mxu0
  %619 = vmatprep.mubr.bf16.mxu0 %v462
  %620 = vmatmul.mubr.bf16.gmra.mrb[0].mxu0 %v304
  %v621 = vpop.f32.mrb[0].mxu0
  %v622 = vadd.f32 0.0, %v621
  %v623 = vpop.f32.mrb[0].mxu0
  %v624 = vpop.f32.mrb[0].mxu0
  %v625 = vadd.f32 0.0, %v624
  %v626 = vpop.f32.mrb[0].mxu0
  %627 = vmatprep.mubr.bf16.mxu0 %v465
  %628 = vmatmul.mubr.bf16.gmra.mrb[0].mxu0 %v306
  %v629 = vpop.f32.mrb[0].mxu0
  %v630 = vadd.f32 0.0, %v629
  %v631 = vpop.f32.mrb[0].mxu0
  %v632 = vpop.f32.mrb[0].mxu0
  %v633 = vadd.f32 0.0, %v632
  %v634 = vpop.f32.mrb[0].mxu0
  %635 = vmatprep.mubr.bf16.mxu0 %v468
  %636 = vmatmul.mubr.bf16.gmra.mrb[0].mxu0 %v308
  %v637 = vpop.f32.mrb[0].mxu0
  %v638 = vadd.f32 0.0, %v637
  %v639 = vpop.f32.mrb[0].mxu0
  %v640 = vpop.f32.mrb[0].mxu0
  %v641 = vadd.f32 0.0, %v640
  %v642 = vpop.f32.mrb[0].mxu0
  %643 = vmatprep.mubr.bf16.mxu0 %v471
  %644 = vmatmul.mubr.bf16.gmra.mrb[0].mxu0 %v310
  %v645 = vpop.f32.mrb[0].mxu0
  %v646 = vadd.f32 0.0, %v645
  %v647 = vpop.f32.mrb[0].mxu0
  %v648 = vpop.f32.mrb[0].mxu0
  %v649 = vadd.f32 0.0, %v648
  %v650 = vpop.f32.mrb[0].mxu0
  %651 = vmatprep.mubr.bf16.mxu0 %v474
  %652 = vmatmul.mubr.bf16.gmra.mrb[0].mxu0 %v312
  %v653 = vpop.f32.mrb[0].mxu0
  %v654 = vadd.f32 0.0, %v653
  %v655 = vpop.f32.mrb[0].mxu0
  %v656 = vpop.f32.mrb[0].mxu0
  %v657 = vadd.f32 0.0, %v656
  %v658 = vpop.f32.mrb[0].mxu0
  %659 = vmatprep.mubr.bf16.mxu0 %v477
  %660 = vmatmul.mubr.bf16.gmra.mrb[0].mxu0 %v314
  %v661 = vpop.f32.mrb[0].mxu0
  %v662 = vadd.f32 0.0, %v661
  %v663 = vpop.f32.mrb[0].mxu0
  %v664 = vpop.f32.mrb[0].mxu0
  %v665 = vadd.f32 0.0, %v664
  %v666 = vpop.f32.mrb[0].mxu0
  %667 = vmatprep.mubr.bf16.mxu0 %v480
  %668 = vmatmul.mubr.bf16.gmra.mrb[0].mxu0 %v316
  %v669 = vpop.f32.mrb[0].mxu0
  %v670 = vadd.f32 0.0, %v669
  %v671 = vpop.f32.mrb[0].mxu0
  %v672 = vpop.f32.mrb[0].mxu0
  %v673 = vadd.f32 0.0, %v672
  %v674 = vpop.f32.mrb[0].mxu0
  %675 = vmatprep.mubr.bf16.mxu0 %v483
  %676 = vmatmul.mubr.bf16.gmra.mrb[0].mxu0 %v318
  %v677 = vpop.f32.mrb[0].mxu0
  %v678 = vadd.f32 0.0, %v677
  %v679 = vpop.f32.mrb[0].mxu0
  %v680 = vpop.f32.mrb[0].mxu0
  %v681 = vadd.f32 0.0, %v680
  %v682 = vpop.f32.mrb[0].mxu0
  %683 = vmatprep.mubr.bf16.mxu0 %v486
  %684 = vmatmul.mubr.bf16.gmra.mrb[0].mxu0 %v320
  %v685 = vpop.f32.mrb[0].mxu0
  %v686 = vadd.f32 0.0, %v685
  %v687 = vpop.f32.mrb[0].mxu0
  %v688 = vpop.f32.mrb[0].mxu0
  %v689 = vadd.f32 0.0, %v688
  %v690 = vpop.f32.mrb[0].mxu0
  %691 = vmatprep.mubr.bf16.mxu0 %v489
  %692 = vmatmul.mubr.bf16.gmra.mrb[0].mxu0 %v322
  %v693 = vpop.f32.mrb[0].mxu0
  %v694 = vadd.f32 0.0, %v693
  %v695 = vpop.f32.mrb[0].mxu0
  %v696 = vpop.f32.mrb[0].mxu0
  %v697 = vadd.f32 0.0, %v696
  %v698 = vpop.f32.mrb[0].mxu0
  %699 = vmatprep.mubr.bf16.mxu0 %v492
  %700 = vmatmul.mubr.bf16.gmra.mrb[0].mxu0 %v324
  %v701 = vpop.f32.mrb[0].mxu0
  %v702 = vadd.f32 0.0, %v701
  %v703 = vpop.f32.mrb[0].mxu0
  %v704 = vpop.f32.mrb[0].mxu0
  %v705 = vadd.f32 0.0, %v704
  %v706 = vpop.f32.mrb[0].mxu0
  %707 = vmatprep.mubr.bf16.mxu0 %v495
  %708 = vmatmul.mubr.bf16.gmra.mrb[0].mxu0 %v326
  %v709 = vpop.f32.mrb[0].mxu0
  %v710 = vadd.f32 0.0, %v709
  %v711 = vpop.f32.mrb[0].mxu0
  %v712 = vpop.f32.mrb[0].mxu0
  %v713 = vadd.f32 0.0, %v712
  %v714 = vpop.f32.mrb[0].mxu0
  %715 = vmatprep.mubr.bf16.mxu0 %v498
  %716 = vmatmul.mubr.bf16.gmra.mrb[0].mxu0 %v328
  %v717 = vpop.f32.mrb[0].mxu0
  %v718 = vadd.f32 0.0, %v717
  %v719 = vpop.f32.mrb[0].mxu0
  %v720 = vpop.f32.mrb[0].mxu0
  %v721 = vadd.f32 0.0, %v720
  %v722 = vpop.f32.mrb[0].mxu0
  %723 = vmatprep.mubr.bf16.mxu0 %v501
  %724 = vmatmul.mubr.bf16.gmra.mrb[0].mxu0 %v330
  %v725 = vpop.f32.mrb[0].mxu0
  %v726 = vadd.f32 0.0, %v725
  %v727 = vpop.f32.mrb[0].mxu0
  %v728 = vpop.f32.mrb[0].mxu0
  %v729 = vadd.f32 0.0, %v728
  %v730 = vpop.f32.mrb[0].mxu0
  %731 = vmatprep.mubr.bf16.mxu0 %v504
  %732 = vmatmul.mubr.bf16.gmra.mrb[0].mxu0 %v332
  %v733 = vpop.f32.mrb[0].mxu0
  %v734 = vadd.f32 0.0, %v733
  %v735 = vpop.f32.mrb[0].mxu0
  %v736 = vpop.f32.mrb[0].mxu0
  %v737 = vadd.f32 0.0, %v736
  %v738 = vpop.f32.mrb[0].mxu0
  %739 = vmatprep.mubr.bf16.mxu0 %v507
  %740 = vmatmul.mubr.bf16.gmra.mrb[0].mxu0 %v334
  %v741 = vpop.f32.mrb[0].mxu0
  %v742 = vadd.f32 0.0, %v741
  %v743 = vpop.f32.mrb[0].mxu0
  %v744 = vpop.f32.mrb[0].mxu0
  %v745 = vadd.f32 0.0, %v744
  %v746 = vpop.f32.mrb[0].mxu0
  %747 = vmatprep.mubr.bf16.mxu0 %v510
  %748 = vmatmul.mubr.bf16.gmra.mrb[0].mxu0 %v336
  %v749 = vpop.f32.mrb[0].mxu0
  %v750 = vadd.f32 0.0, %v749
  %v751 = vpop.f32.mrb[0].mxu0
  %v752 = vpop.f32.mrb[0].mxu0
  %v753 = vadd.f32 0.0, %v752
  %v754 = vpop.f32.mrb[0].mxu0
  %755 = vmatprep.mubr.bf16.mxu0 %v513
  %756 = vmatmul.mubr.bf16.gmra.mrb[0].mxu0 %v338
  %v757 = vpop.f32.mrb[0].mxu0
  %v758 = vadd.f32 0.0, %v757
  %v759 = vpop.f32.mrb[0].mxu0
  %v760 = vpop.f32.mrb[0].mxu0
  %v761 = vadd.f32 0.0, %v760
  %v762 = vpop.f32.mrb[0].mxu0
  %763 = vmatprep.mubr.bf16.mxu0 %v516
  %764 = vmatmul.mubr.bf16.gmra.mrb[0].mxu0 %v340
  %v765 = vpop.f32.mrb[0].mxu0
  %v766 = vadd.f32 0.0, %v765
  %v767 = vpop.f32.mrb[0].mxu0
  %v768 = vpop.f32.mrb[0].mxu0
  %v769 = vadd.f32 0.0, %v768
  %v770 = vpop.f32.mrb[0].mxu0
  %771 = vmatprep.mubr.bf16.mxu0 %v519
  %772 = vmatmul.mubr.bf16.gmra.mrb[0].mxu0 %v342
  %v773 = vpop.f32.mrb[0].mxu0
  %v774 = vadd.f32 0.0, %v773
  %v775 = vpop.f32.mrb[0].mxu0
  %v776 = vpop.f32.mrb[0].mxu0
  %v777 = vadd.f32 0.0, %v776
  %v778 = vpop.f32.mrb[0].mxu0
  %779 = vmatprep.mubr.bf16.mxu0 %v522
  %780 = vmatmul.mubr.bf16.gmra.mrb[0].mxu0 %v344
  %v781 = vpop.f32.mrb[0].mxu0
  %v782 = vadd.f32 0.0, %v781
  %v783 = vpop.f32.mrb[0].mxu0
  %v784 = vpop.f32.mrb[0].mxu0
  %v785 = vadd.f32 0.0, %v784
  %v786 = vpop.f32.mrb[0].mxu0
  %787 = vmatprep.mubr.bf16.mxu0 %v525
  %788 = vmatmul.mubr.bf16.gmra.mrb[0].mxu0 %v346
  %v789 = vpop.f32.mrb[0].mxu0
  %v790 = vadd.f32 0.0, %v789
  %v791 = vpop.f32.mrb[0].mxu0
  %v792 = vpop.f32.mrb[0].mxu0
  %v793 = vadd.f32 0.0, %v792
  %v794 = vpop.f32.mrb[0].mxu0
  %795 = vmatprep.mubr.bf16.mxu0 %v528
  %796 = vmatmul.mubr.bf16.gmra.mrb[0].mxu0 %v348
  %v797 = vpop.f32.mrb[0].mxu0
  %v798 = vadd.f32 0.0, %v797
  %v799 = vpop.f32.mrb[0].mxu0
  %v800 = vpop.f32.mrb[0].mxu0
  %v801 = vadd.f32 0.0, %v800
  %v802 = vpop.f32.mrb[0].mxu0
  %803 = vmatprep.mubr.bf16.mxu0 %v531
  %804 = vmatmul.mubr.bf16.gmra.mrb[0].mxu0 %v350
  %v805 = vpop.f32.mrb[0].mxu0
  %v806 = vadd.f32 0.0, %v805
  %v807 = vpop.f32.mrb[0].mxu0
  %v808 = vpop.f32.mrb[0].mxu0
  %v809 = vadd.f32 0.0, %v808
  %v810 = vpop.f32.mrb[0].mxu0
  %811 = vmatprep.mubr.bf16.mxu0 %v534
  %812 = vmatmul.mubr.bf16.gmra.mrb[0].mxu0 %v352
  %v813 = vpop.f32.mrb[0].mxu0
  %v814 = vadd.f32 0.0, %v813
  %v815 = vpop.f32.mrb[0].mxu0
  %v816 = vpop.f32.mrb[0].mxu0
  %v817 = vadd.f32 0.0, %v816
  %v818 = vpop.f32.mrb[0].mxu0
  %819 = vmatprep.mubr.bf16.mxu0 %v537
  %820 = vmatmul.mubr.bf16.gmra.mrb[0].mxu0 %v354
  %v821 = vpop.f32.mrb[0].mxu0
  %v822 = vadd.f32 0.0, %v821
  %v823 = vpop.f32.mrb[0].mxu0
  %v824 = vpop.f32.mrb[0].mxu0
  %v825 = vadd.f32 0.0, %v824
  %v826 = vpop.f32.mrb[0].mxu0
  %827 = vdwg.mxu0
  %v828 = vadd.f32 %v574, %v577
  %v829 = vadd.f32 %v828, %v582
  %v830 = vadd.f32 %v829, %v585
  %v831 = vadd.f32 %v830, %v590
  %v832 = vadd.f32 %v831, %v593
  %v833 = vadd.f32 %v832, %v598
  %v834 = vadd.f32 %v833, %v601
  %v835 = vadd.f32 %v834, %v606
  %v836 = vadd.f32 %v835, %v609
  %v837 = vadd.f32 %v836, %v614
  %v838 = vadd.f32 %v837, %v617
  %v839 = vadd.f32 %v838, %v622
  %v840 = vadd.f32 %v839, %v625
  %v841 = vadd.f32 %v840, %v630
  %v842 = vadd.f32 %v841, %v633
  %v843 = vadd.f32 %v842, %v638
  %v844 = vadd.f32 %v843, %v641
  %v845 = vadd.f32 %v844, %v646
  %v846 = vadd.f32 %v845, %v649
  %v847 = vadd.f32 %v846, %v654
  %v848 = vadd.f32 %v847, %v657
  %v849 = vadd.f32 %v848, %v662
  %v850 = vadd.f32 %v849, %v665
  %v851 = vadd.f32 %v850, %v670
  %v852 = vadd.f32 %v851, %v673
  %v853 = vadd.f32 %v852, %v678
  %v854 = vadd.f32 %v853, %v681
  %v855 = vadd.f32 %v854, %v686
  %v856 = vadd.f32 %v855, %v689
  %v857 = vadd.f32 %v856, %v694
  %v858 = vadd.f32 %v857, %v697
  %v859 = vadd.f32 %v858, %v702
  %v860 = vadd.f32 %v859, %v705
  %v861 = vadd.f32 %v860, %v710
  %v862 = vadd.f32 %v861, %v713
  %v863 = vadd.f32 %v862, %v718
  %v864 = vadd.f32 %v863, %v721
  %v865 = vadd.f32 %v864, %v726
  %v866 = vadd.f32 %v865, %v729
  %v867 = vadd.f32 %v866, %v734
  %v868 = vadd.f32 %v867, %v737
  %v869 = vadd.f32 %v868, %v742
  %v870 = vadd.f32 %v869, %v745
  %v871 = vadd.f32 %v870, %v750
  %v872 = vadd.f32 %v871, %v753
  %v873 = vadd.f32 %v872, %v758
  %v874 = vadd.f32 %v873, %v761
  %v875 = vadd.f32 %v874, %v766
  %v876 = vadd.f32 %v875, %v769
  %v877 = vadd.f32 %v876, %v774
  %v878 = vadd.f32 %v877, %v777
  %v879 = vadd.f32 %v878, %v782
  %v880 = vadd.f32 %v879, %v785
  %v881 = vadd.f32 %v880, %v790
  %v882 = vadd.f32 %v881, %v793
  %v883 = vadd.f32 %v882, %v798
  %v884 = vadd.f32 %v883, %v801
  %v885 = vadd.f32 %v884, %v806
  %v886 = vadd.f32 %v885, %v809
  %v887 = vadd.f32 %v886, %v814
  %v888 = vadd.f32 %v887, %v817
  %v889 = vadd.f32 %v888, %v822
  %v890 = vadd.f32 %v889, %v825
  %v891 = vrot.slane %v890, 4
  %v892 = vadd.f32 %v890, %v891
  %v893 = vrot.slane %v892, 2
  %v894 = vadd.f32 %v892, %v893
  %v895 = vrot.slane %v894, 1
  %v896 = vadd.f32 %v894, %v895
  %v897 = vmul.f32 %v896, 0.001953125
  %v898 = vmul.f32 %v574, %v574
  %v899 = vmul.f32 %v577, %v577
  %v900 = vmul.f32 %v582, %v582
  %v901 = vmul.f32 %v585, %v585
  %v902 = vmul.f32 %v590, %v590
  %v903 = vmul.f32 %v593, %v593
  %v904 = vmul.f32 %v598, %v598
  %v905 = vmul.f32 %v601, %v601
  %v906 = vmul.f32 %v606, %v606
  %v907 = vmul.f32 %v609, %v609
  %v908 = vmul.f32 %v614, %v614
  %v909 = vmul.f32 %v617, %v617
  %v910 = vmul.f32 %v622, %v622
  %v911 = vmul.f32 %v625, %v625
  %v912 = vmul.f32 %v630, %v630
  %v913 = vmul.f32 %v633, %v633
  %v914 = vmul.f32 %v638, %v638
  %v915 = vmul.f32 %v641, %v641
  %v916 = vmul.f32 %v646, %v646
  %v917 = vmul.f32 %v649, %v649
  %v918 = vmul.f32 %v654, %v654
  %v919 = vmul.f32 %v657, %v657
  %v920 = vmul.f32 %v662, %v662
  %v921 = vmul.f32 %v665, %v665
  %v922 = vmul.f32 %v670, %v670
  %v923 = vmul.f32 %v673, %v673
  %v924 = vmul.f32 %v678, %v678
  %v925 = vmul.f32 %v681, %v681
  %v926 = vmul.f32 %v686, %v686
  %v927 = vmul.f32 %v689, %v689
  %v928 = vmul.f32 %v694, %v694
  %v929 = vmul.f32 %v697, %v697
  %v930 = vmul.f32 %v702, %v702
  %v931 = vmul.f32 %v705, %v705
  %v932 = vmul.f32 %v710, %v710
  %v933 = vmul.f32 %v713, %v713
  %v934 = vmul.f32 %v718, %v718
  %v935 = vmul.f32 %v721, %v721
  %v936 = vmul.f32 %v726, %v726
  %v937 = vmul.f32 %v729, %v729
  %v938 = vmul.f32 %v734, %v734
  %v939 = vmul.f32 %v737, %v737
  %v940 = vmul.f32 %v742, %v742
  %v941 = vmul.f32 %v745, %v745
  %v942 = vmul.f32 %v750, %v750
  %v943 = vmul.f32 %v753, %v753
  %v944 = vmul.f32 %v758, %v758
  %v945 = vmul.f32 %v761, %v761
  %v946 = vmul.f32 %v766, %v766
  %v947 = vmul.f32 %v769, %v769
  %v948 = vmul.f32 %v774, %v774
  %v949 = vmul.f32 %v777, %v777
  %v950 = vmul.f32 %v782, %v782
  %v951 = vmul.f32 %v785, %v785
  %v952 = vmul.f32 %v790, %v790
  %v953 = vmul.f32 %v793, %v793
  %v954 = vmul.f32 %v798, %v798
  %v955 = vmul.f32 %v801, %v801
  %v956 = vmul.f32 %v806, %v806
  %v957 = vmul.f32 %v809, %v809
  %v958 = vmul.f32 %v814, %v814
  %v959 = vmul.f32 %v817, %v817
  %v960 = vmul.f32 %v822, %v822
  %v961 = vmul.f32 %v825, %v825
  %v962 = vadd.f32 %v898, %v899
  %v963 = vadd.f32 %v962, %v900
  %v964 = vadd.f32 %v963, %v901
  %v965 = vadd.f32 %v964, %v902
  %v966 = vadd.f32 %v965, %v903
  %v967 = vadd.f32 %v966, %v904
  %v968 = vadd.f32 %v967, %v905
  %v969 = vadd.f32 %v968, %v906
  %v970 = vadd.f32 %v969, %v907
  %v971 = vadd.f32 %v970, %v908
  %v972 = vadd.f32 %v971, %v909
  %v973 = vadd.f32 %v972, %v910
  %v974 = vadd.f32 %v973, %v911
  %v975 = vadd.f32 %v974, %v912
  %v976 = vadd.f32 %v975, %v913
  %v977 = vadd.f32 %v976, %v914
  %v978 = vadd.f32 %v977, %v915
  %v979 = vadd.f32 %v978, %v916
  %v980 = vadd.f32 %v979, %v917
  %v981 = vadd.f32 %v980, %v918
  %v982 = vadd.f32 %v981, %v919
  %v983 = vadd.f32 %v982, %v920
  %v984 = vadd.f32 %v983, %v921
  %v985 = vadd.f32 %v984, %v922
  %v986 = vadd.f32 %v985, %v923
  %v987 = vadd.f32 %v986, %v924
  %v988 = vadd.f32 %v987, %v925
  %v989 = vadd.f32 %v988, %v926
  %v990 = vadd.f32 %v989, %v927
  %v991 = vadd.f32 %v990, %v928
  %v992 = vadd.f32 %v991, %v929
  %v993 = vadd.f32 %v992, %v930
  %v994 = vadd.f32 %v993, %v931
  %v995 = vadd.f32 %v994, %v932
  %v996 = vadd.f32 %v995, %v933
  %v997 = vadd.f32 %v996, %v934
  %v998 = vadd.f32 %v997, %v935
  %v999 = vadd.f32 %v998, %v936
  %v1000 = vadd.f32 %v999, %v937
  %v1001 = vadd.f32 %v1000, %v938
  %v1002 = vadd.f32 %v1001, %v939
  %v1003 = vadd.f32 %v1002, %v940
  %v1004 = vadd.f32 %v1003, %v941
  %v1005 = vadd.f32 %v1004, %v942
  %v1006 = vadd.f32 %v1005, %v943
  %v1007 = vadd.f32 %v1006, %v944
  %v1008 = vadd.f32 %v1007, %v945
  %v1009 = vadd.f32 %v1008, %v946
  %v1010 = vadd.f32 %v1009, %v947
  %v1011 = vadd.f32 %v1010, %v948
  %v1012 = vadd.f32 %v1011, %v949
  %v1013 = vadd.f32 %v1012, %v950
  %v1014 = vadd.f32 %v1013, %v951
  %v1015 = vadd.f32 %v1014, %v952
  %v1016 = vadd.f32 %v1015, %v953
  %v1017 = vadd.f32 %v1016, %v954
  %v1018 = vadd.f32 %v1017, %v955
  %v1019 = vadd.f32 %v1018, %v956
  %v1020 = vadd.f32 %v1019, %v957
  %v1021 = vadd.f32 %v1020, %v958
  %v1022 = vadd.f32 %v1021, %v959
  %v1023 = vadd.f32 %v1022, %v960
  %v1024 = vadd.f32 %v1023, %v961
  %v1025 = vrot.slane %v1024, 4
  %v1026 = vadd.f32 %v1024, %v1025
  %v1027 = vrot.slane %v1026, 2
  %v1028 = vadd.f32 %v1026, %v1027
  %v1029 = vrot.slane %v1028, 1
  %v1030 = vadd.f32 %v1028, %v1029
  %v1031 = vmul.f32 %v1030, 0.001953125
  %v1032 = vmul.f32 %v897, %v897
  %v1033 = vsub.f32 %v1031, %v1032
  %v1034 = vmax.f32 %v1033, 0.0
  %v1035 = vsub.f32 %v574, %v897
  %v1036 = vsub.f32 %v577, %v897
  %v1037 = vsub.f32 %v582, %v897
  %v1038 = vsub.f32 %v585, %v897
  %v1039 = vsub.f32 %v590, %v897
  %v1040 = vsub.f32 %v593, %v897
  %v1041 = vsub.f32 %v598, %v897
  %v1042 = vsub.f32 %v601, %v897
  %v1043 = vsub.f32 %v606, %v897
  %v1044 = vsub.f32 %v609, %v897
  %v1045 = vsub.f32 %v614, %v897
  %v1046 = vsub.f32 %v617, %v897
  %v1047 = vsub.f32 %v622, %v897
  %v1048 = vsub.f32 %v625, %v897
  %v1049 = vsub.f32 %v630, %v897
  %v1050 = vsub.f32 %v633, %v897
  %v1051 = vsub.f32 %v638, %v897
  %v1052 = vsub.f32 %v641, %v897
  %v1053 = vsub.f32 %v646, %v897
  %v1054 = vsub.f32 %v649, %v897
  %v1055 = vsub.f32 %v654, %v897
  %v1056 = vsub.f32 %v657, %v897
  %v1057 = vsub.f32 %v662, %v897
  %v1058 = vsub.f32 %v665, %v897
  %v1059 = vsub.f32 %v670, %v897
  %v1060 = vsub.f32 %v673, %v897
  %v1061 = vsub.f32 %v678, %v897
  %v1062 = vsub.f32 %v681, %v897
  %v1063 = vsub.f32 %v686, %v897
  %v1064 = vsub.f32 %v689, %v897
  %v1065 = vsub.f32 %v694, %v897
  %v1066 = vsub.f32 %v697, %v897
  %v1067 = vsub.f32 %v702, %v897
  %v1068 = vsub.f32 %v705, %v897
  %v1069 = vsub.f32 %v710, %v897
  %v1070 = vsub.f32 %v713, %v897
  %v1071 = vsub.f32 %v718, %v897
  %v1072 = vsub.f32 %v721, %v897
  %v1073 = vsub.f32 %v726, %v897
  %v1074 = vsub.f32 %v729, %v897
  %v1075 = vsub.f32 %v734, %v897
  %v1076 = vsub.f32 %v737, %v897
  %v1077 = vsub.f32 %v742, %v897
  %v1078 = vsub.f32 %v745, %v897
  %v1079 = vsub.f32 %v750, %v897
  %v1080 = vsub.f32 %v753, %v897
  %v1081 = vsub.f32 %v758, %v897
  %v1082 = vsub.f32 %v761, %v897
  %v1083 = vsub.f32 %v766, %v897
  %v1084 = vsub.f32 %v769, %v897
  %v1085 = vsub.f32 %v774, %v897
  %v1086 = vsub.f32 %v777, %v897
  %v1087 = vsub.f32 %v782, %v897
  %v1088 = vsub.f32 %v785, %v897
  %v1089 = vsub.f32 %v790, %v897
  %v1090 = vsub.f32 %v793, %v897
  %v1091 = vsub.f32 %v798, %v897
  %v1092 = vsub.f32 %v801, %v897
  %v1093 = vsub.f32 %v806, %v897
  %v1094 = vsub.f32 %v809, %v897
  %v1095 = vsub.f32 %v814, %v897
  %v1096 = vsub.f32 %v817, %v897
  %v1097 = vsub.f32 %v822, %v897
  %v1098 = vsub.f32 %v825, %v897
  %v1099 = vadd.f32 %v1034, 1e-05
  %v1100 = vrsqrt.pop %v1099
  %v1101 = vmul.f32 %v1035, %v1100
  %v1102 = vmul.f32 %v1036, %v1100
  %v1103 = vmul.f32 %v1037, %v1100
  %v1104 = vmul.f32 %v1038, %v1100
  %v1105 = vmul.f32 %v1039, %v1100
  %v1106 = vmul.f32 %v1040, %v1100
  %v1107 = vmul.f32 %v1041, %v1100
  %v1108 = vmul.f32 %v1042, %v1100
  %v1109 = vmul.f32 %v1043, %v1100
  %v1110 = vmul.f32 %v1044, %v1100
  %v1111 = vmul.f32 %v1045, %v1100
  %v1112 = vmul.f32 %v1046, %v1100
  %v1113 = vmul.f32 %v1047, %v1100
  %v1114 = vmul.f32 %v1048, %v1100
  %v1115 = vmul.f32 %v1049, %v1100
  %v1116 = vmul.f32 %v1050, %v1100
  %v1117 = vmul.f32 %v1051, %v1100
  %v1118 = vmul.f32 %v1052, %v1100
  %v1119 = vmul.f32 %v1053, %v1100
  %v1120 = vmul.f32 %v1054, %v1100
  %v1121 = vmul.f32 %v1055, %v1100
  %v1122 = vmul.f32 %v1056, %v1100
  %v1123 = vmul.f32 %v1057, %v1100
  %v1124 = vmul.f32 %v1058, %v1100
  %v1125 = vmul.f32 %v1059, %v1100
  %v1126 = vmul.f32 %v1060, %v1100
  %v1127 = vmul.f32 %v1061, %v1100
  %v1128 = vmul.f32 %v1062, %v1100
  %v1129 = vmul.f32 %v1063, %v1100
  %v1130 = vmul.f32 %v1064, %v1100
  %v1131 = vmul.f32 %v1065, %v1100
  %v1132 = vmul.f32 %v1066, %v1100
  %v1133 = vmul.f32 %v1067, %v1100
  %v1134 = vmul.f32 %v1068, %v1100
  %v1135 = vmul.f32 %v1069, %v1100
  %v1136 = vmul.f32 %v1070, %v1100
  %v1137 = vmul.f32 %v1071, %v1100
  %v1138 = vmul.f32 %v1072, %v1100
  %v1139 = vmul.f32 %v1073, %v1100
  %v1140 = vmul.f32 %v1074, %v1100
  %v1141 = vmul.f32 %v1075, %v1100
  %v1142 = vmul.f32 %v1076, %v1100
  %v1143 = vmul.f32 %v1077, %v1100
  %v1144 = vmul.f32 %v1078, %v1100
  %v1145 = vmul.f32 %v1079, %v1100
  %v1146 = vmul.f32 %v1080, %v1100
  %v1147 = vmul.f32 %v1081, %v1100
  %v1148 = vmul.f32 %v1082, %v1100
  %v1149 = vmul.f32 %v1083, %v1100
  %v1150 = vmul.f32 %v1084, %v1100
  %v1151 = vmul.f32 %v1085, %v1100
  %v1152 = vmul.f32 %v1086, %v1100
  %v1153 = vmul.f32 %v1087, %v1100
  %v1154 = vmul.f32 %v1088, %v1100
  %v1155 = vmul.f32 %v1089, %v1100
  %v1156 = vmul.f32 %v1090, %v1100
  %v1157 = vmul.f32 %v1091, %v1100
  %v1158 = vmul.f32 %v1092, %v1100
  %v1159 = vmul.f32 %v1093, %v1100
  %v1160 = vmul.f32 %v1094, %v1100
  %v1161 = vmul.f32 %v1095, %v1100
  %v1162 = vmul.f32 %v1096, %v1100
  %v1163 = vmul.f32 %v1097, %v1100
  %v1164 = vmul.f32 %v1098, %v1100
  %v1165 = vld [vmem:[%s2] sm:$0x1]
  %v1167 = vlaneseq
  %v1168 = vshrl.u32 %v1167, 7
  %v1169 = vsub.s32 0, %v1168
  %v1170 = vrot.slane %v1165, %v1169
  %v1172 = vmul.f32 %v1101, %v1170
  %v1173 = vmul.f32 %v1102, %v1170
  %v1174 = vmul.f32 %v1103, %v1170
  %v1175 = vmul.f32 %v1104, %v1170
  %v1176 = vmul.f32 %v1105, %v1170
  %v1177 = vmul.f32 %v1106, %v1170
  %v1178 = vmul.f32 %v1107, %v1170
  %v1179 = vmul.f32 %v1108, %v1170
  %v1180 = vmul.f32 %v1109, %v1170
  %v1181 = vmul.f32 %v1110, %v1170
  %v1182 = vmul.f32 %v1111, %v1170
  %v1183 = vmul.f32 %v1112, %v1170
  %v1184 = vmul.f32 %v1113, %v1170
  %v1185 = vmul.f32 %v1114, %v1170
  %v1186 = vmul.f32 %v1115, %v1170
  %v1187 = vmul.f32 %v1116, %v1170
  %v1188 = vmul.f32 %v1117, %v1170
  %v1189 = vmul.f32 %v1118, %v1170
  %v1190 = vmul.f32 %v1119, %v1170
  %v1191 = vmul.f32 %v1120, %v1170
  %v1192 = vmul.f32 %v1121, %v1170
  %v1193 = vmul.f32 %v1122, %v1170
  %v1194 = vmul.f32 %v1123, %v1170
  %v1195 = vmul.f32 %v1124, %v1170
  %v1196 = vmul.f32 %v1125, %v1170
  %v1197 = vmul.f32 %v1126, %v1170
  %v1198 = vmul.f32 %v1127, %v1170
  %v1199 = vmul.f32 %v1128, %v1170
  %v1200 = vmul.f32 %v1129, %v1170
  %v1201 = vmul.f32 %v1130, %v1170
  %v1202 = vmul.f32 %v1131, %v1170
  %v1203 = vmul.f32 %v1132, %v1170
  %v1204 = vmul.f32 %v1133, %v1170
  %v1205 = vmul.f32 %v1134, %v1170
  %v1206 = vmul.f32 %v1135, %v1170
  %v1207 = vmul.f32 %v1136, %v1170
  %v1208 = vmul.f32 %v1137, %v1170
  %v1209 = vmul.f32 %v1138, %v1170
  %v1210 = vmul.f32 %v1139, %v1170
  %v1211 = vmul.f32 %v1140, %v1170
  %v1212 = vmul.f32 %v1141, %v1170
  %v1213 = vmul.f32 %v1142, %v1170
  %v1214 = vmul.f32 %v1143, %v1170
  %v1215 = vmul.f32 %v1144, %v1170
  %v1216 = vmul.f32 %v1145, %v1170
  %v1217 = vmul.f32 %v1146, %v1170
  %v1218 = vmul.f32 %v1147, %v1170
  %v1219 = vmul.f32 %v1148, %v1170
  %v1220 = vmul.f32 %v1149, %v1170
  %v1221 = vmul.f32 %v1150, %v1170
  %v1222 = vmul.f32 %v1151, %v1170
  %v1223 = vmul.f32 %v1152, %v1170
  %v1224 = vmul.f32 %v1153, %v1170
  %v1225 = vmul.f32 %v1154, %v1170
  %v1226 = vmul.f32 %v1155, %v1170
  %v1227 = vmul.f32 %v1156, %v1170
  %v1228 = vmul.f32 %v1157, %v1170
  %v1229 = vmul.f32 %v1158, %v1170
  %v1230 = vmul.f32 %v1159, %v1170
  %v1231 = vmul.f32 %v1160, %v1170
  %v1232 = vmul.f32 %v1161, %v1170
  %v1233 = vmul.f32 %v1162, %v1170
  %v1234 = vmul.f32 %v1163, %v1170
  %v1235 = vmul.f32 %v1164, %v1170
  %v1236 = vld [vmem:[%s3] sm:$0x1]
  %v1238 = vlaneseq
  %v1239 = vshrl.u32 %v1238, 7
  %v1240 = vsub.s32 0, %v1239
  %v1241 = vrot.slane %v1236, %v1240
  %v1243 = vadd.f32 %v1172, %v1241
  %v1244 = vadd.f32 %v1173, %v1241
  %v1245 = vadd.f32 %v1174, %v1241
  %v1246 = vadd.f32 %v1175, %v1241
  %v1247 = vadd.f32 %v1176, %v1241
  %v1248 = vadd.f32 %v1177, %v1241
  %v1249 = vadd.f32 %v1178, %v1241
  %v1250 = vadd.f32 %v1179, %v1241
  %v1251 = vadd.f32 %v1180, %v1241
  %v1252 = vadd.f32 %v1181, %v1241
  %v1253 = vadd.f32 %v1182, %v1241
  %v1254 = vadd.f32 %v1183, %v1241
  %v1255 = vadd.f32 %v1184, %v1241
  %v1256 = vadd.f32 %v1185, %v1241
  %v1257 = vadd.f32 %v1186, %v1241
  %v1258 = vadd.f32 %v1187, %v1241
  %v1259 = vadd.f32 %v1188, %v1241
  %v1260 = vadd.f32 %v1189, %v1241
  %v1261 = vadd.f32 %v1190, %v1241
  %v1262 = vadd.f32 %v1191, %v1241
  %v1263 = vadd.f32 %v1192, %v1241
  %v1264 = vadd.f32 %v1193, %v1241
  %v1265 = vadd.f32 %v1194, %v1241
  %v1266 = vadd.f32 %v1195, %v1241
  %v1267 = vadd.f32 %v1196, %v1241
  %v1268 = vadd.f32 %v1197, %v1241
  %v1269 = vadd.f32 %v1198, %v1241
  %v1270 = vadd.f32 %v1199, %v1241
  %v1271 = vadd.f32 %v1200, %v1241
  %v1272 = vadd.f32 %v1201, %v1241
  %v1273 = vadd.f32 %v1202, %v1241
  %v1274 = vadd.f32 %v1203, %v1241
  %v1275 = vadd.f32 %v1204, %v1241
  %v1276 = vadd.f32 %v1205, %v1241
  %v1277 = vadd.f32 %v1206, %v1241
  %v1278 = vadd.f32 %v1207, %v1241
  %v1279 = vadd.f32 %v1208, %v1241
  %v1280 = vadd.f32 %v1209, %v1241
  %v1281 = vadd.f32 %v1210, %v1241
  %v1282 = vadd.f32 %v1211, %v1241
  %v1283 = vadd.f32 %v1212, %v1241
  %v1284 = vadd.f32 %v1213, %v1241
  %v1285 = vadd.f32 %v1214, %v1241
  %v1286 = vadd.f32 %v1215, %v1241
  %v1287 = vadd.f32 %v1216, %v1241
  %v1288 = vadd.f32 %v1217, %v1241
  %v1289 = vadd.f32 %v1218, %v1241
  %v1290 = vadd.f32 %v1219, %v1241
  %v1291 = vadd.f32 %v1220, %v1241
  %v1292 = vadd.f32 %v1221, %v1241
  %v1293 = vadd.f32 %v1222, %v1241
  %v1294 = vadd.f32 %v1223, %v1241
  %v1295 = vadd.f32 %v1224, %v1241
  %v1296 = vadd.f32 %v1225, %v1241
  %v1297 = vadd.f32 %v1226, %v1241
  %v1298 = vadd.f32 %v1227, %v1241
  %v1299 = vadd.f32 %v1228, %v1241
  %v1300 = vadd.f32 %v1229, %v1241
  %v1301 = vadd.f32 %v1230, %v1241
  %v1302 = vadd.f32 %v1231, %v1241
  %v1303 = vadd.f32 %v1232, %v1241
  %v1304 = vadd.f32 %v1233, %v1241
  %v1305 = vadd.f32 %v1234, %v1241
  %v1306 = vadd.f32 %v1235, %v1241
  %vm1307 = vcmp.gt.f32.partialorder %v1243, 0.0
  %vm1308 = vcmp.gt.f32.partialorder %v1244, 0.0
  %vm1309 = vcmp.gt.f32.partialorder %v1245, 0.0
  %vm1310 = vcmp.gt.f32.partialorder %v1246, 0.0
  %vm1311 = vcmp.gt.f32.partialorder %v1247, 0.0
  %vm1312 = vcmp.gt.f32.partialorder %v1248, 0.0
  %vm1313 = vcmp.gt.f32.partialorder %v1249, 0.0
  %vm1314 = vcmp.gt.f32.partialorder %v1250, 0.0
  %vm1315 = vcmp.gt.f32.partialorder %v1251, 0.0
  %vm1316 = vcmp.gt.f32.partialorder %v1252, 0.0
  %vm1317 = vcmp.gt.f32.partialorder %v1253, 0.0
  %vm1318 = vcmp.gt.f32.partialorder %v1254, 0.0
  %vm1319 = vcmp.gt.f32.partialorder %v1255, 0.0
  %vm1320 = vcmp.gt.f32.partialorder %v1256, 0.0
  %vm1321 = vcmp.gt.f32.partialorder %v1257, 0.0
  %vm1322 = vcmp.gt.f32.partialorder %v1258, 0.0
  %vm1323 = vcmp.gt.f32.partialorder %v1259, 0.0
  %vm1324 = vcmp.gt.f32.partialorder %v1260, 0.0
  %vm1325 = vcmp.gt.f32.partialorder %v1261, 0.0
  %vm1326 = vcmp.gt.f32.partialorder %v1262, 0.0
  %vm1327 = vcmp.gt.f32.partialorder %v1263, 0.0
  %vm1328 = vcmp.gt.f32.partialorder %v1264, 0.0
  %vm1329 = vcmp.gt.f32.partialorder %v1265, 0.0
  %vm1330 = vcmp.gt.f32.partialorder %v1266, 0.0
  %vm1331 = vcmp.gt.f32.partialorder %v1267, 0.0
  %vm1332 = vcmp.gt.f32.partialorder %v1268, 0.0
  %vm1333 = vcmp.gt.f32.partialorder %v1269, 0.0
  %vm1334 = vcmp.gt.f32.partialorder %v1270, 0.0
  %vm1335 = vcmp.gt.f32.partialorder %v1271, 0.0
  %vm1336 = vcmp.gt.f32.partialorder %v1272, 0.0
  %vm1337 = vcmp.gt.f32.partialorder %v1273, 0.0
  %vm1338 = vcmp.gt.f32.partialorder %v1274, 0.0
  %vm1339 = vcmp.gt.f32.partialorder %v1275, 0.0
  %vm1340 = vcmp.gt.f32.partialorder %v1276, 0.0
  %vm1341 = vcmp.gt.f32.partialorder %v1277, 0.0
  %vm1342 = vcmp.gt.f32.partialorder %v1278, 0.0
  %vm1343 = vcmp.gt.f32.partialorder %v1279, 0.0
  %vm1344 = vcmp.gt.f32.partialorder %v1280, 0.0
  %vm1345 = vcmp.gt.f32.partialorder %v1281, 0.0
  %vm1346 = vcmp.gt.f32.partialorder %v1282, 0.0
  %vm1347 = vcmp.gt.f32.partialorder %v1283, 0.0
  %vm1348 = vcmp.gt.f32.partialorder %v1284, 0.0
  %vm1349 = vcmp.gt.f32.partialorder %v1285, 0.0
  %vm1350 = vcmp.gt.f32.partialorder %v1286, 0.0
  %vm1351 = vcmp.gt.f32.partialorder %v1287, 0.0
  %vm1352 = vcmp.gt.f32.partialorder %v1288, 0.0
  %vm1353 = vcmp.gt.f32.partialorder %v1289, 0.0
  %vm1354 = vcmp.gt.f32.partialorder %v1290, 0.0
  %vm1355 = vcmp.gt.f32.partialorder %v1291, 0.0
  %vm1356 = vcmp.gt.f32.partialorder %v1292, 0.0
  %vm1357 = vcmp.gt.f32.partialorder %v1293, 0.0
  %vm1358 = vcmp.gt.f32.partialorder %v1294, 0.0
  %vm1359 = vcmp.gt.f32.partialorder %v1295, 0.0
  %vm1360 = vcmp.gt.f32.partialorder %v1296, 0.0
  %vm1361 = vcmp.gt.f32.partialorder %v1297, 0.0
  %vm1362 = vcmp.gt.f32.partialorder %v1298, 0.0
  %vm1363 = vcmp.gt.f32.partialorder %v1299, 0.0
  %vm1364 = vcmp.gt.f32.partialorder %v1300, 0.0
  %vm1365 = vcmp.gt.f32.partialorder %v1301, 0.0
  %vm1366 = vcmp.gt.f32.partialorder %v1302, 0.0
  %vm1367 = vcmp.gt.f32.partialorder %v1303, 0.0
  %vm1368 = vcmp.gt.f32.partialorder %v1304, 0.0
  %vm1369 = vcmp.gt.f32.partialorder %v1305, 0.0
  %vm1370 = vcmp.gt.f32.partialorder %v1306, 0.0
  %v1371 = vmul.f32 %v1243, 0.1
  %v1372 = vmul.f32 %v1244, 0.1
  %v1373 = vmul.f32 %v1245, 0.1
  %v1374 = vmul.f32 %v1246, 0.1
  %v1375 = vmul.f32 %v1247, 0.1
  %v1376 = vmul.f32 %v1248, 0.1
  %v1377 = vmul.f32 %v1249, 0.1
  %v1378 = vmul.f32 %v1250, 0.1
  %v1379 = vmul.f32 %v1251, 0.1
  %v1380 = vmul.f32 %v1252, 0.1
  %v1381 = vmul.f32 %v1253, 0.1
  %v1382 = vmul.f32 %v1254, 0.1
  %v1383 = vmul.f32 %v1255, 0.1
  %v1384 = vmul.f32 %v1256, 0.1
  %v1385 = vmul.f32 %v1257, 0.1
  %v1386 = vmul.f32 %v1258, 0.1
  %v1387 = vmul.f32 %v1259, 0.1
  %v1388 = vmul.f32 %v1260, 0.1
  %v1389 = vmul.f32 %v1261, 0.1
  %v1390 = vmul.f32 %v1262, 0.1
  %v1391 = vmul.f32 %v1263, 0.1
  %v1392 = vmul.f32 %v1264, 0.1
  %v1393 = vmul.f32 %v1265, 0.1
  %v1394 = vmul.f32 %v1266, 0.1
  %v1395 = vmul.f32 %v1267, 0.1
  %v1396 = vmul.f32 %v1268, 0.1
  %v1397 = vmul.f32 %v1269, 0.1
  %v1398 = vmul.f32 %v1270, 0.1
  %v1399 = vmul.f32 %v1271, 0.1
  %v1400 = vmul.f32 %v1272, 0.1
  %v1401 = vmul.f32 %v1273, 0.1
  %v1402 = vmul.f32 %v1274, 0.1
  %v1403 = vmul.f32 %v1275, 0.1
  %v1404 = vmul.f32 %v1276, 0.1
  %v1405 = vmul.f32 %v1277, 0.1
  %v1406 = vmul.f32 %v1278, 0.1
  %v1407 = vmul.f32 %v1279, 0.1
  %v1408 = vmul.f32 %v1280, 0.1
  %v1409 = vmul.f32 %v1281, 0.1
  %v1410 = vmul.f32 %v1282, 0.1
  %v1411 = vmul.f32 %v1283, 0.1
  %v1412 = vmul.f32 %v1284, 0.1
  %v1413 = vmul.f32 %v1285, 0.1
  %v1414 = vmul.f32 %v1286, 0.1
  %v1415 = vmul.f32 %v1287, 0.1
  %v1416 = vmul.f32 %v1288, 0.1
  %v1417 = vmul.f32 %v1289, 0.1
  %v1418 = vmul.f32 %v1290, 0.1
  %v1419 = vmul.f32 %v1291, 0.1
  %v1420 = vmul.f32 %v1292, 0.1
  %v1421 = vmul.f32 %v1293, 0.1
  %v1422 = vmul.f32 %v1294, 0.1
  %v1423 = vmul.f32 %v1295, 0.1
  %v1424 = vmul.f32 %v1296, 0.1
  %v1425 = vmul.f32 %v1297, 0.1
  %v1426 = vmul.f32 %v1298, 0.1
  %v1427 = vmul.f32 %v1299, 0.1
  %v1428 = vmul.f32 %v1300, 0.1
  %v1429 = vmul.f32 %v1301, 0.1
  %v1430 = vmul.f32 %v1302, 0.1
  %v1431 = vmul.f32 %v1303, 0.1
  %v1432 = vmul.f32 %v1304, 0.1
  %v1433 = vmul.f32 %v1305, 0.1
  %v1434 = vmul.f32 %v1306, 0.1
  %v1435 = vsel %vm1307, %v1243, %v1371
  %v1436 = vsel %vm1308, %v1244, %v1372
  %v1437 = vsel %vm1309, %v1245, %v1373
  %v1438 = vsel %vm1310, %v1246, %v1374
  %v1439 = vsel %vm1311, %v1247, %v1375
  %v1440 = vsel %vm1312, %v1248, %v1376
  %v1441 = vsel %vm1313, %v1249, %v1377
  %v1442 = vsel %vm1314, %v1250, %v1378
  %v1443 = vsel %vm1315, %v1251, %v1379
  %v1444 = vsel %vm1316, %v1252, %v1380
  %v1445 = vsel %vm1317, %v1253, %v1381
  %v1446 = vsel %vm1318, %v1254, %v1382
  %v1447 = vsel %vm1319, %v1255, %v1383
  %v1448 = vsel %vm1320, %v1256, %v1384
  %v1449 = vsel %vm1321, %v1257, %v1385
  %v1450 = vsel %vm1322, %v1258, %v1386
  %v1451 = vsel %vm1323, %v1259, %v1387
  %v1452 = vsel %vm1324, %v1260, %v1388
  %v1453 = vsel %vm1325, %v1261, %v1389
  %v1454 = vsel %vm1326, %v1262, %v1390
  %v1455 = vsel %vm1327, %v1263, %v1391
  %v1456 = vsel %vm1328, %v1264, %v1392
  %v1457 = vsel %vm1329, %v1265, %v1393
  %v1458 = vsel %vm1330, %v1266, %v1394
  %v1459 = vsel %vm1331, %v1267, %v1395
  %v1460 = vsel %vm1332, %v1268, %v1396
  %v1461 = vsel %vm1333, %v1269, %v1397
  %v1462 = vsel %vm1334, %v1270, %v1398
  %v1463 = vsel %vm1335, %v1271, %v1399
  %v1464 = vsel %vm1336, %v1272, %v1400
  %v1465 = vsel %vm1337, %v1273, %v1401
  %v1466 = vsel %vm1338, %v1274, %v1402
  %v1467 = vsel %vm1339, %v1275, %v1403
  %v1468 = vsel %vm1340, %v1276, %v1404
  %v1469 = vsel %vm1341, %v1277, %v1405
  %v1470 = vsel %vm1342, %v1278, %v1406
  %v1471 = vsel %vm1343, %v1279, %v1407
  %v1472 = vsel %vm1344, %v1280, %v1408
  %v1473 = vsel %vm1345, %v1281, %v1409
  %v1474 = vsel %vm1346, %v1282, %v1410
  %v1475 = vsel %vm1347, %v1283, %v1411
  %v1476 = vsel %vm1348, %v1284, %v1412
  %v1477 = vsel %vm1349, %v1285, %v1413
  %v1478 = vsel %vm1350, %v1286, %v1414
  %v1479 = vsel %vm1351, %v1287, %v1415
  %v1480 = vsel %vm1352, %v1288, %v1416
  %v1481 = vsel %vm1353, %v1289, %v1417
  %v1482 = vsel %vm1354, %v1290, %v1418
  %v1483 = vsel %vm1355, %v1291, %v1419
  %v1484 = vsel %vm1356, %v1292, %v1420
  %v1485 = vsel %vm1357, %v1293, %v1421
  %v1486 = vsel %vm1358, %v1294, %v1422
  %v1487 = vsel %vm1359, %v1295, %v1423
  %v1488 = vsel %vm1360, %v1296, %v1424
  %v1489 = vsel %vm1361, %v1297, %v1425
  %v1490 = vsel %vm1362, %v1298, %v1426
  %v1491 = vsel %vm1363, %v1299, %v1427
  %v1492 = vsel %vm1364, %v1300, %v1428
  %v1493 = vsel %vm1365, %v1301, %v1429
  %v1494 = vsel %vm1366, %v1302, %v1430
  %v1495 = vsel %vm1367, %v1303, %v1431
  %v1496 = vsel %vm1368, %v1304, %v1432
  %v1497 = vsel %vm1369, %v1305, %v1433
  %v1498 = vsel %vm1370, %v1306, %v1434
  %1499 = vst [vmem:[%s4] sm:$0xff] %v1435
  %1500 = vst [vmem:[%s4 + $0x8] sm:$0xff] %v1436
  %1501 = vst [vmem:[%s4 + $0x10] sm:$0xff] %v1437
  %1502 = vst [vmem:[%s4 + $0x18] sm:$0xff] %v1438
  %1503 = vst [vmem:[%s4 + $0x20] sm:$0xff] %v1439
  %1504 = vst [vmem:[%s4 + $0x28] sm:$0xff] %v1440
  %1505 = vst [vmem:[%s4 + $0x30] sm:$0xff] %v1441
  %1506 = vst [vmem:[%s4 + $0x38] sm:$0xff] %v1442
  %1507 = vst [vmem:[%s4 + $0x40] sm:$0xff] %v1443
  %1508 = vst [vmem:[%s4 + $0x48] sm:$0xff] %v1444
  %1509 = vst [vmem:[%s4 + $0x50] sm:$0xff] %v1445
  %1510 = vst [vmem:[%s4 + $0x58] sm:$0xff] %v1446
  %1511 = vst [vmem:[%s4 + $0x60] sm:$0xff] %v1447
  %1512 = vst [vmem:[%s4 + $0x68] sm:$0xff] %v1448
  %1513 = vst [vmem:[%s4 + $0x70] sm:$0xff] %v1449
  %1514 = vst [vmem:[%s4 + $0x78] sm:$0xff] %v1450
  %1515 = vst [vmem:[%s4 + $0x80] sm:$0xff] %v1451
  %1516 = vst [vmem:[%s4 + $0x88] sm:$0xff] %v1452
  %1517 = vst [vmem:[%s4 + $0x90] sm:$0xff] %v1453
  %1518 = vst [vmem:[%s4 + $0x98] sm:$0xff] %v1454
  %1519 = vst [vmem:[%s4 + $0xa0] sm:$0xff] %v1455
  %1520 = vst [vmem:[%s4 + $0xa8] sm:$0xff] %v1456
  %1521 = vst [vmem:[%s4 + $0xb0] sm:$0xff] %v1457
  %1522 = vst [vmem:[%s4 + $0xb8] sm:$0xff] %v1458
  %1523 = vst [vmem:[%s4 + $0xc0] sm:$0xff] %v1459
  %1524 = vst [vmem:[%s4 + $0xc8] sm:$0xff] %v1460
  %1525 = vst [vmem:[%s4 + $0xd0] sm:$0xff] %v1461
  %1526 = vst [vmem:[%s4 + $0xd8] sm:$0xff] %v1462
  %1527 = vst [vmem:[%s4 + $0xe0] sm:$0xff] %v1463
  %1528 = vst [vmem:[%s4 + $0xe8] sm:$0xff] %v1464
  %1529 = vst [vmem:[%s4 + $0xf0] sm:$0xff] %v1465
  %1530 = vst [vmem:[%s4 + $0xf8] sm:$0xff] %v1466
  %1531 = vst [vmem:[%s4 + $0x100] sm:$0xff] %v1467
  %1532 = vst [vmem:[%s4 + $0x108] sm:$0xff] %v1468
  %1533 = vst [vmem:[%s4 + $0x110] sm:$0xff] %v1469
  %1534 = vst [vmem:[%s4 + $0x118] sm:$0xff] %v1470
  %1535 = vst [vmem:[%s4 + $0x120] sm:$0xff] %v1471
  %1536 = vst [vmem:[%s4 + $0x128] sm:$0xff] %v1472
  %1537 = vst [vmem:[%s4 + $0x130] sm:$0xff] %v1473
  %1538 = vst [vmem:[%s4 + $0x138] sm:$0xff] %v1474
  %1539 = vst [vmem:[%s4 + $0x140] sm:$0xff] %v1475
  %1540 = vst [vmem:[%s4 + $0x148] sm:$0xff] %v1476
  %1541 = vst [vmem:[%s4 + $0x150] sm:$0xff] %v1477
  %1542 = vst [vmem:[%s4 + $0x158] sm:$0xff] %v1478
  %1543 = vst [vmem:[%s4 + $0x160] sm:$0xff] %v1479
  %1544 = vst [vmem:[%s4 + $0x168] sm:$0xff] %v1480
  %1545 = vst [vmem:[%s4 + $0x170] sm:$0xff] %v1481
  %1546 = vst [vmem:[%s4 + $0x178] sm:$0xff] %v1482
  %1547 = vst [vmem:[%s4 + $0x180] sm:$0xff] %v1483
  %1548 = vst [vmem:[%s4 + $0x188] sm:$0xff] %v1484
  %1549 = vst [vmem:[%s4 + $0x190] sm:$0xff] %v1485
  %1550 = vst [vmem:[%s4 + $0x198] sm:$0xff] %v1486
  %1551 = vst [vmem:[%s4 + $0x1a0] sm:$0xff] %v1487
  %1552 = vst [vmem:[%s4 + $0x1a8] sm:$0xff] %v1488
  %1553 = vst [vmem:[%s4 + $0x1b0] sm:$0xff] %v1489
  %1554 = vst [vmem:[%s4 + $0x1b8] sm:$0xff] %v1490
  %1555 = vst [vmem:[%s4 + $0x1c0] sm:$0xff] %v1491
  %1556 = vst [vmem:[%s4 + $0x1c8] sm:$0xff] %v1492
  %1557 = vst [vmem:[%s4 + $0x1d0] sm:$0xff] %v1493
  %1558 = vst [vmem:[%s4 + $0x1d8] sm:$0xff] %v1494
  %1559 = vst [vmem:[%s4 + $0x1e0] sm:$0xff] %v1495
  %1560 = vst [vmem:[%s4 + $0x1e8] sm:$0xff] %v1496
  %1561 = vst [vmem:[%s4 + $0x1f0] sm:$0xff] %v1497
  %1562 = vst [vmem:[%s4 + $0x1f8] sm:$0xff] %v1498
  // Predicated region
  $region18: #{_lambda_.13} parent=0 // pred_check
    _
  $region19: #{_lambda_.13} parent=0 // pred_check_branch
    %1564 = sbr.rel (0) target = $region21
  $region20: #{_lambda_.13} parent=0 // pred_region
    _
  $region21: #{_lambda_.13} parent=0 // pred_fallthru
    _
  // Predicated region
  $region22: #{_lambda_.13} parent=0 // pred_check
    _
  $region23: #{_lambda_.13} parent=0 // pred_check_branch
    %1566 = sbr.rel (0) target = $region25
  $region24: #{_lambda_.13} parent=0 // pred_region
    _
  $region25: #{_lambda_.13} parent=0 // pred_fallthru
    _

// kernel: _lambda_.14
$region0: #{_lambda_.14}
  #allocation0 [shape = 'u32[]', space=smem, size = 0x4, offset = 0x4, fixed_abs, tag = 'smem constant byte address 0x4 - core index']
  #allocation1 [shape = 'u32[144,128]{1,0:T(1,128)}', space=vmem, size = 0x12000, scoped, tag = 'internal scratch']
  %s0 = inlined_call_operand.vmem [shape: bf16[128,144], index: 0, kind: input, shape index: {}]
  %s1 = inlined_call_operand.vmem [shape: bf16[144,128], index: 1, kind: input, shape index: {}]
  %s2 = inlined_call_operand.vmem [shape: f32[1,128], index: 2, kind: input, shape index: {}]
  %s3 = inlined_call_operand.vmem [shape: f32[1,128], index: 3, kind: input, shape index: {}]
  %s4 = inlined_call_operand.vmem [shape: f32[128,128], index: 4, kind: output, shape index: {}]
  %s5 = sld [smem:[#allocation0]]
  $region26: #{_lambda_.14} parent=0
    _
  %s7 = ssub.s32 1, %s5
  %s8 = scalar_select 0, %s7, %s5
  // Predicated region
  $region2: #{_lambda_.14} parent=0 // pred_check
    _
  $region3: #{_lambda_.14} parent=0 // pred_check_branch
    %10 = sbr.rel (0) target = $region5
  $region4: #{_lambda_.14} parent=0 // pred_region
    _
  $region5: #{_lambda_.14} parent=0 // pred_fallthru
    _
  // Predicated region
  $region6: #{_lambda_.14} parent=0 // pred_check
    _
  $region7: #{_lambda_.14} parent=0 // pred_check_branch
    %12 = sbr.rel (0) target = $region9
  $region8: #{_lambda_.14} parent=0 // pred_region
    _
  $region9: #{_lambda_.14} parent=0 // pred_fallthru
    _
  // Predicated region
  $region10: #{_lambda_.14} parent=0 // pred_check
    _
  $region11: #{_lambda_.14} parent=0 // pred_check_branch
    %14 = sbr.rel (0) target = $region13
  $region12: #{_lambda_.14} parent=0 // pred_region
    _
  $region13: #{_lambda_.14} parent=0 // pred_fallthru
    _
  // Predicated region
  $region14: #{_lambda_.14} parent=0 // pred_check
    _
  $region15: #{_lambda_.14} parent=0 // pred_check_branch
    %16 = sbr.rel (0) target = $region17
  $region16: #{_lambda_.14} parent=0 // pred_region
    _
  $region17: #{_lambda_.14} parent=0 // pred_fallthru
    _
  %v18 = vld [vmem:[%s0] sm:$0xff]
  %v19 = vld [vmem:[%s0 + $0x8] sm:$0xff]
  %v20 = vld [vmem:[%s0 + $0x10] sm:$0xff]
  %v21 = vld [vmem:[%s0 + $0x18] sm:$0xff]
  %v22 = vld [vmem:[%s0 + $0x20] sm:$0xff]
  %v23 = vld [vmem:[%s0 + $0x28] sm:$0xff]
  %v24 = vld [vmem:[%s0 + $0x30] sm:$0xff]
  %v25 = vld [vmem:[%s0 + $0x38] sm:$0xff]
  %v26 = vld [vmem:[%s0 + $0x40] sm:$0xff]
  %v27 = vld [vmem:[%s0 + $0x48] sm:$0xff]
  %v28 = vld [vmem:[%s0 + $0x50] sm:$0xff]
  %v29 = vld [vmem:[%s0 + $0x58] sm:$0xff]
  %v30 = vld [vmem:[%s0 + $0x60] sm:$0xff]
  %v31 = vld [vmem:[%s0 + $0x68] sm:$0xff]
  %v32 = vld [vmem:[%s0 + $0x70] sm:$0xff]
  %v33 = vld [vmem:[%s0 + $0x78] sm:$0xff]
  %v34 = vld [vmem:[%s1] sm:$0xf]
  %v35 = vld [vmem:[%s1 + $0x4] sm:$0xf]
  %v36 = vld [vmem:[%s1 + $0x8] sm:$0xf]
  %v37 = vld [vmem:[%s1 + $0xc] sm:$0xf]
  %v38 = vld [vmem:[%s1 + $0x10] sm:$0xf]
  %v39 = vld [vmem:[%s1 + $0x14] sm:$0xf]
  %v40 = vld [vmem:[%s1 + $0x18] sm:$0xf]
  %v41 = vld [vmem:[%s1 + $0x1c] sm:$0xf]
  %v42 = vld [vmem:[%s1 + $0x20] sm:$0xf]
  %v43 = vld [vmem:[%s1 + $0x24] sm:$0xf]
  %v44 = vld [vmem:[%s1 + $0x28] sm:$0xf]
  %v45 = vld [vmem:[%s1 + $0x2c] sm:$0xf]
  %v46 = vld [vmem:[%s1 + $0x30] sm:$0xf]
  %v47 = vld [vmem:[%s1 + $0x34] sm:$0xf]
  %v48 = vld [vmem:[%s1 + $0x38] sm:$0xf]
  %v49 = vld [vmem:[%s1 + $0x3c] sm:$0xf]
  %v50 = vld [vmem:[%s1 + $0x40] sm:$0xf]
  %v51 = vld [vmem:[%s1 + $0x44] sm:$0xf]
  %v68 = vunpack.c.l.b16 %v18
  %v69 = vunpack.c.h.b16 %v18
  %v70 = vunpack.c.l.b16 %v19
  %v71 = vunpack.c.h.b16 %v19
  %v72 = vunpack.c.l.b16 %v20
  %v73 = vunpack.c.h.b16 %v20
  %v74 = vunpack.c.l.b16 %v21
  %v75 = vunpack.c.h.b16 %v21
  %v76 = vunpack.c.l.b16 %v22
  %v77 = vunpack.c.h.b16 %v22
  %v78 = vunpack.c.l.b16 %v23
  %v79 = vunpack.c.h.b16 %v23
  %v80 = vunpack.c.l.b16 %v24
  %v81 = vunpack.c.h.b16 %v24
  %v82 = vunpack.c.l.b16 %v25
  %v83 = vunpack.c.h.b16 %v25
  %v84 = vunpack.c.l.b16 %v26
  %v85 = vunpack.c.h.b16 %v26
  %v86 = vunpack.c.l.b16 %v27
  %v87 = vunpack.c.h.b16 %v27
  %v88 = vunpack.c.l.b16 %v28
  %v89 = vunpack.c.h.b16 %v28
  %v90 = vunpack.c.l.b16 %v29
  %v91 = vunpack.c.h.b16 %v29
  %v92 = vunpack.c.l.b16 %v30
  %v93 = vunpack.c.h.b16 %v30
  %v94 = vunpack.c.l.b16 %v31
  %v95 = vunpack.c.h.b16 %v31
  %v96 = vunpack.c.l.b16 %v32
  %v97 = vunpack.c.h.b16 %v32
  %v98 = vunpack.c.l.b16 %v33
  %v99 = vunpack.c.h.b16 %v33
  %v100 = vpack.c.b16 %v70, %v68
  %v101 = vpack.c.b16 %v71, %v69
  %v102 = vpack.c.b16 %v74, %v72
  %v103 = vpack.c.b16 %v75, %v73
  %v104 = vpack.c.b16 %v78, %v76
  %v105 = vpack.c.b16 %v79, %v77
  %v106 = vpack.c.b16 %v82, %v80
  %v107 = vpack.c.b16 %v83, %v81
  %v108 = vpack.c.b16 %v86, %v84
  %v109 = vpack.c.b16 %v87, %v85
  %v110 = vpack.c.b16 %v90, %v88
  %v111 = vpack.c.b16 %v91, %v89
  %v112 = vpack.c.b16 %v94, %v92
  %v113 = vpack.c.b16 %v95, %v93
  %v114 = vpack.c.b16 %v98, %v96
  %v115 = vpack.c.b16 %v99, %v97
  %v142 = vunpack.c.l.b16 %v34
  %v143 = vunpack.c.l.b16 %v35
  %v144 = vunpack.c.l.b16 %v36
  %v145 = vunpack.c.l.b16 %v37
  %v146 = vunpack.c.l.b16 %v38
  %v147 = vunpack.c.l.b16 %v39
  %v148 = vunpack.c.l.b16 %v40
  %v149 = vunpack.c.l.b16 %v41
  %v150 = vunpack.c.l.b16 %v42
  %v151 = vunpack.c.l.b16 %v43
  %v152 = vunpack.c.l.b16 %v44
  %v153 = vunpack.c.l.b16 %v45
  %v154 = vunpack.c.l.b16 %v46
  %v155 = vunpack.c.l.b16 %v47
  %v156 = vunpack.c.l.b16 %v48
  %v157 = vunpack.c.l.b16 %v49
  %v158 = vunpack.c.l.b16 %v50
  %v159 = vunpack.c.l.b16 %v51
  %v160 = vpack.c.b16 %v143, %v142
  %v161 = vpack.c.b16 %v145, %v144
  %v162 = vpack.c.b16 %v147, %v146
  %v163 = vpack.c.b16 %v149, %v148
  %v164 = vpack.c.b16 %v151, %v150
  %v165 = vpack.c.b16 %v153, %v152
  %v166 = vpack.c.b16 %v155, %v154
  %v167 = vpack.c.b16 %v157, %v156
  %v168 = vpack.c.b16 %v159, %v158
  %vm178 = vcmask 130048
  %v180 = vsel %vm178, %v101, 0
  %v183 = vsel %vm178, %v103, 0
  %v186 = vsel %vm178, %v105, 0
  %v189 = vsel %vm178, %v107, 0
  %v192 = vsel %vm178, %v109, 0
  %v195 = vsel %vm178, %v111, 0
  %v198 = vsel %vm178, %v113, 0
  %v201 = vsel %vm178, %v115, 0
  %203 = vmatprep.subr.bf16.mxu0 0
  %204 = vmatpush1.bf16.msra.mxu0 %v160
  %205 = vmatprep.subr.bf16.mxu0 0
  %206 = vmatpush1.bf16.msra.mxu0 %v161
  %207 = vmatprep.subr.bf16.mxu0 0
  %208 = vmatpush1.bf16.msra.mxu0 %v162
  %209 = vmatprep.subr.bf16.mxu0 0
  %210 = vmatpush1.bf16.msra.mxu0 %v163
  %211 = vmatprep.subr.bf16.mxu0 0
  %212 = vmatpush1.bf16.msra.mxu0 %v164
  %213 = vmatprep.subr.bf16.mxu0 0
  %214 = vmatpush1.bf16.msra.mxu0 %v165
  %215 = vmatprep.subr.bf16.mxu0 0
  %216 = vmatpush1.bf16.msra.mxu0 %v166
  %217 = vmatprep.subr.bf16.mxu0 0
  %218 = vmatpush1.bf16.msra.mxu0 %v167
  %219 = vmatprep.subr.bf16.mxu0 0
  %220 = vmatpush1.bf16.msra.mxu0 %v168
  %221 = vmatprep.subr.bf16.mxu0 0
  %222 = vmatpush1.bf16.msra.mxu0 0
  %223 = vmatprep.subr.bf16.mxu0 0
  %224 = vmatpush1.bf16.msra.mxu0 0
  %225 = vmatprep.subr.bf16.mxu0 0
  %226 = vmatpush1.bf16.msra.mxu0 0
  %227 = vmatprep.subr.bf16.mxu0 0
  %228 = vmatpush1.bf16.msra.mxu0 0
  %229 = vmatprep.subr.bf16.mxu0 0
  %230 = vmatpush1.bf16.msra.mxu0 0
  %231 = vmatprep.subr.bf16.mxu0 0
  %232 = vmatpush1.bf16.msra.mxu0 0
  %233 = vmatprep.subr.bf16.mxu0 0
  %234 = vmatpush1.bf16.msra.mxu0 0
  %235 = vmatprep.mubr.bf16.mxu0 %v180
  %236 = vmatmul.mubr.bf16.gmra.mrb[0].mxu0 %v100
  %v237 = vpop.f32.mrb[0].mxu0
  %v238 = vadd.f32 0.0, %v237
  %v239 = vpop.f32.mrb[0].mxu0
  %v240 = vpop.f32.mrb[0].mxu0
  %v241 = vadd.f32 0.0, %v240
  %v242 = vpop.f32.mrb[0].mxu0
  %243 = vmatprep.mubr.bf16.mxu0 %v183
  %244 = vmatmul.mubr.bf16.gmra.mrb[0].mxu0 %v102
  %v245 = vpop.f32.mrb[0].mxu0
  %v246 = vadd.f32 0.0, %v245
  %v247 = vpop.f32.mrb[0].mxu0
  %v248 = vpop.f32.mrb[0].mxu0
  %v249 = vadd.f32 0.0, %v248
  %v250 = vpop.f32.mrb[0].mxu0
  %251 = vmatprep.mubr.bf16.mxu0 %v186
  %252 = vmatmul.mubr.bf16.gmra.mrb[0].mxu0 %v104
  %v253 = vpop.f32.mrb[0].mxu0
  %v254 = vadd.f32 0.0, %v253
  %v255 = vpop.f32.mrb[0].mxu0
  %v256 = vpop.f32.mrb[0].mxu0
  %v257 = vadd.f32 0.0, %v256
  %v258 = vpop.f32.mrb[0].mxu0
  %259 = vmatprep.mubr.bf16.mxu0 %v189
  %260 = vmatmul.mubr.bf16.gmra.mrb[0].mxu0 %v106
  %v261 = vpop.f32.mrb[0].mxu0
  %v262 = vadd.f32 0.0, %v261
  %v263 = vpop.f32.mrb[0].mxu0
  %v264 = vpop.f32.mrb[0].mxu0
  %v265 = vadd.f32 0.0, %v264
  %v266 = vpop.f32.mrb[0].mxu0
  %267 = vmatprep.mubr.bf16.mxu0 %v192
  %268 = vmatmul.mubr.bf16.gmra.mrb[0].mxu0 %v108
  %v269 = vpop.f32.mrb[0].mxu0
  %v270 = vadd.f32 0.0, %v269
  %v271 = vpop.f32.mrb[0].mxu0
  %v272 = vpop.f32.mrb[0].mxu0
  %v273 = vadd.f32 0.0, %v272
  %v274 = vpop.f32.mrb[0].mxu0
  %275 = vmatprep.mubr.bf16.mxu0 %v195
  %276 = vmatmul.mubr.bf16.gmra.mrb[0].mxu0 %v110
  %v277 = vpop.f32.mrb[0].mxu0
  %v278 = vadd.f32 0.0, %v277
  %v279 = vpop.f32.mrb[0].mxu0
  %v280 = vpop.f32.mrb[0].mxu0
  %v281 = vadd.f32 0.0, %v280
  %v282 = vpop.f32.mrb[0].mxu0
  %283 = vmatprep.mubr.bf16.mxu0 %v198
  %284 = vmatmul.mubr.bf16.gmra.mrb[0].mxu0 %v112
  %v285 = vpop.f32.mrb[0].mxu0
  %v286 = vadd.f32 0.0, %v285
  %v287 = vpop.f32.mrb[0].mxu0
  %v288 = vpop.f32.mrb[0].mxu0
  %v289 = vadd.f32 0.0, %v288
  %v290 = vpop.f32.mrb[0].mxu0
  %291 = vmatprep.mubr.bf16.mxu0 %v201
  %292 = vmatmul.mubr.bf16.gmra.mrb[0].mxu0 %v114
  %v293 = vpop.f32.mrb[0].mxu0
  %v294 = vadd.f32 0.0, %v293
  %v295 = vpop.f32.mrb[0].mxu0
  %v296 = vpop.f32.mrb[0].mxu0
  %v297 = vadd.f32 0.0, %v296
  %v298 = vpop.f32.mrb[0].mxu0
  %299 = vdwg.mxu0
  %v300 = vadd.f32 %v238, %v241
  %v301 = vadd.f32 %v300, %v246
  %v302 = vadd.f32 %v301, %v249
  %v303 = vadd.f32 %v302, %v254
  %v304 = vadd.f32 %v303, %v257
  %v305 = vadd.f32 %v304, %v262
  %v306 = vadd.f32 %v305, %v265
  %v307 = vadd.f32 %v306, %v270
  %v308 = vadd.f32 %v307, %v273
  %v309 = vadd.f32 %v308, %v278
  %v310 = vadd.f32 %v309, %v281
  %v311 = vadd.f32 %v310, %v286
  %v312 = vadd.f32 %v311, %v289
  %v313 = vadd.f32 %v312, %v294
  %v314 = vadd.f32 %v313, %v297
  %v315 = vrot.slane %v314, 4
  %v316 = vadd.f32 %v314, %v315
  %v317 = vrot.slane %v316, 2
  %v318 = vadd.f32 %v316, %v317
  %v319 = vrot.slane %v318, 1
  %v320 = vadd.f32 %v318, %v319
  %v321 = vmul.f32 %v320, 0.0078125
  %v322 = vmul.f32 %v238, %v238
  %v323 = vmul.f32 %v241, %v241
  %v324 = vmul.f32 %v246, %v246
  %v325 = vmul.f32 %v249, %v249
  %v326 = vmul.f32 %v254, %v254
  %v327 = vmul.f32 %v257, %v257
  %v328 = vmul.f32 %v262, %v262
  %v329 = vmul.f32 %v265, %v265
  %v330 = vmul.f32 %v270, %v270
  %v331 = vmul.f32 %v273, %v273
  %v332 = vmul.f32 %v278, %v278
  %v333 = vmul.f32 %v281, %v281
  %v334 = vmul.f32 %v286, %v286
  %v335 = vmul.f32 %v289, %v289
  %v336 = vmul.f32 %v294, %v294
  %v337 = vmul.f32 %v297, %v297
  %v338 = vadd.f32 %v322, %v323
  %v339 = vadd.f32 %v338, %v324
  %v340 = vadd.f32 %v339, %v325
  %v341 = vadd.f32 %v340, %v326
  %v342 = vadd.f32 %v341, %v327
  %v343 = vadd.f32 %v342, %v328
  %v344 = vadd.f32 %v343, %v329
  %v345 = vadd.f32 %v344, %v330
  %v346 = vadd.f32 %v345, %v331
  %v347 = vadd.f32 %v346, %v332
  %v348 = vadd.f32 %v347, %v333
  %v349 = vadd.f32 %v348, %v334
  %v350 = vadd.f32 %v349, %v335
  %v351 = vadd.f32 %v350, %v336
  %v352 = vadd.f32 %v351, %v337
  %v353 = vrot.slane %v352, 4
  %v354 = vadd.f32 %v352, %v353
  %v355 = vrot.slane %v354, 2
  %v356 = vadd.f32 %v354, %v355
  %v357 = vrot.slane %v356, 1
  %v358 = vadd.f32 %v356, %v357
  %v359 = vmul.f32 %v358, 0.0078125
  %v360 = vmul.f32 %v321, %v321
  %v361 = vsub.f32 %v359, %v360
  %v362 = vmax.f32 %v361, 0.0
  %v363 = vsub.f32 %v238, %v321
  %v364 = vsub.f32 %v241, %v321
  %v365 = vsub.f32 %v246, %v321
  %v366 = vsub.f32 %v249, %v321
  %v367 = vsub.f32 %v254, %v321
  %v368 = vsub.f32 %v257, %v321
  %v369 = vsub.f32 %v262, %v321
  %v370 = vsub.f32 %v265, %v321
  %v371 = vsub.f32 %v270, %v321
  %v372 = vsub.f32 %v273, %v321
  %v373 = vsub.f32 %v278, %v321
  %v374 = vsub.f32 %v281, %v321
  %v375 = vsub.f32 %v286, %v321
  %v376 = vsub.f32 %v289, %v321
  %v377 = vsub.f32 %v294, %v321
  %v378 = vsub.f32 %v297, %v321
  %v379 = vadd.f32 %v362, 1e-05
  %v380 = vrsqrt.pop %v379
  %v381 = vmul.f32 %v363, %v380
  %v382 = vmul.f32 %v364, %v380
  %v383 = vmul.f32 %v365, %v380
  %v384 = vmul.f32 %v366, %v380
  %v385 = vmul.f32 %v367, %v380
  %v386 = vmul.f32 %v368, %v380
  %v387 = vmul.f32 %v369, %v380
  %v388 = vmul.f32 %v370, %v380
  %v389 = vmul.f32 %v371, %v380
  %v390 = vmul.f32 %v372, %v380
  %v391 = vmul.f32 %v373, %v380
  %v392 = vmul.f32 %v374, %v380
  %v393 = vmul.f32 %v375, %v380
  %v394 = vmul.f32 %v376, %v380
  %v395 = vmul.f32 %v377, %v380
  %v396 = vmul.f32 %v378, %v380
  %v397 = vld [vmem:[%s2] sm:$0x1]
  %v399 = vlaneseq
  %v400 = vshrl.u32 %v399, 7
  %v401 = vsub.s32 0, %v400
  %v402 = vrot.slane %v397, %v401
  %v404 = vmul.f32 %v381, %v402
  %v405 = vmul.f32 %v382, %v402
  %v406 = vmul.f32 %v383, %v402
  %v407 = vmul.f32 %v384, %v402
  %v408 = vmul.f32 %v385, %v402
  %v409 = vmul.f32 %v386, %v402
  %v410 = vmul.f32 %v387, %v402
  %v411 = vmul.f32 %v388, %v402
  %v412 = vmul.f32 %v389, %v402
  %v413 = vmul.f32 %v390, %v402
  %v414 = vmul.f32 %v391, %v402
  %v415 = vmul.f32 %v392, %v402
  %v416 = vmul.f32 %v393, %v402
  %v417 = vmul.f32 %v394, %v402
  %v418 = vmul.f32 %v395, %v402
  %v419 = vmul.f32 %v396, %v402
  %v420 = vld [vmem:[%s3] sm:$0x1]
  %v422 = vlaneseq
  %v423 = vshrl.u32 %v422, 7
  %v424 = vsub.s32 0, %v423
  %v425 = vrot.slane %v420, %v424
  %v427 = vadd.f32 %v404, %v425
  %v428 = vadd.f32 %v405, %v425
  %v429 = vadd.f32 %v406, %v425
  %v430 = vadd.f32 %v407, %v425
  %v431 = vadd.f32 %v408, %v425
  %v432 = vadd.f32 %v409, %v425
  %v433 = vadd.f32 %v410, %v425
  %v434 = vadd.f32 %v411, %v425
  %v435 = vadd.f32 %v412, %v425
  %v436 = vadd.f32 %v413, %v425
  %v437 = vadd.f32 %v414, %v425
  %v438 = vadd.f32 %v415, %v425
  %v439 = vadd.f32 %v416, %v425
  %v440 = vadd.f32 %v417, %v425
  %v441 = vadd.f32 %v418, %v425
  %v442 = vadd.f32 %v419, %v425
  %vm443 = vcmp.gt.f32.partialorder %v427, 0.0
  %vm444 = vcmp.gt.f32.partialorder %v428, 0.0
  %vm445 = vcmp.gt.f32.partialorder %v429, 0.0
  %vm446 = vcmp.gt.f32.partialorder %v430, 0.0
  %vm447 = vcmp.gt.f32.partialorder %v431, 0.0
  %vm448 = vcmp.gt.f32.partialorder %v432, 0.0
  %vm449 = vcmp.gt.f32.partialorder %v433, 0.0
  %vm450 = vcmp.gt.f32.partialorder %v434, 0.0
  %vm451 = vcmp.gt.f32.partialorder %v435, 0.0
  %vm452 = vcmp.gt.f32.partialorder %v436, 0.0
  %vm453 = vcmp.gt.f32.partialorder %v437, 0.0
  %vm454 = vcmp.gt.f32.partialorder %v438, 0.0
  %vm455 = vcmp.gt.f32.partialorder %v439, 0.0
  %vm456 = vcmp.gt.f32.partialorder %v440, 0.0
  %vm457 = vcmp.gt.f32.partialorder %v441, 0.0
  %vm458 = vcmp.gt.f32.partialorder %v442, 0.0
  %v459 = vmul.f32 %v427, 0.1
  %v460 = vmul.f32 %v428, 0.1
  %v461 = vmul.f32 %v429, 0.1
  %v462 = vmul.f32 %v430, 0.1
  %v463 = vmul.f32 %v431, 0.1
  %v464 = vmul.f32 %v432, 0.1
  %v465 = vmul.f32 %v433, 0.1
  %v466 = vmul.f32 %v434, 0.1
  %v467 = vmul.f32 %v435, 0.1
  %v468 = vmul.f32 %v436, 0.1
  %v469 = vmul.f32 %v437, 0.1
  %v470 = vmul.f32 %v438, 0.1
  %v471 = vmul.f32 %v439, 0.1
  %v472 = vmul.f32 %v440, 0.1
  %v473 = vmul.f32 %v441, 0.1
  %v474 = vmul.f32 %v442, 0.1
  %v475 = vsel %vm443, %v427, %v459
  %v476 = vsel %vm444, %v428, %v460
  %v477 = vsel %vm445, %v429, %v461
  %v478 = vsel %vm446, %v430, %v462
  %v479 = vsel %vm447, %v431, %v463
  %v480 = vsel %vm448, %v432, %v464
  %v481 = vsel %vm449, %v433, %v465
  %v482 = vsel %vm450, %v434, %v466
  %v483 = vsel %vm451, %v435, %v467
  %v484 = vsel %vm452, %v436, %v468
  %v485 = vsel %vm453, %v437, %v469
  %v486 = vsel %vm454, %v438, %v470
  %v487 = vsel %vm455, %v439, %v471
  %v488 = vsel %vm456, %v440, %v472
  %v489 = vsel %vm457, %v441, %v473
  %v490 = vsel %vm458, %v442, %v474
  %491 = vst [vmem:[%s4] sm:$0xff] %v475
  %492 = vst [vmem:[%s4 + $0x8] sm:$0xff] %v476
  %493 = vst [vmem:[%s4 + $0x10] sm:$0xff] %v477
  %494 = vst [vmem:[%s4 + $0x18] sm:$0xff] %v478
  %495 = vst [vmem:[%s4 + $0x20] sm:$0xff] %v479
  %496 = vst [vmem:[%s4 + $0x28] sm:$0xff] %v480
  %497 = vst [vmem:[%s4 + $0x30] sm:$0xff] %v481
  %498 = vst [vmem:[%s4 + $0x38] sm:$0xff] %v482
  %499 = vst [vmem:[%s4 + $0x40] sm:$0xff] %v483
  %500 = vst [vmem:[%s4 + $0x48] sm:$0xff] %v484
  %501 = vst [vmem:[%s4 + $0x50] sm:$0xff] %v485
  %502 = vst [vmem:[%s4 + $0x58] sm:$0xff] %v486
  %503 = vst [vmem:[%s4 + $0x60] sm:$0xff] %v487
  %504 = vst [vmem:[%s4 + $0x68] sm:$0xff] %v488
  %505 = vst [vmem:[%s4 + $0x70] sm:$0xff] %v489
  %506 = vst [vmem:[%s4 + $0x78] sm:$0xff] %v490
  // Predicated region
  $region18: #{_lambda_.14} parent=0 // pred_check
    _
  $region19: #{_lambda_.14} parent=0 // pred_check_branch
    %508 = sbr.rel (0) target = $region21
  $region20: #{_lambda_.14} parent=0 // pred_region
    _
  $region21: #{_lambda_.14} parent=0 // pred_fallthru
    _
  // Predicated region
  $region22: #{_lambda_.14} parent=0 // pred_check
    _
  $region23: #{_lambda_.14} parent=0 // pred_check_branch
    %510 = sbr.rel (0) target = $region25
  $region24: #{_lambda_.14} parent=0 // pred_region
    _
  $region25: #{_lambda_.14} parent=0 // pred_fallthru
    _

// kernel: _lambda_.17
$region0: #{_lambda_.17}
  #allocation0 [shape = 'u32[]', space=smem, size = 0x4, offset = 0x4, fixed_abs, tag = 'smem constant byte address 0x4 - core index']
  #allocation1 [shape = 'u32[144,128]{1,0:T(1,128)}', space=vmem, size = 0x12000, scoped, tag = 'internal scratch']
  %s0 = inlined_call_operand.vmem [shape: bf16[128,128], index: 0, kind: input, shape index: {}]
  %s1 = inlined_call_operand.vmem [shape: bf16[128,128], index: 1, kind: input, shape index: {}]
  %s2 = inlined_call_operand.vmem [shape: f32[1,128], index: 2, kind: input, shape index: {}]
  %s3 = inlined_call_operand.vmem [shape: f32[1,128], index: 3, kind: input, shape index: {}]
  %s4 = inlined_call_operand.vmem [shape: f32[128,128], index: 4, kind: output, shape index: {}]
  %s5 = sld [smem:[#allocation0]]
  $region26: #{_lambda_.17} parent=0
    _
  %s7 = ssub.s32 1, %s5
  %s8 = scalar_select 0, %s7, %s5
  // Predicated region
  $region2: #{_lambda_.17} parent=0 // pred_check
    _
  $region3: #{_lambda_.17} parent=0 // pred_check_branch
    %10 = sbr.rel (0) target = $region5
  $region4: #{_lambda_.17} parent=0 // pred_region
    _
  $region5: #{_lambda_.17} parent=0 // pred_fallthru
    _
  // Predicated region
  $region6: #{_lambda_.17} parent=0 // pred_check
    _
  $region7: #{_lambda_.17} parent=0 // pred_check_branch
    %12 = sbr.rel (0) target = $region9
  $region8: #{_lambda_.17} parent=0 // pred_region
    _
  $region9: #{_lambda_.17} parent=0 // pred_fallthru
    _
  // Predicated region
  $region10: #{_lambda_.17} parent=0 // pred_check
    _
  $region11: #{_lambda_.17} parent=0 // pred_check_branch
    %14 = sbr.rel (0) target = $region13
  $region12: #{_lambda_.17} parent=0 // pred_region
    _
  $region13: #{_lambda_.17} parent=0 // pred_fallthru
    _
  // Predicated region
  $region14: #{_lambda_.17} parent=0 // pred_check
    _
  $region15: #{_lambda_.17} parent=0 // pred_check_branch
    %16 = sbr.rel (0) target = $region17
  $region16: #{_lambda_.17} parent=0 // pred_region
    _
  $region17: #{_lambda_.17} parent=0 // pred_fallthru
    _
  %v18 = vld [vmem:[%s0] sm:$0xf]
  %v19 = vld [vmem:[%s0 + $0x4] sm:$0xf]
  %v20 = vld [vmem:[%s0 + $0x8] sm:$0xf]
  %v21 = vld [vmem:[%s0 + $0xc] sm:$0xf]
  %v22 = vld [vmem:[%s0 + $0x10] sm:$0xf]
  %v23 = vld [vmem:[%s0 + $0x14] sm:$0xf]
  %v24 = vld [vmem:[%s0 + $0x18] sm:$0xf]
  %v25 = vld [vmem:[%s0 + $0x1c] sm:$0xf]
  %v26 = vld [vmem:[%s0 + $0x20] sm:$0xf]
  %v27 = vld [vmem:[%s0 + $0x24] sm:$0xf]
  %v28 = vld [vmem:[%s0 + $0x28] sm:$0xf]
  %v29 = vld [vmem:[%s0 + $0x2c] sm:$0xf]
  %v30 = vld [vmem:[%s0 + $0x30] sm:$0xf]
  %v31 = vld [vmem:[%s0 + $0x34] sm:$0xf]
  %v32 = vld [vmem:[%s0 + $0x38] sm:$0xf]
  %v33 = vld [vmem:[%s0 + $0x3c] sm:$0xf]
  %v34 = vld [vmem:[%s1] sm:$0xf]
  %v35 = vld [vmem:[%s1 + $0x4] sm:$0xf]
  %v36 = vld [vmem:[%s1 + $0x8] sm:$0xf]
  %v37 = vld [vmem:[%s1 + $0xc] sm:$0xf]
  %v38 = vld [vmem:[%s1 + $0x10] sm:$0xf]
  %v39 = vld [vmem:[%s1 + $0x14] sm:$0xf]
  %v40 = vld [vmem:[%s1 + $0x18] sm:$0xf]
  %v41 = vld [vmem:[%s1 + $0x1c] sm:$0xf]
  %v42 = vld [vmem:[%s1 + $0x20] sm:$0xf]
  %v43 = vld [vmem:[%s1 + $0x24] sm:$0xf]
  %v44 = vld [vmem:[%s1 + $0x28] sm:$0xf]
  %v45 = vld [vmem:[%s1 + $0x2c] sm:$0xf]
  %v46 = vld [vmem:[%s1 + $0x30] sm:$0xf]
  %v47 = vld [vmem:[%s1 + $0x34] sm:$0xf]
  %v48 = vld [vmem:[%s1 + $0x38] sm:$0xf]
  %v49 = vld [vmem:[%s1 + $0x3c] sm:$0xf]
  %v66 = vunpack.c.l.b16 %v18
  %v67 = vunpack.c.l.b16 %v19
  %v68 = vunpack.c.l.b16 %v20
  %v69 = vunpack.c.l.b16 %v21
  %v70 = vunpack.c.l.b16 %v22
  %v71 = vunpack.c.l.b16 %v23
  %v72 = vunpack.c.l.b16 %v24
  %v73 = vunpack.c.l.b16 %v25
  %v74 = vunpack.c.l.b16 %v26
  %v75 = vunpack.c.l.b16 %v27
  %v76 = vunpack.c.l.b16 %v28
  %v77 = vunpack.c.l.b16 %v29
  %v78 = vunpack.c.l.b16 %v30
  %v79 = vunpack.c.l.b16 %v31
  %v80 = vunpack.c.l.b16 %v32
  %v81 = vunpack.c.l.b16 %v33
  %v82 = vpack.c.b16 %v67, %v66
  %v83 = vpack.c.b16 %v69, %v68
  %v84 = vpack.c.b16 %v71, %v70
  %v85 = vpack.c.b16 %v73, %v72
  %v86 = vpack.c.b16 %v75, %v74
  %v87 = vpack.c.b16 %v77, %v76
  %v88 = vpack.c.b16 %v79, %v78
  %v89 = vpack.c.b16 %v81, %v80
  %v114 = vunpack.c.l.b16 %v34
  %v115 = vunpack.c.l.b16 %v35
  %v116 = vunpack.c.l.b16 %v36
  %v117 = vunpack.c.l.b16 %v37
  %v118 = vunpack.c.l.b16 %v38
  %v119 = vunpack.c.l.b16 %v39
  %v120 = vunpack.c.l.b16 %v40
  %v121 = vunpack.c.l.b16 %v41
  %v122 = vunpack.c.l.b16 %v42
  %v123 = vunpack.c.l.b16 %v43
  %v124 = vunpack.c.l.b16 %v44
  %v125 = vunpack.c.l.b16 %v45
  %v126 = vunpack.c.l.b16 %v46
  %v127 = vunpack.c.l.b16 %v47
  %v128 = vunpack.c.l.b16 %v48
  %v129 = vunpack.c.l.b16 %v49
  %v130 = vpack.c.b16 %v115, %v114
  %v131 = vpack.c.b16 %v117, %v116
  %v132 = vpack.c.b16 %v119, %v118
  %v133 = vpack.c.b16 %v121, %v120
  %v134 = vpack.c.b16 %v123, %v122
  %v135 = vpack.c.b16 %v125, %v124
  %v136 = vpack.c.b16 %v127, %v126
  %v137 = vpack.c.b16 %v129, %v128
  %146 = vmatprep.subr.bf16.mxu0 0
  %147 = vmatpush1.bf16.msra.mxu0 %v130
  %148 = vmatprep.subr.bf16.mxu0 0
  %149 = vmatpush1.bf16.msra.mxu0 %v131
  %150 = vmatprep.subr.bf16.mxu0 0
  %151 = vmatpush1.bf16.msra.mxu0 %v132
  %152 = vmatprep.subr.bf16.mxu0 0
  %153 = vmatpush1.bf16.msra.mxu0 %v133
  %154 = vmatprep.subr.bf16.mxu0 0
  %155 = vmatpush1.bf16.msra.mxu0 %v134
  %156 = vmatprep.subr.bf16.mxu0 0
  %157 = vmatpush1.bf16.msra.mxu0 %v135
  %158 = vmatprep.subr.bf16.mxu0 0
  %159 = vmatpush1.bf16.msra.mxu0 %v136
  %160 = vmatprep.subr.bf16.mxu0 0
  %161 = vmatpush1.bf16.msra.mxu0 %v137
  %162 = vmatprep.subr.bf16.mxu0 0
  %163 = vmatpush1.bf16.msra.mxu0 0
  %164 = vmatprep.subr.bf16.mxu0 0
  %165 = vmatpush1.bf16.msra.mxu0 0
  %166 = vmatprep.subr.bf16.mxu0 0
  %167 = vmatpush1.bf16.msra.mxu0 0
  %168 = vmatprep.subr.bf16.mxu0 0
  %169 = vmatpush1.bf16.msra.mxu0 0
  %170 = vmatprep.subr.bf16.mxu0 0
  %171 = vmatpush1.bf16.msra.mxu0 0
  %172 = vmatprep.subr.bf16.mxu0 0
  %173 = vmatpush1.bf16.msra.mxu0 0
  %174 = vmatprep.subr.bf16.mxu0 0
  %175 = vmatpush1.bf16.msra.mxu0 0
  %176 = vmatprep.subr.bf16.mxu0 0
  %177 = vmatpush1.bf16.msra.mxu0 0
  %178 = vmatprep.mubr.bf16.mxu0 0
  %179 = vmatmul.mubr.bf16.gmra.mrb[0].mxu0 %v82
  %v180 = vpop.f32.mrb[0].mxu0
  %v181 = vadd.f32 0.0, %v180
  %v182 = vpop.f32.mrb[0].mxu0
  %v183 = vpop.f32.mrb[0].mxu0
  %v184 = vadd.f32 0.0, %v183
  %v185 = vpop.f32.mrb[0].mxu0
  %186 = vmatprep.mubr.bf16.mxu0 0
  %187 = vmatmul.mubr.bf16.gmra.mrb[0].mxu0 %v83
  %v188 = vpop.f32.mrb[0].mxu0
  %v189 = vadd.f32 0.0, %v188
  %v190 = vpop.f32.mrb[0].mxu0
  %v191 = vpop.f32.mrb[0].mxu0
  %v192 = vadd.f32 0.0, %v191
  %v193 = vpop.f32.mrb[0].mxu0
  %194 = vmatprep.mubr.bf16.mxu0 0
  %195 = vmatmul.mubr.bf16.gmra.mrb[0].mxu0 %v84
  %v196 = vpop.f32.mrb[0].mxu0
  %v197 = vadd.f32 0.0, %v196
  %v198 = vpop.f32.mrb[0].mxu0
  %v199 = vpop.f32.mrb[0].mxu0
  %v200 = vadd.f32 0.0, %v199
  %v201 = vpop.f32.mrb[0].mxu0
  %202 = vmatprep.mubr.bf16.mxu0 0
  %203 = vmatmul.mubr.bf16.gmra.mrb[0].mxu0 %v85
  %v204 = vpop.f32.mrb[0].mxu0
  %v205 = vadd.f32 0.0, %v204
  %v206 = vpop.f32.mrb[0].mxu0
  %v207 = vpop.f32.mrb[0].mxu0
  %v208 = vadd.f32 0.0, %v207
  %v209 = vpop.f32.mrb[0].mxu0
  %210 = vmatprep.mubr.bf16.mxu0 0
  %211 = vmatmul.mubr.bf16.gmra.mrb[0].mxu0 %v86
  %v212 = vpop.f32.mrb[0].mxu0
  %v213 = vadd.f32 0.0, %v212
  %v214 = vpop.f32.mrb[0].mxu0
  %v215 = vpop.f32.mrb[0].mxu0
  %v216 = vadd.f32 0.0, %v215
  %v217 = vpop.f32.mrb[0].mxu0
  %218 = vmatprep.mubr.bf16.mxu0 0
  %219 = vmatmul.mubr.bf16.gmra.mrb[0].mxu0 %v87
  %v220 = vpop.f32.mrb[0].mxu0
  %v221 = vadd.f32 0.0, %v220
  %v222 = vpop.f32.mrb[0].mxu0
  %v223 = vpop.f32.mrb[0].mxu0
  %v224 = vadd.f32 0.0, %v223
  %v225 = vpop.f32.mrb[0].mxu0
  %226 = vmatprep.mubr.bf16.mxu0 0
  %227 = vmatmul.mubr.bf16.gmra.mrb[0].mxu0 %v88
  %v228 = vpop.f32.mrb[0].mxu0
  %v229 = vadd.f32 0.0, %v228
  %v230 = vpop.f32.mrb[0].mxu0
  %v231 = vpop.f32.mrb[0].mxu0
  %v232 = vadd.f32 0.0, %v231
  %v233 = vpop.f32.mrb[0].mxu0
  %234 = vmatprep.mubr.bf16.mxu0 0
  %235 = vmatmul.mubr.bf16.gmra.mrb[0].mxu0 %v89
  %v236 = vpop.f32.mrb[0].mxu0
  %v237 = vadd.f32 0.0, %v236
  %v238 = vpop.f32.mrb[0].mxu0
  %v239 = vpop.f32.mrb[0].mxu0
  %v240 = vadd.f32 0.0, %v239
  %v241 = vpop.f32.mrb[0].mxu0
  %242 = vdwg.mxu0
  %v243 = vadd.f32 %v181, %v184
  %v244 = vadd.f32 %v243, %v189
  %v245 = vadd.f32 %v244, %v192
  %v246 = vadd.f32 %v245, %v197
  %v247 = vadd.f32 %v246, %v200
  %v248 = vadd.f32 %v247, %v205
  %v249 = vadd.f32 %v248, %v208
  %v250 = vadd.f32 %v249, %v213
  %v251 = vadd.f32 %v250, %v216
  %v252 = vadd.f32 %v251, %v221
  %v253 = vadd.f32 %v252, %v224
  %v254 = vadd.f32 %v253, %v229
  %v255 = vadd.f32 %v254, %v232
  %v256 = vadd.f32 %v255, %v237
  %v257 = vadd.f32 %v256, %v240
  %v258 = vrot.slane %v257, 4
  %v259 = vadd.f32 %v257, %v258
  %v260 = vrot.slane %v259, 2
  %v261 = vadd.f32 %v259, %v260
  %v262 = vrot.slane %v261, 1
  %v263 = vadd.f32 %v261, %v262
  %v264 = vmul.f32 %v263, 0.0078125
  %v265 = vmul.f32 %v181, %v181
  %v266 = vmul.f32 %v184, %v184
  %v267 = vmul.f32 %v189, %v189
  %v268 = vmul.f32 %v192, %v192
  %v269 = vmul.f32 %v197, %v197
  %v270 = vmul.f32 %v200, %v200
  %v271 = vmul.f32 %v205, %v205
  %v272 = vmul.f32 %v208, %v208
  %v273 = vmul.f32 %v213, %v213
  %v274 = vmul.f32 %v216, %v216
  %v275 = vmul.f32 %v221, %v221
  %v276 = vmul.f32 %v224, %v224
  %v277 = vmul.f32 %v229, %v229
  %v278 = vmul.f32 %v232, %v232
  %v279 = vmul.f32 %v237, %v237
  %v280 = vmul.f32 %v240, %v240
  %v281 = vadd.f32 %v265, %v266
  %v282 = vadd.f32 %v281, %v267
  %v283 = vadd.f32 %v282, %v268
  %v284 = vadd.f32 %v283, %v269
  %v285 = vadd.f32 %v284, %v270
  %v286 = vadd.f32 %v285, %v271
  %v287 = vadd.f32 %v286, %v272
  %v288 = vadd.f32 %v287, %v273
  %v289 = vadd.f32 %v288, %v274
  %v290 = vadd.f32 %v289, %v275
  %v291 = vadd.f32 %v290, %v276
  %v292 = vadd.f32 %v291, %v277
  %v293 = vadd.f32 %v292, %v278
  %v294 = vadd.f32 %v293, %v279
  %v295 = vadd.f32 %v294, %v280
  %v296 = vrot.slane %v295, 4
  %v297 = vadd.f32 %v295, %v296
  %v298 = vrot.slane %v297, 2
  %v299 = vadd.f32 %v297, %v298
  %v300 = vrot.slane %v299, 1
  %v301 = vadd.f32 %v299, %v300
  %v302 = vmul.f32 %v301, 0.0078125
  %v303 = vmul.f32 %v264, %v264
  %v304 = vsub.f32 %v302, %v303
  %v305 = vmax.f32 %v304, 0.0
  %v306 = vsub.f32 %v181, %v264
  %v307 = vsub.f32 %v184, %v264
  %v308 = vsub.f32 %v189, %v264
  %v309 = vsub.f32 %v192, %v264
  %v310 = vsub.f32 %v197, %v264
  %v311 = vsub.f32 %v200, %v264
  %v312 = vsub.f32 %v205, %v264
  %v313 = vsub.f32 %v208, %v264
  %v314 = vsub.f32 %v213, %v264
  %v315 = vsub.f32 %v216, %v264
  %v316 = vsub.f32 %v221, %v264
  %v317 = vsub.f32 %v224, %v264
  %v318 = vsub.f32 %v229, %v264
  %v319 = vsub.f32 %v232, %v264
  %v320 = vsub.f32 %v237, %v264
  %v321 = vsub.f32 %v240, %v264
  %v322 = vadd.f32 %v305, 1e-05
  %v323 = vrsqrt.pop %v322
  %v324 = vmul.f32 %v306, %v323
  %v325 = vmul.f32 %v307, %v323
  %v326 = vmul.f32 %v308, %v323
  %v327 = vmul.f32 %v309, %v323
  %v328 = vmul.f32 %v310, %v323
  %v329 = vmul.f32 %v311, %v323
  %v330 = vmul.f32 %v312, %v323
  %v331 = vmul.f32 %v313, %v323
  %v332 = vmul.f32 %v314, %v323
  %v333 = vmul.f32 %v315, %v323
  %v334 = vmul.f32 %v316, %v323
  %v335 = vmul.f32 %v317, %v323
  %v336 = vmul.f32 %v318, %v323
  %v337 = vmul.f32 %v319, %v323
  %v338 = vmul.f32 %v320, %v323
  %v339 = vmul.f32 %v321, %v323
  %v340 = vld [vmem:[%s2] sm:$0x1]
  %v342 = vlaneseq
  %v343 = vshrl.u32 %v342, 7
  %v344 = vsub.s32 0, %v343
  %v345 = vrot.slane %v340, %v344
  %v347 = vmul.f32 %v324, %v345
  %v348 = vmul.f32 %v325, %v345
  %v349 = vmul.f32 %v326, %v345
  %v350 = vmul.f32 %v327, %v345
  %v351 = vmul.f32 %v328, %v345
  %v352 = vmul.f32 %v329, %v345
  %v353 = vmul.f32 %v330, %v345
  %v354 = vmul.f32 %v331, %v345
  %v355 = vmul.f32 %v332, %v345
  %v356 = vmul.f32 %v333, %v345
  %v357 = vmul.f32 %v334, %v345
  %v358 = vmul.f32 %v335, %v345
  %v359 = vmul.f32 %v336, %v345
  %v360 = vmul.f32 %v337, %v345
  %v361 = vmul.f32 %v338, %v345
  %v362 = vmul.f32 %v339, %v345
  %v363 = vld [vmem:[%s3] sm:$0x1]
  %v365 = vlaneseq
  %v366 = vshrl.u32 %v365, 7
  %v367 = vsub.s32 0, %v366
  %v368 = vrot.slane %v363, %v367
  %v370 = vadd.f32 %v347, %v368
  %v371 = vadd.f32 %v348, %v368
  %v372 = vadd.f32 %v349, %v368
  %v373 = vadd.f32 %v350, %v368
  %v374 = vadd.f32 %v351, %v368
  %v375 = vadd.f32 %v352, %v368
  %v376 = vadd.f32 %v353, %v368
  %v377 = vadd.f32 %v354, %v368
  %v378 = vadd.f32 %v355, %v368
  %v379 = vadd.f32 %v356, %v368
  %v380 = vadd.f32 %v357, %v368
  %v381 = vadd.f32 %v358, %v368
  %v382 = vadd.f32 %v359, %v368
  %v383 = vadd.f32 %v360, %v368
  %v384 = vadd.f32 %v361, %v368
  %v385 = vadd.f32 %v362, %v368
  %vm386 = vcmp.gt.f32.partialorder %v370, 0.0
  %vm387 = vcmp.gt.f32.partialorder %v371, 0.0
  %vm388 = vcmp.gt.f32.partialorder %v372, 0.0
  %vm389 = vcmp.gt.f32.partialorder %v373, 0.0
  %vm390 = vcmp.gt.f32.partialorder %v374, 0.0
  %vm391 = vcmp.gt.f32.partialorder %v375, 0.0
  %vm392 = vcmp.gt.f32.partialorder %v376, 0.0
  %vm393 = vcmp.gt.f32.partialorder %v377, 0.0
  %vm394 = vcmp.gt.f32.partialorder %v378, 0.0
  %vm395 = vcmp.gt.f32.partialorder %v379, 0.0
  %vm396 = vcmp.gt.f32.partialorder %v380, 0.0
  %vm397 = vcmp.gt.f32.partialorder %v381, 0.0
  %vm398 = vcmp.gt.f32.partialorder %v382, 0.0
  %vm399 = vcmp.gt.f32.partialorder %v383, 0.0
  %vm400 = vcmp.gt.f32.partialorder %v384, 0.0
  %vm401 = vcmp.gt.f32.partialorder %v385, 0.0
  %v402 = vmul.f32 %v370, 0.1
  %v403 = vmul.f32 %v371, 0.1
  %v404 = vmul.f32 %v372, 0.1
  %v405 = vmul.f32 %v373, 0.1
  %v406 = vmul.f32 %v374, 0.1
  %v407 = vmul.f32 %v375, 0.1
  %v408 = vmul.f32 %v376, 0.1
  %v409 = vmul.f32 %v377, 0.1
  %v410 = vmul.f32 %v378, 0.1
  %v411 = vmul.f32 %v379, 0.1
  %v412 = vmul.f32 %v380, 0.1
  %v413 = vmul.f32 %v381, 0.1
  %v414 = vmul.f32 %v382, 0.1
  %v415 = vmul.f32 %v383, 0.1
  %v416 = vmul.f32 %v384, 0.1
  %v417 = vmul.f32 %v385, 0.1
  %v418 = vsel %vm386, %v370, %v402
  %v419 = vsel %vm387, %v371, %v403
  %v420 = vsel %vm388, %v372, %v404
  %v421 = vsel %vm389, %v373, %v405
  %v422 = vsel %vm390, %v374, %v406
  %v423 = vsel %vm391, %v375, %v407
  %v424 = vsel %vm392, %v376, %v408
  %v425 = vsel %vm393, %v377, %v409
  %v426 = vsel %vm394, %v378, %v410
  %v427 = vsel %vm395, %v379, %v411
  %v428 = vsel %vm396, %v380, %v412
  %v429 = vsel %vm397, %v381, %v413
  %v430 = vsel %vm398, %v382, %v414
  %v431 = vsel %vm399, %v383, %v415
  %v432 = vsel %vm400, %v384, %v416
  %v433 = vsel %vm401, %v385, %v417
  %434 = vst [vmem:[%s4] sm:$0xff] %v418
  %435 = vst [vmem:[%s4 + $0x8] sm:$0xff] %v419
  %436 = vst [vmem:[%s4 + $0x10] sm:$0xff] %v420
  %437 = vst [vmem:[%s4 + $0x18] sm:$0xff] %v421
  %438 = vst [vmem:[%s4 + $0x20] sm:$0xff] %v422
  %439 = vst [vmem:[%s4 + $0x28] sm:$0xff] %v423
  %440 = vst [vmem:[%s4 + $0x30] sm:$0xff] %v424
  %441 = vst [vmem:[%s4 + $0x38] sm:$0xff] %v425
  %442 = vst [vmem:[%s4 + $0x40] sm:$0xff] %v426
  %443 = vst [vmem:[%s4 + $0x48] sm:$0xff] %v427
  %444 = vst [vmem:[%s4 + $0x50] sm:$0xff] %v428
  %445 = vst [vmem:[%s4 + $0x58] sm:$0xff] %v429
  %446 = vst [vmem:[%s4 + $0x60] sm:$0xff] %v430
  %447 = vst [vmem:[%s4 + $0x68] sm:$0xff] %v431
  %448 = vst [vmem:[%s4 + $0x70] sm:$0xff] %v432
  %449 = vst [vmem:[%s4 + $0x78] sm:$0xff] %v433
  // Predicated region
  $region18: #{_lambda_.17} parent=0 // pred_check
    _
  $region19: #{_lambda_.17} parent=0 // pred_check_branch
    %451 = sbr.rel (0) target = $region21
  $region20: #{_lambda_.17} parent=0 // pred_region
    _
  $region21: #{_lambda_.17} parent=0 // pred_fallthru
    _
  // Predicated region
  $region22: #{_lambda_.17} parent=0 // pred_check
    _
  $region23: #{_lambda_.17} parent=0 // pred_check_branch
    %453 = sbr.rel (0) target = $region25
  $region24: #{_lambda_.17} parent=0 // pred_region
    _
  $region25: #{_lambda_.17} parent=0 // pred_fallthru
    _

// kernel: _lambda_.18
$region0: #{_lambda_.18}
  #allocation0 [shape = 'u32[]', space=smem, size = 0x4, offset = 0x4, fixed_abs, tag = 'smem constant byte address 0x4 - core index']
  #allocation1 [shape = 'u32[144,128]{1,0:T(1,128)}', space=vmem, size = 0x12000, scoped, tag = 'internal scratch']
  %s0 = inlined_call_operand.vmem [shape: bf16[512,32], index: 0, kind: input, shape index: {}]
  %s1 = inlined_call_operand.vmem [shape: bf16[32,128], index: 1, kind: input, shape index: {}]
  %s2 = inlined_call_operand.vmem [shape: f32[1,128], index: 2, kind: input, shape index: {}]
  %s3 = inlined_call_operand.vmem [shape: f32[512,128], index: 3, kind: output, shape index: {}]
  %s4 = sld [smem:[#allocation0]]
  $region45: #{_lambda_.18} parent=0
    _
  %s6 = ssub.s32 1, %s4
  %s7 = scalar_select 0, %s6, %s4
  loop: start=0, step=1, limit=4
  $region2: #{_lambda_.18} parent=0 // loop_pre_header
    _
  $region3: #{_lambda_.18} parent=0 // loop_header
    %s9 = sphi 0, %s13
    %p10 = scmp.ge.s32.totalorder %s9, 4
    %s19 = sphi 0, %s21
    %s22 = sphi 0, %s19
    %s23 = sphi 0, %s22
    %s39 = sphi 0, %s23
    %s43 = sphi 0, %s43
    %s45 = sphi 0, %s43
    %s46 = sphi 0, %s45
    %s60 = sphi 0, %s46
    %s64 = sphi 0, %s64
    %s66 = sphi 0, %s64
    %s67 = sphi 0, %s66
    %s81 = sphi 0, %s67
    %s87 = sphi 0, %s89
    %s90 = sphi 0, %s87
    %s91 = sphi 0, %s90
    %s107 = sphi 0, %s91
  $region4: #{_lambda_.18} parent=0 // loop_header_branch
    %12 = sbr.rel (%p10) target = $region8
  $region5: #{_lambda_.18} parent=0 // loop_body
    %s14 = ssub.s32 %s9, 1
    %s15 = ssub.s32 %s9, 2
    %s16 = sadd.s32 %s9, 1
    %s17 = ssub.s32 %s9, %s16
    %p18 = scmp.eq.s32.totalorder %s17, 0
    %s20 = sadd.s32 %s19, 1
    %s21 = scalar_select %p18, %s19, %s20
    %p24 = pneg %p18
    %p25 = scmp.eq.s32.totalorder %s9, 1
    %p26 = por %p24, %p25
    %p27 = scmp.ne.s32.totalorder %s19, %s22
    %p28 = scmp.eq.s32.totalorder %s9, 0
    %p29 = por %p27, %p28
    %p30 = scmp.ne.s32.totalorder %s19, %s22
    %p31 = scmp.eq.s32.totalorder %s14, 1
    %p32 = por %p30, %p31
    %p33 = scmp.ne.s32.totalorder %s22, %s23
    %p34 = scmp.eq.s32.totalorder %s14, 0
    %p35 = por %p33, %p34
    %p36 = scmp.ne.s32.totalorder %s22, %s23
    %p37 = scmp.eq.s32.totalorder %s15, 1
    %p38 = por %p36, %p37
    %p40 = scmp.ne.s32.totalorder %s23, %s39
    %p41 = scmp.eq.s32.totalorder %s15, 0
    %p42 = por %p40, %p41
    %s44 = sadd.s32 %s43, 1
    %p47 = scmp.eq.s32.totalorder %s9, 1
    %p48 = scmp.ne.s32.totalorder %s43, %s45
    %p49 = scmp.eq.s32.totalorder %s9, 0
    %p50 = por %p48, %p49
    %p51 = scmp.ne.s32.totalorder %s43, %s45
    %p52 = scmp.eq.s32.totalorder %s14, 1
    %p53 = por %p51, %p52
    %p54 = scmp.ne.s32.totalorder %s45, %s46
    %p55 = scmp.eq.s32.totalorder %s14, 0
    %p56 = por %p54, %p55
    %p57 = scmp.ne.s32.totalorder %s45, %s46
    %p58 = scmp.eq.s32.totalorder %s15, 1
    %p59 = por %p57, %p58
    %p61 = scmp.ne.s32.totalorder %s46, %s60
    %p62 = scmp.eq.s32.totalorder %s15, 0
    %p63 = por %p61, %p62
    %s65 = sadd.s32 %s64, 1
    %p68 = scmp.eq.s32.totalorder %s9, 1
    %p69 = scmp.ne.s32.totalorder %s64, %s66
    %p70 = scmp.eq.s32.totalorder %s9, 0
    %p71 = por %p69, %p70
    %p72 = scmp.ne.s32.totalorder %s64, %s66
    %p73 = scmp.eq.s32.totalorder %s14, 1
    %p74 = por %p72, %p73
    %p75 = scmp.ne.s32.totalorder %s66, %s67
    %p76 = scmp.eq.s32.totalorder %s14, 0
    %p77 = por %p75, %p76
    %p78 = scmp.ne.s32.totalorder %s66, %s67
    %p79 = scmp.eq.s32.totalorder %s15, 1
    %p80 = por %p78, %p79
    %p82 = scmp.ne.s32.totalorder %s67, %s81
    %p83 = scmp.eq.s32.totalorder %s15, 0
    %p84 = por %p82, %p83
    %s85 = ssub.s32 %s9, %s16
    %p86 = scmp.eq.s32.totalorder %s85, 0
    %s88 = sadd.s32 %s87, 1
    %s89 = scalar_select %p86, %s87, %s88
    %p92 = pneg %p86
    %p93 = scmp.eq.s32.totalorder %s9, 1
    %p94 = por %p92, %p93
    %p95 = scmp.ne.s32.totalorder %s87, %s90
    %p96 = scmp.eq.s32.totalorder %s9, 0
    %p97 = por %p95, %p96
    %p98 = scmp.ne.s32.totalorder %s87, %s90
    %p99 = scmp.eq.s32.totalorder %s14, 1
    %p100 = por %p98, %p99
    %p101 = scmp.ne.s32.totalorder %s90, %s91
    %p102 = scmp.eq.s32.totalorder %s14, 0
    %p103 = por %p101, %p102
    %p104 = scmp.ne.s32.totalorder %s90, %s91
    %p105 = scmp.eq.s32.totalorder %s15, 1
    %p106 = por %p104, %p105
    %p108 = scmp.ne.s32.totalorder %s91, %s107
    %p109 = scmp.eq.s32.totalorder %s15, 0
    %p110 = por %p108, %p109
    %p111 = scmp.le.s32.totalorder 1, %s9
    %p112 = scmp.lt.s32.totalorder %s9, 3
    %p113 = pnand %p111, %p112
    %p114 = pneg %p113
    // Predicated region
    $region9: #{_lambda_.18} parent=5 // pred_check
      _
    $region10: #{_lambda_.18} parent=5 // pred_check_branch
      %116 = sbr.rel (%p113) target = $region12
    $region11: #{_lambda_.18} parent=5 // pred_region
      %s117 = ssub.s32 %s9, 1
      // Predicated region
      $region13: #{_lambda_.18} parent=11 // pred_check
        %p118 = pneg %p56
      $region14: #{_lambda_.18} parent=11 // pred_check_branch
        %120 = sbr.rel (%p118) target = $region16
      $region15: #{_lambda_.18} parent=11 // pred_region
        _
      $region16: #{_lambda_.18} parent=11 // pred_fallthru
        _
      // Predicated region
      $region17: #{_lambda_.18} parent=11 // pred_check
        %p121 = pneg %p77
      $region18: #{_lambda_.18} parent=11 // pred_check_branch
        %123 = sbr.rel (%p121) target = $region20
      $region19: #{_lambda_.18} parent=11 // pred_region
        _
      $region20: #{_lambda_.18} parent=11 // pred_fallthru
        _
    $region12: #{_lambda_.18} parent=5 // pred_fallthru
      _
    %p124 = scmp.lt.s32.totalorder %s9, 2
    // Predicated region
    $region21: #{_lambda_.18} parent=5 // pred_check
      %p125 = pneg %p124
    $region22: #{_lambda_.18} parent=5 // pred_check_branch
      %127 = sbr.rel (%p125) target = $region24
    $region23: #{_lambda_.18} parent=5 // pred_region
      // Predicated region
      $region25: #{_lambda_.18} parent=23 // pred_check
        %p128 = pneg %p29
      $region26: #{_lambda_.18} parent=23 // pred_check_branch
        %130 = sbr.rel (%p128) target = $region28
      $region27: #{_lambda_.18} parent=23 // pred_region
        %s131 = smul.u32 32, %s9
        %p132 = scmp.lt.s32.totalorder %s131, 63
        %s133 = scalar_select %p132, %s131, 63
        %s134 = smul.addr %s133, 4
        %s135 = scalar_lea.vmem %s0, %s134
        %s136 = smul.u32 32, %s9
      $region28: #{_lambda_.18} parent=23 // pred_fallthru
        _
    $region24: #{_lambda_.18} parent=5 // pred_fallthru
      _
    %p137 = scmp.le.s32.totalorder 1, %s9
    %p138 = scmp.lt.s32.totalorder %s9, 3
    %p139 = pnand %p137, %p138
    %p140 = pneg %p139
    // Predicated region
    $region29: #{_lambda_.18} parent=5 // pred_check
      _
    $region30: #{_lambda_.18} parent=5 // pred_check_branch
      %142 = sbr.rel (%p139) target = $region32
    $region31: #{_lambda_.18} parent=5 // pred_region
      %s143 = ssub.s32 %s9, 1
      %s144 = smul.u32 32, %s14
      %p145 = scmp.lt.s32.totalorder %s144, 63
      %s146 = scalar_select %p145, %s144, 63
      %s147 = smul.addr %s146, 4
      %s148 = scalar_lea.vmem %s0, %s147
      %p149 = pneg %p35
      %p150 = pneg %p32
      %p151 = pneg %p56
      %p152 = pneg %p53
      %p153 = pneg %p77
      %p154 = pneg %p74
      %p155 = pneg %p103
      %p156 = pneg %p100
      %s157 = smul.u32 32, %s14
      %p158 = scmp.lt.s32.totalorder %s157, 63
      %s159 = scalar_select %p158, %s157, 63
      %s160 = smul.addr %s159, 8
      %s161 = scalar_lea.vmem %s3, %s160
      %s162 = smul.u32 32, %s14
      %p163 = scmp.lt.s32.totalorder %s162, 63
      %s164 = scalar_select %p163, %s162, 63
      %s165 = smul.addr %s164, 4
      %s166 = scalar_lea.vmem %s0, %s165
      %s167 = smul.u32 32, %s14
      %s168 = smul.u32 32, %s14
      %p169 = scmp.lt.s32.totalorder %s168, 63
      %s170 = scalar_select %p169, %s168, 63
      %s171 = smul.addr %s170, 8
      %s172 = scalar_lea.vmem %s3, %s171
      %s173 = smul.u32 32, %s14
      %v175 = vld [vmem:[%s166] sm:$0xf]
      %v176 = vld [vmem:[%s166 + $0x4] sm:$0xf]
      %v177 = vld [vmem:[%s166 + $0x8] sm:$0xf]
      %v178 = vld [vmem:[%s166 + $0xc] sm:$0xf]
      %v179 = vld [vmem:[%s166 + $0x10] sm:$0xf]
      %v180 = vld [vmem:[%s166 + $0x14] sm:$0xf]
      %v181 = vld [vmem:[%s166 + $0x18] sm:$0xf]
      %v182 = vld [vmem:[%s166 + $0x1c] sm:$0xf]
      %v183 = vld [vmem:[%s166 + $0x20] sm:$0xf]
      %v184 = vld [vmem:[%s166 + $0x24] sm:$0xf]
      %v185 = vld [vmem:[%s166 + $0x28] sm:$0xf]
      %v186 = vld [vmem:[%s166 + $0x2c] sm:$0xf]
      %v187 = vld [vmem:[%s166 + $0x30] sm:$0xf]
      %v188 = vld [vmem:[%s166 + $0x34] sm:$0xf]
      %v189 = vld [vmem:[%s166 + $0x38] sm:$0xf]
      %v190 = vld [vmem:[%s166 + $0x3c] sm:$0xf]
      %v191 = vld [vmem:[%s166 + $0x40] sm:$0xf]
      %v192 = vld [vmem:[%s166 + $0x44] sm:$0xf]
      %v193 = vld [vmem:[%s166 + $0x48] sm:$0xf]
      %v194 = vld [vmem:[%s166 + $0x4c] sm:$0xf]
      %v195 = vld [vmem:[%s166 + $0x50] sm:$0xf]
      %v196 = vld [vmem:[%s166 + $0x54] sm:$0xf]
      %v197 = vld [vmem:[%s166 + $0x58] sm:$0xf]
      %v198 = vld [vmem:[%s166 + $0x5c] sm:$0xf]
      %v199 = vld [vmem:[%s166 + $0x60] sm:$0xf]
      %v200 = vld [vmem:[%s166 + $0x64] sm:$0xf]
      %v201 = vld [vmem:[%s166 + $0x68] sm:$0xf]
      %v202 = vld [vmem:[%s166 + $0x6c] sm:$0xf]
      %v203 = vld [vmem:[%s166 + $0x70] sm:$0xf]
      %v204 = vld [vmem:[%s166 + $0x74] sm:$0xf]
      %v205 = vld [vmem:[%s166 + $0x78] sm:$0xf]
      %v206 = vld [vmem:[%s166 + $0x7c] sm:$0xf]
      %v207 = vld [vmem:[%s1] sm:$0xf]
      %v208 = vld [vmem:[%s1 + $0x4] sm:$0xf]
      %v209 = vld [vmem:[%s1 + $0x8] sm:$0xf]
      %v210 = vld [vmem:[%s1 + $0xc] sm:$0xf]
      %v211 = vld [vmem:[%s2] sm:$0x1]
      %v213 = vlaneseq
      %v214 = vshrl.u32 %v213, 7
      %v215 = vsub.s32 0, %v214
      %v216 = vrot.slane %v211, %v215
      %v250 = vunpack.c.l.b16 %v175
      %v251 = vunpack.c.l.b16 %v176
      %v252 = vunpack.c.l.b16 %v177
      %v253 = vunpack.c.l.b16 %v178
      %v254 = vunpack.c.l.b16 %v179
      %v255 = vunpack.c.l.b16 %v180
      %v256 = vunpack.c.l.b16 %v181
      %v257 = vunpack.c.l.b16 %v182
      %v258 = vunpack.c.l.b16 %v183
      %v259 = vunpack.c.l.b16 %v184
      %v260 = vunpack.c.l.b16 %v185
      %v261 = vunpack.c.l.b16 %v186
      %v262 = vunpack.c.l.b16 %v187
      %v263 = vunpack.c.l.b16 %v188
      %v264 = vunpack.c.l.b16 %v189
      %v265 = vunpack.c.l.b16 %v190
      %v266 = vunpack.c.l.b16 %v191
      %v267 = vunpack.c.l.b16 %v192
      %v268 = vunpack.c.l.b16 %v193
      %v269 = vunpack.c.l.b16 %v194
      %v270 = vunpack.c.l.b16 %v195
      %v271 = vunpack.c.l.b16 %v196
      %v272 = vunpack.c.l.b16 %v197
      %v273 = vunpack.c.l.b16 %v198
      %v274 = vunpack.c.l.b16 %v199
      %v275 = vunpack.c.l.b16 %v200
      %v276 = vunpack.c.l.b16 %v201
      %v277 = vunpack.c.l.b16 %v202
      %v278 = vunpack.c.l.b16 %v203
      %v279 = vunpack.c.l.b16 %v204
      %v280 = vunpack.c.l.b16 %v205
      %v281 = vunpack.c.l.b16 %v206
      %v282 = vpack.c.b16 %v251, %v250
      %v283 = vpack.c.b16 %v253, %v252
      %v284 = vpack.c.b16 %v255, %v254
      %v285 = vpack.c.b16 %v257, %v256
      %v286 = vpack.c.b16 %v259, %v258
      %v287 = vpack.c.b16 %v261, %v260
      %v288 = vpack.c.b16 %v263, %v262
      %v289 = vpack.c.b16 %v265, %v264
      %v290 = vpack.c.b16 %v267, %v266
      %v291 = vpack.c.b16 %v269, %v268
      %v292 = vpack.c.b16 %v271, %v270
      %v293 = vpack.c.b16 %v273, %v272
      %v294 = vpack.c.b16 %v275, %v274
      %v295 = vpack.c.b16 %v277, %v276
      %v296 = vpack.c.b16 %v279, %v278
      %v297 = vpack.c.b16 %v281, %v280
      %v302 = vunpack.c.l.b16 %v207
      %v303 = vunpack.c.l.b16 %v208
      %v304 = vunpack.c.l.b16 %v209
      %v305 = vunpack.c.l.b16 %v210
      %v306 = vpack.c.b16 %v303, %v302
      %v307 = vpack.c.b16 %v305, %v304
      %vm310 = vcmask 261120
      %v312 = vsel %vm310, %v282, 0
      %v315 = vsel %vm310, %v283, 0
      %v318 = vsel %vm310, %v284, 0
      %v321 = vsel %vm310, %v285, 0
      %v324 = vsel %vm310, %v286, 0
      %v327 = vsel %vm310, %v287, 0
      %v330 = vsel %vm310, %v288, 0
      %v333 = vsel %vm310, %v289, 0
      %v336 = vsel %vm310, %v290, 0
      %v339 = vsel %vm310, %v291, 0
      %v342 = vsel %vm310, %v292, 0
      %v345 = vsel %vm310, %v293, 0
      %v348 = vsel %vm310, %v294, 0
      %v351 = vsel %vm310, %v295, 0
      %v354 = vsel %vm310, %v296, 0
      %v357 = vsel %vm310, %v297, 0
      %359 = vmatprep.subr.bf16.mxu0 0
      %360 = vmatpush1.bf16.msra.mxu0 %v306
      %361 = vmatprep.subr.bf16.mxu0 0
      %362 = vmatpush1.bf16.msra.mxu0 %v307
      %363 = vmatprep.subr.bf16.mxu0 0
      %364 = vmatpush1.bf16.msra.mxu0 0
      %365 = vmatprep.subr.bf16.mxu0 0
      %366 = vmatpush1.bf16.msra.mxu0 0
      %367 = vmatprep.subr.bf16.mxu0 0
      %368 = vmatpush1.bf16.msra.mxu0 0
      %369 = vmatprep.subr.bf16.mxu0 0
      %370 = vmatpush1.bf16.msra.mxu0 0
      %371 = vmatprep.subr.bf16.mxu0 0
      %372 = vmatpush1.bf16.msra.mxu0 0
      %373 = vmatprep.subr.bf16.mxu0 0
      %374 = vmatpush1.bf16.msra.mxu0 0
      %375 = vmatprep.subr.bf16.mxu0 0
      %376 = vmatpush1.bf16.msra.mxu0 0
      %377 = vmatprep.subr.bf16.mxu0 0
      %378 = vmatpush1.bf16.msra.mxu0 0
      %379 = vmatprep.subr.bf16.mxu0 0
      %380 = vmatpush1.bf16.msra.mxu0 0
      %381 = vmatprep.subr.bf16.mxu0 0
      %382 = vmatpush1.bf16.msra.mxu0 0
      %383 = vmatprep.subr.bf16.mxu0 0
      %384 = vmatpush1.bf16.msra.mxu0 0
      %385 = vmatprep.subr.bf16.mxu0 0
      %386 = vmatpush1.bf16.msra.mxu0 0
      %387 = vmatprep.subr.bf16.mxu0 0
      %388 = vmatpush1.bf16.msra.mxu0 0
      %389 = vmatprep.subr.bf16.mxu0 0
      %390 = vmatpush1.bf16.msra.mxu0 0
      %391 = vmatprep.mubr.bf16.mxu0 0
      %392 = vmatmul.mubr.bf16.gmra.mrb[0].mxu0 %v312
      %v393 = vpop.f32.mrb[0].mxu0
      %v394 = vadd.f32 %v216, %v393
      %v395 = vpop.f32.mrb[0].mxu0
      %v396 = vpop.f32.mrb[0].mxu0
      %v397 = vadd.f32 %v216, %v396
      %v398 = vpop.f32.mrb[0].mxu0
      %399 = vmatprep.mubr.bf16.mxu0 0
      %400 = vmatmul.mubr.bf16.gmra.mrb[0].mxu0 %v315
      %v401 = vpop.f32.mrb[0].mxu0
      %v402 = vadd.f32 %v216, %v401
      %v403 = vpop.f32.mrb[0].mxu0
      %v404 = vpop.f32.mrb[0].mxu0
      %v405 = vadd.f32 %v216, %v404
      %v406 = vpop.f32.mrb[0].mxu0
      %407 = vmatprep.mubr.bf16.mxu0 0
      %408 = vmatmul.mubr.bf16.gmra.mrb[0].mxu0 %v318
      %v409 = vpop.f32.mrb[0].mxu0
      %v410 = vadd.f32 %v216, %v409
      %v411 = vpop.f32.mrb[0].mxu0
      %v412 = vpop.f32.mrb[0].mxu0
      %v413 = vadd.f32 %v216, %v412
      %v414 = vpop.f32.mrb[0].mxu0
      %415 = vmatprep.mubr.bf16.mxu0 0
      %416 = vmatmul.mubr.bf16.gmra.mrb[0].mxu0 %v321
      %v417 = vpop.f32.mrb[0].mxu0
      %v418 = vadd.f32 %v216, %v417
      %v419 = vpop.f32.mrb[0].mxu0
      %v420 = vpop.f32.mrb[0].mxu0
      %v421 = vadd.f32 %v216, %v420
      %v422 = vpop.f32.mrb[0].mxu0
      %423 = vmatprep.mubr.bf16.mxu0 0
      %424 = vmatmul.mubr.bf16.gmra.mrb[0].mxu0 %v324
      %v425 = vpop.f32.mrb[0].mxu0
      %v426 = vadd.f32 %v216, %v425
      %v427 = vpop.f32.mrb[0].mxu0
      %v428 = vpop.f32.mrb[0].mxu0
      %v429 = vadd.f32 %v216, %v428
      %v430 = vpop.f32.mrb[0].mxu0
      %431 = vmatprep.mubr.bf16.mxu0 0
      %432 = vmatmul.mubr.bf16.gmra.mrb[0].mxu0 %v327
      %v433 = vpop.f32.mrb[0].mxu0
      %v434 = vadd.f32 %v216, %v433
      %v435 = vpop.f32.mrb[0].mxu0
      %v436 = vpop.f32.mrb[0].mxu0
      %v437 = vadd.f32 %v216, %v436
      %v438 = vpop.f32.mrb[0].mxu0
      %439 = vmatprep.mubr.bf16.mxu0 0
      %440 = vmatmul.mubr.bf16.gmra.mrb[0].mxu0 %v330
      %v441 = vpop.f32.mrb[0].mxu0
      %v442 = vadd.f32 %v216, %v441
      %v443 = vpop.f32.mrb[0].mxu0
      %v444 = vpop.f32.mrb[0].mxu0
      %v445 = vadd.f32 %v216, %v444
      %v446 = vpop.f32.mrb[0].mxu0
      %447 = vmatprep.mubr.bf16.mxu0 0
      %448 = vmatmul.mubr.bf16.gmra.mrb[0].mxu0 %v333
      %v449 = vpop.f32.mrb[0].mxu0
      %v450 = vadd.f32 %v216, %v449
      %v451 = vpop.f32.mrb[0].mxu0
      %v452 = vpop.f32.mrb[0].mxu0
      %v453 = vadd.f32 %v216, %v452
      %v454 = vpop.f32.mrb[0].mxu0
      %455 = vmatprep.mubr.bf16.mxu0 0
      %456 = vmatmul.mubr.bf16.gmra.mrb[0].mxu0 %v336
      %v457 = vpop.f32.mrb[0].mxu0
      %v458 = vadd.f32 %v216, %v457
      %v459 = vpop.f32.mrb[0].mxu0
      %v460 = vpop.f32.mrb[0].mxu0
      %v461 = vadd.f32 %v216, %v460
      %v462 = vpop.f32.mrb[0].mxu0
      %463 = vmatprep.mubr.bf16.mxu0 0
      %464 = vmatmul.mubr.bf16.gmra.mrb[0].mxu0 %v339
      %v465 = vpop.f32.mrb[0].mxu0
      %v466 = vadd.f32 %v216, %v465
      %v467 = vpop.f32.mrb[0].mxu0
      %v468 = vpop.f32.mrb[0].mxu0
      %v469 = vadd.f32 %v216, %v468
      %v470 = vpop.f32.mrb[0].mxu0
      %471 = vmatprep.mubr.bf16.mxu0 0
      %472 = vmatmul.mubr.bf16.gmra.mrb[0].mxu0 %v342
      %v473 = vpop.f32.mrb[0].mxu0
      %v474 = vadd.f32 %v216, %v473
      %v475 = vpop.f32.mrb[0].mxu0
      %v476 = vpop.f32.mrb[0].mxu0
      %v477 = vadd.f32 %v216, %v476
      %v478 = vpop.f32.mrb[0].mxu0
      %479 = vmatprep.mubr.bf16.mxu0 0
      %480 = vmatmul.mubr.bf16.gmra.mrb[0].mxu0 %v345
      %v481 = vpop.f32.mrb[0].mxu0
      %v482 = vadd.f32 %v216, %v481
      %v483 = vpop.f32.mrb[0].mxu0
      %v484 = vpop.f32.mrb[0].mxu0
      %v485 = vadd.f32 %v216, %v484
      %v486 = vpop.f32.mrb[0].mxu0
      %487 = vmatprep.mubr.bf16.mxu0 0
      %488 = vmatmul.mubr.bf16.gmra.mrb[0].mxu0 %v348
      %v489 = vpop.f32.mrb[0].mxu0
      %v490 = vadd.f32 %v216, %v489
      %v491 = vpop.f32.mrb[0].mxu0
      %v492 = vpop.f32.mrb[0].mxu0
      %v493 = vadd.f32 %v216, %v492
      %v494 = vpop.f32.mrb[0].mxu0
      %495 = vmatprep.mubr.bf16.mxu0 0
      %496 = vmatmul.mubr.bf16.gmra.mrb[0].mxu0 %v351
      %v497 = vpop.f32.mrb[0].mxu0
      %v498 = vadd.f32 %v216, %v497
      %v499 = vpop.f32.mrb[0].mxu0
      %v500 = vpop.f32.mrb[0].mxu0
      %v501 = vadd.f32 %v216, %v500
      %v502 = vpop.f32.mrb[0].mxu0
      %503 = vmatprep.mubr.bf16.mxu0 0
      %504 = vmatmul.mubr.bf16.gmra.mrb[0].mxu0 %v354
      %v505 = vpop.f32.mrb[0].mxu0
      %v506 = vadd.f32 %v216, %v505
      %v507 = vpop.f32.mrb[0].mxu0
      %v508 = vpop.f32.mrb[0].mxu0
      %v509 = vadd.f32 %v216, %v508
      %v510 = vpop.f32.mrb[0].mxu0
      %511 = vmatprep.mubr.bf16.mxu0 0
      %512 = vmatmul.mubr.bf16.gmra.mrb[0].mxu0 %v357
      %v513 = vpop.f32.mrb[0].mxu0
      %v514 = vadd.f32 %v216, %v513
      %v515 = vpop.f32.mrb[0].mxu0
      %v516 = vpop.f32.mrb[0].mxu0
      %v517 = vadd.f32 %v216, %v516
      %v518 = vpop.f32.mrb[0].mxu0
      %519 = vdwg.mxu0
      %520 = vst [vmem:[%s172] sm:$0xff] %v394
      %521 = vst [vmem:[%s172 + $0x8] sm:$0xff] %v397
      %522 = vst [vmem:[%s172 + $0x10] sm:$0xff] %v402
      %523 = vst [vmem:[%s172 + $0x18] sm:$0xff] %v405
      %524 = vst [vmem:[%s172 + $0x20] sm:$0xff] %v410
      %525 = vst [vmem:[%s172 + $0x28] sm:$0xff] %v413
      %526 = vst [vmem:[%s172 + $0x30] sm:$0xff] %v418
      %527 = vst [vmem:[%s172 + $0x38] sm:$0xff] %v421
      %528 = vst [vmem:[%s172 + $0x40] sm:$0xff] %v426
      %529 = vst [vmem:[%s172 + $0x48] sm:$0xff] %v429
      %530 = vst [vmem:[%s172 + $0x50] sm:$0xff] %v434
      %531 = vst [vmem:[%s172 + $0x58] sm:$0xff] %v437
      %532 = vst [vmem:[%s172 + $0x60] sm:$0xff] %v442
      %533 = vst [vmem:[%s172 + $0x68] sm:$0xff] %v445
      %534 = vst [vmem:[%s172 + $0x70] sm:$0xff] %v450
      %535 = vst [vmem:[%s172 + $0x78] sm:$0xff] %v453
      %536 = vst [vmem:[%s172 + $0x80] sm:$0xff] %v458
      %537 = vst [vmem:[%s172 + $0x88] sm:$0xff] %v461
      %538 = vst [vmem:[%s172 + $0x90] sm:$0xff] %v466
      %539 = vst [vmem:[%s172 + $0x98] sm:$0xff] %v469
      %540 = vst [vmem:[%s172 + $0xa0] sm:$0xff] %v474
      %541 = vst [vmem:[%s172 + $0xa8] sm:$0xff] %v477
      %542 = vst [vmem:[%s172 + $0xb0] sm:$0xff] %v482
      %543 = vst [vmem:[%s172 + $0xb8] sm:$0xff] %v485
      %544 = vst [vmem:[%s172 + $0xc0] sm:$0xff] %v490
      %545 = vst [vmem:[%s172 + $0xc8] sm:$0xff] %v493
      %546 = vst [vmem:[%s172 + $0xd0] sm:$0xff] %v498
      %547 = vst [vmem:[%s172 + $0xd8] sm:$0xff] %v501
      %548 = vst [vmem:[%s172 + $0xe0] sm:$0xff] %v506
      %549 = vst [vmem:[%s172 + $0xe8] sm:$0xff] %v509
      %550 = vst [vmem:[%s172 + $0xf0] sm:$0xff] %v514
      %551 = vst [vmem:[%s172 + $0xf8] sm:$0xff] %v517
      %s552 = smul.u32 32, %s14
      %p553 = scmp.lt.s32.totalorder %s552, 63
      %s554 = scalar_select %p553, %s552, 63
      %s555 = smul.addr %s554, 8
      %s556 = scalar_lea.vmem %s3, %s555
      // Predicated region
      $region33: #{_lambda_.18} parent=31 // pred_check
        %p557 = pneg %p100
      $region34: #{_lambda_.18} parent=31 // pred_check_branch
        %559 = sbr.rel (%p557) target = $region36
      $region35: #{_lambda_.18} parent=31 // pred_region
        %s560 = smul.u32 32, %s14
      $region36: #{_lambda_.18} parent=31 // pred_fallthru
        _
    $region32: #{_lambda_.18} parent=5 // pred_fallthru
      _
    %p561 = scmp.le.s32.totalorder 2, %s9
    // Predicated region
    $region37: #{_lambda_.18} parent=5 // pred_check
      %p562 = pneg %p561
    $region38: #{_lambda_.18} parent=5 // pred_check_branch
      %564 = sbr.rel (%p562) target = $region40
    $region39: #{_lambda_.18} parent=5 // pred_region
      %s565 = ssub.s32 %s9, 2
      // Predicated region
      $region41: #{_lambda_.18} parent=39 // pred_check
        %p566 = pneg %p106
      $region42: #{_lambda_.18} parent=39 // pred_check_branch
        %568 = sbr.rel (%p566) target = $region44
      $region43: #{_lambda_.18} parent=39 // pred_region
        %s569 = smul.u32 32, %s15
        %p570 = scmp.lt.s32.totalorder %s569, 63
        %s571 = scalar_select %p570, %s569, 63
        %s572 = smul.addr %s571, 8
        %s573 = scalar_lea.vmem %s3, %s572
      $region44: #{_lambda_.18} parent=39 // pred_fallthru
        _
    $region40: #{_lambda_.18} parent=5 // pred_fallthru
      _
  $region6: #{_lambda_.18} parent=0 // loop_footer
    %s13 = sadd.s32 1, %s9
  $region7: #{_lambda_.18} parent=0 // loop_footer_branch
    %8 = sbr.rel target = $region3
  $region8: #{_lambda_.18} parent=0 // loop_exit
    _

// kernel: _lambda_.15
$region0: #{_lambda_.15}
  #allocation0 [shape = 'u32[]', space=smem, size = 0x4, offset = 0x4, fixed_abs, tag = 'smem constant byte address 0x4 - core index']
  #allocation1 [shape = 'u32[144,128]{1,0:T(1,128)}', space=vmem, size = 0x12000, scoped, tag = 'internal scratch']
  %s0 = inlined_call_operand.vmem [shape: bf16[128,128], index: 0, kind: input, shape index: {}]
  %s1 = inlined_call_operand.vmem [shape: bf16[128,128], index: 1, kind: input, shape index: {}]
  %s2 = inlined_call_operand.vmem [shape: f32[1,128], index: 2, kind: input, shape index: {}]
  %s3 = inlined_call_operand.vmem [shape: f32[128,128], index: 3, kind: output, shape index: {}]
  %s4 = sld [smem:[#allocation0]]
  $region22: #{_lambda_.15} parent=0
    _
  %s6 = ssub.s32 1, %s4
  %s7 = scalar_select 0, %s6, %s4
  // Predicated region
  $region2: #{_lambda_.15} parent=0 // pred_check
    _
  $region3: #{_lambda_.15} parent=0 // pred_check_branch
    %9 = sbr.rel (0) target = $region5
  $region4: #{_lambda_.15} parent=0 // pred_region
    _
  $region5: #{_lambda_.15} parent=0 // pred_fallthru
    _
  // Predicated region
  $region6: #{_lambda_.15} parent=0 // pred_check
    _
  $region7: #{_lambda_.15} parent=0 // pred_check_branch
    %11 = sbr.rel (0) target = $region9
  $region8: #{_lambda_.15} parent=0 // pred_region
    _
  $region9: #{_lambda_.15} parent=0 // pred_fallthru
    _
  // Predicated region
  $region10: #{_lambda_.15} parent=0 // pred_check
    _
  $region11: #{_lambda_.15} parent=0 // pred_check_branch
    %13 = sbr.rel (0) target = $region13
  $region12: #{_lambda_.15} parent=0 // pred_region
    _
  $region13: #{_lambda_.15} parent=0 // pred_fallthru
    _
  %v15 = vld [vmem:[%s0] sm:$0xf]
  %v16 = vld [vmem:[%s0 + $0x4] sm:$0xf]
  %v17 = vld [vmem:[%s0 + $0x8] sm:$0xf]
  %v18 = vld [vmem:[%s0 + $0xc] sm:$0xf]
  %v19 = vld [vmem:[%s0 + $0x10] sm:$0xf]
  %v20 = vld [vmem:[%s0 + $0x14] sm:$0xf]
  %v21 = vld [vmem:[%s0 + $0x18] sm:$0xf]
  %v22 = vld [vmem:[%s0 + $0x1c] sm:$0xf]
  %v23 = vld [vmem:[%s0 + $0x20] sm:$0xf]
  %v24 = vld [vmem:[%s0 + $0x24] sm:$0xf]
  %v25 = vld [vmem:[%s0 + $0x28] sm:$0xf]
  %v26 = vld [vmem:[%s0 + $0x2c] sm:$0xf]
  %v27 = vld [vmem:[%s0 + $0x30] sm:$0xf]
  %v28 = vld [vmem:[%s0 + $0x34] sm:$0xf]
  %v29 = vld [vmem:[%s0 + $0x38] sm:$0xf]
  %v30 = vld [vmem:[%s0 + $0x3c] sm:$0xf]
  %v31 = vld [vmem:[%s1] sm:$0xf]
  %v32 = vld [vmem:[%s1 + $0x4] sm:$0xf]
  %v33 = vld [vmem:[%s1 + $0x8] sm:$0xf]
  %v34 = vld [vmem:[%s1 + $0xc] sm:$0xf]
  %v35 = vld [vmem:[%s1 + $0x10] sm:$0xf]
  %v36 = vld [vmem:[%s1 + $0x14] sm:$0xf]
  %v37 = vld [vmem:[%s1 + $0x18] sm:$0xf]
  %v38 = vld [vmem:[%s1 + $0x1c] sm:$0xf]
  %v39 = vld [vmem:[%s1 + $0x20] sm:$0xf]
  %v40 = vld [vmem:[%s1 + $0x24] sm:$0xf]
  %v41 = vld [vmem:[%s1 + $0x28] sm:$0xf]
  %v42 = vld [vmem:[%s1 + $0x2c] sm:$0xf]
  %v43 = vld [vmem:[%s1 + $0x30] sm:$0xf]
  %v44 = vld [vmem:[%s1 + $0x34] sm:$0xf]
  %v45 = vld [vmem:[%s1 + $0x38] sm:$0xf]
  %v46 = vld [vmem:[%s1 + $0x3c] sm:$0xf]
  %v47 = vld [vmem:[%s2] sm:$0x1]
  %v49 = vlaneseq
  %v50 = vshrl.u32 %v49, 7
  %v51 = vsub.s32 0, %v50
  %v52 = vrot.slane %v47, %v51
  %v70 = vunpack.c.l.b16 %v15
  %v71 = vunpack.c.l.b16 %v16
  %v72 = vunpack.c.l.b16 %v17
  %v73 = vunpack.c.l.b16 %v18
  %v74 = vunpack.c.l.b16 %v19
  %v75 = vunpack.c.l.b16 %v20
  %v76 = vunpack.c.l.b16 %v21
  %v77 = vunpack.c.l.b16 %v22
  %v78 = vunpack.c.l.b16 %v23
  %v79 = vunpack.c.l.b16 %v24
  %v80 = vunpack.c.l.b16 %v25
  %v81 = vunpack.c.l.b16 %v26
  %v82 = vunpack.c.l.b16 %v27
  %v83 = vunpack.c.l.b16 %v28
  %v84 = vunpack.c.l.b16 %v29
  %v85 = vunpack.c.l.b16 %v30
  %v86 = vpack.c.b16 %v71, %v70
  %v87 = vpack.c.b16 %v73, %v72
  %v88 = vpack.c.b16 %v75, %v74
  %v89 = vpack.c.b16 %v77, %v76
  %v90 = vpack.c.b16 %v79, %v78
  %v91 = vpack.c.b16 %v81, %v80
  %v92 = vpack.c.b16 %v83, %v82
  %v93 = vpack.c.b16 %v85, %v84
  %v118 = vunpack.c.l.b16 %v31
  %v119 = vunpack.c.l.b16 %v32
  %v120 = vunpack.c.l.b16 %v33
  %v121 = vunpack.c.l.b16 %v34
  %v122 = vunpack.c.l.b16 %v35
  %v123 = vunpack.c.l.b16 %v36
  %v124 = vunpack.c.l.b16 %v37
  %v125 = vunpack.c.l.b16 %v38
  %v126 = vunpack.c.l.b16 %v39
  %v127 = vunpack.c.l.b16 %v40
  %v128 = vunpack.c.l.b16 %v41
  %v129 = vunpack.c.l.b16 %v42
  %v130 = vunpack.c.l.b16 %v43
  %v131 = vunpack.c.l.b16 %v44
  %v132 = vunpack.c.l.b16 %v45
  %v133 = vunpack.c.l.b16 %v46
  %v134 = vpack.c.b16 %v119, %v118
  %v135 = vpack.c.b16 %v121, %v120
  %v136 = vpack.c.b16 %v123, %v122
  %v137 = vpack.c.b16 %v125, %v124
  %v138 = vpack.c.b16 %v127, %v126
  %v139 = vpack.c.b16 %v129, %v128
  %v140 = vpack.c.b16 %v131, %v130
  %v141 = vpack.c.b16 %v133, %v132
  %150 = vmatprep.subr.bf16.mxu0 0
  %151 = vmatpush1.bf16.msra.mxu0 %v134
  %152 = vmatprep.subr.bf16.mxu0 0
  %153 = vmatpush1.bf16.msra.mxu0 %v135
  %154 = vmatprep.subr.bf16.mxu0 0
  %155 = vmatpush1.bf16.msra.mxu0 %v136
  %156 = vmatprep.subr.bf16.mxu0 0
  %157 = vmatpush1.bf16.msra.mxu0 %v137
  %158 = vmatprep.subr.bf16.mxu0 0
  %159 = vmatpush1.bf16.msra.mxu0 %v138
  %160 = vmatprep.subr.bf16.mxu0 0
  %161 = vmatpush1.bf16.msra.mxu0 %v139
  %162 = vmatprep.subr.bf16.mxu0 0
  %163 = vmatpush1.bf16.msra.mxu0 %v140
  %164 = vmatprep.subr.bf16.mxu0 0
  %165 = vmatpush1.bf16.msra.mxu0 %v141
  %166 = vmatprep.subr.bf16.mxu0 0
  %167 = vmatpush1.bf16.msra.mxu0 0
  %168 = vmatprep.subr.bf16.mxu0 0
  %169 = vmatpush1.bf16.msra.mxu0 0
  %170 = vmatprep.subr.bf16.mxu0 0
  %171 = vmatpush1.bf16.msra.mxu0 0
  %172 = vmatprep.subr.bf16.mxu0 0
  %173 = vmatpush1.bf16.msra.mxu0 0
  %174 = vmatprep.subr.bf16.mxu0 0
  %175 = vmatpush1.bf16.msra.mxu0 0
  %176 = vmatprep.subr.bf16.mxu0 0
  %177 = vmatpush1.bf16.msra.mxu0 0
  %178 = vmatprep.subr.bf16.mxu0 0
  %179 = vmatpush1.bf16.msra.mxu0 0
  %180 = vmatprep.subr.bf16.mxu0 0
  %181 = vmatpush1.bf16.msra.mxu0 0
  %182 = vmatprep.mubr.bf16.mxu0 0
  %183 = vmatmul.mubr.bf16.gmra.mrb[0].mxu0 %v86
  %v184 = vpop.f32.mrb[0].mxu0
  %v185 = vadd.f32 %v52, %v184
  %v186 = vpop.f32.mrb[0].mxu0
  %v187 = vpop.f32.mrb[0].mxu0
  %v188 = vadd.f32 %v52, %v187
  %v189 = vpop.f32.mrb[0].mxu0
  %190 = vmatprep.mubr.bf16.mxu0 0
  %191 = vmatmul.mubr.bf16.gmra.mrb[0].mxu0 %v87
  %v192 = vpop.f32.mrb[0].mxu0
  %v193 = vadd.f32 %v52, %v192
  %v194 = vpop.f32.mrb[0].mxu0
  %v195 = vpop.f32.mrb[0].mxu0
  %v196 = vadd.f32 %v52, %v195
  %v197 = vpop.f32.mrb[0].mxu0
  %198 = vmatprep.mubr.bf16.mxu0 0
  %199 = vmatmul.mubr.bf16.gmra.mrb[0].mxu0 %v88
  %v200 = vpop.f32.mrb[0].mxu0
  %v201 = vadd.f32 %v52, %v200
  %v202 = vpop.f32.mrb[0].mxu0
  %v203 = vpop.f32.mrb[0].mxu0
  %v204 = vadd.f32 %v52, %v203
  %v205 = vpop.f32.mrb[0].mxu0
  %206 = vmatprep.mubr.bf16.mxu0 0
  %207 = vmatmul.mubr.bf16.gmra.mrb[0].mxu0 %v89
  %v208 = vpop.f32.mrb[0].mxu0
  %v209 = vadd.f32 %v52, %v208
  %v210 = vpop.f32.mrb[0].mxu0
  %v211 = vpop.f32.mrb[0].mxu0
  %v212 = vadd.f32 %v52, %v211
  %v213 = vpop.f32.mrb[0].mxu0
  %214 = vmatprep.mubr.bf16.mxu0 0
  %215 = vmatmul.mubr.bf16.gmra.mrb[0].mxu0 %v90
  %v216 = vpop.f32.mrb[0].mxu0
  %v217 = vadd.f32 %v52, %v216
  %v218 = vpop.f32.mrb[0].mxu0
  %v219 = vpop.f32.mrb[0].mxu0
  %v220 = vadd.f32 %v52, %v219
  %v221 = vpop.f32.mrb[0].mxu0
  %222 = vmatprep.mubr.bf16.mxu0 0
  %223 = vmatmul.mubr.bf16.gmra.mrb[0].mxu0 %v91
  %v224 = vpop.f32.mrb[0].mxu0
  %v225 = vadd.f32 %v52, %v224
  %v226 = vpop.f32.mrb[0].mxu0
  %v227 = vpop.f32.mrb[0].mxu0
  %v228 = vadd.f32 %v52, %v227
  %v229 = vpop.f32.mrb[0].mxu0
  %230 = vmatprep.mubr.bf16.mxu0 0
  %231 = vmatmul.mubr.bf16.gmra.mrb[0].mxu0 %v92
  %v232 = vpop.f32.mrb[0].mxu0
  %v233 = vadd.f32 %v52, %v232
  %v234 = vpop.f32.mrb[0].mxu0
  %v235 = vpop.f32.mrb[0].mxu0
  %v236 = vadd.f32 %v52, %v235
  %v237 = vpop.f32.mrb[0].mxu0
  %238 = vmatprep.mubr.bf16.mxu0 0
  %239 = vmatmul.mubr.bf16.gmra.mrb[0].mxu0 %v93
  %v240 = vpop.f32.mrb[0].mxu0
  %v241 = vadd.f32 %v52, %v240
  %v242 = vpop.f32.mrb[0].mxu0
  %v243 = vpop.f32.mrb[0].mxu0
  %v244 = vadd.f32 %v52, %v243
  %v245 = vpop.f32.mrb[0].mxu0
  %246 = vdwg.mxu0
  %247 = vst [vmem:[%s3] sm:$0xff] %v185
  %248 = vst [vmem:[%s3 + $0x8] sm:$0xff] %v188
  %249 = vst [vmem:[%s3 + $0x10] sm:$0xff] %v193
  %250 = vst [vmem:[%s3 + $0x18] sm:$0xff] %v196
  %251 = vst [vmem:[%s3 + $0x20] sm:$0xff] %v201
  %252 = vst [vmem:[%s3 + $0x28] sm:$0xff] %v204
  %253 = vst [vmem:[%s3 + $0x30] sm:$0xff] %v209
  %254 = vst [vmem:[%s3 + $0x38] sm:$0xff] %v212
  %255 = vst [vmem:[%s3 + $0x40] sm:$0xff] %v217
  %256 = vst [vmem:[%s3 + $0x48] sm:$0xff] %v220
  %257 = vst [vmem:[%s3 + $0x50] sm:$0xff] %v225
  %258 = vst [vmem:[%s3 + $0x58] sm:$0xff] %v228
  %259 = vst [vmem:[%s3 + $0x60] sm:$0xff] %v233
  %260 = vst [vmem:[%s3 + $0x68] sm:$0xff] %v236
  %261 = vst [vmem:[%s3 + $0x70] sm:$0xff] %v241
  %262 = vst [vmem:[%s3 + $0x78] sm:$0xff] %v244
  // Predicated region
  $region14: #{_lambda_.15} parent=0 // pred_check
    _
  $region15: #{_lambda_.15} parent=0 // pred_check_branch
    %264 = sbr.rel (0) target = $region17
  $region16: #{_lambda_.15} parent=0 // pred_region
    _
  $region17: #{_lambda_.15} parent=0 // pred_fallthru
    _
  // Predicated region
  $region18: #{_lambda_.15} parent=0 // pred_check
    _
  $region19: #{_lambda_.15} parent=0 // pred_check_branch
    %266 = sbr.rel (0) target = $region21
  $region20: #{_lambda_.15} parent=0 // pred_region
    _
  $region21: #{_lambda_.15} parent=0 // pred_fallthru
    _

// kernel: _lambda_.16
$region0: #{_lambda_.16}
  #allocation0 [shape = 'u32[]', space=smem, size = 0x4, offset = 0x4, fixed_abs, tag = 'smem constant byte address 0x4 - core index']
  #allocation1 [shape = 'u32[144,128]{1,0:T(1,128)}', space=vmem, size = 0x12000, scoped, tag = 'internal scratch']
  %s0 = inlined_call_operand.vmem [shape: f32[128,128], index: 0, kind: input, shape index: {}]
  %s1 = inlined_call_operand.vmem [shape: f32[8,128], index: 1, kind: input, shape index: {}]
  %s2 = inlined_call_operand.vmem [shape: f32[128,128], index: 2, kind: output, shape index: {}]
  %s3 = sld [smem:[#allocation0]]
  $region18: #{_lambda_.16} parent=0
    _
  %s5 = ssub.s32 1, %s3
  %s6 = scalar_select 0, %s5, %s3
  // Predicated region
  $region2: #{_lambda_.16} parent=0 // pred_check
    _
  $region3: #{_lambda_.16} parent=0 // pred_check_branch
    %8 = sbr.rel (0) target = $region5
  $region4: #{_lambda_.16} parent=0 // pred_region
    _
  $region5: #{_lambda_.16} parent=0 // pred_fallthru
    _
  // Predicated region
  $region6: #{_lambda_.16} parent=0 // pred_check
    _
  $region7: #{_lambda_.16} parent=0 // pred_check_branch
    %10 = sbr.rel (0) target = $region9
  $region8: #{_lambda_.16} parent=0 // pred_region
    _
  $region9: #{_lambda_.16} parent=0 // pred_fallthru
    _
  %v11 = vld [vmem:[%s0] sm:$0xff]
  %v12 = vld [vmem:[%s0 + $0x8] sm:$0xff]
  %v13 = vld [vmem:[%s0 + $0x10] sm:$0xff]
  %v14 = vld [vmem:[%s0 + $0x18] sm:$0xff]
  %v15 = vld [vmem:[%s0 + $0x20] sm:$0xff]
  %v16 = vld [vmem:[%s0 + $0x28] sm:$0xff]
  %v17 = vld [vmem:[%s0 + $0x30] sm:$0xff]
  %v18 = vld [vmem:[%s0 + $0x38] sm:$0xff]
  %v19 = vld [vmem:[%s0 + $0x40] sm:$0xff]
  %v20 = vld [vmem:[%s0 + $0x48] sm:$0xff]
  %v21 = vld [vmem:[%s0 + $0x50] sm:$0xff]
  %v22 = vld [vmem:[%s0 + $0x58] sm:$0xff]
  %v23 = vld [vmem:[%s0 + $0x60] sm:$0xff]
  %v24 = vld [vmem:[%s0 + $0x68] sm:$0xff]
  %v25 = vld [vmem:[%s0 + $0x70] sm:$0xff]
  %v26 = vld [vmem:[%s0 + $0x78] sm:$0xff]
  %v27 = vld [vmem:[%s1] sm:$0x1]
  %vm28 = vcmp.gt.f32.partialorder %v27, 0.5
  %v29 = vld [vmem:[%s1 + $0x1] sm:$0x1]
  %vm30 = vcmp.gt.f32.partialorder %v29, 0.5
  %v31 = vld [vmem:[%s1 + $0x2] sm:$0x1]
  %v32 = vld [vmem:[%s1 + $0x3] sm:$0x1]
  %v33 = vld [vmem:[%s1 + $0x4] sm:$0x1]
  %v34 = vld [vmem:[%s1 + $0x5] sm:$0x1]
  %s35 = smul.u32 0, 128
  %s36 = scvt.s32.f32 %s35
  %v37 = vlaneseq
  %v38 = vshrl.u32 %v37, 7
  %v39 = vadd.s32 %v38, 8
  %v40 = vadd.s32 %v38, 16
  %v41 = vadd.s32 %v38, 24
  %v42 = vadd.s32 %v38, 32
  %v43 = vadd.s32 %v38, 40
  %v44 = vadd.s32 %v38, 48
  %v45 = vadd.s32 %v38, 56
  %v46 = vadd.s32 %v38, 64
  %v47 = vadd.s32 %v38, 72
  %v48 = vadd.s32 %v38, 80
  %v49 = vadd.s32 %v38, 88
  %v50 = vadd.s32 %v38, 96
  %v51 = vadd.s32 %v38, 104
  %v52 = vadd.s32 %v38, 112
  %v53 = vadd.s32 %v38, 120
  %v54 = vcvt.s32.f32 %v38
  %v55 = vcvt.s32.f32 %v39
  %v56 = vcvt.s32.f32 %v40
  %v57 = vcvt.s32.f32 %v41
  %v58 = vcvt.s32.f32 %v42
  %v59 = vcvt.s32.f32 %v43
  %v60 = vcvt.s32.f32 %v44
  %v61 = vcvt.s32.f32 %v45
  %v62 = vcvt.s32.f32 %v46
  %v63 = vcvt.s32.f32 %v47
  %v64 = vcvt.s32.f32 %v48
  %v65 = vcvt.s32.f32 %v49
  %v66 = vcvt.s32.f32 %v50
  %v67 = vcvt.s32.f32 %v51
  %v68 = vcvt.s32.f32 %v52
  %v69 = vcvt.s32.f32 %v53
  %v70 = vstv %s36
  %v71 = vadd.f32 %v54, %v70
  %v72 = vadd.f32 %v55, %v70
  %v73 = vadd.f32 %v56, %v70
  %v74 = vadd.f32 %v57, %v70
  %v75 = vadd.f32 %v58, %v70
  %v76 = vadd.f32 %v59, %v70
  %v77 = vadd.f32 %v60, %v70
  %v78 = vadd.f32 %v61, %v70
  %v79 = vadd.f32 %v62, %v70
  %v80 = vadd.f32 %v63, %v70
  %v81 = vadd.f32 %v64, %v70
  %v82 = vadd.f32 %v65, %v70
  %v83 = vadd.f32 %v66, %v70
  %v84 = vadd.f32 %v67, %v70
  %v85 = vadd.f32 %v68, %v70
  %v86 = vadd.f32 %v69, %v70
  %v87 = vadd.f32 %v71, 0.5
  %v88 = vadd.f32 %v72, 0.5
  %v89 = vadd.f32 %v73, 0.5
  %v90 = vadd.f32 %v74, 0.5
  %v91 = vadd.f32 %v75, 0.5
  %v92 = vadd.f32 %v76, 0.5
  %v93 = vadd.f32 %v77, 0.5
  %v94 = vadd.f32 %v78, 0.5
  %v95 = vadd.f32 %v79, 0.5
  %v96 = vadd.f32 %v80, 0.5
  %v97 = vadd.f32 %v81, 0.5
  %v98 = vadd.f32 %v82, 0.5
  %v99 = vadd.f32 %v83, 0.5
  %v100 = vadd.f32 %v84, 0.5
  %v101 = vadd.f32 %v85, 0.5
  %v102 = vadd.f32 %v86, 0.5
  %v103 = vrcp.pop 64.0
  %v104 = vmul.f32 %v87, %v103
  %v105 = vmul.f32 %v88, %v103
  %v106 = vmul.f32 %v89, %v103
  %v107 = vmul.f32 %v90, %v103
  %v108 = vmul.f32 %v91, %v103
  %v109 = vmul.f32 %v92, %v103
  %v110 = vmul.f32 %v93, %v103
  %v111 = vmul.f32 %v94, %v103
  %v112 = vmul.f32 %v95, %v103
  %v113 = vmul.f32 %v96, %v103
  %v114 = vmul.f32 %v97, %v103
  %v115 = vmul.f32 %v98, %v103
  %v116 = vmul.f32 %v99, %v103
  %v117 = vmul.f32 %v100, %v103
  %v118 = vmul.f32 %v101, %v103
  %v119 = vmul.f32 %v102, %v103
  %v120 = vfloor.f32 %v104
  %v121 = vfloor.f32 %v105
  %v122 = vfloor.f32 %v106
  %v123 = vfloor.f32 %v107
  %v124 = vfloor.f32 %v108
  %v125 = vfloor.f32 %v109
  %v126 = vfloor.f32 %v110
  %v127 = vfloor.f32 %v111
  %v128 = vfloor.f32 %v112
  %v129 = vfloor.f32 %v113
  %v130 = vfloor.f32 %v114
  %v131 = vfloor.f32 %v115
  %v132 = vfloor.f32 %v116
  %v133 = vfloor.f32 %v117
  %v134 = vfloor.f32 %v118
  %v135 = vfloor.f32 %v119
  %v136 = vmul.f32 %v120, 64.0
  %v137 = vmul.f32 %v121, 64.0
  %v138 = vmul.f32 %v122, 64.0
  %v139 = vmul.f32 %v123, 64.0
  %v140 = vmul.f32 %v124, 64.0
  %v141 = vmul.f32 %v125, 64.0
  %v142 = vmul.f32 %v126, 64.0
  %v143 = vmul.f32 %v127, 64.0
  %v144 = vmul.f32 %v128, 64.0
  %v145 = vmul.f32 %v129, 64.0
  %v146 = vmul.f32 %v130, 64.0
  %v147 = vmul.f32 %v131, 64.0
  %v148 = vmul.f32 %v132, 64.0
  %v149 = vmul.f32 %v133, 64.0
  %v150 = vmul.f32 %v134, 64.0
  %v151 = vmul.f32 %v135, 64.0
  %v152 = vsub.f32 %v71, %v136
  %v153 = vsub.f32 %v72, %v137
  %v154 = vsub.f32 %v73, %v138
  %v155 = vsub.f32 %v74, %v139
  %v156 = vsub.f32 %v75, %v140
  %v157 = vsub.f32 %v76, %v141
  %v158 = vsub.f32 %v77, %v142
  %v159 = vsub.f32 %v78, %v143
  %v160 = vsub.f32 %v79, %v144
  %v161 = vsub.f32 %v80, %v145
  %v162 = vsub.f32 %v81, %v146
  %v163 = vsub.f32 %v82, %v147
  %v164 = vsub.f32 %v83, %v148
  %v165 = vsub.f32 %v84, %v149
  %v166 = vsub.f32 %v85, %v150
  %v167 = vsub.f32 %v86, %v151
  %v168 = vadd.f32 %v152, 0.5
  %v169 = vadd.f32 %v153, 0.5
  %v170 = vadd.f32 %v154, 0.5
  %v171 = vadd.f32 %v155, 0.5
  %v172 = vadd.f32 %v156, 0.5
  %v173 = vadd.f32 %v157, 0.5
  %v174 = vadd.f32 %v158, 0.5
  %v175 = vadd.f32 %v159, 0.5
  %v176 = vadd.f32 %v160, 0.5
  %v177 = vadd.f32 %v161, 0.5
  %v178 = vadd.f32 %v162, 0.5
  %v179 = vadd.f32 %v163, 0.5
  %v180 = vadd.f32 %v164, 0.5
  %v181 = vadd.f32 %v165, 0.5
  %v182 = vadd.f32 %v166, 0.5
  %v183 = vadd.f32 %v167, 0.5
  %v184 = vrcp.pop 8.0
  %v185 = vmul.f32 %v168, %v184
  %v186 = vmul.f32 %v169, %v184
  %v187 = vmul.f32 %v170, %v184
  %v188 = vmul.f32 %v171, %v184
  %v189 = vmul.f32 %v172, %v184
  %v190 = vmul.f32 %v173, %v184
  %v191 = vmul.f32 %v174, %v184
  %v192 = vmul.f32 %v175, %v184
  %v193 = vmul.f32 %v176, %v184
  %v194 = vmul.f32 %v177, %v184
  %v195 = vmul.f32 %v178, %v184
  %v196 = vmul.f32 %v179, %v184
  %v197 = vmul.f32 %v180, %v184
  %v198 = vmul.f32 %v181, %v184
  %v199 = vmul.f32 %v182, %v184
  %v200 = vmul.f32 %v183, %v184
  %v201 = vfloor.f32 %v185
  %v202 = vfloor.f32 %v186
  %v203 = vfloor.f32 %v187
  %v204 = vfloor.f32 %v188
  %v205 = vfloor.f32 %v189
  %v206 = vfloor.f32 %v190
  %v207 = vfloor.f32 %v191
  %v208 = vfloor.f32 %v192
  %v209 = vfloor.f32 %v193
  %v210 = vfloor.f32 %v194
  %v211 = vfloor.f32 %v195
  %v212 = vfloor.f32 %v196
  %v213 = vfloor.f32 %v197
  %v214 = vfloor.f32 %v198
  %v215 = vfloor.f32 %v199
  %v216 = vfloor.f32 %v200
  %v217 = vmul.f32 %v201, 8.0
  %v218 = vmul.f32 %v202, 8.0
  %v219 = vmul.f32 %v203, 8.0
  %v220 = vmul.f32 %v204, 8.0
  %v221 = vmul.f32 %v205, 8.0
  %v222 = vmul.f32 %v206, 8.0
  %v223 = vmul.f32 %v207, 8.0
  %v224 = vmul.f32 %v208, 8.0
  %v225 = vmul.f32 %v209, 8.0
  %v226 = vmul.f32 %v210, 8.0
  %v227 = vmul.f32 %v211, 8.0
  %v228 = vmul.f32 %v212, 8.0
  %v229 = vmul.f32 %v213, 8.0
  %v230 = vmul.f32 %v214, 8.0
  %v231 = vmul.f32 %v215, 8.0
  %v232 = vmul.f32 %v216, 8.0
  %v233 = vsub.f32 %v152, %v217
  %v234 = vsub.f32 %v153, %v218
  %v235 = vsub.f32 %v154, %v219
  %v236 = vsub.f32 %v155, %v220
  %v237 = vsub.f32 %v156, %v221
  %v238 = vsub.f32 %v157, %v222
  %v239 = vsub.f32 %v158, %v223
  %v240 = vsub.f32 %v159, %v224
  %v241 = vsub.f32 %v160, %v225
  %v242 = vsub.f32 %v161, %v226
  %v243 = vsub.f32 %v162, %v227
  %v244 = vsub.f32 %v163, %v228
  %v245 = vsub.f32 %v164, %v229
  %v246 = vsub.f32 %v165, %v230
  %v247 = vsub.f32 %v166, %v231
  %v248 = vsub.f32 %v167, %v232
  %v249 = vxor.u32 %v11, 2147483648
  %v250 = vxor.u32 %v12, 2147483648
  %v251 = vxor.u32 %v13, 2147483648
  %v252 = vxor.u32 %v14, 2147483648
  %v253 = vxor.u32 %v15, 2147483648
  %v254 = vxor.u32 %v16, 2147483648
  %v255 = vxor.u32 %v17, 2147483648
  %v256 = vxor.u32 %v18, 2147483648
  %v257 = vxor.u32 %v19, 2147483648
  %v258 = vxor.u32 %v20, 2147483648
  %v259 = vxor.u32 %v21, 2147483648
  %v260 = vxor.u32 %v22, 2147483648
  %v261 = vxor.u32 %v23, 2147483648
  %v262 = vxor.u32 %v24, 2147483648
  %v263 = vxor.u32 %v25, 2147483648
  %v264 = vxor.u32 %v26, 2147483648
  %v265 = vmul.f32 %v249, 1.442695
  %v266 = vpow.pop %v265
  %v267 = vmul.f32 %v250, 1.442695
  %v268 = vpow.pop %v267
  %v269 = vmul.f32 %v251, 1.442695
  %v270 = vpow.pop %v269
  %v271 = vmul.f32 %v252, 1.442695
  %v272 = vpow.pop %v271
  %v273 = vmul.f32 %v253, 1.442695
  %v274 = vpow.pop %v273
  %v275 = vmul.f32 %v254, 1.442695
  %v276 = vpow.pop %v275
  %v277 = vmul.f32 %v255, 1.442695
  %v278 = vpow.pop %v277
  %v279 = vmul.f32 %v256, 1.442695
  %v280 = vpow.pop %v279
  %v281 = vmul.f32 %v257, 1.442695
  %v282 = vpow.pop %v281
  %v283 = vmul.f32 %v258, 1.442695
  %v284 = vpow.pop %v283
  %v285 = vmul.f32 %v259, 1.442695
  %v286 = vpow.pop %v285
  %v287 = vmul.f32 %v260, 1.442695
  %v288 = vpow.pop %v287
  %v289 = vmul.f32 %v261, 1.442695
  %v290 = vpow.pop %v289
  %v291 = vmul.f32 %v262, 1.442695
  %v292 = vpow.pop %v291
  %v293 = vmul.f32 %v263, 1.442695
  %v294 = vpow.pop %v293
  %v295 = vmul.f32 %v264, 1.442695
  %v296 = vpow.pop %v295
  %v297 = vadd.f32 %v266, 1.0
  %v298 = vadd.f32 %v268, 1.0
  %v299 = vadd.f32 %v270, 1.0
  %v300 = vadd.f32 %v272, 1.0
  %v301 = vadd.f32 %v274, 1.0
  %v302 = vadd.f32 %v276, 1.0
  %v303 = vadd.f32 %v278, 1.0
  %v304 = vadd.f32 %v280, 1.0
  %v305 = vadd.f32 %v282, 1.0
  %v306 = vadd.f32 %v284, 1.0
  %v307 = vadd.f32 %v286, 1.0
  %v308 = vadd.f32 %v288, 1.0
  %v309 = vadd.f32 %v290, 1.0
  %v310 = vadd.f32 %v292, 1.0
  %v311 = vadd.f32 %v294, 1.0
  %v312 = vadd.f32 %v296, 1.0
  %v313 = vrcp.pop %v297
  %v314 = vmul.f32 1.0, %v313
  %v315 = vrcp.pop %v298
  %v316 = vmul.f32 1.0, %v315
  %v317 = vrcp.pop %v299
  %v318 = vmul.f32 1.0, %v317
  %v319 = vrcp.pop %v300
  %v320 = vmul.f32 1.0, %v319
  %v321 = vrcp.pop %v301
  %v322 = vmul.f32 1.0, %v321
  %v323 = vrcp.pop %v302
  %v324 = vmul.f32 1.0, %v323
  %v325 = vrcp.pop %v303
  %v326 = vmul.f32 1.0, %v325
  %v327 = vrcp.pop %v304
  %v328 = vmul.f32 1.0, %v327
  %v329 = vrcp.pop %v305
  %v330 = vmul.f32 1.0, %v329
  %v331 = vrcp.pop %v306
  %v332 = vmul.f32 1.0, %v331
  %v333 = vrcp.pop %v307
  %v334 = vmul.f32 1.0, %v333
  %v335 = vrcp.pop %v308
  %v336 = vmul.f32 1.0, %v335
  %v337 = vrcp.pop %v309
  %v338 = vmul.f32 1.0, %v337
  %v339 = vrcp.pop %v310
  %v340 = vmul.f32 1.0, %v339
  %v341 = vrcp.pop %v311
  %v342 = vmul.f32 1.0, %v341
  %v343 = vrcp.pop %v312
  %v344 = vmul.f32 1.0, %v343
  %v345 = vsel %vm28, 1, 0
  %v346 = vlaneseq
  %v347 = vshrl.u32 %v346, 7
  %v348 = vsub.s32 0, %v347
  %v349 = vrot.slane %v345, %v348
  %vm350 = vcmp.eq.s32.totalorder %v349, 1
  %v351 = vsel %vm350, %v314, %v11
  %v352 = vsel %vm350, %v316, %v12
  %v353 = vsel %vm350, %v318, %v13
  %v354 = vsel %vm350, %v320, %v14
  %v355 = vsel %vm350, %v322, %v15
  %v356 = vsel %vm350, %v324, %v16
  %v357 = vsel %vm350, %v326, %v17
  %v358 = vsel %vm350, %v328, %v18
  %v359 = vsel %vm350, %v330, %v19
  %v360 = vsel %vm350, %v332, %v20
  %v361 = vsel %vm350, %v334, %v21
  %v362 = vsel %vm350, %v336, %v22
  %v363 = vsel %vm350, %v338, %v23
  %v364 = vsel %vm350, %v340, %v24
  %v365 = vsel %vm350, %v342, %v25
  %v366 = vsel %vm350, %v344, %v26
  %v367 = vmul.f32 %v11, 1.442695
  %v368 = vpow.pop %v367
  %v369 = vmul.f32 %v12, 1.442695
  %v370 = vpow.pop %v369
  %v371 = vmul.f32 %v13, 1.442695
  %v372 = vpow.pop %v371
  %v373 = vmul.f32 %v14, 1.442695
  %v374 = vpow.pop %v373
  %v375 = vmul.f32 %v15, 1.442695
  %v376 = vpow.pop %v375
  %v377 = vmul.f32 %v16, 1.442695
  %v378 = vpow.pop %v377
  %v379 = vmul.f32 %v17, 1.442695
  %v380 = vpow.pop %v379
  %v381 = vmul.f32 %v18, 1.442695
  %v382 = vpow.pop %v381
  %v383 = vmul.f32 %v19, 1.442695
  %v384 = vpow.pop %v383
  %v385 = vmul.f32 %v20, 1.442695
  %v386 = vpow.pop %v385
  %v387 = vmul.f32 %v21, 1.442695
  %v388 = vpow.pop %v387
  %v389 = vmul.f32 %v22, 1.442695
  %v390 = vpow.pop %v389
  %v391 = vmul.f32 %v23, 1.442695
  %v392 = vpow.pop %v391
  %v393 = vmul.f32 %v24, 1.442695
  %v394 = vpow.pop %v393
  %v395 = vmul.f32 %v25, 1.442695
  %v396 = vpow.pop %v395
  %v397 = vmul.f32 %v26, 1.442695
  %v398 = vpow.pop %v397
  %v399 = vlaneseq
  %v400 = vshrl.u32 %v399, 7
  %v401 = vsub.s32 0, %v400
  %v402 = vrot.slane %v31, %v401
  %v403 = vmul.f32 %v368, %v402
  %v404 = vmul.f32 %v370, %v402
  %v405 = vmul.f32 %v372, %v402
  %v406 = vmul.f32 %v374, %v402
  %v407 = vmul.f32 %v376, %v402
  %v408 = vmul.f32 %v378, %v402
  %v409 = vmul.f32 %v380, %v402
  %v410 = vmul.f32 %v382, %v402
  %v411 = vmul.f32 %v384, %v402
  %v412 = vmul.f32 %v386, %v402
  %v413 = vmul.f32 %v388, %v402
  %v414 = vmul.f32 %v390, %v402
  %v415 = vmul.f32 %v392, %v402
  %v416 = vmul.f32 %v394, %v402
  %v417 = vmul.f32 %v396, %v402
  %v418 = vmul.f32 %v398, %v402
  %v419 = vsel %vm30, 1, 0
  %v420 = vlaneseq
  %v421 = vshrl.u32 %v420, 7
  %v422 = vsub.s32 0, %v421
  %v423 = vrot.slane %v419, %v422
  %vm424 = vcmp.eq.s32.totalorder %v423, 1
  %v425 = vsel %vm424, %v403, %v351
  %v426 = vsel %vm424, %v404, %v352
  %v427 = vsel %vm424, %v405, %v353
  %v428 = vsel %vm424, %v406, %v354
  %v429 = vsel %vm424, %v407, %v355
  %v430 = vsel %vm424, %v408, %v356
  %v431 = vsel %vm424, %v409, %v357
  %v432 = vsel %vm424, %v410, %v358
  %v433 = vsel %vm424, %v411, %v359
  %v434 = vsel %vm424, %v412, %v360
  %v435 = vsel %vm424, %v413, %v361
  %v436 = vsel %vm424, %v414, %v362
  %v437 = vsel %vm424, %v415, %v363
  %v438 = vsel %vm424, %v416, %v364
  %v439 = vsel %vm424, %v417, %v365
  %v440 = vsel %vm424, %v418, %v366
  %v441 = vlaneseq
  %v442 = vshrl.u32 %v441, 7
  %v443 = vsub.s32 0, %v442
  %v444 = vrot.slane %v32, %v443
  %v445 = vmul.f32 %v233, %v444
  %v446 = vmul.f32 %v234, %v444
  %v447 = vmul.f32 %v235, %v444
  %v448 = vmul.f32 %v236, %v444
  %v449 = vmul.f32 %v237, %v444
  %v450 = vmul.f32 %v238, %v444
  %v451 = vmul.f32 %v239, %v444
  %v452 = vmul.f32 %v240, %v444
  %v453 = vmul.f32 %v241, %v444
  %v454 = vmul.f32 %v242, %v444
  %v455 = vmul.f32 %v243, %v444
  %v456 = vmul.f32 %v244, %v444
  %v457 = vmul.f32 %v245, %v444
  %v458 = vmul.f32 %v246, %v444
  %v459 = vmul.f32 %v247, %v444
  %v460 = vmul.f32 %v248, %v444
  %v461 = vadd.f32 %v425, %v445
  %v462 = vadd.f32 %v426, %v446
  %v463 = vadd.f32 %v427, %v447
  %v464 = vadd.f32 %v428, %v448
  %v465 = vadd.f32 %v429, %v449
  %v466 = vadd.f32 %v430, %v450
  %v467 = vadd.f32 %v431, %v451
  %v468 = vadd.f32 %v432, %v452
  %v469 = vadd.f32 %v433, %v453
  %v470 = vadd.f32 %v434, %v454
  %v471 = vadd.f32 %v435, %v455
  %v472 = vadd.f32 %v436, %v456
  %v473 = vadd.f32 %v437, %v457
  %v474 = vadd.f32 %v438, %v458
  %v475 = vadd.f32 %v439, %v459
  %v476 = vadd.f32 %v440, %v460
  %v477 = vlaneseq
  %v478 = vshrl.u32 %v477, 7
  %v479 = vsub.s32 0, %v478
  %v480 = vrot.slane %v33, %v479
  %v481 = vmul.f32 %v201, %v480
  %v482 = vmul.f32 %v202, %v480
  %v483 = vmul.f32 %v203, %v480
  %v484 = vmul.f32 %v204, %v480
  %v485 = vmul.f32 %v205, %v480
  %v486 = vmul.f32 %v206, %v480
  %v487 = vmul.f32 %v207, %v480
  %v488 = vmul.f32 %v208, %v480
  %v489 = vmul.f32 %v209, %v480
  %v490 = vmul.f32 %v210, %v480
  %v491 = vmul.f32 %v211, %v480
  %v492 = vmul.f32 %v212, %v480
  %v493 = vmul.f32 %v213, %v480
  %v494 = vmul.f32 %v214, %v480
  %v495 = vmul.f32 %v215, %v480
  %v496 = vmul.f32 %v216, %v480
  %v497 = vadd.f32 %v461, %v481
  %v498 = vadd.f32 %v462, %v482
  %v499 = vadd.f32 %v463, %v483
  %v500 = vadd.f32 %v464, %v484
  %v501 = vadd.f32 %v465, %v485
  %v502 = vadd.f32 %v466, %v486
  %v503 = vadd.f32 %v467, %v487
  %v504 = vadd.f32 %v468, %v488
  %v505 = vadd.f32 %v469, %v489
  %v506 = vadd.f32 %v470, %v490
  %v507 = vadd.f32 %v471, %v491
  %v508 = vadd.f32 %v472, %v492
  %v509 = vadd.f32 %v473, %v493
  %v510 = vadd.f32 %v474, %v494
  %v511 = vadd.f32 %v475, %v495
  %v512 = vadd.f32 %v476, %v496
  %v513 = vlaneseq
  %v514 = vshrl.u32 %v513, 7
  %v515 = vsub.s32 0, %v514
  %v516 = vrot.slane %v34, %v515
  %v517 = vmul.f32 %v497, %v516
  %v518 = vmul.f32 %v498, %v516
  %v519 = vmul.f32 %v499, %v516
  %v520 = vmul.f32 %v500, %v516
  %v521 = vmul.f32 %v501, %v516
  %v522 = vmul.f32 %v502, %v516
  %v523 = vmul.f32 %v503, %v516
  %v524 = vmul.f32 %v504, %v516
  %v525 = vmul.f32 %v505, %v516
  %v526 = vmul.f32 %v506, %v516
  %v527 = vmul.f32 %v507, %v516
  %v528 = vmul.f32 %v508, %v516
  %v529 = vmul.f32 %v509, %v516
  %v530 = vmul.f32 %v510, %v516
  %v531 = vmul.f32 %v511, %v516
  %v532 = vmul.f32 %v512, %v516
  %533 = vst [vmem:[%s2] sm:$0xff] %v517
  %534 = vst [vmem:[%s2 + $0x8] sm:$0xff] %v518
  %535 = vst [vmem:[%s2 + $0x10] sm:$0xff] %v519
  %536 = vst [vmem:[%s2 + $0x18] sm:$0xff] %v520
  %537 = vst [vmem:[%s2 + $0x20] sm:$0xff] %v521
  %538 = vst [vmem:[%s2 + $0x28] sm:$0xff] %v522
  %539 = vst [vmem:[%s2 + $0x30] sm:$0xff] %v523
  %540 = vst [vmem:[%s2 + $0x38] sm:$0xff] %v524
  %541 = vst [vmem:[%s2 + $0x40] sm:$0xff] %v525
  %542 = vst [vmem:[%s2 + $0x48] sm:$0xff] %v526
  %543 = vst [vmem:[%s2 + $0x50] sm:$0xff] %v527
  %544 = vst [vmem:[%s2 + $0x58] sm:$0xff] %v528
  %545 = vst [vmem:[%s2 + $0x60] sm:$0xff] %v529
  %546 = vst [vmem:[%s2 + $0x68] sm:$0xff] %v530
  %547 = vst [vmem:[%s2 + $0x70] sm:$0xff] %v531
  %548 = vst [vmem:[%s2 + $0x78] sm:$0xff] %v532
  // Predicated region
  $region10: #{_lambda_.16} parent=0 // pred_check
    _
  $region11: #{_lambda_.16} parent=0 // pred_check_branch
    %550 = sbr.rel (0) target = $region13
  $region12: #{_lambda_.16} parent=0 // pred_region
    _
  $region13: #{_lambda_.16} parent=0 // pred_fallthru
    _
  // Predicated region
  $region14: #{_lambda_.16} parent=0 // pred_check
    _
  $region15: #{_lambda_.16} parent=0 // pred_check_branch
    %552 = sbr.rel (0) target = $region17
  $region16: #{_lambda_.16} parent=0 // pred_region
    _
  $region17: #{_lambda_.16} parent=0 // pred_fallthru
    _

// kernel: _lambda_.19
$region0: #{_lambda_.19}
  #allocation0 [shape = 'u32[]', space=smem, size = 0x4, offset = 0x4, fixed_abs, tag = 'smem constant byte address 0x4 - core index']
  #allocation1 [shape = 'u32[144,128]{1,0:T(1,128)}', space=vmem, size = 0x12000, scoped, tag = 'internal scratch']
  %s0 = inlined_call_operand.vmem [shape: f32[512,128], index: 0, kind: input, shape index: {}]
  %s1 = inlined_call_operand.vmem [shape: f32[8,128], index: 1, kind: input, shape index: {}]
  %s2 = inlined_call_operand.vmem [shape: f32[512,128], index: 2, kind: output, shape index: {}]
  %s3 = sld [smem:[#allocation0]]
  $region41: #{_lambda_.19} parent=0
    _
  %s5 = ssub.s32 1, %s3
  %s6 = scalar_select 0, %s5, %s3
  loop: start=0, step=1, limit=4
  $region2: #{_lambda_.19} parent=0 // loop_pre_header
    _
  $region3: #{_lambda_.19} parent=0 // loop_header
    %s8 = sphi 0, %s12
    %p9 = scmp.ge.s32.totalorder %s8, 4
    %s18 = sphi 0, %s20
    %s21 = sphi 0, %s18
    %s22 = sphi 0, %s21
    %s38 = sphi 0, %s22
    %s42 = sphi 0, %s42
    %s44 = sphi 0, %s42
    %s45 = sphi 0, %s44
    %s59 = sphi 0, %s45
    %s65 = sphi 0, %s67
    %s68 = sphi 0, %s65
    %s69 = sphi 0, %s68
    %s85 = sphi 0, %s69
  $region4: #{_lambda_.19} parent=0 // loop_header_branch
    %11 = sbr.rel (%p9) target = $region8
  $region5: #{_lambda_.19} parent=0 // loop_body
    %s13 = ssub.s32 %s8, 1
    %s14 = ssub.s32 %s8, 2
    %s15 = sadd.s32 %s8, 1
    %s16 = ssub.s32 %s8, %s15
    %p17 = scmp.eq.s32.totalorder %s16, 0
    %s19 = sadd.s32 %s18, 1
    %s20 = scalar_select %p17, %s18, %s19
    %p23 = pneg %p17
    %p24 = scmp.eq.s32.totalorder %s8, 1
    %p25 = por %p23, %p24
    %p26 = scmp.ne.s32.totalorder %s18, %s21
    %p27 = scmp.eq.s32.totalorder %s8, 0
    %p28 = por %p26, %p27
    %p29 = scmp.ne.s32.totalorder %s18, %s21
    %p30 = scmp.eq.s32.totalorder %s13, 1
    %p31 = por %p29, %p30
    %p32 = scmp.ne.s32.totalorder %s21, %s22
    %p33 = scmp.eq.s32.totalorder %s13, 0
    %p34 = por %p32, %p33
    %p35 = scmp.ne.s32.totalorder %s21, %s22
    %p36 = scmp.eq.s32.totalorder %s14, 1
    %p37 = por %p35, %p36
    %p39 = scmp.ne.s32.totalorder %s22, %s38
    %p40 = scmp.eq.s32.totalorder %s14, 0
    %p41 = por %p39, %p40
    %s43 = sadd.s32 %s42, 1
    %p46 = scmp.eq.s32.totalorder %s8, 1
    %p47 = scmp.ne.s32.totalorder %s42, %s44
    %p48 = scmp.eq.s32.totalorder %s8, 0
    %p49 = por %p47, %p48
    %p50 = scmp.ne.s32.totalorder %s42, %s44
    %p51 = scmp.eq.s32.totalorder %s13, 1
    %p52 = por %p50, %p51
    %p53 = scmp.ne.s32.totalorder %s44, %s45
    %p54 = scmp.eq.s32.totalorder %s13, 0
    %p55 = por %p53, %p54
    %p56 = scmp.ne.s32.totalorder %s44, %s45
    %p57 = scmp.eq.s32.totalorder %s14, 1
    %p58 = por %p56, %p57
    %p60 = scmp.ne.s32.totalorder %s45, %s59
    %p61 = scmp.eq.s32.totalorder %s14, 0
    %p62 = por %p60, %p61
    %s63 = ssub.s32 %s8, %s15
    %p64 = scmp.eq.s32.totalorder %s63, 0
    %s66 = sadd.s32 %s65, 1
    %s67 = scalar_select %p64, %s65, %s66
    %p70 = pneg %p64
    %p71 = scmp.eq.s32.totalorder %s8, 1
    %p72 = por %p70, %p71
    %p73 = scmp.ne.s32.totalorder %s65, %s68
    %p74 = scmp.eq.s32.totalorder %s8, 0
    %p75 = por %p73, %p74
    %p76 = scmp.ne.s32.totalorder %s65, %s68
    %p77 = scmp.eq.s32.totalorder %s13, 1
    %p78 = por %p76, %p77
    %p79 = scmp.ne.s32.totalorder %s68, %s69
    %p80 = scmp.eq.s32.totalorder %s13, 0
    %p81 = por %p79, %p80
    %p82 = scmp.ne.s32.totalorder %s68, %s69
    %p83 = scmp.eq.s32.totalorder %s14, 1
    %p84 = por %p82, %p83
    %p86 = scmp.ne.s32.totalorder %s69, %s85
    %p87 = scmp.eq.s32.totalorder %s14, 0
    %p88 = por %p86, %p87
    %p89 = scmp.le.s32.totalorder 1, %s8
    %p90 = scmp.lt.s32.totalorder %s8, 3
    %p91 = pnand %p89, %p90
    %p92 = pneg %p91
    // Predicated region
    $region9: #{_lambda_.19} parent=5 // pred_check
      _
    $region10: #{_lambda_.19} parent=5 // pred_check_branch
      %94 = sbr.rel (%p91) target = $region12
    $region11: #{_lambda_.19} parent=5 // pred_region
      %s95 = ssub.s32 %s8, 1
      // Predicated region
      $region13: #{_lambda_.19} parent=11 // pred_check
        %p96 = pneg %p55
      $region14: #{_lambda_.19} parent=11 // pred_check_branch
        %98 = sbr.rel (%p96) target = $region16
      $region15: #{_lambda_.19} parent=11 // pred_region
        _
      $region16: #{_lambda_.19} parent=11 // pred_fallthru
        _
    $region12: #{_lambda_.19} parent=5 // pred_fallthru
      _
    %p99 = scmp.lt.s32.totalorder %s8, 2
    // Predicated region
    $region17: #{_lambda_.19} parent=5 // pred_check
      %p100 = pneg %p99
    $region18: #{_lambda_.19} parent=5 // pred_check_branch
      %102 = sbr.rel (%p100) target = $region20
    $region19: #{_lambda_.19} parent=5 // pred_region
      // Predicated region
      $region21: #{_lambda_.19} parent=19 // pred_check
        %p103 = pneg %p28
      $region22: #{_lambda_.19} parent=19 // pred_check_branch
        %105 = sbr.rel (%p103) target = $region24
      $region23: #{_lambda_.19} parent=19 // pred_region
        %s106 = smul.u32 32, %s8
        %p107 = scmp.lt.s32.totalorder %s106, 63
        %s108 = scalar_select %p107, %s106, 63
        %s109 = smul.addr %s108, 8
        %s110 = scalar_lea.vmem %s0, %s109
        %s111 = smul.u32 32, %s8
      $region24: #{_lambda_.19} parent=19 // pred_fallthru
        _
    $region20: #{_lambda_.19} parent=5 // pred_fallthru
      _
    %p112 = scmp.le.s32.totalorder 1, %s8
    %p113 = scmp.lt.s32.totalorder %s8, 3
    %p114 = pnand %p112, %p113
    %p115 = pneg %p114
    // Predicated region
    $region25: #{_lambda_.19} parent=5 // pred_check
      _
    $region26: #{_lambda_.19} parent=5 // pred_check_branch
      %117 = sbr.rel (%p114) target = $region28
    $region27: #{_lambda_.19} parent=5 // pred_region
      %s118 = ssub.s32 %s8, 1
      %s119 = smul.u32 32, %s13
      %p120 = scmp.lt.s32.totalorder %s119, 63
      %s121 = scalar_select %p120, %s119, 63
      %s122 = smul.addr %s121, 8
      %s123 = scalar_lea.vmem %s0, %s122
      %p124 = pneg %p34
      %p125 = pneg %p31
      %p126 = pneg %p55
      %p127 = pneg %p52
      %p128 = pneg %p81
      %p129 = pneg %p78
      %s130 = smul.u32 32, %s13
      %p131 = scmp.lt.s32.totalorder %s130, 63
      %s132 = scalar_select %p131, %s130, 63
      %s133 = smul.addr %s132, 8
      %s134 = scalar_lea.vmem %s2, %s133
      %s135 = smul.u32 32, %s13
      %p136 = scmp.lt.s32.totalorder %s135, 63
      %s137 = scalar_select %p136, %s135, 63
      %s138 = smul.addr %s137, 8
      %s139 = scalar_lea.vmem %s0, %s138
      %s140 = smul.u32 32, %s13
      %s141 = smul.u32 32, %s13
      %p142 = scmp.lt.s32.totalorder %s141, 63
      %s143 = scalar_select %p142, %s141, 63
      %s144 = smul.addr %s143, 8
      %s145 = scalar_lea.vmem %s2, %s144
      %s146 = smul.u32 32, %s13
      %v147 = vld [vmem:[%s139] sm:$0xff]
      %v148 = vld [vmem:[%s139 + $0x8] sm:$0xff]
      %v149 = vld [vmem:[%s139 + $0x10] sm:$0xff]
      %v150 = vld [vmem:[%s139 + $0x18] sm:$0xff]
      %v151 = vld [vmem:[%s139 + $0x20] sm:$0xff]
      %v152 = vld [vmem:[%s139 + $0x28] sm:$0xff]
      %v153 = vld [vmem:[%s139 + $0x30] sm:$0xff]
      %v154 = vld [vmem:[%s139 + $0x38] sm:$0xff]
      %v155 = vld [vmem:[%s139 + $0x40] sm:$0xff]
      %v156 = vld [vmem:[%s139 + $0x48] sm:$0xff]
      %v157 = vld [vmem:[%s139 + $0x50] sm:$0xff]
      %v158 = vld [vmem:[%s139 + $0x58] sm:$0xff]
      %v159 = vld [vmem:[%s139 + $0x60] sm:$0xff]
      %v160 = vld [vmem:[%s139 + $0x68] sm:$0xff]
      %v161 = vld [vmem:[%s139 + $0x70] sm:$0xff]
      %v162 = vld [vmem:[%s139 + $0x78] sm:$0xff]
      %v163 = vld [vmem:[%s139 + $0x80] sm:$0xff]
      %v164 = vld [vmem:[%s139 + $0x88] sm:$0xff]
      %v165 = vld [vmem:[%s139 + $0x90] sm:$0xff]
      %v166 = vld [vmem:[%s139 + $0x98] sm:$0xff]
      %v167 = vld [vmem:[%s139 + $0xa0] sm:$0xff]
      %v168 = vld [vmem:[%s139 + $0xa8] sm:$0xff]
      %v169 = vld [vmem:[%s139 + $0xb0] sm:$0xff]
      %v170 = vld [vmem:[%s139 + $0xb8] sm:$0xff]
      %v171 = vld [vmem:[%s139 + $0xc0] sm:$0xff]
      %v172 = vld [vmem:[%s139 + $0xc8] sm:$0xff]
      %v173 = vld [vmem:[%s139 + $0xd0] sm:$0xff]
      %v174 = vld [vmem:[%s139 + $0xd8] sm:$0xff]
      %v175 = vld [vmem:[%s139 + $0xe0] sm:$0xff]
      %v176 = vld [vmem:[%s139 + $0xe8] sm:$0xff]
      %v177 = vld [vmem:[%s139 + $0xf0] sm:$0xff]
      %v178 = vld [vmem:[%s139 + $0xf8] sm:$0xff]
      %v179 = vld [vmem:[%s1] sm:$0x1]
      %vm180 = vcmp.gt.f32.partialorder %v179, 0.5
      %v181 = vld [vmem:[%s1 + $0x1] sm:$0x1]
      %vm182 = vcmp.gt.f32.partialorder %v181, 0.5
      %v183 = vld [vmem:[%s1 + $0x2] sm:$0x1]
      %v184 = vld [vmem:[%s1 + $0x3] sm:$0x1]
      %v185 = vld [vmem:[%s1 + $0x4] sm:$0x1]
      %v186 = vld [vmem:[%s1 + $0x5] sm:$0x1]
      %s187 = smul.u32 %s13, 256
      %s188 = scvt.s32.f32 %s187
      %v189 = vlaneseq
      %v190 = vshrl.u32 %v189, 7
      %v191 = vadd.s32 %v190, 8
      %v192 = vadd.s32 %v190, 16
      %v193 = vadd.s32 %v190, 24
      %v194 = vadd.s32 %v190, 32
      %v195 = vadd.s32 %v190, 40
      %v196 = vadd.s32 %v190, 48
      %v197 = vadd.s32 %v190, 56
      %v198 = vadd.s32 %v190, 64
      %v199 = vadd.s32 %v190, 72
      %v200 = vadd.s32 %v190, 80
      %v201 = vadd.s32 %v190, 88
      %v202 = vadd.s32 %v190, 96
      %v203 = vadd.s32 %v190, 104
      %v204 = vadd.s32 %v190, 112
      %v205 = vadd.s32 %v190, 120
      %v206 = vadd.s32 %v190, 128
      %v207 = vadd.s32 %v190, 136
      %v208 = vadd.s32 %v190, 144
      %v209 = vadd.s32 %v190, 152
      %v210 = vadd.s32 %v190, 160
      %v211 = vadd.s32 %v190, 168
      %v212 = vadd.s32 %v190, 176
      %v213 = vadd.s32 %v190, 184
      %v214 = vadd.s32 %v190, 192
      %v215 = vadd.s32 %v190, 200
      %v216 = vadd.s32 %v190, 208
      %v217 = vadd.s32 %v190, 216
      %v218 = vadd.s32 %v190, 224
      %v219 = vadd.s32 %v190, 232
      %v220 = vadd.s32 %v190, 240
      %v221 = vadd.s32 %v190, 248
      %v222 = vcvt.s32.f32 %v190
      %v223 = vcvt.s32.f32 %v191
      %v224 = vcvt.s32.f32 %v192
      %v225 = vcvt.s32.f32 %v193
      %v226 = vcvt.s32.f32 %v194
      %v227 = vcvt.s32.f32 %v195
      %v228 = vcvt.s32.f32 %v196
      %v229 = vcvt.s32.f32 %v197
      %v230 = vcvt.s32.f32 %v198
      %v231 = vcvt.s32.f32 %v199
      %v232 = vcvt.s32.f32 %v200
      %v233 = vcvt.s32.f32 %v201
      %v234 = vcvt.s32.f32 %v202
      %v235 = vcvt.s32.f32 %v203
      %v236 = vcvt.s32.f32 %v204
      %v237 = vcvt.s32.f32 %v205
      %v238 = vcvt.s32.f32 %v206
      %v239 = vcvt.s32.f32 %v207
      %v240 = vcvt.s32.f32 %v208
      %v241 = vcvt.s32.f32 %v209
      %v242 = vcvt.s32.f32 %v210
      %v243 = vcvt.s32.f32 %v211
      %v244 = vcvt.s32.f32 %v212
      %v245 = vcvt.s32.f32 %v213
      %v246 = vcvt.s32.f32 %v214
      %v247 = vcvt.s32.f32 %v215
      %v248 = vcvt.s32.f32 %v216
      %v249 = vcvt.s32.f32 %v217
      %v250 = vcvt.s32.f32 %v218
      %v251 = vcvt.s32.f32 %v219
      %v252 = vcvt.s32.f32 %v220
      %v253 = vcvt.s32.f32 %v221
      %v254 = vstv %s188
      %v255 = vadd.f32 %v222, %v254
      %v256 = vadd.f32 %v223, %v254
      %v257 = vadd.f32 %v224, %v254
      %v258 = vadd.f32 %v225, %v254
      %v259 = vadd.f32 %v226, %v254
      %v260 = vadd.f32 %v227, %v254
      %v261 = vadd.f32 %v228, %v254
      %v262 = vadd.f32 %v229, %v254
      %v263 = vadd.f32 %v230, %v254
      %v264 = vadd.f32 %v231, %v254
      %v265 = vadd.f32 %v232, %v254
      %v266 = vadd.f32 %v233, %v254
      %v267 = vadd.f32 %v234, %v254
      %v268 = vadd.f32 %v235, %v254
      %v269 = vadd.f32 %v236, %v254
      %v270 = vadd.f32 %v237, %v254
      %v271 = vadd.f32 %v238, %v254
      %v272 = vadd.f32 %v239, %v254
      %v273 = vadd.f32 %v240, %v254
      %v274 = vadd.f32 %v241, %v254
      %v275 = vadd.f32 %v242, %v254
      %v276 = vadd.f32 %v243, %v254
      %v277 = vadd.f32 %v244, %v254
      %v278 = vadd.f32 %v245, %v254
      %v279 = vadd.f32 %v246, %v254
      %v280 = vadd.f32 %v247, %v254
      %v281 = vadd.f32 %v248, %v254
      %v282 = vadd.f32 %v249, %v254
      %v283 = vadd.f32 %v250, %v254
      %v284 = vadd.f32 %v251, %v254
      %v285 = vadd.f32 %v252, %v254
      %v286 = vadd.f32 %v253, %v254
      %v287 = vadd.f32 %v255, 0.5
      %v288 = vadd.f32 %v256, 0.5
      %v289 = vadd.f32 %v257, 0.5
      %v290 = vadd.f32 %v258, 0.5
      %v291 = vadd.f32 %v259, 0.5
      %v292 = vadd.f32 %v260, 0.5
      %v293 = vadd.f32 %v261, 0.5
      %v294 = vadd.f32 %v262, 0.5
      %v295 = vadd.f32 %v263, 0.5
      %v296 = vadd.f32 %v264, 0.5
      %v297 = vadd.f32 %v265, 0.5
      %v298 = vadd.f32 %v266, 0.5
      %v299 = vadd.f32 %v267, 0.5
      %v300 = vadd.f32 %v268, 0.5
      %v301 = vadd.f32 %v269, 0.5
      %v302 = vadd.f32 %v270, 0.5
      %v303 = vadd.f32 %v271, 0.5
      %v304 = vadd.f32 %v272, 0.5
      %v305 = vadd.f32 %v273, 0.5
      %v306 = vadd.f32 %v274, 0.5
      %v307 = vadd.f32 %v275, 0.5
      %v308 = vadd.f32 %v276, 0.5
      %v309 = vadd.f32 %v277, 0.5
      %v310 = vadd.f32 %v278, 0.5
      %v311 = vadd.f32 %v279, 0.5
      %v312 = vadd.f32 %v280, 0.5
      %v313 = vadd.f32 %v281, 0.5
      %v314 = vadd.f32 %v282, 0.5
      %v315 = vadd.f32 %v283, 0.5
      %v316 = vadd.f32 %v284, 0.5
      %v317 = vadd.f32 %v285, 0.5
      %v318 = vadd.f32 %v286, 0.5
      %v319 = vrcp.pop 256.0
      %v320 = vmul.f32 %v287, %v319
      %v321 = vmul.f32 %v288, %v319
      %v322 = vmul.f32 %v289, %v319
      %v323 = vmul.f32 %v290, %v319
      %v324 = vmul.f32 %v291, %v319
      %v325 = vmul.f32 %v292, %v319
      %v326 = vmul.f32 %v293, %v319
      %v327 = vmul.f32 %v294, %v319
      %v328 = vmul.f32 %v295, %v319
      %v329 = vmul.f32 %v296, %v319
      %v330 = vmul.f32 %v297, %v319
      %v331 = vmul.f32 %v298, %v319
      %v332 = vmul.f32 %v299, %v319
      %v333 = vmul.f32 %v300, %v319
      %v334 = vmul.f32 %v301, %v319
      %v335 = vmul.f32 %v302, %v319
      %v336 = vmul.f32 %v303, %v319
      %v337 = vmul.f32 %v304, %v319
      %v338 = vmul.f32 %v305, %v319
      %v339 = vmul.f32 %v306, %v319
      %v340 = vmul.f32 %v307, %v319
      %v341 = vmul.f32 %v308, %v319
      %v342 = vmul.f32 %v309, %v319
      %v343 = vmul.f32 %v310, %v319
      %v344 = vmul.f32 %v311, %v319
      %v345 = vmul.f32 %v312, %v319
      %v346 = vmul.f32 %v313, %v319
      %v347 = vmul.f32 %v314, %v319
      %v348 = vmul.f32 %v315, %v319
      %v349 = vmul.f32 %v316, %v319
      %v350 = vmul.f32 %v317, %v319
      %v351 = vmul.f32 %v318, %v319
      %v352 = vfloor.f32 %v320
      %v353 = vfloor.f32 %v321
      %v354 = vfloor.f32 %v322
      %v355 = vfloor.f32 %v323
      %v356 = vfloor.f32 %v324
      %v357 = vfloor.f32 %v325
      %v358 = vfloor.f32 %v326
      %v359 = vfloor.f32 %v327
      %v360 = vfloor.f32 %v328
      %v361 = vfloor.f32 %v329
      %v362 = vfloor.f32 %v330
      %v363 = vfloor.f32 %v331
      %v364 = vfloor.f32 %v332
      %v365 = vfloor.f32 %v333
      %v366 = vfloor.f32 %v334
      %v367 = vfloor.f32 %v335
      %v368 = vfloor.f32 %v336
      %v369 = vfloor.f32 %v337
      %v370 = vfloor.f32 %v338
      %v371 = vfloor.f32 %v339
      %v372 = vfloor.f32 %v340
      %v373 = vfloor.f32 %v341
      %v374 = vfloor.f32 %v342
      %v375 = vfloor.f32 %v343
      %v376 = vfloor.f32 %v344
      %v377 = vfloor.f32 %v345
      %v378 = vfloor.f32 %v346
      %v379 = vfloor.f32 %v347
      %v380 = vfloor.f32 %v348
      %v381 = vfloor.f32 %v349
      %v382 = vfloor.f32 %v350
      %v383 = vfloor.f32 %v351
      %v384 = vmul.f32 %v352, 256.0
      %v385 = vmul.f32 %v353, 256.0
      %v386 = vmul.f32 %v354, 256.0
      %v387 = vmul.f32 %v355, 256.0
      %v388 = vmul.f32 %v356, 256.0
      %v389 = vmul.f32 %v357, 256.0
      %v390 = vmul.f32 %v358, 256.0
      %v391 = vmul.f32 %v359, 256.0
      %v392 = vmul.f32 %v360, 256.0
      %v393 = vmul.f32 %v361, 256.0
      %v394 = vmul.f32 %v362, 256.0
      %v395 = vmul.f32 %v363, 256.0
      %v396 = vmul.f32 %v364, 256.0
      %v397 = vmul.f32 %v365, 256.0
      %v398 = vmul.f32 %v366, 256.0
      %v399 = vmul.f32 %v367, 256.0
      %v400 = vmul.f32 %v368, 256.0
      %v401 = vmul.f32 %v369, 256.0
      %v402 = vmul.f32 %v370, 256.0
      %v403 = vmul.f32 %v371, 256.0
      %v404 = vmul.f32 %v372, 256.0
      %v405 = vmul.f32 %v373, 256.0
      %v406 = vmul.f32 %v374, 256.0
      %v407 = vmul.f32 %v375, 256.0
      %v408 = vmul.f32 %v376, 256.0
      %v409 = vmul.f32 %v377, 256.0
      %v410 = vmul.f32 %v378, 256.0
      %v411 = vmul.f32 %v379, 256.0
      %v412 = vmul.f32 %v380, 256.0
      %v413 = vmul.f32 %v381, 256.0
      %v414 = vmul.f32 %v382, 256.0
      %v415 = vmul.f32 %v383, 256.0
      %v416 = vsub.f32 %v255, %v384
      %v417 = vsub.f32 %v256, %v385
      %v418 = vsub.f32 %v257, %v386
      %v419 = vsub.f32 %v258, %v387
      %v420 = vsub.f32 %v259, %v388
      %v421 = vsub.f32 %v260, %v389
      %v422 = vsub.f32 %v261, %v390
      %v423 = vsub.f32 %v262, %v391
      %v424 = vsub.f32 %v263, %v392
      %v425 = vsub.f32 %v264, %v393
      %v426 = vsub.f32 %v265, %v394
      %v427 = vsub.f32 %v266, %v395
      %v428 = vsub.f32 %v267, %v396
      %v429 = vsub.f32 %v268, %v397
      %v430 = vsub.f32 %v269, %v398
      %v431 = vsub.f32 %v270, %v399
      %v432 = vsub.f32 %v271, %v400
      %v433 = vsub.f32 %v272, %v401
      %v434 = vsub.f32 %v273, %v402
      %v435 = vsub.f32 %v274, %v403
      %v436 = vsub.f32 %v275, %v404
      %v437 = vsub.f32 %v276, %v405
      %v438 = vsub.f32 %v277, %v406
      %v439 = vsub.f32 %v278, %v407
      %v440 = vsub.f32 %v279, %v408
      %v441 = vsub.f32 %v280, %v409
      %v442 = vsub.f32 %v281, %v410
      %v443 = vsub.f32 %v282, %v411
      %v444 = vsub.f32 %v283, %v412
      %v445 = vsub.f32 %v284, %v413
      %v446 = vsub.f32 %v285, %v414
      %v447 = vsub.f32 %v286, %v415
      %v448 = vadd.f32 %v416, 0.5
      %v449 = vadd.f32 %v417, 0.5
      %v450 = vadd.f32 %v418, 0.5
      %v451 = vadd.f32 %v419, 0.5
      %v452 = vadd.f32 %v420, 0.5
      %v453 = vadd.f32 %v421, 0.5
      %v454 = vadd.f32 %v422, 0.5
      %v455 = vadd.f32 %v423, 0.5
      %v456 = vadd.f32 %v424, 0.5
      %v457 = vadd.f32 %v425, 0.5
      %v458 = vadd.f32 %v426, 0.5
      %v459 = vadd.f32 %v427, 0.5
      %v460 = vadd.f32 %v428, 0.5
      %v461 = vadd.f32 %v429, 0.5
      %v462 = vadd.f32 %v430, 0.5
      %v463 = vadd.f32 %v431, 0.5
      %v464 = vadd.f32 %v432, 0.5
      %v465 = vadd.f32 %v433, 0.5
      %v466 = vadd.f32 %v434, 0.5
      %v467 = vadd.f32 %v435, 0.5
      %v468 = vadd.f32 %v436, 0.5
      %v469 = vadd.f32 %v437, 0.5
      %v470 = vadd.f32 %v438, 0.5
      %v471 = vadd.f32 %v439, 0.5
      %v472 = vadd.f32 %v440, 0.5
      %v473 = vadd.f32 %v441, 0.5
      %v474 = vadd.f32 %v442, 0.5
      %v475 = vadd.f32 %v443, 0.5
      %v476 = vadd.f32 %v444, 0.5
      %v477 = vadd.f32 %v445, 0.5
      %v478 = vadd.f32 %v446, 0.5
      %v479 = vadd.f32 %v447, 0.5
      %v480 = vrcp.pop 16.0
      %v481 = vmul.f32 %v448, %v480
      %v482 = vmul.f32 %v449, %v480
      %v483 = vmul.f32 %v450, %v480
      %v484 = vmul.f32 %v451, %v480
      %v485 = vmul.f32 %v452, %v480
      %v486 = vmul.f32 %v453, %v480
      %v487 = vmul.f32 %v454, %v480
      %v488 = vmul.f32 %v455, %v480
      %v489 = vmul.f32 %v456, %v480
      %v490 = vmul.f32 %v457, %v480
      %v491 = vmul.f32 %v458, %v480
      %v492 = vmul.f32 %v459, %v480
      %v493 = vmul.f32 %v460, %v480
      %v494 = vmul.f32 %v461, %v480
      %v495 = vmul.f32 %v462, %v480
      %v496 = vmul.f32 %v463, %v480
      %v497 = vmul.f32 %v464, %v480
      %v498 = vmul.f32 %v465, %v480
      %v499 = vmul.f32 %v466, %v480
      %v500 = vmul.f32 %v467, %v480
      %v501 = vmul.f32 %v468, %v480
      %v502 = vmul.f32 %v469, %v480
      %v503 = vmul.f32 %v470, %v480
      %v504 = vmul.f32 %v471, %v480
      %v505 = vmul.f32 %v472, %v480
      %v506 = vmul.f32 %v473, %v480
      %v507 = vmul.f32 %v474, %v480
      %v508 = vmul.f32 %v475, %v480
      %v509 = vmul.f32 %v476, %v480
      %v510 = vmul.f32 %v477, %v480
      %v511 = vmul.f32 %v478, %v480
      %v512 = vmul.f32 %v479, %v480
      %v513 = vfloor.f32 %v481
      %v514 = vfloor.f32 %v482
      %v515 = vfloor.f32 %v483
      %v516 = vfloor.f32 %v484
      %v517 = vfloor.f32 %v485
      %v518 = vfloor.f32 %v486
      %v519 = vfloor.f32 %v487
      %v520 = vfloor.f32 %v488
      %v521 = vfloor.f32 %v489
      %v522 = vfloor.f32 %v490
      %v523 = vfloor.f32 %v491
      %v524 = vfloor.f32 %v492
      %v525 = vfloor.f32 %v493
      %v526 = vfloor.f32 %v494
      %v527 = vfloor.f32 %v495
      %v528 = vfloor.f32 %v496
      %v529 = vfloor.f32 %v497
      %v530 = vfloor.f32 %v498
      %v531 = vfloor.f32 %v499
      %v532 = vfloor.f32 %v500
      %v533 = vfloor.f32 %v501
      %v534 = vfloor.f32 %v502
      %v535 = vfloor.f32 %v503
      %v536 = vfloor.f32 %v504
      %v537 = vfloor.f32 %v505
      %v538 = vfloor.f32 %v506
      %v539 = vfloor.f32 %v507
      %v540 = vfloor.f32 %v508
      %v541 = vfloor.f32 %v509
      %v542 = vfloor.f32 %v510
      %v543 = vfloor.f32 %v511
      %v544 = vfloor.f32 %v512
      %v545 = vmul.f32 %v513, 16.0
      %v546 = vmul.f32 %v514, 16.0
      %v547 = vmul.f32 %v515, 16.0
      %v548 = vmul.f32 %v516, 16.0
      %v549 = vmul.f32 %v517, 16.0
      %v550 = vmul.f32 %v518, 16.0
      %v551 = vmul.f32 %v519, 16.0
      %v552 = vmul.f32 %v520, 16.0
      %v553 = vmul.f32 %v521, 16.0
      %v554 = vmul.f32 %v522, 16.0
      %v555 = vmul.f32 %v523, 16.0
      %v556 = vmul.f32 %v524, 16.0
      %v557 = vmul.f32 %v525, 16.0
      %v558 = vmul.f32 %v526, 16.0
      %v559 = vmul.f32 %v527, 16.0
      %v560 = vmul.f32 %v528, 16.0
      %v561 = vmul.f32 %v529, 16.0
      %v562 = vmul.f32 %v530, 16.0
      %v563 = vmul.f32 %v531, 16.0
      %v564 = vmul.f32 %v532, 16.0
      %v565 = vmul.f32 %v533, 16.0
      %v566 = vmul.f32 %v534, 16.0
      %v567 = vmul.f32 %v535, 16.0
      %v568 = vmul.f32 %v536, 16.0
      %v569 = vmul.f32 %v537, 16.0
      %v570 = vmul.f32 %v538, 16.0
      %v571 = vmul.f32 %v539, 16.0
      %v572 = vmul.f32 %v540, 16.0
      %v573 = vmul.f32 %v541, 16.0
      %v574 = vmul.f32 %v542, 16.0
      %v575 = vmul.f32 %v543, 16.0
      %v576 = vmul.f32 %v544, 16.0
      %v577 = vsub.f32 %v416, %v545
      %v578 = vsub.f32 %v417, %v546
      %v579 = vsub.f32 %v418, %v547
      %v580 = vsub.f32 %v419, %v548
      %v581 = vsub.f32 %v420, %v549
      %v582 = vsub.f32 %v421, %v550
      %v583 = vsub.f32 %v422, %v551
      %v584 = vsub.f32 %v423, %v552
      %v585 = vsub.f32 %v424, %v553
      %v586 = vsub.f32 %v425, %v554
      %v587 = vsub.f32 %v426, %v555
      %v588 = vsub.f32 %v427, %v556
      %v589 = vsub.f32 %v428, %v557
      %v590 = vsub.f32 %v429, %v558
      %v591 = vsub.f32 %v430, %v559
      %v592 = vsub.f32 %v431, %v560
      %v593 = vsub.f32 %v432, %v561
      %v594 = vsub.f32 %v433, %v562
      %v595 = vsub.f32 %v434, %v563
      %v596 = vsub.f32 %v435, %v564
      %v597 = vsub.f32 %v436, %v565
      %v598 = vsub.f32 %v437, %v566
      %v599 = vsub.f32 %v438, %v567
      %v600 = vsub.f32 %v439, %v568
      %v601 = vsub.f32 %v440, %v569
      %v602 = vsub.f32 %v441, %v570
      %v603 = vsub.f32 %v442, %v571
      %v604 = vsub.f32 %v443, %v572
      %v605 = vsub.f32 %v444, %v573
      %v606 = vsub.f32 %v445, %v574
      %v607 = vsub.f32 %v446, %v575
      %v608 = vsub.f32 %v447, %v576
      %v609 = vxor.u32 %v147, 2147483648
      %v610 = vxor.u32 %v148, 2147483648
      %v611 = vxor.u32 %v149, 2147483648
      %v612 = vxor.u32 %v150, 2147483648
      %v613 = vxor.u32 %v151, 2147483648
      %v614 = vxor.u32 %v152, 2147483648
      %v615 = vxor.u32 %v153, 2147483648
      %v616 = vxor.u32 %v154, 2147483648
      %v617 = vxor.u32 %v155, 2147483648
      %v618 = vxor.u32 %v156, 2147483648
      %v619 = vxor.u32 %v157, 2147483648
      %v620 = vxor.u32 %v158, 2147483648
      %v621 = vxor.u32 %v159, 2147483648
      %v622 = vxor.u32 %v160, 2147483648
      %v623 = vxor.u32 %v161, 2147483648
      %v624 = vxor.u32 %v162, 2147483648
      %v625 = vxor.u32 %v163, 2147483648
      %v626 = vxor.u32 %v164, 2147483648
      %v627 = vxor.u32 %v165, 2147483648
      %v628 = vxor.u32 %v166, 2147483648
      %v629 = vxor.u32 %v167, 2147483648
      %v630 = vxor.u32 %v168, 2147483648
      %v631 = vxor.u32 %v169, 2147483648
      %v632 = vxor.u32 %v170, 2147483648
      %v633 = vxor.u32 %v171, 2147483648
      %v634 = vxor.u32 %v172, 2147483648
      %v635 = vxor.u32 %v173, 2147483648
      %v636 = vxor.u32 %v174, 2147483648
      %v637 = vxor.u32 %v175, 2147483648
      %v638 = vxor.u32 %v176, 2147483648
      %v639 = vxor.u32 %v177, 2147483648
      %v640 = vxor.u32 %v178, 2147483648
      %v641 = vmul.f32 %v609, 1.442695
      %v642 = vpow.pop %v641
      %v643 = vmul.f32 %v610, 1.442695
      %v644 = vpow.pop %v643
      %v645 = vmul.f32 %v611, 1.442695
      %v646 = vpow.pop %v645
      %v647 = vmul.f32 %v612, 1.442695
      %v648 = vpow.pop %v647
      %v649 = vmul.f32 %v613, 1.442695
      %v650 = vpow.pop %v649
      %v651 = vmul.f32 %v614, 1.442695
      %v652 = vpow.pop %v651
      %v653 = vmul.f32 %v615, 1.442695
      %v654 = vpow.pop %v653
      %v655 = vmul.f32 %v616, 1.442695
      %v656 = vpow.pop %v655
      %v657 = vmul.f32 %v617, 1.442695
      %v658 = vpow.pop %v657
      %v659 = vmul.f32 %v618, 1.442695
      %v660 = vpow.pop %v659
      %v661 = vmul.f32 %v619, 1.442695
      %v662 = vpow.pop %v661
      %v663 = vmul.f32 %v620, 1.442695
      %v664 = vpow.pop %v663
      %v665 = vmul.f32 %v621, 1.442695
      %v666 = vpow.pop %v665
      %v667 = vmul.f32 %v622, 1.442695
      %v668 = vpow.pop %v667
      %v669 = vmul.f32 %v623, 1.442695
      %v670 = vpow.pop %v669
      %v671 = vmul.f32 %v624, 1.442695
      %v672 = vpow.pop %v671
      %v673 = vmul.f32 %v625, 1.442695
      %v674 = vpow.pop %v673
      %v675 = vmul.f32 %v626, 1.442695
      %v676 = vpow.pop %v675
      %v677 = vmul.f32 %v627, 1.442695
      %v678 = vpow.pop %v677
      %v679 = vmul.f32 %v628, 1.442695
      %v680 = vpow.pop %v679
      %v681 = vmul.f32 %v629, 1.442695
      %v682 = vpow.pop %v681
      %v683 = vmul.f32 %v630, 1.442695
      %v684 = vpow.pop %v683
      %v685 = vmul.f32 %v631, 1.442695
      %v686 = vpow.pop %v685
      %v687 = vmul.f32 %v632, 1.442695
      %v688 = vpow.pop %v687
      %v689 = vmul.f32 %v633, 1.442695
      %v690 = vpow.pop %v689
      %v691 = vmul.f32 %v634, 1.442695
      %v692 = vpow.pop %v691
      %v693 = vmul.f32 %v635, 1.442695
      %v694 = vpow.pop %v693
      %v695 = vmul.f32 %v636, 1.442695
      %v696 = vpow.pop %v695
      %v697 = vmul.f32 %v637, 1.442695
      %v698 = vpow.pop %v697
      %v699 = vmul.f32 %v638, 1.442695
      %v700 = vpow.pop %v699
      %v701 = vmul.f32 %v639, 1.442695
      %v702 = vpow.pop %v701
      %v703 = vmul.f32 %v640, 1.442695
      %v704 = vpow.pop %v703
      %v705 = vadd.f32 %v642, 1.0
      %v706 = vadd.f32 %v644, 1.0
      %v707 = vadd.f32 %v646, 1.0
      %v708 = vadd.f32 %v648, 1.0
      %v709 = vadd.f32 %v650, 1.0
      %v710 = vadd.f32 %v652, 1.0
      %v711 = vadd.f32 %v654, 1.0
      %v712 = vadd.f32 %v656, 1.0
      %v713 = vadd.f32 %v658, 1.0
      %v714 = vadd.f32 %v660, 1.0
      %v715 = vadd.f32 %v662, 1.0
      %v716 = vadd.f32 %v664, 1.0
      %v717 = vadd.f32 %v666, 1.0
      %v718 = vadd.f32 %v668, 1.0
      %v719 = vadd.f32 %v670, 1.0
      %v720 = vadd.f32 %v672, 1.0
      %v721 = vadd.f32 %v674, 1.0
      %v722 = vadd.f32 %v676, 1.0
      %v723 = vadd.f32 %v678, 1.0
      %v724 = vadd.f32 %v680, 1.0
      %v725 = vadd.f32 %v682, 1.0
      %v726 = vadd.f32 %v684, 1.0
      %v727 = vadd.f32 %v686, 1.0
      %v728 = vadd.f32 %v688, 1.0
      %v729 = vadd.f32 %v690, 1.0
      %v730 = vadd.f32 %v692, 1.0
      %v731 = vadd.f32 %v694, 1.0
      %v732 = vadd.f32 %v696, 1.0
      %v733 = vadd.f32 %v698, 1.0
      %v734 = vadd.f32 %v700, 1.0
      %v735 = vadd.f32 %v702, 1.0
      %v736 = vadd.f32 %v704, 1.0
      %v737 = vrcp.pop %v705
      %v738 = vmul.f32 1.0, %v737
      %v739 = vrcp.pop %v706
      %v740 = vmul.f32 1.0, %v739
      %v741 = vrcp.pop %v707
      %v742 = vmul.f32 1.0, %v741
      %v743 = vrcp.pop %v708
      %v744 = vmul.f32 1.0, %v743
      %v745 = vrcp.pop %v709
      %v746 = vmul.f32 1.0, %v745
      %v747 = vrcp.pop %v710
      %v748 = vmul.f32 1.0, %v747
      %v749 = vrcp.pop %v711
      %v750 = vmul.f32 1.0, %v749
      %v751 = vrcp.pop %v712
      %v752 = vmul.f32 1.0, %v751
      %v753 = vrcp.pop %v713
      %v754 = vmul.f32 1.0, %v753
      %v755 = vrcp.pop %v714
      %v756 = vmul.f32 1.0, %v755
      %v757 = vrcp.pop %v715
      %v758 = vmul.f32 1.0, %v757
      %v759 = vrcp.pop %v716
      %v760 = vmul.f32 1.0, %v759
      %v761 = vrcp.pop %v717
      %v762 = vmul.f32 1.0, %v761
      %v763 = vrcp.pop %v718
      %v764 = vmul.f32 1.0, %v763
      %v765 = vrcp.pop %v719
      %v766 = vmul.f32 1.0, %v765
      %v767 = vrcp.pop %v720
      %v768 = vmul.f32 1.0, %v767
      %v769 = vrcp.pop %v721
      %v770 = vmul.f32 1.0, %v769
      %v771 = vrcp.pop %v722
      %v772 = vmul.f32 1.0, %v771
      %v773 = vrcp.pop %v723
      %v774 = vmul.f32 1.0, %v773
      %v775 = vrcp.pop %v724
      %v776 = vmul.f32 1.0, %v775
      %v777 = vrcp.pop %v725
      %v778 = vmul.f32 1.0, %v777
      %v779 = vrcp.pop %v726
      %v780 = vmul.f32 1.0, %v779
      %v781 = vrcp.pop %v727
      %v782 = vmul.f32 1.0, %v781
      %v783 = vrcp.pop %v728
      %v784 = vmul.f32 1.0, %v783
      %v785 = vrcp.pop %v729
      %v786 = vmul.f32 1.0, %v785
      %v787 = vrcp.pop %v730
      %v788 = vmul.f32 1.0, %v787
      %v789 = vrcp.pop %v731
      %v790 = vmul.f32 1.0, %v789
      %v791 = vrcp.pop %v732
      %v792 = vmul.f32 1.0, %v791
      %v793 = vrcp.pop %v733
      %v794 = vmul.f32 1.0, %v793
      %v795 = vrcp.pop %v734
      %v796 = vmul.f32 1.0, %v795
      %v797 = vrcp.pop %v735
      %v798 = vmul.f32 1.0, %v797
      %v799 = vrcp.pop %v736
      %v800 = vmul.f32 1.0, %v799
      %v801 = vsel %vm180, 1, 0
      %v802 = vlaneseq
      %v803 = vshrl.u32 %v802, 7
      %v804 = vsub.s32 0, %v803
      %v805 = vrot.slane %v801, %v804
      %vm806 = vcmp.eq.s32.totalorder %v805, 1
      %v807 = vsel %vm806, %v738, %v147
      %v808 = vsel %vm806, %v740, %v148
      %v809 = vsel %vm806, %v742, %v149
      %v810 = vsel %vm806, %v744, %v150
      %v811 = vsel %vm806, %v746, %v151
      %v812 = vsel %vm806, %v748, %v152
      %v813 = vsel %vm806, %v750, %v153
      %v814 = vsel %vm806, %v752, %v154
      %v815 = vsel %vm806, %v754, %v155
      %v816 = vsel %vm806, %v756, %v156
      %v817 = vsel %vm806, %v758, %v157
      %v818 = vsel %vm806, %v760, %v158
      %v819 = vsel %vm806, %v762, %v159
      %v820 = vsel %vm806, %v764, %v160
      %v821 = vsel %vm806, %v766, %v161
      %v822 = vsel %vm806, %v768, %v162
      %v823 = vsel %vm806, %v770, %v163
      %v824 = vsel %vm806, %v772, %v164
      %v825 = vsel %vm806, %v774, %v165
      %v826 = vsel %vm806, %v776, %v166
      %v827 = vsel %vm806, %v778, %v167
      %v828 = vsel %vm806, %v780, %v168
      %v829 = vsel %vm806, %v782, %v169
      %v830 = vsel %vm806, %v784, %v170
      %v831 = vsel %vm806, %v786, %v171
      %v832 = vsel %vm806, %v788, %v172
      %v833 = vsel %vm806, %v790, %v173
      %v834 = vsel %vm806, %v792, %v174
      %v835 = vsel %vm806, %v794, %v175
      %v836 = vsel %vm806, %v796, %v176
      %v837 = vsel %vm806, %v798, %v177
      %v838 = vsel %vm806, %v800, %v178
      %v839 = vmul.f32 %v147, 1.442695
      %v840 = vpow.pop %v839
      %v841 = vmul.f32 %v148, 1.442695
      %v842 = vpow.pop %v841
      %v843 = vmul.f32 %v149, 1.442695
      %v844 = vpow.pop %v843
      %v845 = vmul.f32 %v150, 1.442695
      %v846 = vpow.pop %v845
      %v847 = vmul.f32 %v151, 1.442695
      %v848 = vpow.pop %v847
      %v849 = vmul.f32 %v152, 1.442695
      %v850 = vpow.pop %v849
      %v851 = vmul.f32 %v153, 1.442695
      %v852 = vpow.pop %v851
      %v853 = vmul.f32 %v154, 1.442695
      %v854 = vpow.pop %v853
      %v855 = vmul.f32 %v155, 1.442695
      %v856 = vpow.pop %v855
      %v857 = vmul.f32 %v156, 1.442695
      %v858 = vpow.pop %v857
      %v859 = vmul.f32 %v157, 1.442695
      %v860 = vpow.pop %v859
      %v861 = vmul.f32 %v158, 1.442695
      %v862 = vpow.pop %v861
      %v863 = vmul.f32 %v159, 1.442695
      %v864 = vpow.pop %v863
      %v865 = vmul.f32 %v160, 1.442695
      %v866 = vpow.pop %v865
      %v867 = vmul.f32 %v161, 1.442695
      %v868 = vpow.pop %v867
      %v869 = vmul.f32 %v162, 1.442695
      %v870 = vpow.pop %v869
      %v871 = vmul.f32 %v163, 1.442695
      %v872 = vpow.pop %v871
      %v873 = vmul.f32 %v164, 1.442695
      %v874 = vpow.pop %v873
      %v875 = vmul.f32 %v165, 1.442695
      %v876 = vpow.pop %v875
      %v877 = vmul.f32 %v166, 1.442695
      %v878 = vpow.pop %v877
      %v879 = vmul.f32 %v167, 1.442695
      %v880 = vpow.pop %v879
      %v881 = vmul.f32 %v168, 1.442695
      %v882 = vpow.pop %v881
      %v883 = vmul.f32 %v169, 1.442695
      %v884 = vpow.pop %v883
      %v885 = vmul.f32 %v170, 1.442695
      %v886 = vpow.pop %v885
      %v887 = vmul.f32 %v171, 1.442695
      %v888 = vpow.pop %v887
      %v889 = vmul.f32 %v172, 1.442695
      %v890 = vpow.pop %v889
      %v891 = vmul.f32 %v173, 1.442695
      %v892 = vpow.pop %v891
      %v893 = vmul.f32 %v174, 1.442695
      %v894 = vpow.pop %v893
      %v895 = vmul.f32 %v175, 1.442695
      %v896 = vpow.pop %v895
      %v897 = vmul.f32 %v176, 1.442695
      %v898 = vpow.pop %v897
      %v899 = vmul.f32 %v177, 1.442695
      %v900 = vpow.pop %v899
      %v901 = vmul.f32 %v178, 1.442695
      %v902 = vpow.pop %v901
      %v903 = vlaneseq
      %v904 = vshrl.u32 %v903, 7
      %v905 = vsub.s32 0, %v904
      %v906 = vrot.slane %v183, %v905
      %v907 = vmul.f32 %v840, %v906
      %v908 = vmul.f32 %v842, %v906
      %v909 = vmul.f32 %v844, %v906
      %v910 = vmul.f32 %v846, %v906
      %v911 = vmul.f32 %v848, %v906
      %v912 = vmul.f32 %v850, %v906
      %v913 = vmul.f32 %v852, %v906
      %v914 = vmul.f32 %v854, %v906
      %v915 = vmul.f32 %v856, %v906
      %v916 = vmul.f32 %v858, %v906
      %v917 = vmul.f32 %v860, %v906
      %v918 = vmul.f32 %v862, %v906
      %v919 = vmul.f32 %v864, %v906
      %v920 = vmul.f32 %v866, %v906
      %v921 = vmul.f32 %v868, %v906
      %v922 = vmul.f32 %v870, %v906
      %v923 = vmul.f32 %v872, %v906
      %v924 = vmul.f32 %v874, %v906
      %v925 = vmul.f32 %v876, %v906
      %v926 = vmul.f32 %v878, %v906
      %v927 = vmul.f32 %v880, %v906
      %v928 = vmul.f32 %v882, %v906
      %v929 = vmul.f32 %v884, %v906
      %v930 = vmul.f32 %v886, %v906
      %v931 = vmul.f32 %v888, %v906
      %v932 = vmul.f32 %v890, %v906
      %v933 = vmul.f32 %v892, %v906
      %v934 = vmul.f32 %v894, %v906
      %v935 = vmul.f32 %v896, %v906
      %v936 = vmul.f32 %v898, %v906
      %v937 = vmul.f32 %v900, %v906
      %v938 = vmul.f32 %v902, %v906
      %v939 = vsel %vm182, 1, 0
      %v940 = vlaneseq
      %v941 = vshrl.u32 %v940, 7
      %v942 = vsub.s32 0, %v941
      %v943 = vrot.slane %v939, %v942
      %vm944 = vcmp.eq.s32.totalorder %v943, 1
      %v945 = vsel %vm944, %v907, %v807
      %v946 = vsel %vm944, %v908, %v808
      %v947 = vsel %vm944, %v909, %v809
      %v948 = vsel %vm944, %v910, %v810
      %v949 = vsel %vm944, %v911, %v811
      %v950 = vsel %vm944, %v912, %v812
      %v951 = vsel %vm944, %v913, %v813
      %v952 = vsel %vm944, %v914, %v814
      %v953 = vsel %vm944, %v915, %v815
      %v954 = vsel %vm944, %v916, %v816
      %v955 = vsel %vm944, %v917, %v817
      %v956 = vsel %vm944, %v918, %v818
      %v957 = vsel %vm944, %v919, %v819
      %v958 = vsel %vm944, %v920, %v820
      %v959 = vsel %vm944, %v921, %v821
      %v960 = vsel %vm944, %v922, %v822
      %v961 = vsel %vm944, %v923, %v823
      %v962 = vsel %vm944, %v924, %v824
      %v963 = vsel %vm944, %v925, %v825
      %v964 = vsel %vm944, %v926, %v826
      %v965 = vsel %vm944, %v927, %v827
      %v966 = vsel %vm944, %v928, %v828
      %v967 = vsel %vm944, %v929, %v829
      %v968 = vsel %vm944, %v930, %v830
      %v969 = vsel %vm944, %v931, %v831
      %v970 = vsel %vm944, %v932, %v832
      %v971 = vsel %vm944, %v933, %v833
      %v972 = vsel %vm944, %v934, %v834
      %v973 = vsel %vm944, %v935, %v835
      %v974 = vsel %vm944, %v936, %v836
      %v975 = vsel %vm944, %v937, %v837
      %v976 = vsel %vm944, %v938, %v838
      %v977 = vlaneseq
      %v978 = vshrl.u32 %v977, 7
      %v979 = vsub.s32 0, %v978
      %v980 = vrot.slane %v184, %v979
      %v981 = vmul.f32 %v577, %v980
      %v982 = vmul.f32 %v578, %v980
      %v983 = vmul.f32 %v579, %v980
      %v984 = vmul.f32 %v580, %v980
      %v985 = vmul.f32 %v581, %v980
      %v986 = vmul.f32 %v582, %v980
      %v987 = vmul.f32 %v583, %v980
      %v988 = vmul.f32 %v584, %v980
      %v989 = vmul.f32 %v585, %v980
      %v990 = vmul.f32 %v586, %v980
      %v991 = vmul.f32 %v587, %v980
      %v992 = vmul.f32 %v588, %v980
      %v993 = vmul.f32 %v589, %v980
      %v994 = vmul.f32 %v590, %v980
      %v995 = vmul.f32 %v591, %v980
      %v996 = vmul.f32 %v592, %v980
      %v997 = vmul.f32 %v593, %v980
      %v998 = vmul.f32 %v594, %v980
      %v999 = vmul.f32 %v595, %v980
      %v1000 = vmul.f32 %v596, %v980
      %v1001 = vmul.f32 %v597, %v980
      %v1002 = vmul.f32 %v598, %v980
      %v1003 = vmul.f32 %v599, %v980
      %v1004 = vmul.f32 %v600, %v980
      %v1005 = vmul.f32 %v601, %v980
      %v1006 = vmul.f32 %v602, %v980
      %v1007 = vmul.f32 %v603, %v980
      %v1008 = vmul.f32 %v604, %v980
      %v1009 = vmul.f32 %v605, %v980
      %v1010 = vmul.f32 %v606, %v980
      %v1011 = vmul.f32 %v607, %v980
      %v1012 = vmul.f32 %v608, %v980
      %v1013 = vadd.f32 %v945, %v981
      %v1014 = vadd.f32 %v946, %v982
      %v1015 = vadd.f32 %v947, %v983
      %v1016 = vadd.f32 %v948, %v984
      %v1017 = vadd.f32 %v949, %v985
      %v1018 = vadd.f32 %v950, %v986
      %v1019 = vadd.f32 %v951, %v987
      %v1020 = vadd.f32 %v952, %v988
      %v1021 = vadd.f32 %v953, %v989
      %v1022 = vadd.f32 %v954, %v990
      %v1023 = vadd.f32 %v955, %v991
      %v1024 = vadd.f32 %v956, %v992
      %v1025 = vadd.f32 %v957, %v993
      %v1026 = vadd.f32 %v958, %v994
      %v1027 = vadd.f32 %v959, %v995
      %v1028 = vadd.f32 %v960, %v996
      %v1029 = vadd.f32 %v961, %v997
      %v1030 = vadd.f32 %v962, %v998
      %v1031 = vadd.f32 %v963, %v999
      %v1032 = vadd.f32 %v964, %v1000
      %v1033 = vadd.f32 %v965, %v1001
      %v1034 = vadd.f32 %v966, %v1002
      %v1035 = vadd.f32 %v967, %v1003
      %v1036 = vadd.f32 %v968, %v1004
      %v1037 = vadd.f32 %v969, %v1005
      %v1038 = vadd.f32 %v970, %v1006
      %v1039 = vadd.f32 %v971, %v1007
      %v1040 = vadd.f32 %v972, %v1008
      %v1041 = vadd.f32 %v973, %v1009
      %v1042 = vadd.f32 %v974, %v1010
      %v1043 = vadd.f32 %v975, %v1011
      %v1044 = vadd.f32 %v976, %v1012
      %v1045 = vlaneseq
      %v1046 = vshrl.u32 %v1045, 7
      %v1047 = vsub.s32 0, %v1046
      %v1048 = vrot.slane %v185, %v1047
      %v1049 = vmul.f32 %v513, %v1048
      %v1050 = vmul.f32 %v514, %v1048
      %v1051 = vmul.f32 %v515, %v1048
      %v1052 = vmul.f32 %v516, %v1048
      %v1053 = vmul.f32 %v517, %v1048
      %v1054 = vmul.f32 %v518, %v1048
      %v1055 = vmul.f32 %v519, %v1048
      %v1056 = vmul.f32 %v520, %v1048
      %v1057 = vmul.f32 %v521, %v1048
      %v1058 = vmul.f32 %v522, %v1048
      %v1059 = vmul.f32 %v523, %v1048
      %v1060 = vmul.f32 %v524, %v1048
      %v1061 = vmul.f32 %v525, %v1048
      %v1062 = vmul.f32 %v526, %v1048
      %v1063 = vmul.f32 %v527, %v1048
      %v1064 = vmul.f32 %v528, %v1048
      %v1065 = vmul.f32 %v529, %v1048
      %v1066 = vmul.f32 %v530, %v1048
      %v1067 = vmul.f32 %v531, %v1048
      %v1068 = vmul.f32 %v532, %v1048
      %v1069 = vmul.f32 %v533, %v1048
      %v1070 = vmul.f32 %v534, %v1048
      %v1071 = vmul.f32 %v535, %v1048
      %v1072 = vmul.f32 %v536, %v1048
      %v1073 = vmul.f32 %v537, %v1048
      %v1074 = vmul.f32 %v538, %v1048
      %v1075 = vmul.f32 %v539, %v1048
      %v1076 = vmul.f32 %v540, %v1048
      %v1077 = vmul.f32 %v541, %v1048
      %v1078 = vmul.f32 %v542, %v1048
      %v1079 = vmul.f32 %v543, %v1048
      %v1080 = vmul.f32 %v544, %v1048
      %v1081 = vadd.f32 %v1013, %v1049
      %v1082 = vadd.f32 %v1014, %v1050
      %v1083 = vadd.f32 %v1015, %v1051
      %v1084 = vadd.f32 %v1016, %v1052
      %v1085 = vadd.f32 %v1017, %v1053
      %v1086 = vadd.f32 %v1018, %v1054
      %v1087 = vadd.f32 %v1019, %v1055
      %v1088 = vadd.f32 %v1020, %v1056
      %v1089 = vadd.f32 %v1021, %v1057
      %v1090 = vadd.f32 %v1022, %v1058
      %v1091 = vadd.f32 %v1023, %v1059
      %v1092 = vadd.f32 %v1024, %v1060
      %v1093 = vadd.f32 %v1025, %v1061
      %v1094 = vadd.f32 %v1026, %v1062
      %v1095 = vadd.f32 %v1027, %v1063
      %v1096 = vadd.f32 %v1028, %v1064
      %v1097 = vadd.f32 %v1029, %v1065
      %v1098 = vadd.f32 %v1030, %v1066
      %v1099 = vadd.f32 %v1031, %v1067
      %v1100 = vadd.f32 %v1032, %v1068
      %v1101 = vadd.f32 %v1033, %v1069
      %v1102 = vadd.f32 %v1034, %v1070
      %v1103 = vadd.f32 %v1035, %v1071
      %v1104 = vadd.f32 %v1036, %v1072
      %v1105 = vadd.f32 %v1037, %v1073
      %v1106 = vadd.f32 %v1038, %v1074
      %v1107 = vadd.f32 %v1039, %v1075
      %v1108 = vadd.f32 %v1040, %v1076
      %v1109 = vadd.f32 %v1041, %v1077
      %v1110 = vadd.f32 %v1042, %v1078
      %v1111 = vadd.f32 %v1043, %v1079
      %v1112 = vadd.f32 %v1044, %v1080
      %v1113 = vlaneseq
      %v1114 = vshrl.u32 %v1113, 7
      %v1115 = vsub.s32 0, %v1114
      %v1116 = vrot.slane %v186, %v1115
      %v1117 = vmul.f32 %v1081, %v1116
      %v1118 = vmul.f32 %v1082, %v1116
      %v1119 = vmul.f32 %v1083, %v1116
      %v1120 = vmul.f32 %v1084, %v1116
      %v1121 = vmul.f32 %v1085, %v1116
      %v1122 = vmul.f32 %v1086, %v1116
      %v1123 = vmul.f32 %v1087, %v1116
      %v1124 = vmul.f32 %v1088, %v1116
      %v1125 = vmul.f32 %v1089, %v1116
      %v1126 = vmul.f32 %v1090, %v1116
      %v1127 = vmul.f32 %v1091, %v1116
      %v1128 = vmul.f32 %v1092, %v1116
      %v1129 = vmul.f32 %v1093, %v1116
      %v1130 = vmul.f32 %v1094, %v1116
      %v1131 = vmul.f32 %v1095, %v1116
      %v1132 = vmul.f32 %v1096, %v1116
      %v1133 = vmul.f32 %v1097, %v1116
      %v1134 = vmul.f32 %v1098, %v1116
      %v1135 = vmul.f32 %v1099, %v1116
      %v1136 = vmul.f32 %v1100, %v1116
      %v1137 = vmul.f32 %v1101, %v1116
      %v1138 = vmul.f32 %v1102, %v1116
      %v1139 = vmul.f32 %v1103, %v1116
      %v1140 = vmul.f32 %v1104, %v1116
      %v1141 = vmul.f32 %v1105, %v1116
      %v1142 = vmul.f32 %v1106, %v1116
      %v1143 = vmul.f32 %v1107, %v1116
      %v1144 = vmul.f32 %v1108, %v1116
      %v1145 = vmul.f32 %v1109, %v1116
      %v1146 = vmul.f32 %v1110, %v1116
      %v1147 = vmul.f32 %v1111, %v1116
      %v1148 = vmul.f32 %v1112, %v1116
      %1149 = vst [vmem:[%s145] sm:$0xff] %v1117
      %1150 = vst [vmem:[%s145 + $0x8] sm:$0xff] %v1118
      %1151 = vst [vmem:[%s145 + $0x10] sm:$0xff] %v1119
      %1152 = vst [vmem:[%s145 + $0x18] sm:$0xff] %v1120
      %1153 = vst [vmem:[%s145 + $0x20] sm:$0xff] %v1121
      %1154 = vst [vmem:[%s145 + $0x28] sm:$0xff] %v1122
      %1155 = vst [vmem:[%s145 + $0x30] sm:$0xff] %v1123
      %1156 = vst [vmem:[%s145 + $0x38] sm:$0xff] %v1124
      %1157 = vst [vmem:[%s145 + $0x40] sm:$0xff] %v1125
      %1158 = vst [vmem:[%s145 + $0x48] sm:$0xff] %v1126
      %1159 = vst [vmem:[%s145 + $0x50] sm:$0xff] %v1127
      %1160 = vst [vmem:[%s145 + $0x58] sm:$0xff] %v1128
      %1161 = vst [vmem:[%s145 + $0x60] sm:$0xff] %v1129
      %1162 = vst [vmem:[%s145 + $0x68] sm:$0xff] %v1130
      %1163 = vst [vmem:[%s145 + $0x70] sm:$0xff] %v1131
      %1164 = vst [vmem:[%s145 + $0x78] sm:$0xff] %v1132
      %1165 = vst [vmem:[%s145 + $0x80] sm:$0xff] %v1133
      %1166 = vst [vmem:[%s145 + $0x88] sm:$0xff] %v1134
      %1167 = vst [vmem:[%s145 + $0x90] sm:$0xff] %v1135
      %1168 = vst [vmem:[%s145 + $0x98] sm:$0xff] %v1136
      %1169 = vst [vmem:[%s145 + $0xa0] sm:$0xff] %v1137
      %1170 = vst [vmem:[%s145 + $0xa8] sm:$0xff] %v1138
      %1171 = vst [vmem:[%s145 + $0xb0] sm:$0xff] %v1139
      %1172 = vst [vmem:[%s145 + $0xb8] sm:$0xff] %v1140
      %1173 = vst [vmem:[%s145 + $0xc0] sm:$0xff] %v1141
      %1174 = vst [vmem:[%s145 + $0xc8] sm:$0xff] %v1142
      %1175 = vst [vmem:[%s145 + $0xd0] sm:$0xff] %v1143
      %1176 = vst [vmem:[%s145 + $0xd8] sm:$0xff] %v1144
      %1177 = vst [vmem:[%s145 + $0xe0] sm:$0xff] %v1145
      %1178 = vst [vmem:[%s145 + $0xe8] sm:$0xff] %v1146
      %1179 = vst [vmem:[%s145 + $0xf0] sm:$0xff] %v1147
      %1180 = vst [vmem:[%s145 + $0xf8] sm:$0xff] %v1148
      %s1181 = smul.u32 32, %s13
      %p1182 = scmp.lt.s32.totalorder %s1181, 63
      %s1183 = scalar_select %p1182, %s1181, 63
      %s1184 = smul.addr %s1183, 8
      %s1185 = scalar_lea.vmem %s2, %s1184
      // Predicated region
      $region29: #{_lambda_.19} parent=27 // pred_check
        %p1186 = pneg %p78
      $region30: #{_lambda_.19} parent=27 // pred_check_branch
        %1188 = sbr.rel (%p1186) target = $region32
      $region31: #{_lambda_.19} parent=27 // pred_region
        %s1189 = smul.u32 32, %s13
      $region32: #{_lambda_.19} parent=27 // pred_fallthru
        _
    $region28: #{_lambda_.19} parent=5 // pred_fallthru
      _
    %p1190 = scmp.le.s32.totalorder 2, %s8
    // Predicated region
    $region33: #{_lambda_.19} parent=5 // pred_check
      %p1191 = pneg %p1190
    $region34: #{_lambda_.19} parent=5 // pred_check_branch
      %1193 = sbr.rel (%p1191) target = $region36
    $region35: #{_lambda_.19} parent=5 // pred_region
      %s1194 = ssub.s32 %s8, 2
      // Predicated region
      $region37: #{_lambda_.19} parent=35 // pred_check
        %p1195 = pneg %p84
      $region38: #{_lambda_.19} parent=35 // pred_check_branch
        %1197 = sbr.rel (%p1195) target = $region40
      $region39: #{_lambda_.19} parent=35 // pred_region
        %s1198 = smul.u32 32, %s14
        %p1199 = scmp.lt.s32.totalorder %s1198, 63
        %s1200 = scalar_select %p1199, %s1198, 63
        %s1201 = smul.addr %s1200, 8
        %s1202 = scalar_lea.vmem %s2, %s1201
      $region40: #{_lambda_.19} parent=35 // pred_fallthru
        _
    $region36: #{_lambda_.19} parent=5 // pred_fallthru
      _
  $region6: #{_lambda_.19} parent=0 // loop_footer
    %s12 = sadd.s32 1, %s8
  $region7: #{_lambda_.19} parent=0 // loop_footer_branch
    %7 = sbr.rel target = $region3
  $region8: #{_lambda_.19} parent=0 // loop_exit
    _

</llo_original>
